<compile_context>
chip_gen: v6e
topology: v6e:2x2x1
jax: 0.10.0
libtpu: 0.0.40
codegen_flags: <defaults>
</compile_context>

<pallas_src>
import functools

import jax
import jax.numpy as jnp
from jax import lax
from jax.experimental import pallas as pl
from jax.experimental.pallas import tpu as pltpu


def _round_up(x, m):
    return (x + m - 1) // m * m


def basic_block_kernel(x_ref, w1_ref, b1_ref, w2_ref, b2_ref, o_ref,
                       xpad_ref, mid_ref, *, Nb, H, W, C):
    """One grid step == Nb batch elements.

    x_ref   : (Nb, H, W, C)     f32   unpadded input (NHWC)
    w1_ref  : (9, C, C)         bf16  conv1 weights (BN1 scale folded), tap-major
    b1_ref  : (1, C)            f32   BN1 folded bias
    w2_ref  : (9, C, C)         bf16  conv2 weights (BN2 scale folded), tap-major
    b2_ref  : (1, C)            f32   BN2 folded bias
    o_ref   : (Nb, H, W, C)     f32   output
    xpad_ref: (Nb, H+2, Wp, C)  bf16  scratch: spatially padded input
    mid_ref : (Nb, H+2, Wp, C)  bf16  scratch: padded conv1 activation
    (Wp = W+2 rounded up to a sublane multiple; columns >= W+2 are never read.)
    """
    M = Nb * H * W
    Wp = xpad_ref.shape[2]

    # Zero only the 1-pixel halo border (the interior is fully overwritten
    # every step).  Not gated on program_id == 0 so the kernel stays correct
    # when the 'parallel' batch axis is sharded across TensorCores (each core
    # has its own scratch instance).
    # TODO(synk): on v5e (single vst slot) audit whether these small masked
    #             column stores saturate vst; on v6e/v7x they are noise.
    def zero_border(ref):
        ref[:, 0:1, :, :] = jnp.zeros((Nb, 1, Wp, C), jnp.bfloat16)
        ref[:, H + 1:H + 2, :, :] = jnp.zeros((Nb, 1, Wp, C), jnp.bfloat16)
        ref[:, :, 0:1, :] = jnp.zeros((Nb, H + 2, 1, C), jnp.bfloat16)
        ref[:, :, W + 1:W + 2, :] = jnp.zeros((Nb, H + 2, 1, C), jnp.bfloat16)

    zero_border(xpad_ref)
    zero_border(mid_ref)

    def conv3x3(pad_ref, w_ref):
        """3x3 'SAME' conv of a padded bf16 scratch with tap-major weights."""
        if C % 128 == 0:
            # Lane-aligned channels: copy-free lane concat, one MXU matmul
            # with K = 9*C (keeps the 256-deep MXU on v6e/v7x fed).
            cols = []
            for kh in range(3):
                for kw in range(3):
                    cols.append(
                        pad_ref[:, kh:kh + H, kw:kw + W, :].reshape(M, C))
            p = jnp.concatenate(cols, axis=-1)                 # (M, 9*C) bf16
            return jnp.dot(p, w_ref[...].reshape(9 * C, C),
                           preferred_element_type=jnp.float32)
        # Small / lane-unaligned channels: 9-tap accumulate.  Avoids the
        # lane-misaligned concat and the 9x-replicated slab entirely.
        acc = jnp.zeros((M, C), jnp.float32)
        for kh in range(3):
            for kw in range(3):
                piece = pad_ref[:, kh:kh + H, kw:kw + W, :].reshape(M, C)
                acc = acc + jnp.dot(piece, w_ref[kh * 3 + kw],
                                    preferred_element_type=jnp.float32)
        return acc

    x = x_ref[...]                                             # (Nb,H,W,C) f32
    # Single f32->bf16 cast at the scratch store (not on the 9 im2col reads).
    xpad_ref[:, 1:H + 1, 1:W + 1, :] = x.astype(jnp.bfloat16)

    # ---- conv1 (+ folded BN1 scale) -> bias -> ReLU, f32 accumulation ----
    h1 = jnp.maximum(conv3x3(xpad_ref, w1_ref) + b1_ref[0], 0.0)
    mid_ref[:, 1:H + 1, 1:W + 1, :] = h1.reshape(Nb, H, W, C).astype(jnp.bfloat16)

    # ---- conv2 (+ folded BN2 scale) -> bias ----
    h2 = conv3x3(mid_ref, w2_ref) + b2_ref[0]

    # ---- identity residual (f32, from the unpadded input) + final ReLU ----
    out = jnp.maximum(h2 + x.reshape(M, C), 0.0)
    o_ref[...] = out.reshape(Nb, H, W, C).astype(o_ref.dtype)


def _pick_block_batch(N, H, W, C):
    """Batch elements per grid step: largest divisor of N that keeps >= 2 grid
    steps (so the 'parallel' batch axis still shards across 2 TensorCores /
    megacore) and a modest per-step VMEM footprint."""
    Wp = _round_up(W + 2, 8)
    lanes = _round_up(C, 128)                       # lane padding of VMEM tiles
    per_img = (2 * (H + 2) * Wp * lanes * 2         # two bf16 halo scratches
               + 2 * 2 * H * W * lanes * 4)         # double-buffered f32 in/out
    budget = 16 * 1024 * 1024
    best = 1
    for nb in range(1, N + 1):
        if N % nb != 0:
            continue
        if N >= 2 and N // nb < 2:
            continue
        if nb * per_img > budget:
            continue
        best = nb
    return best


@jax.jit
def basic_block(x_nchw, w1, s1, b1, w2, s2, b2):
    """x_nchw: (N, C, H, W) f32.  w*: (3,3,Cin,Cout) HWIO.  s*/b*: folded BN (C,)."""
    N, C, H, W = x_nchw.shape
    # Identity residual => inplanes == planes, stride == 1, no downsample.
    assert w1.shape == (3, 3, C, C), "identity BasicBlock needs Cin == Cout (conv1)"
    assert w2.shape == (3, 3, C, C), "identity BasicBlock needs Cin == Cout (conv2)"

    # NCHW -> NHWC (channels on the lane axis) for the kernel.
    # TODO(synk): an NHWC-native API across blocks would avoid this HBM pass.
    x = jnp.transpose(x_nchw, (0, 2, 3, 1))

    # Fold the BN scale into the conv weights (only the bias add stays in-
    # kernel); tap-major (9, Cin, Cout) layout, bf16 for the MXU.
    w1f = (w1 * s1[None, None, None, :]).reshape(9, C, C).astype(jnp.bfloat16)
    w2f = (w2 * s2[None, None, None, :]).reshape(9, C, C).astype(jnp.bfloat16)
    b1_2d = b1.reshape(1, C).astype(jnp.float32)
    b2_2d = b2.reshape(1, C).astype(jnp.float32)

    nb = _pick_block_batch(N, H, W, C)
    Wp = _round_up(W + 2, 8)
    kernel = functools.partial(basic_block_kernel, Nb=nb, H=H, W=W, C=C)

    out_nhwc = pl.pallas_call(
        kernel,
        out_shape=jax.ShapeDtypeStruct((N, H, W, C), x.dtype),
        grid_spec=pltpu.PrefetchScalarGridSpec(
            num_scalar_prefetch=0,
            grid=(N // nb,),
            in_specs=[
                pl.BlockSpec((nb, H, W, C), lambda n: (n, 0, 0, 0)),
                pl.BlockSpec((9, C, C), lambda n: (0, 0, 0)),
                pl.BlockSpec((1, C), lambda n: (0, 0)),
                pl.BlockSpec((9, C, C), lambda n: (0, 0, 0)),
                pl.BlockSpec((1, C), lambda n: (0, 0)),
            ],
            out_specs=pl.BlockSpec((nb, H, W, C), lambda n: (n, 0, 0, 0)),
            scratch_shapes=[
                pltpu.VMEM((nb, H + 2, Wp, C), jnp.bfloat16),  # padded input
                pltpu.VMEM((nb, H + 2, Wp, C), jnp.bfloat16),  # padded conv1 act
            ],
        ),
        compiler_params=pltpu.CompilerParams(
            # Batch-block axis is independent -> megacore / 2-TC sharding.
            dimension_semantics=("parallel",),
            # Tiny at these shapes; re-derive when the row-tile grid axis for
            # real ResNet shapes lands (v7x: 64 MiB physical VMEM).
            vmem_limit_bytes=32 * 1024 * 1024,
        ),
    )(x, w1f, b1_2d, w2f, b2_2d)

    return jnp.transpose(out_nhwc, (0, 3, 1, 2))   # -> NCHW


def basic_block_reference(x_nchw, w1, s1, b1, w2, s2, b2):
    """Pure-JAX f32 reference (same eval-mode BN folding)."""
    x = jnp.transpose(x_nchw, (0, 2, 3, 1))
    dn = ('NHWC', 'HWIO', 'NHWC')
    h = lax.conv_general_dilated(x, w1, (1, 1), 'SAME', dimension_numbers=dn)
    h = jnp.maximum(h * s1 + b1, 0.0)
    h = lax.conv_general_dilated(h, w2, (1, 1), 'SAME', dimension_numbers=dn)
    h = h * s2 + b2
    out = jnp.maximum(h + x, 0.0)
    return jnp.transpose(out, (0, 3, 1, 2))


def fold_bn(gamma, beta, running_mean, running_var, eps=1e-5):
    scale = gamma / jnp.sqrt(running_var + eps)
    bias = beta - running_mean * scale
    return scale, bias


if __name__ == "__main__":
    key = jax.random.PRNGKey(0)
    N, C, H, W = 2, 4, 16, 16          # inplanes = planes = 4, stride = 1
    keys = jax.random.split(key, 11)

    x = jax.random.normal(keys[0], (N, C, H, W), jnp.float32)

    # conv weights in HWIO (kh, kw, Cin, Cout)
    w1 = 0.1 * jax.random.normal(keys[1], (3, 3, C, C), jnp.float32)
    w2 = 0.1 * jax.random.normal(keys[2], (3, 3, C, C), jnp.float32)

    # BatchNorm parameters / running stats (eval mode)
    g1 = 1.0 + 0.1 * jax.random.normal(keys[3], (C,), jnp.float32)
    be1 = 0.1 * jax.random.normal(keys[4], (C,), jnp.float32)
    rm1 = 0.1 * jax.random.normal(keys[5], (C,), jnp.float32)
    rv1 = 0.5 + jax.random.uniform(keys[6], (C,), jnp.float32)
    g2 = 1.0 + 0.1 * jax.random.normal(keys[7], (C,), jnp.float32)
    be2 = 0.1 * jax.random.normal(keys[8], (C,), jnp.float32)
    rm2 = 0.1 * jax.random.normal(keys[9], (C,), jnp.float32)
    rv2 = 0.5 + jax.random.uniform(keys[10], (C,), jnp.float32)

    s1, b1 = fold_bn(g1, be1, rm1, rv1)
    s2, b2 = fold_bn(g2, be2, rm2, rv2)

    out = basic_block(x, w1, s1, b1, w2, s2, b2)
    out = jax.block_until_ready(out)

    ref = basic_block_reference(x, w1, s1, b1, w2, s2, b2)
    assert out.shape == (N, C, H, W)
    # bf16 MXU inputs (f32 accumulation) -> slightly relaxed tolerance.
    assert jnp.allclose(out, ref, atol=5e-2, rtol=5e-2), "mismatch vs reference"

    print("KERNEL_OK")
</pallas_src>

<mosaic_0001>
module attributes {stable_mosaic.version = 11 : i64} {
  func.func @basic_block_kernel(%arg0: i32, %arg1: memref<1x16x16x4xf32, #tpu.memory_space<vmem>>, %arg2: memref<9x4x4xbf16, #tpu.memory_space<vmem>>, %arg3: memref<1x4xf32, #tpu.memory_space<vmem>>, %arg4: memref<9x4x4xbf16, #tpu.memory_space<vmem>>, %arg5: memref<1x4xf32, #tpu.memory_space<vmem>>, %arg6: memref<1x16x16x4xf32, #tpu.memory_space<vmem>>, %arg7: memref<1x18x24x4xbf16, #tpu.memory_space<vmem>>, %arg8: memref<1x18x24x4xbf16, #tpu.memory_space<vmem>>) attributes {dimension_semantics = [#tpu.dimension_semantics<parallel>], iteration_bounds = array<i64: 2>, scalar_prefetch = 0 : i64, scratch_operands = 2 : i64, tpu.core_type = #tpu.core_type<tc>, window_params = [{transform_indices = @transform_0, window_bounds = array<i64: 1, 16, 16, 4>}, {pipeline_mode = #tpu.pipeline_mode<synchronous>, transform_indices = @transform_1, window_bounds = array<i64: 9, 4, 4>}, {pipeline_mode = #tpu.pipeline_mode<synchronous>, transform_indices = @transform_2, window_bounds = array<i64: 1, 4>}, {pipeline_mode = #tpu.pipeline_mode<synchronous>, transform_indices = @transform_3, window_bounds = array<i64: 9, 4, 4>}, {pipeline_mode = #tpu.pipeline_mode<synchronous>, transform_indices = @transform_4, window_bounds = array<i64: 1, 4>}, {transform_indices = @transform_5, window_bounds = array<i64: 1, 16, 16, 4>}]} {
    %cst = arith.constant 0.000000e+00 : bf16
    %0 = vector.broadcast %cst : bf16 to vector<1x1x24x4xbf16>
    %c0 = arith.constant 0 : index
    %c0_0 = arith.constant 0 : index
    %c0_1 = arith.constant 0 : index
    %c0_2 = arith.constant 0 : index
    %1 = vector.load %arg7[%c0, %c0_0, %c0_1, %c0_2] : memref<1x18x24x4xbf16, #tpu.memory_space<vmem>>, vector<1x1x24x4xbf16>
    tpu.vector_store %arg7[%c0, %c0_0, %c0_1, %c0_2], %0 {strides = array<i32>} : memref<1x18x24x4xbf16, #tpu.memory_space<vmem>>, vector<1x1x24x4xbf16>,
    %cst_3 = arith.constant 0.000000e+00 : bf16
    %2 = vector.broadcast %cst_3 : bf16 to vector<1x1x24x4xbf16>
    %c0_4 = arith.constant 0 : index
    %c17 = arith.constant 17 : index
    %c0_5 = arith.constant 0 : index
    %c0_6 = arith.constant 0 : index
    %3 = vector.load %arg7[%c0_4, %c17, %c0_5, %c0_6] : memref<1x18x24x4xbf16, #tpu.memory_space<vmem>>, vector<1x1x24x4xbf16>
    tpu.vector_store %arg7[%c0_4, %c17, %c0_5, %c0_6], %2 {strides = array<i32>} : memref<1x18x24x4xbf16, #tpu.memory_space<vmem>>, vector<1x1x24x4xbf16>,
    %cst_7 = arith.constant 0.000000e+00 : bf16
    %4 = vector.broadcast %cst_7 : bf16 to vector<1x18x1x4xbf16>
    %c0_8 = arith.constant 0 : index
    %c0_9 = arith.constant 0 : index
    %c0_10 = arith.constant 0 : index
    %c0_11 = arith.constant 0 : index
    %5 = vector.load %arg7[%c0_8, %c0_9, %c0_10, %c0_11] : memref<1x18x24x4xbf16, #tpu.memory_space<vmem>>, vector<1x18x1x4xbf16>
    tpu.vector_store %arg7[%c0_8, %c0_9, %c0_10, %c0_11], %4 {strides = array<i32>} : memref<1x18x24x4xbf16, #tpu.memory_space<vmem>>, vector<1x18x1x4xbf16>,
    %cst_12 = arith.constant 0.000000e+00 : bf16
    %6 = vector.broadcast %cst_12 : bf16 to vector<1x18x1x4xbf16>
    %c0_13 = arith.constant 0 : index
    %c0_14 = arith.constant 0 : index
    %c17_15 = arith.constant 17 : index
    %c0_16 = arith.constant 0 : index
    %7 = vector.load %arg7[%c0_13, %c0_14, %c17_15, %c0_16] : memref<1x18x24x4xbf16, #tpu.memory_space<vmem>>, vector<1x18x1x4xbf16>
    tpu.vector_store %arg7[%c0_13, %c0_14, %c17_15, %c0_16], %6 {strides = array<i32>} : memref<1x18x24x4xbf16, #tpu.memory_space<vmem>>, vector<1x18x1x4xbf16>,
    %cst_17 = arith.constant 0.000000e+00 : bf16
    %8 = vector.broadcast %cst_17 : bf16 to vector<1x1x24x4xbf16>
    %c0_18 = arith.constant 0 : index
    %c0_19 = arith.constant 0 : index
    %c0_20 = arith.constant 0 : index
    %c0_21 = arith.constant 0 : index
    %9 = vector.load %arg8[%c0_18, %c0_19, %c0_20, %c0_21] : memref<1x18x24x4xbf16, #tpu.memory_space<vmem>>, vector<1x1x24x4xbf16>
    tpu.vector_store %arg8[%c0_18, %c0_19, %c0_20, %c0_21], %8 {strides = array<i32>} : memref<1x18x24x4xbf16, #tpu.memory_space<vmem>>, vector<1x1x24x4xbf16>,
    %cst_22 = arith.constant 0.000000e+00 : bf16
    %10 = vector.broadcast %cst_22 : bf16 to vector<1x1x24x4xbf16>
    %c0_23 = arith.constant 0 : index
    %c17_24 = arith.constant 17 : index
    %c0_25 = arith.constant 0 : index
    %c0_26 = arith.constant 0 : index
    %11 = vector.load %arg8[%c0_23, %c17_24, %c0_25, %c0_26] : memref<1x18x24x4xbf16, #tpu.memory_space<vmem>>, vector<1x1x24x4xbf16>
    tpu.vector_store %arg8[%c0_23, %c17_24, %c0_25, %c0_26], %10 {strides = array<i32>} : memref<1x18x24x4xbf16, #tpu.memory_space<vmem>>, vector<1x1x24x4xbf16>,
    %cst_27 = arith.constant 0.000000e+00 : bf16
    %12 = vector.broadcast %cst_27 : bf16 to vector<1x18x1x4xbf16>
    %c0_28 = arith.constant 0 : index
    %c0_29 = arith.constant 0 : index
    %c0_30 = arith.constant 0 : index
    %c0_31 = arith.constant 0 : index
    %13 = vector.load %arg8[%c0_28, %c0_29, %c0_30, %c0_31] : memref<1x18x24x4xbf16, #tpu.memory_space<vmem>>, vector<1x18x1x4xbf16>
    tpu.vector_store %arg8[%c0_28, %c0_29, %c0_30, %c0_31], %12 {strides = array<i32>} : memref<1x18x24x4xbf16, #tpu.memory_space<vmem>>, vector<1x18x1x4xbf16>,
    %cst_32 = arith.constant 0.000000e+00 : bf16
    %14 = vector.broadcast %cst_32 : bf16 to vector<1x18x1x4xbf16>
    %c0_33 = arith.constant 0 : index
    %c0_34 = arith.constant 0 : index
    %c17_35 = arith.constant 17 : index
    %c0_36 = arith.constant 0 : index
    %15 = vector.load %arg8[%c0_33, %c0_34, %c17_35, %c0_36] : memref<1x18x24x4xbf16, #tpu.memory_space<vmem>>, vector<1x18x1x4xbf16>
    tpu.vector_store %arg8[%c0_33, %c0_34, %c17_35, %c0_36], %14 {strides = array<i32>} : memref<1x18x24x4xbf16, #tpu.memory_space<vmem>>, vector<1x18x1x4xbf16>,
    %c0_37 = arith.constant 0 : index
    %c0_38 = arith.constant 0 : index
    %c0_39 = arith.constant 0 : index
    %c0_40 = arith.constant 0 : index
    %16 = vector.load %arg1[%c0_37, %c0_38, %c0_39, %c0_40] : memref<1x16x16x4xf32, #tpu.memory_space<vmem>>, vector<1x16x16x4xf32>
    %17 = arith.truncf %16 : vector<1x16x16x4xf32> to vector<1x16x16x4xbf16>
    %c0_41 = arith.constant 0 : index
    %c1 = arith.constant 1 : index
    %c1_42 = arith.constant 1 : index
    %c0_43 = arith.constant 0 : index
    %18 = vector.load %arg7[%c0_41, %c1, %c1_42, %c0_43] : memref<1x18x24x4xbf16, #tpu.memory_space<vmem>>, vector<1x16x16x4xbf16>
    tpu.vector_store %arg7[%c0_41, %c1, %c1_42, %c0_43], %17 {strides = array<i32>} : memref<1x18x24x4xbf16, #tpu.memory_space<vmem>>, vector<1x16x16x4xbf16>,
    %cst_44 = arith.constant 0.000000e+00 : f32
    %19 = vector.broadcast %cst_44 : f32 to vector<256x4xf32>
    %c0_45 = arith.constant 0 : index
    %c0_46 = arith.constant 0 : index
    %c0_47 = arith.constant 0 : index
    %c0_48 = arith.constant 0 : index
    %20 = vector.load %arg7[%c0_45, %c0_46, %c0_47, %c0_48] : memref<1x18x24x4xbf16, #tpu.memory_space<vmem>>, vector<1x16x16x4xbf16>
    %21 = vector.shape_cast %20 : vector<1x16x16x4xbf16> to vector<256x4xbf16>
    %c0_49 = arith.constant 0 : index
    %c0_50 = arith.constant 0 : index
    %c0_51 = arith.constant 0 : index
    %22 = vector.load %arg2[%c0_49, %c0_50, %c0_51] : memref<9x4x4xbf16, #tpu.memory_space<vmem>>, vector<1x4x4xbf16>
    %23 = vector.shape_cast %22 : vector<1x4x4xbf16> to vector<4x4xbf16>
    %cst_52 = arith.constant dense<0.000000e+00> : vector<256x4xf32>
    %24 = tpu.matmul %21, %23, %cst_52 {dimension_numbers = #tpu.dot_dimension_numbers<[1], [0], [0], [1], [0, 0, 1, 1], [], []>} : vector<256x4xbf16>, vector<4x4xbf16>, vector<256x4xf32> -> vector<256x4xf32>
    %25 = arith.addf %19, %24 : vector<256x4xf32>
    %c0_53 = arith.constant 0 : index
    %c0_54 = arith.constant 0 : index
    %c1_55 = arith.constant 1 : index
    %c0_56 = arith.constant 0 : index
    %26 = vector.load %arg7[%c0_53, %c0_54, %c1_55, %c0_56] : memref<1x18x24x4xbf16, #tpu.memory_space<vmem>>, vector<1x16x16x4xbf16>
    %27 = vector.shape_cast %26 : vector<1x16x16x4xbf16> to vector<256x4xbf16>
    %c1_57 = arith.constant 1 : index
    %c0_58 = arith.constant 0 : index
    %c0_59 = arith.constant 0 : index
    %28 = vector.load %arg2[%c1_57, %c0_58, %c0_59] : memref<9x4x4xbf16, #tpu.memory_space<vmem>>, vector<1x4x4xbf16>
    %29 = vector.shape_cast %28 : vector<1x4x4xbf16> to vector<4x4xbf16>
    %cst_60 = arith.constant dense<0.000000e+00> : vector<256x4xf32>
    %30 = tpu.matmul %27, %29, %cst_60 {dimension_numbers = #tpu.dot_dimension_numbers<[1], [0], [0], [1], [0, 0, 1, 1], [], []>} : vector<256x4xbf16>, vector<4x4xbf16>, vector<256x4xf32> -> vector<256x4xf32>
    %31 = arith.addf %25, %30 : vector<256x4xf32>
    %c0_61 = arith.constant 0 : index
    %c0_62 = arith.constant 0 : index
    %c2 = arith.constant 2 : index
    %c0_63 = arith.constant 0 : index
    %32 = vector.load %arg7[%c0_61, %c0_62, %c2, %c0_63] : memref<1x18x24x4xbf16, #tpu.memory_space<vmem>>, vector<1x16x16x4xbf16>
    %33 = vector.shape_cast %32 : vector<1x16x16x4xbf16> to vector<256x4xbf16>
    %c2_64 = arith.constant 2 : index
    %c0_65 = arith.constant 0 : index
    %c0_66 = arith.constant 0 : index
    %34 = vector.load %arg2[%c2_64, %c0_65, %c0_66] : memref<9x4x4xbf16, #tpu.memory_space<vmem>>, vector<1x4x4xbf16>
    %35 = vector.shape_cast %34 : vector<1x4x4xbf16> to vector<4x4xbf16>
    %cst_67 = arith.constant dense<0.000000e+00> : vector<256x4xf32>
    %36 = tpu.matmul %33, %35, %cst_67 {dimension_numbers = #tpu.dot_dimension_numbers<[1], [0], [0], [1], [0, 0, 1, 1], [], []>} : vector<256x4xbf16>, vector<4x4xbf16>, vector<256x4xf32> -> vector<256x4xf32>
    %37 = arith.addf %31, %36 : vector<256x4xf32>
    %c0_68 = arith.constant 0 : index
    %c1_69 = arith.constant 1 : index
    %c0_70 = arith.constant 0 : index
    %c0_71 = arith.constant 0 : index
    %38 = vector.load %arg7[%c0_68, %c1_69, %c0_70, %c0_71] : memref<1x18x24x4xbf16, #tpu.memory_space<vmem>>, vector<1x16x16x4xbf16>
    %39 = vector.shape_cast %38 : vector<1x16x16x4xbf16> to vector<256x4xbf16>
    %c3 = arith.constant 3 : index
    %c0_72 = arith.constant 0 : index
    %c0_73 = arith.constant 0 : index
    %40 = vector.load %arg2[%c3, %c0_72, %c0_73] : memref<9x4x4xbf16, #tpu.memory_space<vmem>>, vector<1x4x4xbf16>
    %41 = vector.shape_cast %40 : vector<1x4x4xbf16> to vector<4x4xbf16>
    %cst_74 = arith.constant dense<0.000000e+00> : vector<256x4xf32>
    %42 = tpu.matmul %39, %41, %cst_74 {dimension_numbers = #tpu.dot_dimension_numbers<[1], [0], [0], [1], [0, 0, 1, 1], [], []>} : vector<256x4xbf16>, vector<4x4xbf16>, vector<256x4xf32> -> vector<256x4xf32>
    %43 = arith.addf %37, %42 : vector<256x4xf32>
    %c0_75 = arith.constant 0 : index
    %c1_76 = arith.constant 1 : index
    %c1_77 = arith.constant 1 : index
    %c0_78 = arith.constant 0 : index
    %44 = vector.load %arg7[%c0_75, %c1_76, %c1_77, %c0_78] : memref<1x18x24x4xbf16, #tpu.memory_space<vmem>>, vector<1x16x16x4xbf16>
    %45 = vector.shape_cast %44 : vector<1x16x16x4xbf16> to vector<256x4xbf16>
    %c4 = arith.constant 4 : index
    %c0_79 = arith.constant 0 : index
    %c0_80 = arith.constant 0 : index
    %46 = vector.load %arg2[%c4, %c0_79, %c0_80] : memref<9x4x4xbf16, #tpu.memory_space<vmem>>, vector<1x4x4xbf16>
    %47 = vector.shape_cast %46 : vector<1x4x4xbf16> to vector<4x4xbf16>
    %cst_81 = arith.constant dense<0.000000e+00> : vector<256x4xf32>
    %48 = tpu.matmul %45, %47, %cst_81 {dimension_numbers = #tpu.dot_dimension_numbers<[1], [0], [0], [1], [0, 0, 1, 1], [], []>} : vector<256x4xbf16>, vector<4x4xbf16>, vector<256x4xf32> -> vector<256x4xf32>
    %49 = arith.addf %43, %48 : vector<256x4xf32>
    %c0_82 = arith.constant 0 : index
    %c1_83 = arith.constant 1 : index
    %c2_84 = arith.constant 2 : index
    %c0_85 = arith.constant 0 : index
    %50 = vector.load %arg7[%c0_82, %c1_83, %c2_84, %c0_85] : memref<1x18x24x4xbf16, #tpu.memory_space<vmem>>, vector<1x16x16x4xbf16>
    %51 = vector.shape_cast %50 : vector<1x16x16x4xbf16> to vector<256x4xbf16>
    %c5 = arith.constant 5 : index
    %c0_86 = arith.constant 0 : index
    %c0_87 = arith.constant 0 : index
    %52 = vector.load %arg2[%c5, %c0_86, %c0_87] : memref<9x4x4xbf16, #tpu.memory_space<vmem>>, vector<1x4x4xbf16>
    %53 = vector.shape_cast %52 : vector<1x4x4xbf16> to vector<4x4xbf16>
    %cst_88 = arith.constant dense<0.000000e+00> : vector<256x4xf32>
    %54 = tpu.matmul %51, %53, %cst_88 {dimension_numbers = #tpu.dot_dimension_numbers<[1], [0], [0], [1], [0, 0, 1, 1], [], []>} : vector<256x4xbf16>, vector<4x4xbf16>, vector<256x4xf32> -> vector<256x4xf32>
    %55 = arith.addf %49, %54 : vector<256x4xf32>
    %c0_89 = arith.constant 0 : index
    %c2_90 = arith.constant 2 : index
    %c0_91 = arith.constant 0 : index
    %c0_92 = arith.constant 0 : index
    %56 = vector.load %arg7[%c0_89, %c2_90, %c0_91, %c0_92] : memref<1x18x24x4xbf16, #tpu.memory_space<vmem>>, vector<1x16x16x4xbf16>
    %57 = vector.shape_cast %56 : vector<1x16x16x4xbf16> to vector<256x4xbf16>
    %c6 = arith.constant 6 : index
    %c0_93 = arith.constant 0 : index
    %c0_94 = arith.constant 0 : index
    %58 = vector.load %arg2[%c6, %c0_93, %c0_94] : memref<9x4x4xbf16, #tpu.memory_space<vmem>>, vector<1x4x4xbf16>
    %59 = vector.shape_cast %58 : vector<1x4x4xbf16> to vector<4x4xbf16>
    %cst_95 = arith.constant dense<0.000000e+00> : vector<256x4xf32>
    %60 = tpu.matmul %57, %59, %cst_95 {dimension_numbers = #tpu.dot_dimension_numbers<[1], [0], [0], [1], [0, 0, 1, 1], [], []>} : vector<256x4xbf16>, vector<4x4xbf16>, vector<256x4xf32> -> vector<256x4xf32>
    %61 = arith.addf %55, %60 : vector<256x4xf32>
    %c0_96 = arith.constant 0 : index
    %c2_97 = arith.constant 2 : index
    %c1_98 = arith.constant 1 : index
    %c0_99 = arith.constant 0 : index
    %62 = vector.load %arg7[%c0_96, %c2_97, %c1_98, %c0_99] : memref<1x18x24x4xbf16, #tpu.memory_space<vmem>>, vector<1x16x16x4xbf16>
    %63 = vector.shape_cast %62 : vector<1x16x16x4xbf16> to vector<256x4xbf16>
    %c7 = arith.constant 7 : index
    %c0_100 = arith.constant 0 : index
    %c0_101 = arith.constant 0 : index
    %64 = vector.load %arg2[%c7, %c0_100, %c0_101] : memref<9x4x4xbf16, #tpu.memory_space<vmem>>, vector<1x4x4xbf16>
    %65 = vector.shape_cast %64 : vector<1x4x4xbf16> to vector<4x4xbf16>
    %cst_102 = arith.constant dense<0.000000e+00> : vector<256x4xf32>
    %66 = tpu.matmul %63, %65, %cst_102 {dimension_numbers = #tpu.dot_dimension_numbers<[1], [0], [0], [1], [0, 0, 1, 1], [], []>} : vector<256x4xbf16>, vector<4x4xbf16>, vector<256x4xf32> -> vector<256x4xf32>
    %67 = arith.addf %61, %66 : vector<256x4xf32>
    %c0_103 = arith.constant 0 : index
    %c2_104 = arith.constant 2 : index
    %c2_105 = arith.constant 2 : index
    %c0_106 = arith.constant 0 : index
    %68 = vector.load %arg7[%c0_103, %c2_104, %c2_105, %c0_106] : memref<1x18x24x4xbf16, #tpu.memory_space<vmem>>, vector<1x16x16x4xbf16>
    %69 = vector.shape_cast %68 : vector<1x16x16x4xbf16> to vector<256x4xbf16>
    %c8 = arith.constant 8 : index
    %c0_107 = arith.constant 0 : index
    %c0_108 = arith.constant 0 : index
    %70 = vector.load %arg2[%c8, %c0_107, %c0_108] : memref<9x4x4xbf16, #tpu.memory_space<vmem>>, vector<1x4x4xbf16>
    %71 = vector.shape_cast %70 : vector<1x4x4xbf16> to vector<4x4xbf16>
    %cst_109 = arith.constant dense<0.000000e+00> : vector<256x4xf32>
    %72 = tpu.matmul %69, %71, %cst_109 {dimension_numbers = #tpu.dot_dimension_numbers<[1], [0], [0], [1], [0, 0, 1, 1], [], []>} : vector<256x4xbf16>, vector<4x4xbf16>, vector<256x4xf32> -> vector<256x4xf32>
    %73 = arith.addf %67, %72 : vector<256x4xf32>
    %c0_110 = arith.constant 0 : index
    %c0_111 = arith.constant 0 : index
    %74 = vector.load %arg3[%c0_110, %c0_111] : memref<1x4xf32, #tpu.memory_space<vmem>>, vector<1x4xf32>
    %75 = vector.shape_cast %74 : vector<1x4xf32> to vector<4xf32>
    %76 = vector.shape_cast %75 : vector<4xf32> to vector<1x4xf32>
    %77 = vector.broadcast %76 : vector<1x4xf32> to vector<256x4xf32>
    %78 = arith.addf %73, %77 : vector<256x4xf32>
    %cst_112 = arith.constant 0.000000e+00 : f32
    %79 = vector.broadcast %cst_112 : f32 to vector<256x4xf32>
    %80 = arith.maximumf %78, %79 : vector<256x4xf32>
    %81 = vector.shape_cast %80 : vector<256x4xf32> to vector<1x16x16x4xf32>
    %82 = arith.truncf %81 : vector<1x16x16x4xf32> to vector<1x16x16x4xbf16>
    %c0_113 = arith.constant 0 : index
    %c1_114 = arith.constant 1 : index
    %c1_115 = arith.constant 1 : index
    %c0_116 = arith.constant 0 : index
    %83 = vector.load %arg8[%c0_113, %c1_114, %c1_115, %c0_116] : memref<1x18x24x4xbf16, #tpu.memory_space<vmem>>, vector<1x16x16x4xbf16>
    tpu.vector_store %arg8[%c0_113, %c1_114, %c1_115, %c0_116], %82 {strides = array<i32>} : memref<1x18x24x4xbf16, #tpu.memory_space<vmem>>, vector<1x16x16x4xbf16>,
    %cst_117 = arith.constant 0.000000e+00 : f32
    %84 = vector.broadcast %cst_117 : f32 to vector<256x4xf32>
    %c0_118 = arith.constant 0 : index
    %c0_119 = arith.constant 0 : index
    %c0_120 = arith.constant 0 : index
    %c0_121 = arith.constant 0 : index
    %85 = vector.load %arg8[%c0_118, %c0_119, %c0_120, %c0_121] : memref<1x18x24x4xbf16, #tpu.memory_space<vmem>>, vector<1x16x16x4xbf16>
    %86 = vector.shape_cast %85 : vector<1x16x16x4xbf16> to vector<256x4xbf16>
    %c0_122 = arith.constant 0 : index
    %c0_123 = arith.constant 0 : index
    %c0_124 = arith.constant 0 : index
    %87 = vector.load %arg4[%c0_122, %c0_123, %c0_124] : memref<9x4x4xbf16, #tpu.memory_space<vmem>>, vector<1x4x4xbf16>
    %88 = vector.shape_cast %87 : vector<1x4x4xbf16> to vector<4x4xbf16>
    %cst_125 = arith.constant dense<0.000000e+00> : vector<256x4xf32>
    %89 = tpu.matmul %86, %88, %cst_125 {dimension_numbers = #tpu.dot_dimension_numbers<[1], [0], [0], [1], [0, 0, 1, 1], [], []>} : vector<256x4xbf16>, vector<4x4xbf16>, vector<256x4xf32> -> vector<256x4xf32>
    %90 = arith.addf %84, %89 : vector<256x4xf32>
    %c0_126 = arith.constant 0 : index
    %c0_127 = arith.constant 0 : index
    %c1_128 = arith.constant 1 : index
    %c0_129 = arith.constant 0 : index
    %91 = vector.load %arg8[%c0_126, %c0_127, %c1_128, %c0_129] : memref<1x18x24x4xbf16, #tpu.memory_space<vmem>>, vector<1x16x16x4xbf16>
    %92 = vector.shape_cast %91 : vector<1x16x16x4xbf16> to vector<256x4xbf16>
    %c1_130 = arith.constant 1 : index
    %c0_131 = arith.constant 0 : index
    %c0_132 = arith.constant 0 : index
    %93 = vector.load %arg4[%c1_130, %c0_131, %c0_132] : memref<9x4x4xbf16, #tpu.memory_space<vmem>>, vector<1x4x4xbf16>
    %94 = vector.shape_cast %93 : vector<1x4x4xbf16> to vector<4x4xbf16>
    %cst_133 = arith.constant dense<0.000000e+00> : vector<256x4xf32>
    %95 = tpu.matmul %92, %94, %cst_133 {dimension_numbers = #tpu.dot_dimension_numbers<[1], [0], [0], [1], [0, 0, 1, 1], [], []>} : vector<256x4xbf16>, vector<4x4xbf16>, vector<256x4xf32> -> vector<256x4xf32>
    %96 = arith.addf %90, %95 : vector<256x4xf32>
    %c0_134 = arith.constant 0 : index
    %c0_135 = arith.constant 0 : index
    %c2_136 = arith.constant 2 : index
    %c0_137 = arith.constant 0 : index
    %97 = vector.load %arg8[%c0_134, %c0_135, %c2_136, %c0_137] : memref<1x18x24x4xbf16, #tpu.memory_space<vmem>>, vector<1x16x16x4xbf16>
    %98 = vector.shape_cast %97 : vector<1x16x16x4xbf16> to vector<256x4xbf16>
    %c2_138 = arith.constant 2 : index
    %c0_139 = arith.constant 0 : index
    %c0_140 = arith.constant 0 : index
    %99 = vector.load %arg4[%c2_138, %c0_139, %c0_140] : memref<9x4x4xbf16, #tpu.memory_space<vmem>>, vector<1x4x4xbf16>
    %100 = vector.shape_cast %99 : vector<1x4x4xbf16> to vector<4x4xbf16>
    %cst_141 = arith.constant dense<0.000000e+00> : vector<256x4xf32>
    %101 = tpu.matmul %98, %100, %cst_141 {dimension_numbers = #tpu.dot_dimension_numbers<[1], [0], [0], [1], [0, 0, 1, 1], [], []>} : vector<256x4xbf16>, vector<4x4xbf16>, vector<256x4xf32> -> vector<256x4xf32>
    %102 = arith.addf %96, %101 : vector<256x4xf32>
    %c0_142 = arith.constant 0 : index
    %c1_143 = arith.constant 1 : index
    %c0_144 = arith.constant 0 : index
    %c0_145 = arith.constant 0 : index
    %103 = vector.load %arg8[%c0_142, %c1_143, %c0_144, %c0_145] : memref<1x18x24x4xbf16, #tpu.memory_space<vmem>>, vector<1x16x16x4xbf16>
    %104 = vector.shape_cast %103 : vector<1x16x16x4xbf16> to vector<256x4xbf16>
    %c3_146 = arith.constant 3 : index
    %c0_147 = arith.constant 0 : index
    %c0_148 = arith.constant 0 : index
    %105 = vector.load %arg4[%c3_146, %c0_147, %c0_148] : memref<9x4x4xbf16, #tpu.memory_space<vmem>>, vector<1x4x4xbf16>
    %106 = vector.shape_cast %105 : vector<1x4x4xbf16> to vector<4x4xbf16>
    %cst_149 = arith.constant dense<0.000000e+00> : vector<256x4xf32>
    %107 = tpu.matmul %104, %106, %cst_149 {dimension_numbers = #tpu.dot_dimension_numbers<[1], [0], [0], [1], [0, 0, 1, 1], [], []>} : vector<256x4xbf16>, vector<4x4xbf16>, vector<256x4xf32> -> vector<256x4xf32>
    %108 = arith.addf %102, %107 : vector<256x4xf32>
    %c0_150 = arith.constant 0 : index
    %c1_151 = arith.constant 1 : index
    %c1_152 = arith.constant 1 : index
    %c0_153 = arith.constant 0 : index
    %109 = vector.load %arg8[%c0_150, %c1_151, %c1_152, %c0_153] : memref<1x18x24x4xbf16, #tpu.memory_space<vmem>>, vector<1x16x16x4xbf16>
    %110 = vector.shape_cast %109 : vector<1x16x16x4xbf16> to vector<256x4xbf16>
    %c4_154 = arith.constant 4 : index
    %c0_155 = arith.constant 0 : index
    %c0_156 = arith.constant 0 : index
    %111 = vector.load %arg4[%c4_154, %c0_155, %c0_156] : memref<9x4x4xbf16, #tpu.memory_space<vmem>>, vector<1x4x4xbf16>
    %112 = vector.shape_cast %111 : vector<1x4x4xbf16> to vector<4x4xbf16>
    %cst_157 = arith.constant dense<0.000000e+00> : vector<256x4xf32>
    %113 = tpu.matmul %110, %112, %cst_157 {dimension_numbers = #tpu.dot_dimension_numbers<[1], [0], [0], [1], [0, 0, 1, 1], [], []>} : vector<256x4xbf16>, vector<4x4xbf16>, vector<256x4xf32> -> vector<256x4xf32>
    %114 = arith.addf %108, %113 : vector<256x4xf32>
    %c0_158 = arith.constant 0 : index
    %c1_159 = arith.constant 1 : index
    %c2_160 = arith.constant 2 : index
    %c0_161 = arith.constant 0 : index
    %115 = vector.load %arg8[%c0_158, %c1_159, %c2_160, %c0_161] : memref<1x18x24x4xbf16, #tpu.memory_space<vmem>>, vector<1x16x16x4xbf16>
    %116 = vector.shape_cast %115 : vector<1x16x16x4xbf16> to vector<256x4xbf16>
    %c5_162 = arith.constant 5 : index
    %c0_163 = arith.constant 0 : index
    %c0_164 = arith.constant 0 : index
    %117 = vector.load %arg4[%c5_162, %c0_163, %c0_164] : memref<9x4x4xbf16, #tpu.memory_space<vmem>>, vector<1x4x4xbf16>
    %118 = vector.shape_cast %117 : vector<1x4x4xbf16> to vector<4x4xbf16>
    %cst_165 = arith.constant dense<0.000000e+00> : vector<256x4xf32>
    %119 = tpu.matmul %116, %118, %cst_165 {dimension_numbers = #tpu.dot_dimension_numbers<[1], [0], [0], [1], [0, 0, 1, 1], [], []>} : vector<256x4xbf16>, vector<4x4xbf16>, vector<256x4xf32> -> vector<256x4xf32>
    %120 = arith.addf %114, %119 : vector<256x4xf32>
    %c0_166 = arith.constant 0 : index
    %c2_167 = arith.constant 2 : index
    %c0_168 = arith.constant 0 : index
    %c0_169 = arith.constant 0 : index
    %121 = vector.load %arg8[%c0_166, %c2_167, %c0_168, %c0_169] : memref<1x18x24x4xbf16, #tpu.memory_space<vmem>>, vector<1x16x16x4xbf16>
    %122 = vector.shape_cast %121 : vector<1x16x16x4xbf16> to vector<256x4xbf16>
    %c6_170 = arith.constant 6 : index
    %c0_171 = arith.constant 0 : index
    %c0_172 = arith.constant 0 : index
    %123 = vector.load %arg4[%c6_170, %c0_171, %c0_172] : memref<9x4x4xbf16, #tpu.memory_space<vmem>>, vector<1x4x4xbf16>
    %124 = vector.shape_cast %123 : vector<1x4x4xbf16> to vector<4x4xbf16>
    %cst_173 = arith.constant dense<0.000000e+00> : vector<256x4xf32>
    %125 = tpu.matmul %122, %124, %cst_173 {dimension_numbers = #tpu.dot_dimension_numbers<[1], [0], [0], [1], [0, 0, 1, 1], [], []>} : vector<256x4xbf16>, vector<4x4xbf16>, vector<256x4xf32> -> vector<256x4xf32>
    %126 = arith.addf %120, %125 : vector<256x4xf32>
    %c0_174 = arith.constant 0 : index
    %c2_175 = arith.constant 2 : index
    %c1_176 = arith.constant 1 : index
    %c0_177 = arith.constant 0 : index
    %127 = vector.load %arg8[%c0_174, %c2_175, %c1_176, %c0_177] : memref<1x18x24x4xbf16, #tpu.memory_space<vmem>>, vector<1x16x16x4xbf16>
    %128 = vector.shape_cast %127 : vector<1x16x16x4xbf16> to vector<256x4xbf16>
    %c7_178 = arith.constant 7 : index
    %c0_179 = arith.constant 0 : index
    %c0_180 = arith.constant 0 : index
    %129 = vector.load %arg4[%c7_178, %c0_179, %c0_180] : memref<9x4x4xbf16, #tpu.memory_space<vmem>>, vector<1x4x4xbf16>
    %130 = vector.shape_cast %129 : vector<1x4x4xbf16> to vector<4x4xbf16>
    %cst_181 = arith.constant dense<0.000000e+00> : vector<256x4xf32>
    %131 = tpu.matmul %128, %130, %cst_181 {dimension_numbers = #tpu.dot_dimension_numbers<[1], [0], [0], [1], [0, 0, 1, 1], [], []>} : vector<256x4xbf16>, vector<4x4xbf16>, vector<256x4xf32> -> vector<256x4xf32>
    %132 = arith.addf %126, %131 : vector<256x4xf32>
    %c0_182 = arith.constant 0 : index
    %c2_183 = arith.constant 2 : index
    %c2_184 = arith.constant 2 : index
    %c0_185 = arith.constant 0 : index
    %133 = vector.load %arg8[%c0_182, %c2_183, %c2_184, %c0_185] : memref<1x18x24x4xbf16, #tpu.memory_space<vmem>>, vector<1x16x16x4xbf16>
    %134 = vector.shape_cast %133 : vector<1x16x16x4xbf16> to vector<256x4xbf16>
    %c8_186 = arith.constant 8 : index
    %c0_187 = arith.constant 0 : index
    %c0_188 = arith.constant 0 : index
    %135 = vector.load %arg4[%c8_186, %c0_187, %c0_188] : memref<9x4x4xbf16, #tpu.memory_space<vmem>>, vector<1x4x4xbf16>
    %136 = vector.shape_cast %135 : vector<1x4x4xbf16> to vector<4x4xbf16>
    %cst_189 = arith.constant dense<0.000000e+00> : vector<256x4xf32>
    %137 = tpu.matmul %134, %136, %cst_189 {dimension_numbers = #tpu.dot_dimension_numbers<[1], [0], [0], [1], [0, 0, 1, 1], [], []>} : vector<256x4xbf16>, vector<4x4xbf16>, vector<256x4xf32> -> vector<256x4xf32>
    %138 = arith.addf %132, %137 : vector<256x4xf32>
    %c0_190 = arith.constant 0 : index
    %c0_191 = arith.constant 0 : index
    %139 = vector.load %arg5[%c0_190, %c0_191] : memref<1x4xf32, #tpu.memory_space<vmem>>, vector<1x4xf32>
    %140 = vector.shape_cast %139 : vector<1x4xf32> to vector<4xf32>
    %141 = vector.shape_cast %140 : vector<4xf32> to vector<1x4xf32>
    %142 = vector.broadcast %141 : vector<1x4xf32> to vector<256x4xf32>
    %143 = arith.addf %138, %142 : vector<256x4xf32>
    %144 = vector.shape_cast %16 : vector<1x16x16x4xf32> to vector<256x4xf32>
    %145 = arith.addf %143, %144 : vector<256x4xf32>
    %cst_192 = arith.constant 0.000000e+00 : f32
    %146 = vector.broadcast %cst_192 : f32 to vector<256x4xf32>
    %147 = arith.maximumf %145, %146 : vector<256x4xf32>
    %148 = vector.shape_cast %147 : vector<256x4xf32> to vector<1x16x16x4xf32>
    %c0_193 = arith.constant 0 : index
    %c0_194 = arith.constant 0 : index
    %c0_195 = arith.constant 0 : index
    %c0_196 = arith.constant 0 : index
    %149 = vector.load %arg6[%c0_193, %c0_194, %c0_195, %c0_196] : memref<1x16x16x4xf32, #tpu.memory_space<vmem>>, vector<1x16x16x4xf32>
    tpu.vector_store %arg6[%c0_193, %c0_194, %c0_195, %c0_196], %148 {strides = array<i32>} : memref<1x16x16x4xf32, #tpu.memory_space<vmem>>, vector<1x16x16x4xf32>,
    return
  }
  func.func @transform_0(%arg0: i32) -> (i32, i32, i32, i32) {
    %c0_i32 = arith.constant 0 : i32
    %c0_i32_0 = arith.constant 0 : i32
    %c0_i32_1 = arith.constant 0 : i32
    %c0_i32_2 = arith.constant 0 : i32
    return %arg0, %c0_i32, %c0_i32_0, %c0_i32_1 : i32, i32, i32, i32
  }
  func.func @transform_1(%arg0: i32) -> (i32, i32, i32) {
    %c0_i32 = arith.constant 0 : i32
    %c0_i32_0 = arith.constant 0 : i32
    %c0_i32_1 = arith.constant 0 : i32
    %c0_i32_2 = arith.constant 0 : i32
    return %c0_i32, %c0_i32_0, %c0_i32_1 : i32, i32, i32
  }
  func.func @transform_2(%arg0: i32) -> (i32, i32) {
    %c0_i32 = arith.constant 0 : i32
    %c0_i32_0 = arith.constant 0 : i32
    %c0_i32_1 = arith.constant 0 : i32
    return %c0_i32, %c0_i32_0 : i32, i32
  }
  func.func @transform_3(%arg0: i32) -> (i32, i32, i32) {
    %c0_i32 = arith.constant 0 : i32
    %c0_i32_0 = arith.constant 0 : i32
    %c0_i32_1 = arith.constant 0 : i32
    %c0_i32_2 = arith.constant 0 : i32
    return %c0_i32, %c0_i32_0, %c0_i32_1 : i32, i32, i32
  }
  func.func @transform_4(%arg0: i32) -> (i32, i32) {
    %c0_i32 = arith.constant 0 : i32
    %c0_i32_0 = arith.constant 0 : i32
    %c0_i32_1 = arith.constant 0 : i32
    return %c0_i32, %c0_i32_0 : i32, i32
  }
  func.func @transform_5(%arg0: i32) -> (i32, i32, i32, i32) {
    %c0_i32 = arith.constant 0 : i32
    %c0_i32_0 = arith.constant 0 : i32
    %c0_i32_1 = arith.constant 0 : i32
    %c0_i32_2 = arith.constant 0 : i32
    return %arg0, %c0_i32, %c0_i32_0, %c0_i32_1 : i32, i32, i32, i32
  }
}

</mosaic_0001>

<llo_original>
// kernel: basic_block.1
$region0: #{basic_block.1}
  #allocation0 [shape = 'u32[]', space=smem, size = 0x4, offset = 0x4, fixed_abs, tag = 'smem constant byte address 0x4 - core index']
  #allocation1 [shape = 'u32[144,128]{1,0:T(1,128)}', space=vmem, size = 0x12000, scoped, tag = 'internal scratch']
  #allocation2 [shape = 'bf16[1,18,24,4]{3,2,1,0:T(8,128)(2,1)}', space=vmem, size = 0x1b000, scoped, tag = 'scratch operand']
  #allocation3 [shape = 'bf16[1,18,24,4]{3,2,1,0:T(8,128)(2,1)}', space=vmem, size = 0x1b000, scoped, tag = 'scratch operand']
  %s0 = inlined_call_operand.vmem [shape: f32[2,16,16,4], index: 0, kind: input, shape index: {}]
  %s1 = inlined_call_operand.vmem [shape: bf16[9,4,4], index: 1, kind: input, shape index: {}]
  %s2 = inlined_call_operand.vmem [shape: f32[1,4], index: 2, kind: input, shape index: {}]
  %s3 = inlined_call_operand.vmem [shape: bf16[9,4,4], index: 3, kind: input, shape index: {}]
  %s4 = inlined_call_operand.vmem [shape: f32[1,4], index: 4, kind: input, shape index: {}]
  %s5 = inlined_call_operand.vmem [shape: f32[2,16,16,4], index: 5, kind: output, shape index: {}]
  %s6 = sld [smem:[#allocation0]]
  $region53: #{basic_block.1} parent=0
    _
  %s8 = ssub.s32 1, %s6
  %s9 = scalar_select 0, %s8, %s6
  loop: start=0, step=1, limit=4
  $region2: #{basic_block.1} parent=0 // loop_pre_header
    _
  $region3: #{basic_block.1} parent=0 // loop_header
    %s11 = sphi 0, %s15
    %p12 = scmp.ge.s32.totalorder %s11, 4
    %s21 = sphi 0, %s23
    %s24 = sphi 0, %s21
    %s25 = sphi 0, %s24
    %s41 = sphi 0, %s25
    %s45 = sphi 0, %s45
    %s47 = sphi 0, %s45
    %s48 = sphi 0, %s47
    %s62 = sphi 0, %s48
    %s66 = sphi 0, %s66
    %s68 = sphi 0, %s66
    %s69 = sphi 0, %s68
    %s83 = sphi 0, %s69
    %s87 = sphi 0, %s87
    %s89 = sphi 0, %s87
    %s90 = sphi 0, %s89
    %s104 = sphi 0, %s90
    %s108 = sphi 0, %s108
    %s110 = sphi 0, %s108
    %s111 = sphi 0, %s110
    %s125 = sphi 0, %s111
    %s131 = sphi 0, %s133
    %s134 = sphi 0, %s131
    %s135 = sphi 0, %s134
    %s151 = sphi 0, %s135
  $region4: #{basic_block.1} parent=0 // loop_header_branch
    %14 = sbr.rel (%p12) target = $region8
  $region5: #{basic_block.1} parent=0 // loop_body
    %s16 = ssub.s32 %s11, 1
    %s17 = ssub.s32 %s11, 2
    %s18 = sadd.s32 %s11, 1
    %s19 = ssub.s32 %s11, %s18
    %p20 = scmp.eq.s32.totalorder %s19, 0
    %s22 = sadd.s32 %s21, 1
    %s23 = scalar_select %p20, %s21, %s22
    %p26 = pneg %p20
    %p27 = scmp.eq.s32.totalorder %s11, 1
    %p28 = por %p26, %p27
    %p29 = scmp.ne.s32.totalorder %s21, %s24
    %p30 = scmp.eq.s32.totalorder %s11, 0
    %p31 = por %p29, %p30
    %p32 = scmp.ne.s32.totalorder %s21, %s24
    %p33 = scmp.eq.s32.totalorder %s16, 1
    %p34 = por %p32, %p33
    %p35 = scmp.ne.s32.totalorder %s24, %s25
    %p36 = scmp.eq.s32.totalorder %s16, 0
    %p37 = por %p35, %p36
    %p38 = scmp.ne.s32.totalorder %s24, %s25
    %p39 = scmp.eq.s32.totalorder %s17, 1
    %p40 = por %p38, %p39
    %p42 = scmp.ne.s32.totalorder %s25, %s41
    %p43 = scmp.eq.s32.totalorder %s17, 0
    %p44 = por %p42, %p43
    %s46 = sadd.s32 %s45, 1
    %p49 = scmp.eq.s32.totalorder %s11, 1
    %p50 = scmp.ne.s32.totalorder %s45, %s47
    %p51 = scmp.eq.s32.totalorder %s11, 0
    %p52 = por %p50, %p51
    %p53 = scmp.ne.s32.totalorder %s45, %s47
    %p54 = scmp.eq.s32.totalorder %s16, 1
    %p55 = por %p53, %p54
    %p56 = scmp.ne.s32.totalorder %s47, %s48
    %p57 = scmp.eq.s32.totalorder %s16, 0
    %p58 = por %p56, %p57
    %p59 = scmp.ne.s32.totalorder %s47, %s48
    %p60 = scmp.eq.s32.totalorder %s17, 1
    %p61 = por %p59, %p60
    %p63 = scmp.ne.s32.totalorder %s48, %s62
    %p64 = scmp.eq.s32.totalorder %s17, 0
    %p65 = por %p63, %p64
    %s67 = sadd.s32 %s66, 1
    %p70 = scmp.eq.s32.totalorder %s11, 1
    %p71 = scmp.ne.s32.totalorder %s66, %s68
    %p72 = scmp.eq.s32.totalorder %s11, 0
    %p73 = por %p71, %p72
    %p74 = scmp.ne.s32.totalorder %s66, %s68
    %p75 = scmp.eq.s32.totalorder %s16, 1
    %p76 = por %p74, %p75
    %p77 = scmp.ne.s32.totalorder %s68, %s69
    %p78 = scmp.eq.s32.totalorder %s16, 0
    %p79 = por %p77, %p78
    %p80 = scmp.ne.s32.totalorder %s68, %s69
    %p81 = scmp.eq.s32.totalorder %s17, 1
    %p82 = por %p80, %p81
    %p84 = scmp.ne.s32.totalorder %s69, %s83
    %p85 = scmp.eq.s32.totalorder %s17, 0
    %p86 = por %p84, %p85
    %s88 = sadd.s32 %s87, 1
    %p91 = scmp.eq.s32.totalorder %s11, 1
    %p92 = scmp.ne.s32.totalorder %s87, %s89
    %p93 = scmp.eq.s32.totalorder %s11, 0
    %p94 = por %p92, %p93
    %p95 = scmp.ne.s32.totalorder %s87, %s89
    %p96 = scmp.eq.s32.totalorder %s16, 1
    %p97 = por %p95, %p96
    %p98 = scmp.ne.s32.totalorder %s89, %s90
    %p99 = scmp.eq.s32.totalorder %s16, 0
    %p100 = por %p98, %p99
    %p101 = scmp.ne.s32.totalorder %s89, %s90
    %p102 = scmp.eq.s32.totalorder %s17, 1
    %p103 = por %p101, %p102
    %p105 = scmp.ne.s32.totalorder %s90, %s104
    %p106 = scmp.eq.s32.totalorder %s17, 0
    %p107 = por %p105, %p106
    %s109 = sadd.s32 %s108, 1
    %p112 = scmp.eq.s32.totalorder %s11, 1
    %p113 = scmp.ne.s32.totalorder %s108, %s110
    %p114 = scmp.eq.s32.totalorder %s11, 0
    %p115 = por %p113, %p114
    %p116 = scmp.ne.s32.totalorder %s108, %s110
    %p117 = scmp.eq.s32.totalorder %s16, 1
    %p118 = por %p116, %p117
    %p119 = scmp.ne.s32.totalorder %s110, %s111
    %p120 = scmp.eq.s32.totalorder %s16, 0
    %p121 = por %p119, %p120
    %p122 = scmp.ne.s32.totalorder %s110, %s111
    %p123 = scmp.eq.s32.totalorder %s17, 1
    %p124 = por %p122, %p123
    %p126 = scmp.ne.s32.totalorder %s111, %s125
    %p127 = scmp.eq.s32.totalorder %s17, 0
    %p128 = por %p126, %p127
    %s129 = ssub.s32 %s11, %s18
    %p130 = scmp.eq.s32.totalorder %s129, 0
    %s132 = sadd.s32 %s131, 1
    %s133 = scalar_select %p130, %s131, %s132
    %p136 = pneg %p130
    %p137 = scmp.eq.s32.totalorder %s11, 1
    %p138 = por %p136, %p137
    %p139 = scmp.ne.s32.totalorder %s131, %s134
    %p140 = scmp.eq.s32.totalorder %s11, 0
    %p141 = por %p139, %p140
    %p142 = scmp.ne.s32.totalorder %s131, %s134
    %p143 = scmp.eq.s32.totalorder %s16, 1
    %p144 = por %p142, %p143
    %p145 = scmp.ne.s32.totalorder %s134, %s135
    %p146 = scmp.eq.s32.totalorder %s16, 0
    %p147 = por %p145, %p146
    %p148 = scmp.ne.s32.totalorder %s134, %s135
    %p149 = scmp.eq.s32.totalorder %s17, 1
    %p150 = por %p148, %p149
    %p152 = scmp.ne.s32.totalorder %s135, %s151
    %p153 = scmp.eq.s32.totalorder %s17, 0
    %p154 = por %p152, %p153
    %p155 = scmp.le.s32.totalorder 1, %s11
    %p156 = scmp.lt.s32.totalorder %s11, 3
    %p157 = pnand %p155, %p156
    %p158 = pneg %p157
    // Predicated region
    $region9: #{basic_block.1} parent=5 // pred_check
      _
    $region10: #{basic_block.1} parent=5 // pred_check_branch
      %160 = sbr.rel (%p157) target = $region12
    $region11: #{basic_block.1} parent=5 // pred_region
      %s161 = ssub.s32 %s11, 1
      // Predicated region
      $region13: #{basic_block.1} parent=11 // pred_check
        %p162 = pneg %p58
      $region14: #{basic_block.1} parent=11 // pred_check_branch
        %164 = sbr.rel (%p162) target = $region16
      $region15: #{basic_block.1} parent=11 // pred_region
        _
      $region16: #{basic_block.1} parent=11 // pred_fallthru
        _
      // Predicated region
      $region17: #{basic_block.1} parent=11 // pred_check
        %p165 = pneg %p79
      $region18: #{basic_block.1} parent=11 // pred_check_branch
        %167 = sbr.rel (%p165) target = $region20
      $region19: #{basic_block.1} parent=11 // pred_region
        _
      $region20: #{basic_block.1} parent=11 // pred_fallthru
        _
      // Predicated region
      $region21: #{basic_block.1} parent=11 // pred_check
        %p168 = pneg %p100
      $region22: #{basic_block.1} parent=11 // pred_check_branch
        %170 = sbr.rel (%p168) target = $region24
      $region23: #{basic_block.1} parent=11 // pred_region
        _
      $region24: #{basic_block.1} parent=11 // pred_fallthru
        _
      // Predicated region
      $region25: #{basic_block.1} parent=11 // pred_check
        %p171 = pneg %p121
      $region26: #{basic_block.1} parent=11 // pred_check_branch
        %173 = sbr.rel (%p171) target = $region28
      $region27: #{basic_block.1} parent=11 // pred_region
        _
      $region28: #{basic_block.1} parent=11 // pred_fallthru
        _
    $region12: #{basic_block.1} parent=5 // pred_fallthru
      _
    %p174 = scmp.lt.s32.totalorder %s11, 2
    // Predicated region
    $region29: #{basic_block.1} parent=5 // pred_check
      %p175 = pneg %p174
    $region30: #{basic_block.1} parent=5 // pred_check_branch
      %177 = sbr.rel (%p175) target = $region32
    $region31: #{basic_block.1} parent=5 // pred_region
      // Predicated region
      $region33: #{basic_block.1} parent=31 // pred_check
        %p178 = pneg %p31
      $region34: #{basic_block.1} parent=31 // pred_check_branch
        %180 = sbr.rel (%p178) target = $region36
      $region35: #{basic_block.1} parent=31 // pred_region
        %p181 = scmp.lt.s32.totalorder %s11, 1
        %s182 = scalar_select %p181, %s11, 1
        %s183 = smul.addr %s182, 32
        %s184 = smul.addr %s183, 8
        %s185 = scalar_lea.vmem %s0, %s184
      $region36: #{basic_block.1} parent=31 // pred_fallthru
        _
    $region32: #{basic_block.1} parent=5 // pred_fallthru
      _
    %p186 = scmp.le.s32.totalorder 1, %s11
    %p187 = scmp.lt.s32.totalorder %s11, 3
    %p188 = pnand %p186, %p187
    %p189 = pneg %p188
    // Predicated region
    $region37: #{basic_block.1} parent=5 // pred_check
      _
    $region38: #{basic_block.1} parent=5 // pred_check_branch
      %191 = sbr.rel (%p188) target = $region40
    $region39: #{basic_block.1} parent=5 // pred_region
      %s192 = ssub.s32 %s11, 1
      %p193 = scmp.lt.s32.totalorder %s16, 1
      %s194 = scalar_select %p193, %s16, 1
      %s195 = smul.addr %s194, 32
      %s196 = smul.addr %s195, 8
      %s197 = scalar_lea.vmem %s0, %s196
      %p198 = pneg %p37
      %p199 = pneg %p34
      %p200 = pneg %p58
      %p201 = pneg %p55
      %p202 = pneg %p79
      %p203 = pneg %p76
      %p204 = pneg %p100
      %p205 = pneg %p97
      %p206 = pneg %p121
      %p207 = pneg %p118
      %p208 = pneg %p147
      %p209 = pneg %p144
      %p210 = scmp.lt.s32.totalorder %s16, 1
      %s211 = scalar_select %p210, %s16, 1
      %s212 = smul.addr %s211, 32
      %s213 = smul.addr %s212, 8
      %s214 = scalar_lea.vmem %s5, %s213
      %p215 = scmp.lt.s32.totalorder %s16, 1
      %s216 = scalar_select %p215, %s16, 1
      %s217 = smul.addr %s216, 32
      %s218 = smul.addr %s217, 8
      %s219 = scalar_lea.vmem %s0, %s218
      %p220 = scmp.lt.s32.totalorder %s16, 1
      %s221 = scalar_select %p220, %s16, 1
      %s222 = smul.addr %s221, 32
      %s223 = smul.addr %s222, 8
      %s224 = scalar_lea.vmem %s5, %s223
      %vm226 = vcmask 27648
      %227 = vst.msk [vmem:[#allocation2] sm:$0xf] %vm226, 0
      %228 = vst.msk [vmem:[#allocation2 + $0x4] sm:$0xf] %vm226, 0
      %229 = vst.msk [vmem:[#allocation2 + $0x8] sm:$0xf] %vm226, 0
      %s230 = scalar_lea.vmem [#allocation2], 204
      %231 = vst.msk [vmem:[%s230] sm:$0xf] %vm226, 0
      %232 = vst.msk [vmem:[%s230 + $0x4] sm:$0xf] %vm226, 0
      %233 = vst.msk [vmem:[%s230 + $0x8] sm:$0xf] %vm226, 0
      %vm234 = vcmask 24576
      %vm235 = vsmask.f32 256
      %vm236 = vmand %vm234, %vm235
      %v237 = vld [vmem:[#allocation2] sm:$0x1]
      %v238 = vsel %vm236, 0, %v237
      %239 = vst [vmem:[#allocation2] sm:$0x1] %v238
      %v240 = vld [vmem:[#allocation2 + $0xc] sm:$0x1]
      %v241 = vsel %vm236, 0, %v240
      %242 = vst [vmem:[#allocation2 + $0xc] sm:$0x1] %v241
      %v243 = vld [vmem:[#allocation2 + $0x18] sm:$0x1]
      %v244 = vsel %vm236, 0, %v243
      %245 = vst [vmem:[#allocation2 + $0x18] sm:$0x1] %v244
      %v246 = vld [vmem:[#allocation2 + $0x24] sm:$0x1]
      %v247 = vsel %vm236, 0, %v246
      %248 = vst [vmem:[#allocation2 + $0x24] sm:$0x1] %v247
      %v249 = vld [vmem:[#allocation2 + $0x30] sm:$0x1]
      %v250 = vsel %vm236, 0, %v249
      %251 = vst [vmem:[#allocation2 + $0x30] sm:$0x1] %v250
      %v252 = vld [vmem:[#allocation2 + $0x3c] sm:$0x1]
      %v253 = vsel %vm236, 0, %v252
      %254 = vst [vmem:[#allocation2 + $0x3c] sm:$0x1] %v253
      %v255 = vld [vmem:[#allocation2 + $0x48] sm:$0x1]
      %v256 = vsel %vm236, 0, %v255
      %257 = vst [vmem:[#allocation2 + $0x48] sm:$0x1] %v256
      %v258 = vld [vmem:[#allocation2 + $0x54] sm:$0x1]
      %v259 = vsel %vm236, 0, %v258
      %260 = vst [vmem:[#allocation2 + $0x54] sm:$0x1] %v259
      %v261 = vld [vmem:[#allocation2 + $0x60] sm:$0x1]
      %v262 = vsel %vm236, 0, %v261
      %263 = vst [vmem:[#allocation2 + $0x60] sm:$0x1] %v262
      %v264 = vld [vmem:[#allocation2 + $0x6c] sm:$0x1]
      %v265 = vsel %vm236, 0, %v264
      %266 = vst [vmem:[#allocation2 + $0x6c] sm:$0x1] %v265
      %v267 = vld [vmem:[#allocation2 + $0x78] sm:$0x1]
      %v268 = vsel %vm236, 0, %v267
      %269 = vst [vmem:[#allocation2 + $0x78] sm:$0x1] %v268
      %v270 = vld [vmem:[#allocation2 + $0x84] sm:$0x1]
      %v271 = vsel %vm236, 0, %v270
      %272 = vst [vmem:[#allocation2 + $0x84] sm:$0x1] %v271
      %v273 = vld [vmem:[#allocation2 + $0x90] sm:$0x1]
      %v274 = vsel %vm236, 0, %v273
      %275 = vst [vmem:[#allocation2 + $0x90] sm:$0x1] %v274
      %v276 = vld [vmem:[#allocation2 + $0x9c] sm:$0x1]
      %v277 = vsel %vm236, 0, %v276
      %278 = vst [vmem:[#allocation2 + $0x9c] sm:$0x1] %v277
      %v279 = vld [vmem:[#allocation2 + $0xa8] sm:$0x1]
      %v280 = vsel %vm236, 0, %v279
      %281 = vst [vmem:[#allocation2 + $0xa8] sm:$0x1] %v280
      %v282 = vld [vmem:[#allocation2 + $0xb4] sm:$0x1]
      %v283 = vsel %vm236, 0, %v282
      %284 = vst [vmem:[#allocation2 + $0xb4] sm:$0x1] %v283
      %v285 = vld [vmem:[#allocation2 + $0xc0] sm:$0x1]
      %v286 = vsel %vm236, 0, %v285
      %287 = vst [vmem:[#allocation2 + $0xc0] sm:$0x1] %v286
      %v288 = vld [vmem:[#allocation2 + $0xcc] sm:$0x1]
      %v289 = vsel %vm236, 0, %v288
      %290 = vst [vmem:[#allocation2 + $0xcc] sm:$0x1] %v289
      %vm291 = vsmask.f32 7938
      %vm292 = vmand %vm234, %vm291
      %v293 = vld [vmem:[#allocation2 + $0x8] sm:$0x1]
      %v294 = vsel %vm292, 0, %v293
      %295 = vst [vmem:[#allocation2 + $0x8] sm:$0x1] %v294
      %v296 = vld [vmem:[#allocation2 + $0x14] sm:$0x1]
      %v297 = vsel %vm292, 0, %v296
      %298 = vst [vmem:[#allocation2 + $0x14] sm:$0x1] %v297
      %v299 = vld [vmem:[#allocation2 + $0x20] sm:$0x1]
      %v300 = vsel %vm292, 0, %v299
      %301 = vst [vmem:[#allocation2 + $0x20] sm:$0x1] %v300
      %v302 = vld [vmem:[#allocation2 + $0x2c] sm:$0x1]
      %v303 = vsel %vm292, 0, %v302
      %304 = vst [vmem:[#allocation2 + $0x2c] sm:$0x1] %v303
      %v305 = vld [vmem:[#allocation2 + $0x38] sm:$0x1]
      %v306 = vsel %vm292, 0, %v305
      %307 = vst [vmem:[#allocation2 + $0x38] sm:$0x1] %v306
      %v308 = vld [vmem:[#allocation2 + $0x44] sm:$0x1]
      %v309 = vsel %vm292, 0, %v308
      %310 = vst [vmem:[#allocation2 + $0x44] sm:$0x1] %v309
      %v311 = vld [vmem:[#allocation2 + $0x50] sm:$0x1]
      %v312 = vsel %vm292, 0, %v311
      %313 = vst [vmem:[#allocation2 + $0x50] sm:$0x1] %v312
      %v314 = vld [vmem:[#allocation2 + $0x5c] sm:$0x1]
      %v315 = vsel %vm292, 0, %v314
      %316 = vst [vmem:[#allocation2 + $0x5c] sm:$0x1] %v315
      %v317 = vld [vmem:[#allocation2 + $0x68] sm:$0x1]
      %v318 = vsel %vm292, 0, %v317
      %319 = vst [vmem:[#allocation2 + $0x68] sm:$0x1] %v318
      %v320 = vld [vmem:[#allocation2 + $0x74] sm:$0x1]
      %v321 = vsel %vm292, 0, %v320
      %322 = vst [vmem:[#allocation2 + $0x74] sm:$0x1] %v321
      %v323 = vld [vmem:[#allocation2 + $0x80] sm:$0x1]
      %v324 = vsel %vm292, 0, %v323
      %325 = vst [vmem:[#allocation2 + $0x80] sm:$0x1] %v324
      %v326 = vld [vmem:[#allocation2 + $0x8c] sm:$0x1]
      %v327 = vsel %vm292, 0, %v326
      %328 = vst [vmem:[#allocation2 + $0x8c] sm:$0x1] %v327
      %v329 = vld [vmem:[#allocation2 + $0x98] sm:$0x1]
      %v330 = vsel %vm292, 0, %v329
      %331 = vst [vmem:[#allocation2 + $0x98] sm:$0x1] %v330
      %v332 = vld [vmem:[#allocation2 + $0xa4] sm:$0x1]
      %v333 = vsel %vm292, 0, %v332
      %334 = vst [vmem:[#allocation2 + $0xa4] sm:$0x1] %v333
      %v335 = vld [vmem:[#allocation2 + $0xb0] sm:$0x1]
      %v336 = vsel %vm292, 0, %v335
      %337 = vst [vmem:[#allocation2 + $0xb0] sm:$0x1] %v336
      %v338 = vld [vmem:[#allocation2 + $0xbc] sm:$0x1]
      %v339 = vsel %vm292, 0, %v338
      %340 = vst [vmem:[#allocation2 + $0xbc] sm:$0x1] %v339
      %v341 = vld [vmem:[#allocation2 + $0xc8] sm:$0x1]
      %v342 = vsel %vm292, 0, %v341
      %343 = vst [vmem:[#allocation2 + $0xc8] sm:$0x1] %v342
      %v344 = vld [vmem:[#allocation2 + $0xd4] sm:$0x1]
      %v345 = vsel %vm292, 0, %v344
      %346 = vst [vmem:[#allocation2 + $0xd4] sm:$0x1] %v345
      %347 = vst.msk [vmem:[#allocation3] sm:$0xf] %vm226, 0
      %348 = vst.msk [vmem:[#allocation3 + $0x4] sm:$0xf] %vm226, 0
      %349 = vst.msk [vmem:[#allocation3 + $0x8] sm:$0xf] %vm226, 0
      %s350 = scalar_lea.vmem [#allocation3], 204
      %351 = vst.msk [vmem:[%s350] sm:$0xf] %vm226, 0
      %352 = vst.msk [vmem:[%s350 + $0x4] sm:$0xf] %vm226, 0
      %353 = vst.msk [vmem:[%s350 + $0x8] sm:$0xf] %vm226, 0
      %v354 = vld [vmem:[#allocation3] sm:$0x1]
      %v355 = vsel %vm236, 0, %v354
      %356 = vst [vmem:[#allocation3] sm:$0x1] %v355
      %v357 = vld [vmem:[#allocation3 + $0xc] sm:$0x1]
      %v358 = vsel %vm236, 0, %v357
      %359 = vst [vmem:[#allocation3 + $0xc] sm:$0x1] %v358
      %v360 = vld [vmem:[#allocation3 + $0x18] sm:$0x1]
      %v361 = vsel %vm236, 0, %v360
      %362 = vst [vmem:[#allocation3 + $0x18] sm:$0x1] %v361
      %v363 = vld [vmem:[#allocation3 + $0x24] sm:$0x1]
      %v364 = vsel %vm236, 0, %v363
      %365 = vst [vmem:[#allocation3 + $0x24] sm:$0x1] %v364
      %v366 = vld [vmem:[#allocation3 + $0x30] sm:$0x1]
      %v367 = vsel %vm236, 0, %v366
      %368 = vst [vmem:[#allocation3 + $0x30] sm:$0x1] %v367
      %v369 = vld [vmem:[#allocation3 + $0x3c] sm:$0x1]
      %v370 = vsel %vm236, 0, %v369
      %371 = vst [vmem:[#allocation3 + $0x3c] sm:$0x1] %v370
      %v372 = vld [vmem:[#allocation3 + $0x48] sm:$0x1]
      %v373 = vsel %vm236, 0, %v372
      %374 = vst [vmem:[#allocation3 + $0x48] sm:$0x1] %v373
      %v375 = vld [vmem:[#allocation3 + $0x54] sm:$0x1]
      %v376 = vsel %vm236, 0, %v375
      %377 = vst [vmem:[#allocation3 + $0x54] sm:$0x1] %v376
      %v378 = vld [vmem:[#allocation3 + $0x60] sm:$0x1]
      %v379 = vsel %vm236, 0, %v378
      %380 = vst [vmem:[#allocation3 + $0x60] sm:$0x1] %v379
      %v381 = vld [vmem:[#allocation3 + $0x6c] sm:$0x1]
      %v382 = vsel %vm236, 0, %v381
      %383 = vst [vmem:[#allocation3 + $0x6c] sm:$0x1] %v382
      %v384 = vld [vmem:[#allocation3 + $0x78] sm:$0x1]
      %v385 = vsel %vm236, 0, %v384
      %386 = vst [vmem:[#allocation3 + $0x78] sm:$0x1] %v385
      %v387 = vld [vmem:[#allocation3 + $0x84] sm:$0x1]
      %v388 = vsel %vm236, 0, %v387
      %389 = vst [vmem:[#allocation3 + $0x84] sm:$0x1] %v388
      %v390 = vld [vmem:[#allocation3 + $0x90] sm:$0x1]
      %v391 = vsel %vm236, 0, %v390
      %392 = vst [vmem:[#allocation3 + $0x90] sm:$0x1] %v391
      %v393 = vld [vmem:[#allocation3 + $0x9c] sm:$0x1]
      %v394 = vsel %vm236, 0, %v393
      %395 = vst [vmem:[#allocation3 + $0x9c] sm:$0x1] %v394
      %v396 = vld [vmem:[#allocation3 + $0xa8] sm:$0x1]
      %v397 = vsel %vm236, 0, %v396
      %398 = vst [vmem:[#allocation3 + $0xa8] sm:$0x1] %v397
      %v399 = vld [vmem:[#allocation3 + $0xb4] sm:$0x1]
      %v400 = vsel %vm236, 0, %v399
      %401 = vst [vmem:[#allocation3 + $0xb4] sm:$0x1] %v400
      %v402 = vld [vmem:[#allocation3 + $0xc0] sm:$0x1]
      %v403 = vsel %vm236, 0, %v402
      %404 = vst [vmem:[#allocation3 + $0xc0] sm:$0x1] %v403
      %v405 = vld [vmem:[#allocation3 + $0xcc] sm:$0x1]
      %v406 = vsel %vm236, 0, %v405
      %407 = vst [vmem:[#allocation3 + $0xcc] sm:$0x1] %v406
      %v408 = vld [vmem:[#allocation3 + $0x8] sm:$0x1]
      %v409 = vsel %vm292, 0, %v408
      %410 = vst [vmem:[#allocation3 + $0x8] sm:$0x1] %v409
      %v411 = vld [vmem:[#allocation3 + $0x14] sm:$0x1]
      %v412 = vsel %vm292, 0, %v411
      %413 = vst [vmem:[#allocation3 + $0x14] sm:$0x1] %v412
      %v414 = vld [vmem:[#allocation3 + $0x20] sm:$0x1]
      %v415 = vsel %vm292, 0, %v414
      %416 = vst [vmem:[#allocation3 + $0x20] sm:$0x1] %v415
      %v417 = vld [vmem:[#allocation3 + $0x2c] sm:$0x1]
      %v418 = vsel %vm292, 0, %v417
      %419 = vst [vmem:[#allocation3 + $0x2c] sm:$0x1] %v418
      %v420 = vld [vmem:[#allocation3 + $0x38] sm:$0x1]
      %v421 = vsel %vm292, 0, %v420
      %422 = vst [vmem:[#allocation3 + $0x38] sm:$0x1] %v421
      %v423 = vld [vmem:[#allocation3 + $0x44] sm:$0x1]
      %v424 = vsel %vm292, 0, %v423
      %425 = vst [vmem:[#allocation3 + $0x44] sm:$0x1] %v424
      %v426 = vld [vmem:[#allocation3 + $0x50] sm:$0x1]
      %v427 = vsel %vm292, 0, %v426
      %428 = vst [vmem:[#allocation3 + $0x50] sm:$0x1] %v427
      %v429 = vld [vmem:[#allocation3 + $0x5c] sm:$0x1]
      %v430 = vsel %vm292, 0, %v429
      %431 = vst [vmem:[#allocation3 + $0x5c] sm:$0x1] %v430
      %v432 = vld [vmem:[#allocation3 + $0x68] sm:$0x1]
      %v433 = vsel %vm292, 0, %v432
      %434 = vst [vmem:[#allocation3 + $0x68] sm:$0x1] %v433
      %v435 = vld [vmem:[#allocation3 + $0x74] sm:$0x1]
      %v436 = vsel %vm292, 0, %v435
      %437 = vst [vmem:[#allocation3 + $0x74] sm:$0x1] %v436
      %v438 = vld [vmem:[#allocation3 + $0x80] sm:$0x1]
      %v439 = vsel %vm292, 0, %v438
      %440 = vst [vmem:[#allocation3 + $0x80] sm:$0x1] %v439
      %v441 = vld [vmem:[#allocation3 + $0x8c] sm:$0x1]
      %v442 = vsel %vm292, 0, %v441
      %443 = vst [vmem:[#allocation3 + $0x8c] sm:$0x1] %v442
      %v444 = vld [vmem:[#allocation3 + $0x98] sm:$0x1]
      %v445 = vsel %vm292, 0, %v444
      %446 = vst [vmem:[#allocation3 + $0x98] sm:$0x1] %v445
      %v447 = vld [vmem:[#allocation3 + $0xa4] sm:$0x1]
      %v448 = vsel %vm292, 0, %v447
      %449 = vst [vmem:[#allocation3 + $0xa4] sm:$0x1] %v448
      %v450 = vld [vmem:[#allocation3 + $0xb0] sm:$0x1]
      %v451 = vsel %vm292, 0, %v450
      %452 = vst [vmem:[#allocation3 + $0xb0] sm:$0x1] %v451
      %v453 = vld [vmem:[#allocation3 + $0xbc] sm:$0x1]
      %v454 = vsel %vm292, 0, %v453
      %455 = vst [vmem:[#allocation3 + $0xbc] sm:$0x1] %v454
      %v456 = vld [vmem:[#allocation3 + $0xc8] sm:$0x1]
      %v457 = vsel %vm292, 0, %v456
      %458 = vst [vmem:[#allocation3 + $0xc8] sm:$0x1] %v457
      %v459 = vld [vmem:[#allocation3 + $0xd4] sm:$0x1]
      %v460 = vsel %vm292, 0, %v459
      %461 = vst [vmem:[#allocation3 + $0xd4] sm:$0x1] %v460
      %v462 = vld [vmem:[%s219] sm:$0xff]
      %v463 = vld [vmem:[%s219 + $0x8] sm:$0xff]
      %v464 = vld [vmem:[%s219 + $0x10] sm:$0xff]
      %v465 = vld [vmem:[%s219 + $0x18] sm:$0xff]
      %v466 = vld [vmem:[%s219 + $0x20] sm:$0xff]
      %v467 = vld [vmem:[%s219 + $0x28] sm:$0xff]
      %v468 = vld [vmem:[%s219 + $0x30] sm:$0xff]
      %v469 = vld [vmem:[%s219 + $0x38] sm:$0xff]
      %v470 = vld [vmem:[%s219 + $0x40] sm:$0xff]
      %v471 = vld [vmem:[%s219 + $0x48] sm:$0xff]
      %v472 = vld [vmem:[%s219 + $0x50] sm:$0xff]
      %v473 = vld [vmem:[%s219 + $0x58] sm:$0xff]
      %v474 = vld [vmem:[%s219 + $0x60] sm:$0xff]
      %v475 = vld [vmem:[%s219 + $0x68] sm:$0xff]
      %v476 = vld [vmem:[%s219 + $0x70] sm:$0xff]
      %v477 = vld [vmem:[%s219 + $0x78] sm:$0xff]
      %v478 = vld [vmem:[%s219 + $0x80] sm:$0xff]
      %v479 = vld [vmem:[%s219 + $0x88] sm:$0xff]
      %v480 = vld [vmem:[%s219 + $0x90] sm:$0xff]
      %v481 = vld [vmem:[%s219 + $0x98] sm:$0xff]
      %v482 = vld [vmem:[%s219 + $0xa0] sm:$0xff]
      %v483 = vld [vmem:[%s219 + $0xa8] sm:$0xff]
      %v484 = vld [vmem:[%s219 + $0xb0] sm:$0xff]
      %v485 = vld [vmem:[%s219 + $0xb8] sm:$0xff]
      %v486 = vld [vmem:[%s219 + $0xc0] sm:$0xff]
      %v487 = vld [vmem:[%s219 + $0xc8] sm:$0xff]
      %v488 = vld [vmem:[%s219 + $0xd0] sm:$0xff]
      %v489 = vld [vmem:[%s219 + $0xd8] sm:$0xff]
      %v490 = vld [vmem:[%s219 + $0xe0] sm:$0xff]
      %v491 = vld [vmem:[%s219 + $0xe8] sm:$0xff]
      %v492 = vld [vmem:[%s219 + $0xf0] sm:$0xff]
      %v493 = vld [vmem:[%s219 + $0xf8] sm:$0xff]
      %v494 = vpack.c.bf16 %v463, %v462
      %v495 = vpack.c.bf16 %v465, %v464
      %v496 = vpack.c.bf16 %v467, %v466
      %v497 = vpack.c.bf16 %v469, %v468
      %v498 = vpack.c.bf16 %v471, %v470
      %v499 = vpack.c.bf16 %v473, %v472
      %v500 = vpack.c.bf16 %v475, %v474
      %v501 = vpack.c.bf16 %v477, %v476
      %v502 = vpack.c.bf16 %v479, %v478
      %v503 = vpack.c.bf16 %v481, %v480
      %v504 = vpack.c.bf16 %v483, %v482
      %v505 = vpack.c.bf16 %v485, %v484
      %v506 = vpack.c.bf16 %v487, %v486
      %v507 = vpack.c.bf16 %v489, %v488
      %v508 = vpack.c.bf16 %v491, %v490
      %v509 = vpack.c.bf16 %v493, %v492
      %v526 = vunpack.c.l.b16 %v494
      %v527 = vunpack.c.h.b16 %v494
      %v528 = vunpack.c.l.b16 %v495
      %v529 = vunpack.c.h.b16 %v495
      %v530 = vunpack.c.l.b16 %v496
      %v531 = vunpack.c.h.b16 %v496
      %v532 = vunpack.c.l.b16 %v497
      %v533 = vunpack.c.h.b16 %v497
      %v534 = vunpack.c.l.b16 %v498
      %v535 = vunpack.c.h.b16 %v498
      %v536 = vunpack.c.l.b16 %v499
      %v537 = vunpack.c.h.b16 %v499
      %v538 = vunpack.c.l.b16 %v500
      %v539 = vunpack.c.h.b16 %v500
      %v540 = vunpack.c.l.b16 %v501
      %v541 = vunpack.c.h.b16 %v501
      %v542 = vunpack.c.l.b16 %v502
      %v543 = vunpack.c.h.b16 %v502
      %v544 = vunpack.c.l.b16 %v503
      %v545 = vunpack.c.h.b16 %v503
      %v546 = vunpack.c.l.b16 %v504
      %v547 = vunpack.c.h.b16 %v504
      %v548 = vunpack.c.l.b16 %v505
      %v549 = vunpack.c.h.b16 %v505
      %v550 = vunpack.c.l.b16 %v506
      %v551 = vunpack.c.h.b16 %v506
      %v552 = vunpack.c.l.b16 %v507
      %v553 = vunpack.c.h.b16 %v507
      %v554 = vunpack.c.l.b16 %v508
      %v555 = vunpack.c.h.b16 %v508
      %v556 = vunpack.c.l.b16 %v509
      %v557 = vunpack.c.h.b16 %v509
      %v558 = vpack.c.b16 %v526, %v526
      %v559 = vpack.c.b16 %v527, %v527
      %v560 = vpack.c.b16 %v528, %v528
      %v561 = vpack.c.b16 %v529, %v529
      %v562 = vpack.c.b16 %v530, %v530
      %v563 = vpack.c.b16 %v531, %v531
      %v564 = vpack.c.b16 %v532, %v532
      %v565 = vpack.c.b16 %v533, %v533
      %v566 = vpack.c.b16 %v534, %v534
      %v567 = vpack.c.b16 %v535, %v535
      %v568 = vpack.c.b16 %v536, %v536
      %v569 = vpack.c.b16 %v537, %v537
      %v570 = vpack.c.b16 %v538, %v538
      %v571 = vpack.c.b16 %v539, %v539
      %v572 = vpack.c.b16 %v540, %v540
      %v573 = vpack.c.b16 %v541, %v541
      %v574 = vpack.c.b16 %v542, %v542
      %v575 = vpack.c.b16 %v543, %v543
      %v576 = vpack.c.b16 %v544, %v544
      %v577 = vpack.c.b16 %v545, %v545
      %v578 = vpack.c.b16 %v546, %v546
      %v579 = vpack.c.b16 %v547, %v547
      %v580 = vpack.c.b16 %v548, %v548
      %v581 = vpack.c.b16 %v549, %v549
      %v582 = vpack.c.b16 %v550, %v550
      %v583 = vpack.c.b16 %v551, %v551
      %v584 = vpack.c.b16 %v552, %v552
      %v585 = vpack.c.b16 %v553, %v553
      %v586 = vpack.c.b16 %v554, %v554
      %v587 = vpack.c.b16 %v555, %v555
      %v588 = vpack.c.b16 %v556, %v556
      %v589 = vpack.c.b16 %v557, %v557
      %vm590 = vsmask.f32 4368
      %vm591 = vmor %vm235, %vm590
      %v593 = vshrl.u32 %v558, 16
      %v595 = vrot.slane %v593, 7
      %v596 = vshll.u32 %v558, 16
      %v598 = vor.u32 %v595, %v596
      %v599 = vrot.slane %v595, 4
      %v601 = vshrl.u32 %v559, 16
      %v603 = vrot.slane %v601, 7
      %v604 = vshll.u32 %v559, 16
      %v606 = vor.u32 %v603, %v604
      %v607 = vsel %vm591, %v599, %v606
      %v608 = vrot.slane %v603, 4
      %v610 = vshrl.u32 %v560, 16
      %v612 = vrot.slane %v610, 7
      %v613 = vshll.u32 %v560, 16
      %v615 = vor.u32 %v612, %v613
      %v616 = vrot.slane %v612, 4
      %v618 = vshrl.u32 %v561, 16
      %v620 = vrot.slane %v618, 7
      %v621 = vshll.u32 %v561, 16
      %v623 = vor.u32 %v620, %v621
      %v624 = vsel %vm591, %v616, %v623
      %v625 = vrot.slane %v620, 4
      %v627 = vshrl.u32 %v562, 16
      %v629 = vrot.slane %v627, 7
      %v630 = vshll.u32 %v562, 16
      %v632 = vor.u32 %v629, %v630
      %v633 = vrot.slane %v629, 4
      %v635 = vshrl.u32 %v563, 16
      %v637 = vrot.slane %v635, 7
      %v638 = vshll.u32 %v563, 16
      %v640 = vor.u32 %v637, %v638
      %v641 = vsel %vm591, %v633, %v640
      %v642 = vrot.slane %v637, 4
      %v644 = vshrl.u32 %v564, 16
      %v646 = vrot.slane %v644, 7
      %v647 = vshll.u32 %v564, 16
      %v649 = vor.u32 %v646, %v647
      %v650 = vrot.slane %v646, 4
      %v652 = vshrl.u32 %v565, 16
      %v654 = vrot.slane %v652, 7
      %v655 = vshll.u32 %v565, 16
      %v657 = vor.u32 %v654, %v655
      %v658 = vsel %vm591, %v650, %v657
      %v659 = vrot.slane %v654, 4
      %v661 = vshrl.u32 %v566, 16
      %v663 = vrot.slane %v661, 7
      %v664 = vshll.u32 %v566, 16
      %v666 = vor.u32 %v663, %v664
      %v667 = vrot.slane %v663, 4
      %v669 = vshrl.u32 %v567, 16
      %v671 = vrot.slane %v669, 7
      %v672 = vshll.u32 %v567, 16
      %v674 = vor.u32 %v671, %v672
      %v675 = vsel %vm591, %v667, %v674
      %v676 = vrot.slane %v671, 4
      %v678 = vshrl.u32 %v568, 16
      %v680 = vrot.slane %v678, 7
      %v681 = vshll.u32 %v568, 16
      %v683 = vor.u32 %v680, %v681
      %v684 = vrot.slane %v680, 4
      %v686 = vshrl.u32 %v569, 16
      %v688 = vrot.slane %v686, 7
      %v689 = vshll.u32 %v569, 16
      %v691 = vor.u32 %v688, %v689
      %v692 = vsel %vm591, %v684, %v691
      %v693 = vrot.slane %v688, 4
      %v695 = vshrl.u32 %v570, 16
      %v697 = vrot.slane %v695, 7
      %v698 = vshll.u32 %v570, 16
      %v700 = vor.u32 %v697, %v698
      %v701 = vrot.slane %v697, 4
      %v703 = vshrl.u32 %v571, 16
      %v705 = vrot.slane %v703, 7
      %v706 = vshll.u32 %v571, 16
      %v708 = vor.u32 %v705, %v706
      %v709 = vsel %vm591, %v701, %v708
      %v710 = vrot.slane %v705, 4
      %v712 = vshrl.u32 %v572, 16
      %v714 = vrot.slane %v712, 7
      %v715 = vshll.u32 %v572, 16
      %v717 = vor.u32 %v714, %v715
      %v718 = vrot.slane %v714, 4
      %v720 = vshrl.u32 %v573, 16
      %v722 = vrot.slane %v720, 7
      %v723 = vshll.u32 %v573, 16
      %v725 = vor.u32 %v722, %v723
      %v726 = vsel %vm591, %v718, %v725
      %v727 = vrot.slane %v722, 4
      %v729 = vshrl.u32 %v574, 16
      %v731 = vrot.slane %v729, 7
      %v732 = vshll.u32 %v574, 16
      %v734 = vor.u32 %v731, %v732
      %v735 = vrot.slane %v731, 4
      %v737 = vshrl.u32 %v575, 16
      %v739 = vrot.slane %v737, 7
      %v740 = vshll.u32 %v575, 16
      %v742 = vor.u32 %v739, %v740
      %v743 = vsel %vm591, %v735, %v742
      %v744 = vrot.slane %v739, 4
      %v746 = vshrl.u32 %v576, 16
      %v748 = vrot.slane %v746, 7
      %v749 = vshll.u32 %v576, 16
      %v751 = vor.u32 %v748, %v749
      %v752 = vrot.slane %v748, 4
      %v754 = vshrl.u32 %v577, 16
      %v756 = vrot.slane %v754, 7
      %v757 = vshll.u32 %v577, 16
      %v759 = vor.u32 %v756, %v757
      %v760 = vsel %vm591, %v752, %v759
      %v761 = vrot.slane %v756, 4
      %v763 = vshrl.u32 %v578, 16
      %v765 = vrot.slane %v763, 7
      %v766 = vshll.u32 %v578, 16
      %v768 = vor.u32 %v765, %v766
      %v769 = vrot.slane %v765, 4
      %v771 = vshrl.u32 %v579, 16
      %v773 = vrot.slane %v771, 7
      %v774 = vshll.u32 %v579, 16
      %v776 = vor.u32 %v773, %v774
      %v777 = vsel %vm591, %v769, %v776
      %v778 = vrot.slane %v773, 4
      %v780 = vshrl.u32 %v580, 16
      %v782 = vrot.slane %v780, 7
      %v783 = vshll.u32 %v580, 16
      %v785 = vor.u32 %v782, %v783
      %v786 = vrot.slane %v782, 4
      %v788 = vshrl.u32 %v581, 16
      %v790 = vrot.slane %v788, 7
      %v791 = vshll.u32 %v581, 16
      %v793 = vor.u32 %v790, %v791
      %v794 = vsel %vm591, %v786, %v793
      %v795 = vrot.slane %v790, 4
      %v797 = vshrl.u32 %v582, 16
      %v799 = vrot.slane %v797, 7
      %v800 = vshll.u32 %v582, 16
      %v802 = vor.u32 %v799, %v800
      %v803 = vrot.slane %v799, 4
      %v805 = vshrl.u32 %v583, 16
      %v807 = vrot.slane %v805, 7
      %v808 = vshll.u32 %v583, 16
      %v810 = vor.u32 %v807, %v808
      %v811 = vsel %vm591, %v803, %v810
      %v812 = vrot.slane %v807, 4
      %v814 = vshrl.u32 %v584, 16
      %v816 = vrot.slane %v814, 7
      %v817 = vshll.u32 %v584, 16
      %v819 = vor.u32 %v816, %v817
      %v820 = vrot.slane %v816, 4
      %v822 = vshrl.u32 %v585, 16
      %v824 = vrot.slane %v822, 7
      %v825 = vshll.u32 %v585, 16
      %v827 = vor.u32 %v824, %v825
      %v828 = vsel %vm591, %v820, %v827
      %v829 = vrot.slane %v824, 4
      %v831 = vshrl.u32 %v586, 16
      %v833 = vrot.slane %v831, 7
      %v834 = vshll.u32 %v586, 16
      %v836 = vor.u32 %v833, %v834
      %v837 = vrot.slane %v833, 4
      %v839 = vshrl.u32 %v587, 16
      %v841 = vrot.slane %v839, 7
      %v842 = vshll.u32 %v587, 16
      %v844 = vor.u32 %v841, %v842
      %v845 = vsel %vm591, %v837, %v844
      %v846 = vrot.slane %v841, 4
      %v848 = vshrl.u32 %v588, 16
      %v850 = vrot.slane %v848, 7
      %v851 = vshll.u32 %v588, 16
      %v853 = vor.u32 %v850, %v851
      %v854 = vrot.slane %v850, 4
      %v856 = vshrl.u32 %v589, 16
      %v858 = vrot.slane %v856, 7
      %v859 = vshll.u32 %v589, 16
      %v861 = vor.u32 %v858, %v859
      %v862 = vsel %vm591, %v854, %v861
      %v863 = vrot.slane %v858, 4
      %s912 = scalar_lea.vmem [#allocation2], 12
      %vm913 = vcmask 27648
      %vm914 = vmand %vm913, %vm291
      %v915 = vld [vmem:[%s912] sm:$0xf]
      %v916 = vsel %vm914, %v598, %v915
      %917 = vst [vmem:[%s912] sm:$0xf] %v916
      %918 = vst.msk [vmem:[%s912 + $0x4] sm:$0xf] %vm226, %v607
      %v919 = vld [vmem:[%s912 + $0x8] sm:$0x1]
      %v920 = vsel %vm236, %v608, %v919
      %921 = vst [vmem:[%s912 + $0x8] sm:$0x1] %v920
      %v922 = vld [vmem:[%s912 + $0xc] sm:$0xf]
      %v923 = vsel %vm914, %v615, %v922
      %924 = vst [vmem:[%s912 + $0xc] sm:$0xf] %v923
      %925 = vst.msk [vmem:[%s912 + $0x10] sm:$0xf] %vm226, %v624
      %v926 = vld [vmem:[%s912 + $0x14] sm:$0x1]
      %v927 = vsel %vm236, %v625, %v926
      %928 = vst [vmem:[%s912 + $0x14] sm:$0x1] %v927
      %v929 = vld [vmem:[%s912 + $0x18] sm:$0xf]
      %v930 = vsel %vm914, %v632, %v929
      %931 = vst [vmem:[%s912 + $0x18] sm:$0xf] %v930
      %932 = vst.msk [vmem:[%s912 + $0x1c] sm:$0xf] %vm226, %v641
      %v933 = vld [vmem:[%s912 + $0x20] sm:$0x1]
      %v934 = vsel %vm236, %v642, %v933
      %935 = vst [vmem:[%s912 + $0x20] sm:$0x1] %v934
      %v936 = vld [vmem:[%s912 + $0x24] sm:$0xf]
      %v937 = vsel %vm914, %v649, %v936
      %938 = vst [vmem:[%s912 + $0x24] sm:$0xf] %v937
      %939 = vst.msk [vmem:[%s912 + $0x28] sm:$0xf] %vm226, %v658
      %v940 = vld [vmem:[%s912 + $0x2c] sm:$0x1]
      %v941 = vsel %vm236, %v659, %v940
      %942 = vst [vmem:[%s912 + $0x2c] sm:$0x1] %v941
      %v943 = vld [vmem:[%s912 + $0x30] sm:$0xf]
      %v944 = vsel %vm914, %v666, %v943
      %945 = vst [vmem:[%s912 + $0x30] sm:$0xf] %v944
      %946 = vst.msk [vmem:[%s912 + $0x34] sm:$0xf] %vm226, %v675
      %v947 = vld [vmem:[%s912 + $0x38] sm:$0x1]
      %v948 = vsel %vm236, %v676, %v947
      %949 = vst [vmem:[%s912 + $0x38] sm:$0x1] %v948
      %v950 = vld [vmem:[%s912 + $0x3c] sm:$0xf]
      %v951 = vsel %vm914, %v683, %v950
      %952 = vst [vmem:[%s912 + $0x3c] sm:$0xf] %v951
      %953 = vst.msk [vmem:[%s912 + $0x40] sm:$0xf] %vm226, %v692
      %v954 = vld [vmem:[%s912 + $0x44] sm:$0x1]
      %v955 = vsel %vm236, %v693, %v954
      %956 = vst [vmem:[%s912 + $0x44] sm:$0x1] %v955
      %v957 = vld [vmem:[%s912 + $0x48] sm:$0xf]
      %v958 = vsel %vm914, %v700, %v957
      %959 = vst [vmem:[%s912 + $0x48] sm:$0xf] %v958
      %960 = vst.msk [vmem:[%s912 + $0x4c] sm:$0xf] %vm226, %v709
      %v961 = vld [vmem:[%s912 + $0x50] sm:$0x1]
      %v962 = vsel %vm236, %v710, %v961
      %963 = vst [vmem:[%s912 + $0x50] sm:$0x1] %v962
      %v964 = vld [vmem:[%s912 + $0x54] sm:$0xf]
      %v965 = vsel %vm914, %v717, %v964
      %966 = vst [vmem:[%s912 + $0x54] sm:$0xf] %v965
      %967 = vst.msk [vmem:[%s912 + $0x58] sm:$0xf] %vm226, %v726
      %v968 = vld [vmem:[%s912 + $0x5c] sm:$0x1]
      %v969 = vsel %vm236, %v727, %v968
      %970 = vst [vmem:[%s912 + $0x5c] sm:$0x1] %v969
      %v971 = vld [vmem:[%s912 + $0x60] sm:$0xf]
      %v972 = vsel %vm914, %v734, %v971
      %973 = vst [vmem:[%s912 + $0x60] sm:$0xf] %v972
      %974 = vst.msk [vmem:[%s912 + $0x64] sm:$0xf] %vm226, %v743
      %v975 = vld [vmem:[%s912 + $0x68] sm:$0x1]
      %v976 = vsel %vm236, %v744, %v975
      %977 = vst [vmem:[%s912 + $0x68] sm:$0x1] %v976
      %v978 = vld [vmem:[%s912 + $0x6c] sm:$0xf]
      %v979 = vsel %vm914, %v751, %v978
      %980 = vst [vmem:[%s912 + $0x6c] sm:$0xf] %v979
      %981 = vst.msk [vmem:[%s912 + $0x70] sm:$0xf] %vm226, %v760
      %v982 = vld [vmem:[%s912 + $0x74] sm:$0x1]
      %v983 = vsel %vm236, %v761, %v982
      %984 = vst [vmem:[%s912 + $0x74] sm:$0x1] %v983
      %v985 = vld [vmem:[%s912 + $0x78] sm:$0xf]
      %v986 = vsel %vm914, %v768, %v985
      %987 = vst [vmem:[%s912 + $0x78] sm:$0xf] %v986
      %988 = vst.msk [vmem:[%s912 + $0x7c] sm:$0xf] %vm226, %v777
      %v989 = vld [vmem:[%s912 + $0x80] sm:$0x1]
      %v990 = vsel %vm236, %v778, %v989
      %991 = vst [vmem:[%s912 + $0x80] sm:$0x1] %v990
      %v992 = vld [vmem:[%s912 + $0x84] sm:$0xf]
      %v993 = vsel %vm914, %v785, %v992
      %994 = vst [vmem:[%s912 + $0x84] sm:$0xf] %v993
      %995 = vst.msk [vmem:[%s912 + $0x88] sm:$0xf] %vm226, %v794
      %v996 = vld [vmem:[%s912 + $0x8c] sm:$0x1]
      %v997 = vsel %vm236, %v795, %v996
      %998 = vst [vmem:[%s912 + $0x8c] sm:$0x1] %v997
      %v999 = vld [vmem:[%s912 + $0x90] sm:$0xf]
      %v1000 = vsel %vm914, %v802, %v999
      %1001 = vst [vmem:[%s912 + $0x90] sm:$0xf] %v1000
      %1002 = vst.msk [vmem:[%s912 + $0x94] sm:$0xf] %vm226, %v811
      %v1003 = vld [vmem:[%s912 + $0x98] sm:$0x1]
      %v1004 = vsel %vm236, %v812, %v1003
      %1005 = vst [vmem:[%s912 + $0x98] sm:$0x1] %v1004
      %v1006 = vld [vmem:[%s912 + $0x9c] sm:$0xf]
      %v1007 = vsel %vm914, %v819, %v1006
      %1008 = vst [vmem:[%s912 + $0x9c] sm:$0xf] %v1007
      %1009 = vst.msk [vmem:[%s912 + $0xa0] sm:$0xf] %vm226, %v828
      %v1010 = vld [vmem:[%s912 + $0xa4] sm:$0x1]
      %v1011 = vsel %vm236, %v829, %v1010
      %1012 = vst [vmem:[%s912 + $0xa4] sm:$0x1] %v1011
      %v1013 = vld [vmem:[%s912 + $0xa8] sm:$0xf]
      %v1014 = vsel %vm914, %v836, %v1013
      %1015 = vst [vmem:[%s912 + $0xa8] sm:$0xf] %v1014
      %1016 = vst.msk [vmem:[%s912 + $0xac] sm:$0xf] %vm226, %v845
      %v1017 = vld [vmem:[%s912 + $0xb0] sm:$0x1]
      %v1018 = vsel %vm236, %v846, %v1017
      %1019 = vst [vmem:[%s912 + $0xb0] sm:$0x1] %v1018
      %v1020 = vld [vmem:[%s912 + $0xb4] sm:$0xf]
      %v1021 = vsel %vm914, %v853, %v1020
      %1022 = vst [vmem:[%s912 + $0xb4] sm:$0xf] %v1021
      %1023 = vst.msk [vmem:[%s912 + $0xb8] sm:$0xf] %vm226, %v862
      %v1024 = vld [vmem:[%s912 + $0xbc] sm:$0x1]
      %v1025 = vsel %vm236, %v863, %v1024
      %1026 = vst [vmem:[%s912 + $0xbc] sm:$0x1] %v1025
      %v1027 = vld [vmem:[#allocation2] sm:$0xf]
      %v1028 = vld [vmem:[#allocation2 + $0x4] sm:$0xf]
      %v1029 = vld [vmem:[#allocation2 + $0xc] sm:$0xf]
      %v1030 = vld [vmem:[#allocation2 + $0x10] sm:$0xf]
      %v1031 = vld [vmem:[#allocation2 + $0x18] sm:$0xf]
      %v1032 = vld [vmem:[#allocation2 + $0x1c] sm:$0xf]
      %v1033 = vld [vmem:[#allocation2 + $0x24] sm:$0xf]
      %v1034 = vld [vmem:[#allocation2 + $0x28] sm:$0xf]
      %v1035 = vld [vmem:[#allocation2 + $0x30] sm:$0xf]
      %v1036 = vld [vmem:[#allocation2 + $0x34] sm:$0xf]
      %v1037 = vld [vmem:[#allocation2 + $0x3c] sm:$0xf]
      %v1038 = vld [vmem:[#allocation2 + $0x40] sm:$0xf]
      %v1039 = vld [vmem:[#allocation2 + $0x48] sm:$0xf]
      %v1040 = vld [vmem:[#allocation2 + $0x4c] sm:$0xf]
      %v1041 = vld [vmem:[#allocation2 + $0x54] sm:$0xf]
      %v1042 = vld [vmem:[#allocation2 + $0x58] sm:$0xf]
      %v1043 = vld [vmem:[#allocation2 + $0x60] sm:$0xf]
      %v1044 = vld [vmem:[#allocation2 + $0x64] sm:$0xf]
      %v1045 = vld [vmem:[#allocation2 + $0x6c] sm:$0xf]
      %v1046 = vld [vmem:[#allocation2 + $0x70] sm:$0xf]
      %v1047 = vld [vmem:[#allocation2 + $0x78] sm:$0xf]
      %v1048 = vld [vmem:[#allocation2 + $0x7c] sm:$0xf]
      %v1049 = vld [vmem:[#allocation2 + $0x84] sm:$0xf]
      %v1050 = vld [vmem:[#allocation2 + $0x88] sm:$0xf]
      %v1051 = vld [vmem:[#allocation2 + $0x90] sm:$0xf]
      %v1052 = vld [vmem:[#allocation2 + $0x94] sm:$0xf]
      %v1053 = vld [vmem:[#allocation2 + $0x9c] sm:$0xf]
      %v1054 = vld [vmem:[#allocation2 + $0xa0] sm:$0xf]
      %v1055 = vld [vmem:[#allocation2 + $0xa8] sm:$0xf]
      %v1056 = vld [vmem:[#allocation2 + $0xac] sm:$0xf]
      %v1057 = vld [vmem:[#allocation2 + $0xb4] sm:$0xf]
      %v1058 = vld [vmem:[#allocation2 + $0xb8] sm:$0xf]
      %v1059 = vld [vmem:[%s1] sm:$0x3]
      %v1060 = vld [vmem:[#allocation2 + $0x8] sm:$0x1]
      %v1061 = vld [vmem:[#allocation2 + $0x14] sm:$0x1]
      %v1062 = vld [vmem:[#allocation2 + $0x20] sm:$0x1]
      %v1063 = vld [vmem:[#allocation2 + $0x2c] sm:$0x1]
      %v1064 = vld [vmem:[#allocation2 + $0x38] sm:$0x1]
      %v1065 = vld [vmem:[#allocation2 + $0x44] sm:$0x1]
      %v1066 = vld [vmem:[#allocation2 + $0x50] sm:$0x1]
      %v1067 = vld [vmem:[#allocation2 + $0x5c] sm:$0x1]
      %v1068 = vld [vmem:[#allocation2 + $0x68] sm:$0x1]
      %v1069 = vld [vmem:[#allocation2 + $0x74] sm:$0x1]
      %v1070 = vld [vmem:[#allocation2 + $0x80] sm:$0x1]
      %v1071 = vld [vmem:[#allocation2 + $0x8c] sm:$0x1]
      %v1072 = vld [vmem:[#allocation2 + $0x98] sm:$0x1]
      %v1073 = vld [vmem:[#allocation2 + $0xa4] sm:$0x1]
      %v1074 = vld [vmem:[#allocation2 + $0xb0] sm:$0x1]
      %v1075 = vld [vmem:[#allocation2 + $0xbc] sm:$0x1]
      %vm1076 = vsmask.f32 3328
      %vm1077 = vsmask.f32 7440
      %vm1078 = vmor %vm1076, %vm1077
      %v1080 = vshrl.u32 %v1027, 16
      %v1082 = vrot.slane %v1080, 4
      %v1083 = vshll.u32 %v1027, 16
      %v1085 = vrot.slane %v1083, 5
      %v1086 = vor.u32 %v1082, %v1085
      %v1087 = vrot.slane %v1086, 4
      %v1089 = vshll.u32 %v1028, 16
      %v1091 = vrot.slane %v1089, 5
      %v1092 = vsel %vm1078, %v1087, %v1091
      %v1093 = vshrl.u32 %v1028, 16
      %v1095 = vrot.slane %v1093, 4
      %v1096 = vor.u32 %v1095, %v1091
      %v1097 = vrot.slane %v1096, 4
      %v1099 = vshll.u32 %v1060, 16
      %v1101 = vrot.slane %v1099, 5
      %v1102 = vsel %vm1078, %v1097, %v1101
      %v1104 = vshrl.u32 %v1029, 16
      %v1106 = vrot.slane %v1104, 4
      %v1107 = vshll.u32 %v1029, 16
      %v1109 = vrot.slane %v1107, 5
      %v1110 = vor.u32 %v1106, %v1109
      %v1111 = vrot.slane %v1110, 4
      %v1113 = vshll.u32 %v1030, 16
      %v1115 = vrot.slane %v1113, 5
      %v1116 = vsel %vm1078, %v1111, %v1115
      %v1117 = vshrl.u32 %v1030, 16
      %v1119 = vrot.slane %v1117, 4
      %v1120 = vor.u32 %v1119, %v1115
      %v1121 = vrot.slane %v1120, 4
      %v1123 = vshll.u32 %v1061, 16
      %v1125 = vrot.slane %v1123, 5
      %v1126 = vsel %vm1078, %v1121, %v1125
      %v1128 = vshrl.u32 %v1031, 16
      %v1130 = vrot.slane %v1128, 4
      %v1131 = vshll.u32 %v1031, 16
      %v1133 = vrot.slane %v1131, 5
      %v1134 = vor.u32 %v1130, %v1133
      %v1135 = vrot.slane %v1134, 4
      %v1137 = vshll.u32 %v1032, 16
      %v1139 = vrot.slane %v1137, 5
      %v1140 = vsel %vm1078, %v1135, %v1139
      %v1141 = vshrl.u32 %v1032, 16
      %v1143 = vrot.slane %v1141, 4
      %v1144 = vor.u32 %v1143, %v1139
      %v1145 = vrot.slane %v1144, 4
      %v1147 = vshll.u32 %v1062, 16
      %v1149 = vrot.slane %v1147, 5
      %v1150 = vsel %vm1078, %v1145, %v1149
      %v1152 = vshrl.u32 %v1033, 16
      %v1154 = vrot.slane %v1152, 4
      %v1155 = vshll.u32 %v1033, 16
      %v1157 = vrot.slane %v1155, 5
      %v1158 = vor.u32 %v1154, %v1157
      %v1159 = vrot.slane %v1158, 4
      %v1161 = vshll.u32 %v1034, 16
      %v1163 = vrot.slane %v1161, 5
      %v1164 = vsel %vm1078, %v1159, %v1163
      %v1165 = vshrl.u32 %v1034, 16
      %v1167 = vrot.slane %v1165, 4
      %v1168 = vor.u32 %v1167, %v1163
      %v1169 = vrot.slane %v1168, 4
      %v1171 = vshll.u32 %v1063, 16
      %v1173 = vrot.slane %v1171, 5
      %v1174 = vsel %vm1078, %v1169, %v1173
      %v1176 = vshrl.u32 %v1035, 16
      %v1178 = vrot.slane %v1176, 4
      %v1179 = vshll.u32 %v1035, 16
      %v1181 = vrot.slane %v1179, 5
      %v1182 = vor.u32 %v1178, %v1181
      %v1183 = vrot.slane %v1182, 4
      %v1185 = vshll.u32 %v1036, 16
      %v1187 = vrot.slane %v1185, 5
      %v1188 = vsel %vm1078, %v1183, %v1187
      %v1189 = vshrl.u32 %v1036, 16
      %v1191 = vrot.slane %v1189, 4
      %v1192 = vor.u32 %v1191, %v1187
      %v1193 = vrot.slane %v1192, 4
      %v1195 = vshll.u32 %v1064, 16
      %v1197 = vrot.slane %v1195, 5
      %v1198 = vsel %vm1078, %v1193, %v1197
      %v1200 = vshrl.u32 %v1037, 16
      %v1202 = vrot.slane %v1200, 4
      %v1203 = vshll.u32 %v1037, 16
      %v1205 = vrot.slane %v1203, 5
      %v1206 = vor.u32 %v1202, %v1205
      %v1207 = vrot.slane %v1206, 4
      %v1209 = vshll.u32 %v1038, 16
      %v1211 = vrot.slane %v1209, 5
      %v1212 = vsel %vm1078, %v1207, %v1211
      %v1213 = vshrl.u32 %v1038, 16
      %v1215 = vrot.slane %v1213, 4
      %v1216 = vor.u32 %v1215, %v1211
      %v1217 = vrot.slane %v1216, 4
      %v1219 = vshll.u32 %v1065, 16
      %v1221 = vrot.slane %v1219, 5
      %v1222 = vsel %vm1078, %v1217, %v1221
      %v1224 = vshrl.u32 %v1039, 16
      %v1226 = vrot.slane %v1224, 4
      %v1227 = vshll.u32 %v1039, 16
      %v1229 = vrot.slane %v1227, 5
      %v1230 = vor.u32 %v1226, %v1229
      %v1231 = vrot.slane %v1230, 4
      %v1233 = vshll.u32 %v1040, 16
      %v1235 = vrot.slane %v1233, 5
      %v1236 = vsel %vm1078, %v1231, %v1235
      %v1237 = vshrl.u32 %v1040, 16
      %v1239 = vrot.slane %v1237, 4
      %v1240 = vor.u32 %v1239, %v1235
      %v1241 = vrot.slane %v1240, 4
      %v1243 = vshll.u32 %v1066, 16
      %v1245 = vrot.slane %v1243, 5
      %v1246 = vsel %vm1078, %v1241, %v1245
      %v1248 = vshrl.u32 %v1041, 16
      %v1250 = vrot.slane %v1248, 4
      %v1251 = vshll.u32 %v1041, 16
      %v1253 = vrot.slane %v1251, 5
      %v1254 = vor.u32 %v1250, %v1253
      %v1255 = vrot.slane %v1254, 4
      %v1257 = vshll.u32 %v1042, 16
      %v1259 = vrot.slane %v1257, 5
      %v1260 = vsel %vm1078, %v1255, %v1259
      %v1261 = vshrl.u32 %v1042, 16
      %v1263 = vrot.slane %v1261, 4
      %v1264 = vor.u32 %v1263, %v1259
      %v1265 = vrot.slane %v1264, 4
      %v1267 = vshll.u32 %v1067, 16
      %v1269 = vrot.slane %v1267, 5
      %v1270 = vsel %vm1078, %v1265, %v1269
      %v1272 = vshrl.u32 %v1043, 16
      %v1274 = vrot.slane %v1272, 4
      %v1275 = vshll.u32 %v1043, 16
      %v1277 = vrot.slane %v1275, 5
      %v1278 = vor.u32 %v1274, %v1277
      %v1279 = vrot.slane %v1278, 4
      %v1281 = vshll.u32 %v1044, 16
      %v1283 = vrot.slane %v1281, 5
      %v1284 = vsel %vm1078, %v1279, %v1283
      %v1285 = vshrl.u32 %v1044, 16
      %v1287 = vrot.slane %v1285, 4
      %v1288 = vor.u32 %v1287, %v1283
      %v1289 = vrot.slane %v1288, 4
      %v1291 = vshll.u32 %v1068, 16
      %v1293 = vrot.slane %v1291, 5
      %v1294 = vsel %vm1078, %v1289, %v1293
      %v1296 = vshrl.u32 %v1045, 16
      %v1298 = vrot.slane %v1296, 4
      %v1299 = vshll.u32 %v1045, 16
      %v1301 = vrot.slane %v1299, 5
      %v1302 = vor.u32 %v1298, %v1301
      %v1303 = vrot.slane %v1302, 4
      %v1305 = vshll.u32 %v1046, 16
      %v1307 = vrot.slane %v1305, 5
      %v1308 = vsel %vm1078, %v1303, %v1307
      %v1309 = vshrl.u32 %v1046, 16
      %v1311 = vrot.slane %v1309, 4
      %v1312 = vor.u32 %v1311, %v1307
      %v1313 = vrot.slane %v1312, 4
      %v1315 = vshll.u32 %v1069, 16
      %v1317 = vrot.slane %v1315, 5
      %v1318 = vsel %vm1078, %v1313, %v1317
      %v1320 = vshrl.u32 %v1047, 16
      %v1322 = vrot.slane %v1320, 4
      %v1323 = vshll.u32 %v1047, 16
      %v1325 = vrot.slane %v1323, 5
      %v1326 = vor.u32 %v1322, %v1325
      %v1327 = vrot.slane %v1326, 4
      %v1329 = vshll.u32 %v1048, 16
      %v1331 = vrot.slane %v1329, 5
      %v1332 = vsel %vm1078, %v1327, %v1331
      %v1333 = vshrl.u32 %v1048, 16
      %v1335 = vrot.slane %v1333, 4
      %v1336 = vor.u32 %v1335, %v1331
      %v1337 = vrot.slane %v1336, 4
      %v1339 = vshll.u32 %v1070, 16
      %v1341 = vrot.slane %v1339, 5
      %v1342 = vsel %vm1078, %v1337, %v1341
      %v1344 = vshrl.u32 %v1049, 16
      %v1346 = vrot.slane %v1344, 4
      %v1347 = vshll.u32 %v1049, 16
      %v1349 = vrot.slane %v1347, 5
      %v1350 = vor.u32 %v1346, %v1349
      %v1351 = vrot.slane %v1350, 4
      %v1353 = vshll.u32 %v1050, 16
      %v1355 = vrot.slane %v1353, 5
      %v1356 = vsel %vm1078, %v1351, %v1355
      %v1357 = vshrl.u32 %v1050, 16
      %v1359 = vrot.slane %v1357, 4
      %v1360 = vor.u32 %v1359, %v1355
      %v1361 = vrot.slane %v1360, 4
      %v1363 = vshll.u32 %v1071, 16
      %v1365 = vrot.slane %v1363, 5
      %v1366 = vsel %vm1078, %v1361, %v1365
      %v1368 = vshrl.u32 %v1051, 16
      %v1370 = vrot.slane %v1368, 4
      %v1371 = vshll.u32 %v1051, 16
      %v1373 = vrot.slane %v1371, 5
      %v1374 = vor.u32 %v1370, %v1373
      %v1375 = vrot.slane %v1374, 4
      %v1377 = vshll.u32 %v1052, 16
      %v1379 = vrot.slane %v1377, 5
      %v1380 = vsel %vm1078, %v1375, %v1379
      %v1381 = vshrl.u32 %v1052, 16
      %v1383 = vrot.slane %v1381, 4
      %v1384 = vor.u32 %v1383, %v1379
      %v1385 = vrot.slane %v1384, 4
      %v1387 = vshll.u32 %v1072, 16
      %v1389 = vrot.slane %v1387, 5
      %v1390 = vsel %vm1078, %v1385, %v1389
      %v1392 = vshrl.u32 %v1053, 16
      %v1394 = vrot.slane %v1392, 4
      %v1395 = vshll.u32 %v1053, 16
      %v1397 = vrot.slane %v1395, 5
      %v1398 = vor.u32 %v1394, %v1397
      %v1399 = vrot.slane %v1398, 4
      %v1401 = vshll.u32 %v1054, 16
      %v1403 = vrot.slane %v1401, 5
      %v1404 = vsel %vm1078, %v1399, %v1403
      %v1405 = vshrl.u32 %v1054, 16
      %v1407 = vrot.slane %v1405, 4
      %v1408 = vor.u32 %v1407, %v1403
      %v1409 = vrot.slane %v1408, 4
      %v1411 = vshll.u32 %v1073, 16
      %v1413 = vrot.slane %v1411, 5
      %v1414 = vsel %vm1078, %v1409, %v1413
      %v1416 = vshrl.u32 %v1055, 16
      %v1418 = vrot.slane %v1416, 4
      %v1419 = vshll.u32 %v1055, 16
      %v1421 = vrot.slane %v1419, 5
      %v1422 = vor.u32 %v1418, %v1421
      %v1423 = vrot.slane %v1422, 4
      %v1425 = vshll.u32 %v1056, 16
      %v1427 = vrot.slane %v1425, 5
      %v1428 = vsel %vm1078, %v1423, %v1427
      %v1429 = vshrl.u32 %v1056, 16
      %v1431 = vrot.slane %v1429, 4
      %v1432 = vor.u32 %v1431, %v1427
      %v1433 = vrot.slane %v1432, 4
      %v1435 = vshll.u32 %v1074, 16
      %v1437 = vrot.slane %v1435, 5
      %v1438 = vsel %vm1078, %v1433, %v1437
      %v1440 = vshrl.u32 %v1057, 16
      %v1442 = vrot.slane %v1440, 4
      %v1443 = vshll.u32 %v1057, 16
      %v1445 = vrot.slane %v1443, 5
      %v1446 = vor.u32 %v1442, %v1445
      %v1447 = vrot.slane %v1446, 4
      %v1449 = vshll.u32 %v1058, 16
      %v1451 = vrot.slane %v1449, 5
      %v1452 = vsel %vm1078, %v1447, %v1451
      %v1453 = vshrl.u32 %v1058, 16
      %v1455 = vrot.slane %v1453, 4
      %v1456 = vor.u32 %v1455, %v1451
      %v1457 = vrot.slane %v1456, 4
      %v1459 = vshll.u32 %v1075, 16
      %v1461 = vrot.slane %v1459, 5
      %v1462 = vsel %vm1078, %v1457, %v1461
      %s1463 = scalar_lea.vmem %s1, 2
      %v1464 = vld [vmem:[%s1463] sm:$0x3]
      %v1465 = vunpack.c.l.b16 %v1092
      %v1466 = vunpack.c.l.b16 %v1102
      %v1467 = vunpack.c.l.b16 %v1116
      %v1468 = vunpack.c.l.b16 %v1126
      %v1469 = vunpack.c.l.b16 %v1140
      %v1470 = vunpack.c.l.b16 %v1150
      %v1471 = vunpack.c.l.b16 %v1164
      %v1472 = vunpack.c.l.b16 %v1174
      %v1473 = vunpack.c.l.b16 %v1188
      %v1474 = vunpack.c.l.b16 %v1198
      %v1475 = vunpack.c.l.b16 %v1212
      %v1476 = vunpack.c.l.b16 %v1222
      %v1477 = vunpack.c.l.b16 %v1236
      %v1478 = vunpack.c.l.b16 %v1246
      %v1479 = vunpack.c.l.b16 %v1260
      %v1480 = vunpack.c.l.b16 %v1270
      %v1481 = vunpack.c.l.b16 %v1284
      %v1482 = vunpack.c.l.b16 %v1294
      %v1483 = vunpack.c.l.b16 %v1308
      %v1484 = vunpack.c.l.b16 %v1318
      %v1485 = vunpack.c.l.b16 %v1332
      %v1486 = vunpack.c.l.b16 %v1342
      %v1487 = vunpack.c.l.b16 %v1356
      %v1488 = vunpack.c.l.b16 %v1366
      %v1489 = vunpack.c.l.b16 %v1380
      %v1490 = vunpack.c.l.b16 %v1390
      %v1491 = vunpack.c.l.b16 %v1404
      %v1492 = vunpack.c.l.b16 %v1414
      %v1493 = vunpack.c.l.b16 %v1428
      %v1494 = vunpack.c.l.b16 %v1438
      %v1495 = vunpack.c.l.b16 %v1452
      %v1496 = vunpack.c.l.b16 %v1462
      %v1497 = vpack.c.b16 %v1466, %v1465
      %v1498 = vpack.c.b16 %v1468, %v1467
      %v1499 = vpack.c.b16 %v1470, %v1469
      %v1500 = vpack.c.b16 %v1472, %v1471
      %v1501 = vpack.c.b16 %v1474, %v1473
      %v1502 = vpack.c.b16 %v1476, %v1475
      %v1503 = vpack.c.b16 %v1478, %v1477
      %v1504 = vpack.c.b16 %v1480, %v1479
      %v1505 = vpack.c.b16 %v1482, %v1481
      %v1506 = vpack.c.b16 %v1484, %v1483
      %v1507 = vpack.c.b16 %v1486, %v1485
      %v1508 = vpack.c.b16 %v1488, %v1487
      %v1509 = vpack.c.b16 %v1490, %v1489
      %v1510 = vpack.c.b16 %v1492, %v1491
      %v1511 = vpack.c.b16 %v1494, %v1493
      %v1512 = vpack.c.b16 %v1496, %v1495
      %vm1513 = vcmask 31744
      %v1515 = vsel %vm1513, %v1497, 0
      %v1518 = vsel %vm1513, %v1498, 0
      %v1521 = vsel %vm1513, %v1499, 0
      %v1524 = vsel %vm1513, %v1500, 0
      %v1527 = vsel %vm1513, %v1501, 0
      %v1530 = vsel %vm1513, %v1502, 0
      %v1533 = vsel %vm1513, %v1503, 0
      %v1536 = vsel %vm1513, %v1504, 0
      %v1539 = vsel %vm1513, %v1505, 0
      %v1542 = vsel %vm1513, %v1506, 0
      %v1545 = vsel %vm1513, %v1507, 0
      %v1548 = vsel %vm1513, %v1508, 0
      %v1551 = vsel %vm1513, %v1509, 0
      %v1554 = vsel %vm1513, %v1510, 0
      %v1557 = vsel %vm1513, %v1511, 0
      %v1560 = vsel %vm1513, %v1512, 0
      %vm1562 = vcmask 1041408
      %v1564 = vsel %vm1562, %v1464, 0
      %1566 = vmatprep.subr.bf16.mxu0 0
      %1567 = vmatpush1.bf16.msra.mxu0 0
      %1568 = vmatprep.subr.bf16.mxu0 0
      %1569 = vmatpush1.bf16.msra.mxu0 0
      %1570 = vmatprep.subr.bf16.mxu0 0
      %1571 = vmatpush1.bf16.msra.mxu0 0
      %1572 = vmatprep.subr.bf16.mxu0 0
      %1573 = vmatpush1.bf16.msra.mxu0 0
      %1574 = vmatprep.subr.bf16.mxu0 0
      %1575 = vmatpush1.bf16.msra.mxu0 0
      %1576 = vmatprep.subr.bf16.mxu0 0
      %1577 = vmatpush1.bf16.msra.mxu0 0
      %1578 = vmatprep.subr.bf16.mxu0 0
      %1579 = vmatpush1.bf16.msra.mxu0 0
      %1580 = vmatprep.subr.bf16.mxu0 0
      %1581 = vmatpush1.bf16.msra.mxu0 %v1564
      %1582 = vmatprep.subr.bf16.mxu0 0
      %1583 = vmatpush2.bf16.msra.mxu0 0
      %1584 = vmatprep.subr.bf16.mxu0 0
      %1585 = vmatpush2.bf16.msra.mxu0 0
      %1586 = vmatprep.subr.bf16.mxu0 0
      %1587 = vmatpush2.bf16.msra.mxu0 0
      %1588 = vmatprep.subr.bf16.mxu0 0
      %1589 = vmatpush2.bf16.msra.mxu0 0
      %1590 = vmatprep.subr.bf16.mxu0 0
      %1591 = vmatpush2.bf16.msra.mxu0 0
      %1592 = vmatprep.subr.bf16.mxu0 0
      %1593 = vmatpush2.bf16.msra.mxu0 0
      %1594 = vmatprep.subr.bf16.mxu0 0
      %1595 = vmatpush2.bf16.msra.mxu0 0
      %1596 = vmatprep.subr.bf16.mxu0 0
      %1597 = vmatpush2.bf16.msra.mxu0 0
      %1598 = vmatprep.mubr.bf16.mxu0 0
      %1599 = vmatmul.mubr.bf16.gmra.mxu0 %v1515
      %v1600 = vpop.f32.mrf.mxu0
      %v1601 = vadd.f32 0.0, %v1600
      %v1602 = vpop.f32.mrf.mxu0
      %v1603 = vpop.f32.mrf.mxu0
      %v1604 = vadd.f32 0.0, %v1603
      %v1605 = vpop.f32.mrf.mxu0
      %1606 = vmatprep.mubr.bf16.mxu0 0
      %1607 = vmatmul.mubr.bf16.gmra.mxu0 %v1518
      %v1608 = vpop.f32.mrf.mxu0
      %v1609 = vadd.f32 0.0, %v1608
      %v1610 = vpop.f32.mrf.mxu0
      %v1611 = vpop.f32.mrf.mxu0
      %v1612 = vadd.f32 0.0, %v1611
      %v1613 = vpop.f32.mrf.mxu0
      %1614 = vmatprep.mubr.bf16.mxu0 0
      %1615 = vmatmul.mubr.bf16.gmra.mxu0 %v1521
      %v1616 = vpop.f32.mrf.mxu0
      %v1617 = vadd.f32 0.0, %v1616
      %v1618 = vpop.f32.mrf.mxu0
      %v1619 = vpop.f32.mrf.mxu0
      %v1620 = vadd.f32 0.0, %v1619
      %v1621 = vpop.f32.mrf.mxu0
      %1622 = vmatprep.mubr.bf16.mxu0 0
      %1623 = vmatmul.mubr.bf16.gmra.mxu0 %v1524
      %v1624 = vpop.f32.mrf.mxu0
      %v1625 = vadd.f32 0.0, %v1624
      %v1626 = vpop.f32.mrf.mxu0
      %v1627 = vpop.f32.mrf.mxu0
      %v1628 = vadd.f32 0.0, %v1627
      %v1629 = vpop.f32.mrf.mxu0
      %1630 = vmatprep.mubr.bf16.mxu0 0
      %1631 = vmatmul.mubr.bf16.gmra.mxu0 %v1527
      %v1632 = vpop.f32.mrf.mxu0
      %v1633 = vadd.f32 0.0, %v1632
      %v1634 = vpop.f32.mrf.mxu0
      %v1635 = vpop.f32.mrf.mxu0
      %v1636 = vadd.f32 0.0, %v1635
      %v1637 = vpop.f32.mrf.mxu0
      %1638 = vmatprep.mubr.bf16.mxu0 0
      %1639 = vmatmul.mubr.bf16.gmra.mxu0 %v1530
      %v1640 = vpop.f32.mrf.mxu0
      %v1641 = vadd.f32 0.0, %v1640
      %v1642 = vpop.f32.mrf.mxu0
      %v1643 = vpop.f32.mrf.mxu0
      %v1644 = vadd.f32 0.0, %v1643
      %v1645 = vpop.f32.mrf.mxu0
      %1646 = vmatprep.mubr.bf16.mxu0 0
      %1647 = vmatmul.mubr.bf16.gmra.mxu0 %v1533
      %v1648 = vpop.f32.mrf.mxu0
      %v1649 = vadd.f32 0.0, %v1648
      %v1650 = vpop.f32.mrf.mxu0
      %v1651 = vpop.f32.mrf.mxu0
      %v1652 = vadd.f32 0.0, %v1651
      %v1653 = vpop.f32.mrf.mxu0
      %1654 = vmatprep.mubr.bf16.mxu0 0
      %1655 = vmatmul.mubr.bf16.gmra.mxu0 %v1536
      %v1656 = vpop.f32.mrf.mxu0
      %v1657 = vadd.f32 0.0, %v1656
      %v1658 = vpop.f32.mrf.mxu0
      %v1659 = vpop.f32.mrf.mxu0
      %v1660 = vadd.f32 0.0, %v1659
      %v1661 = vpop.f32.mrf.mxu0
      %1662 = vmatprep.mubr.bf16.mxu0 0
      %1663 = vmatmul.mubr.bf16.gmra.mxu0 %v1539
      %v1664 = vpop.f32.mrf.mxu0
      %v1665 = vadd.f32 0.0, %v1664
      %v1666 = vpop.f32.mrf.mxu0
      %v1667 = vpop.f32.mrf.mxu0
      %v1668 = vadd.f32 0.0, %v1667
      %v1669 = vpop.f32.mrf.mxu0
      %1670 = vmatprep.mubr.bf16.mxu0 0
      %1671 = vmatmul.mubr.bf16.gmra.mxu0 %v1542
      %v1672 = vpop.f32.mrf.mxu0
      %v1673 = vadd.f32 0.0, %v1672
      %v1674 = vpop.f32.mrf.mxu0
      %v1675 = vpop.f32.mrf.mxu0
      %v1676 = vadd.f32 0.0, %v1675
      %v1677 = vpop.f32.mrf.mxu0
      %1678 = vmatprep.mubr.bf16.mxu0 0
      %1679 = vmatmul.mubr.bf16.gmra.mxu0 %v1545
      %v1680 = vpop.f32.mrf.mxu0
      %v1681 = vadd.f32 0.0, %v1680
      %v1682 = vpop.f32.mrf.mxu0
      %v1683 = vpop.f32.mrf.mxu0
      %v1684 = vadd.f32 0.0, %v1683
      %v1685 = vpop.f32.mrf.mxu0
      %1686 = vmatprep.mubr.bf16.mxu0 0
      %1687 = vmatmul.mubr.bf16.gmra.mxu0 %v1548
      %v1688 = vpop.f32.mrf.mxu0
      %v1689 = vadd.f32 0.0, %v1688
      %v1690 = vpop.f32.mrf.mxu0
      %v1691 = vpop.f32.mrf.mxu0
      %v1692 = vadd.f32 0.0, %v1691
      %v1693 = vpop.f32.mrf.mxu0
      %1694 = vmatprep.mubr.bf16.mxu0 0
      %1695 = vmatmul.mubr.bf16.gmra.mxu0 %v1551
      %v1696 = vpop.f32.mrf.mxu0
      %v1697 = vadd.f32 0.0, %v1696
      %v1698 = vpop.f32.mrf.mxu0
      %v1699 = vpop.f32.mrf.mxu0
      %v1700 = vadd.f32 0.0, %v1699
      %v1701 = vpop.f32.mrf.mxu0
      %1702 = vmatprep.mubr.bf16.mxu0 0
      %1703 = vmatmul.mubr.bf16.gmra.mxu0 %v1554
      %v1704 = vpop.f32.mrf.mxu0
      %v1705 = vadd.f32 0.0, %v1704
      %v1706 = vpop.f32.mrf.mxu0
      %v1707 = vpop.f32.mrf.mxu0
      %v1708 = vadd.f32 0.0, %v1707
      %v1709 = vpop.f32.mrf.mxu0
      %1710 = vmatprep.mubr.bf16.mxu0 0
      %1711 = vmatmul.mubr.bf16.gmra.mxu0 %v1557
      %v1712 = vpop.f32.mrf.mxu0
      %v1713 = vadd.f32 0.0, %v1712
      %v1714 = vpop.f32.mrf.mxu0
      %v1715 = vpop.f32.mrf.mxu0
      %v1716 = vadd.f32 0.0, %v1715
      %v1717 = vpop.f32.mrf.mxu0
      %1718 = vmatprep.mubr.bf16.mxu0 0
      %1719 = vmatmul.mubr.bf16.gmra.mxu0 %v1560
      %v1720 = vpop.f32.mrf.mxu0
      %v1721 = vadd.f32 0.0, %v1720
      %v1722 = vpop.f32.mrf.mxu0
      %v1723 = vpop.f32.mrf.mxu0
      %v1724 = vadd.f32 0.0, %v1723
      %v1725 = vpop.f32.mrf.mxu0
      %1726 = vdwg.mxu0
      %v1759 = vunpack.c.l.b16 %v1027
      %v1760 = vunpack.c.l.b16 %v1028
      %v1761 = vunpack.c.l.b16 %v1029
      %v1762 = vunpack.c.l.b16 %v1030
      %v1763 = vunpack.c.l.b16 %v1031
      %v1764 = vunpack.c.l.b16 %v1032
      %v1765 = vunpack.c.l.b16 %v1033
      %v1766 = vunpack.c.l.b16 %v1034
      %v1767 = vunpack.c.l.b16 %v1035
      %v1768 = vunpack.c.l.b16 %v1036
      %v1769 = vunpack.c.l.b16 %v1037
      %v1770 = vunpack.c.l.b16 %v1038
      %v1771 = vunpack.c.l.b16 %v1039
      %v1772 = vunpack.c.l.b16 %v1040
      %v1773 = vunpack.c.l.b16 %v1041
      %v1774 = vunpack.c.l.b16 %v1042
      %v1775 = vunpack.c.l.b16 %v1043
      %v1776 = vunpack.c.l.b16 %v1044
      %v1777 = vunpack.c.l.b16 %v1045
      %v1778 = vunpack.c.l.b16 %v1046
      %v1779 = vunpack.c.l.b16 %v1047
      %v1780 = vunpack.c.l.b16 %v1048
      %v1781 = vunpack.c.l.b16 %v1049
      %v1782 = vunpack.c.l.b16 %v1050
      %v1783 = vunpack.c.l.b16 %v1051
      %v1784 = vunpack.c.l.b16 %v1052
      %v1785 = vunpack.c.l.b16 %v1053
      %v1786 = vunpack.c.l.b16 %v1054
      %v1787 = vunpack.c.l.b16 %v1055
      %v1788 = vunpack.c.l.b16 %v1056
      %v1789 = vunpack.c.l.b16 %v1057
      %v1790 = vunpack.c.l.b16 %v1058
      %v1791 = vpack.c.b16 %v1760, %v1759
      %v1792 = vpack.c.b16 %v1762, %v1761
      %v1793 = vpack.c.b16 %v1764, %v1763
      %v1794 = vpack.c.b16 %v1766, %v1765
      %v1795 = vpack.c.b16 %v1768, %v1767
      %v1796 = vpack.c.b16 %v1770, %v1769
      %v1797 = vpack.c.b16 %v1772, %v1771
      %v1798 = vpack.c.b16 %v1774, %v1773
      %v1799 = vpack.c.b16 %v1776, %v1775
      %v1800 = vpack.c.b16 %v1778, %v1777
      %v1801 = vpack.c.b16 %v1780, %v1779
      %v1802 = vpack.c.b16 %v1782, %v1781
      %v1803 = vpack.c.b16 %v1784, %v1783
      %v1804 = vpack.c.b16 %v1786, %v1785
      %v1805 = vpack.c.b16 %v1788, %v1787
      %v1806 = vpack.c.b16 %v1790, %v1789
      %v1808 = vsel %vm1513, %v1791, 0
      %v1811 = vsel %vm1513, %v1792, 0
      %v1814 = vsel %vm1513, %v1793, 0
      %v1817 = vsel %vm1513, %v1794, 0
      %v1820 = vsel %vm1513, %v1795, 0
      %v1823 = vsel %vm1513, %v1796, 0
      %v1826 = vsel %vm1513, %v1797, 0
      %v1829 = vsel %vm1513, %v1798, 0
      %v1832 = vsel %vm1513, %v1799, 0
      %v1835 = vsel %vm1513, %v1800, 0
      %v1838 = vsel %vm1513, %v1801, 0
      %v1841 = vsel %vm1513, %v1802, 0
      %v1844 = vsel %vm1513, %v1803, 0
      %v1847 = vsel %vm1513, %v1804, 0
      %v1850 = vsel %vm1513, %v1805, 0
      %v1853 = vsel %vm1513, %v1806, 0
      %v1856 = vsel %vm1562, %v1059, 0
      %1858 = vmatprep.subr.bf16.mxu0 0
      %1859 = vmatpush1.bf16.msra.mxu0 0
      %1860 = vmatprep.subr.bf16.mxu0 0
      %1861 = vmatpush1.bf16.msra.mxu0 0
      %1862 = vmatprep.subr.bf16.mxu0 0
      %1863 = vmatpush1.bf16.msra.mxu0 0
      %1864 = vmatprep.subr.bf16.mxu0 0
      %1865 = vmatpush1.bf16.msra.mxu0 0
      %1866 = vmatprep.subr.bf16.mxu0 0
      %1867 = vmatpush1.bf16.msra.mxu0 0
      %1868 = vmatprep.subr.bf16.mxu0 0
      %1869 = vmatpush1.bf16.msra.mxu0 0
      %1870 = vmatprep.subr.bf16.mxu0 0
      %1871 = vmatpush1.bf16.msra.mxu0 0
      %1872 = vmatprep.subr.bf16.mxu0 0
      %1873 = vmatpush1.bf16.msra.mxu0 %v1856
      %1874 = vmatprep.subr.bf16.mxu0 0
      %1875 = vmatpush2.bf16.msra.mxu0 0
      %1876 = vmatprep.subr.bf16.mxu0 0
      %1877 = vmatpush2.bf16.msra.mxu0 0
      %1878 = vmatprep.subr.bf16.mxu0 0
      %1879 = vmatpush2.bf16.msra.mxu0 0
      %1880 = vmatprep.subr.bf16.mxu0 0
      %1881 = vmatpush2.bf16.msra.mxu0 0
      %1882 = vmatprep.subr.bf16.mxu0 0
      %1883 = vmatpush2.bf16.msra.mxu0 0
      %1884 = vmatprep.subr.bf16.mxu0 0
      %1885 = vmatpush2.bf16.msra.mxu0 0
      %1886 = vmatprep.subr.bf16.mxu0 0
      %1887 = vmatpush2.bf16.msra.mxu0 0
      %1888 = vmatprep.subr.bf16.mxu0 0
      %1889 = vmatpush2.bf16.msra.mxu0 0
      %1890 = vmatprep.mubr.bf16.mxu0 0
      %1891 = vmatmul.mubr.bf16.gmra.mxu0 %v1808
      %v1892 = vpop.f32.mrf.mxu0
      %v1893 = vadd.f32 %v1601, %v1892
      %v1894 = vpop.f32.mrf.mxu0
      %v1895 = vpop.f32.mrf.mxu0
      %v1896 = vadd.f32 %v1604, %v1895
      %v1897 = vpop.f32.mrf.mxu0
      %1898 = vmatprep.mubr.bf16.mxu0 0
      %1899 = vmatmul.mubr.bf16.gmra.mxu0 %v1811
      %v1900 = vpop.f32.mrf.mxu0
      %v1901 = vadd.f32 %v1609, %v1900
      %v1902 = vpop.f32.mrf.mxu0
      %v1903 = vpop.f32.mrf.mxu0
      %v1904 = vadd.f32 %v1612, %v1903
      %v1905 = vpop.f32.mrf.mxu0
      %1906 = vmatprep.mubr.bf16.mxu0 0
      %1907 = vmatmul.mubr.bf16.gmra.mxu0 %v1814
      %v1908 = vpop.f32.mrf.mxu0
      %v1909 = vadd.f32 %v1617, %v1908
      %v1910 = vpop.f32.mrf.mxu0
      %v1911 = vpop.f32.mrf.mxu0
      %v1912 = vadd.f32 %v1620, %v1911
      %v1913 = vpop.f32.mrf.mxu0
      %1914 = vmatprep.mubr.bf16.mxu0 0
      %1915 = vmatmul.mubr.bf16.gmra.mxu0 %v1817
      %v1916 = vpop.f32.mrf.mxu0
      %v1917 = vadd.f32 %v1625, %v1916
      %v1918 = vpop.f32.mrf.mxu0
      %v1919 = vpop.f32.mrf.mxu0
      %v1920 = vadd.f32 %v1628, %v1919
      %v1921 = vpop.f32.mrf.mxu0
      %1922 = vmatprep.mubr.bf16.mxu0 0
      %1923 = vmatmul.mubr.bf16.gmra.mxu0 %v1820
      %v1924 = vpop.f32.mrf.mxu0
      %v1925 = vadd.f32 %v1633, %v1924
      %v1926 = vpop.f32.mrf.mxu0
      %v1927 = vpop.f32.mrf.mxu0
      %v1928 = vadd.f32 %v1636, %v1927
      %v1929 = vpop.f32.mrf.mxu0
      %1930 = vmatprep.mubr.bf16.mxu0 0
      %1931 = vmatmul.mubr.bf16.gmra.mxu0 %v1823
      %v1932 = vpop.f32.mrf.mxu0
      %v1933 = vadd.f32 %v1641, %v1932
      %v1934 = vpop.f32.mrf.mxu0
      %v1935 = vpop.f32.mrf.mxu0
      %v1936 = vadd.f32 %v1644, %v1935
      %v1937 = vpop.f32.mrf.mxu0
      %1938 = vmatprep.mubr.bf16.mxu0 0
      %1939 = vmatmul.mubr.bf16.gmra.mxu0 %v1826
      %v1940 = vpop.f32.mrf.mxu0
      %v1941 = vadd.f32 %v1649, %v1940
      %v1942 = vpop.f32.mrf.mxu0
      %v1943 = vpop.f32.mrf.mxu0
      %v1944 = vadd.f32 %v1652, %v1943
      %v1945 = vpop.f32.mrf.mxu0
      %1946 = vmatprep.mubr.bf16.mxu0 0
      %1947 = vmatmul.mubr.bf16.gmra.mxu0 %v1829
      %v1948 = vpop.f32.mrf.mxu0
      %v1949 = vadd.f32 %v1657, %v1948
      %v1950 = vpop.f32.mrf.mxu0
      %v1951 = vpop.f32.mrf.mxu0
      %v1952 = vadd.f32 %v1660, %v1951
      %v1953 = vpop.f32.mrf.mxu0
      %1954 = vmatprep.mubr.bf16.mxu0 0
      %1955 = vmatmul.mubr.bf16.gmra.mxu0 %v1832
      %v1956 = vpop.f32.mrf.mxu0
      %v1957 = vadd.f32 %v1665, %v1956
      %v1958 = vpop.f32.mrf.mxu0
      %v1959 = vpop.f32.mrf.mxu0
      %v1960 = vadd.f32 %v1668, %v1959
      %v1961 = vpop.f32.mrf.mxu0
      %1962 = vmatprep.mubr.bf16.mxu0 0
      %1963 = vmatmul.mubr.bf16.gmra.mxu0 %v1835
      %v1964 = vpop.f32.mrf.mxu0
      %v1965 = vadd.f32 %v1673, %v1964
      %v1966 = vpop.f32.mrf.mxu0
      %v1967 = vpop.f32.mrf.mxu0
      %v1968 = vadd.f32 %v1676, %v1967
      %v1969 = vpop.f32.mrf.mxu0
      %1970 = vmatprep.mubr.bf16.mxu0 0
      %1971 = vmatmul.mubr.bf16.gmra.mxu0 %v1838
      %v1972 = vpop.f32.mrf.mxu0
      %v1973 = vadd.f32 %v1681, %v1972
      %v1974 = vpop.f32.mrf.mxu0
      %v1975 = vpop.f32.mrf.mxu0
      %v1976 = vadd.f32 %v1684, %v1975
      %v1977 = vpop.f32.mrf.mxu0
      %1978 = vmatprep.mubr.bf16.mxu0 0
      %1979 = vmatmul.mubr.bf16.gmra.mxu0 %v1841
      %v1980 = vpop.f32.mrf.mxu0
      %v1981 = vadd.f32 %v1689, %v1980
      %v1982 = vpop.f32.mrf.mxu0
      %v1983 = vpop.f32.mrf.mxu0
      %v1984 = vadd.f32 %v1692, %v1983
      %v1985 = vpop.f32.mrf.mxu0
      %1986 = vmatprep.mubr.bf16.mxu0 0
      %1987 = vmatmul.mubr.bf16.gmra.mxu0 %v1844
      %v1988 = vpop.f32.mrf.mxu0
      %v1989 = vadd.f32 %v1697, %v1988
      %v1990 = vpop.f32.mrf.mxu0
      %v1991 = vpop.f32.mrf.mxu0
      %v1992 = vadd.f32 %v1700, %v1991
      %v1993 = vpop.f32.mrf.mxu0
      %1994 = vmatprep.mubr.bf16.mxu0 0
      %1995 = vmatmul.mubr.bf16.gmra.mxu0 %v1847
      %v1996 = vpop.f32.mrf.mxu0
      %v1997 = vadd.f32 %v1705, %v1996
      %v1998 = vpop.f32.mrf.mxu0
      %v1999 = vpop.f32.mrf.mxu0
      %v2000 = vadd.f32 %v1708, %v1999
      %v2001 = vpop.f32.mrf.mxu0
      %2002 = vmatprep.mubr.bf16.mxu0 0
      %2003 = vmatmul.mubr.bf16.gmra.mxu0 %v1850
      %v2004 = vpop.f32.mrf.mxu0
      %v2005 = vadd.f32 %v1713, %v2004
      %v2006 = vpop.f32.mrf.mxu0
      %v2007 = vpop.f32.mrf.mxu0
      %v2008 = vadd.f32 %v1716, %v2007
      %v2009 = vpop.f32.mrf.mxu0
      %2010 = vmatprep.mubr.bf16.mxu0 0
      %2011 = vmatmul.mubr.bf16.gmra.mxu0 %v1853
      %v2012 = vpop.f32.mrf.mxu0
      %v2013 = vadd.f32 %v1721, %v2012
      %v2014 = vpop.f32.mrf.mxu0
      %v2015 = vpop.f32.mrf.mxu0
      %v2016 = vadd.f32 %v1724, %v2015
      %v2017 = vpop.f32.mrf.mxu0
      %2018 = vdwg.mxu0
      %v2019 = vld [vmem:[#allocation2] sm:$0xe]
      %v2020 = vld [vmem:[#allocation2 + $0xc] sm:$0xe]
      %v2021 = vld [vmem:[#allocation2 + $0x18] sm:$0xe]
      %v2022 = vld [vmem:[#allocation2 + $0x24] sm:$0xe]
      %v2023 = vld [vmem:[#allocation2 + $0x30] sm:$0xe]
      %v2024 = vld [vmem:[#allocation2 + $0x3c] sm:$0xe]
      %v2025 = vld [vmem:[#allocation2 + $0x48] sm:$0xe]
      %v2026 = vld [vmem:[#allocation2 + $0x54] sm:$0xe]
      %v2027 = vld [vmem:[#allocation2 + $0x60] sm:$0xe]
      %v2028 = vld [vmem:[#allocation2 + $0x6c] sm:$0xe]
      %v2029 = vld [vmem:[#allocation2 + $0x78] sm:$0xe]
      %v2030 = vld [vmem:[#allocation2 + $0x84] sm:$0xe]
      %v2031 = vld [vmem:[#allocation2 + $0x90] sm:$0xe]
      %v2032 = vld [vmem:[#allocation2 + $0x9c] sm:$0xe]
      %v2033 = vld [vmem:[#allocation2 + $0xa8] sm:$0xe]
      %v2034 = vld [vmem:[#allocation2 + $0xb4] sm:$0xe]
      %vm2067 = vcmask 1042432
      %vm2068 = vcmask 1046532
      %vm2069 = vmor %vm2067, %vm2068
      %v2070 = vrot.slane %v2019, 5
      %v2071 = vrot.slane %v2070, 4
      %v2072 = vrot.slane %v1028, 5
      %v2073 = vsel %vm2069, %v2071, %v2072
      %v2074 = vrot.slane %v2072, 4
      %v2075 = vrot.slane %v1060, 5
      %v2076 = vsel %vm2069, %v2074, %v2075
      %v2077 = vrot.slane %v2020, 5
      %v2078 = vrot.slane %v2077, 4
      %v2079 = vrot.slane %v1030, 5
      %v2080 = vsel %vm2069, %v2078, %v2079
      %v2081 = vrot.slane %v2079, 4
      %v2082 = vrot.slane %v1061, 5
      %v2083 = vsel %vm2069, %v2081, %v2082
      %v2084 = vrot.slane %v2021, 5
      %v2085 = vrot.slane %v2084, 4
      %v2086 = vrot.slane %v1032, 5
      %v2087 = vsel %vm2069, %v2085, %v2086
      %v2088 = vrot.slane %v2086, 4
      %v2089 = vrot.slane %v1062, 5
      %v2090 = vsel %vm2069, %v2088, %v2089
      %v2091 = vrot.slane %v2022, 5
      %v2092 = vrot.slane %v2091, 4
      %v2093 = vrot.slane %v1034, 5
      %v2094 = vsel %vm2069, %v2092, %v2093
      %v2095 = vrot.slane %v2093, 4
      %v2096 = vrot.slane %v1063, 5
      %v2097 = vsel %vm2069, %v2095, %v2096
      %v2098 = vrot.slane %v2023, 5
      %v2099 = vrot.slane %v2098, 4
      %v2100 = vrot.slane %v1036, 5
      %v2101 = vsel %vm2069, %v2099, %v2100
      %v2102 = vrot.slane %v2100, 4
      %v2103 = vrot.slane %v1064, 5
      %v2104 = vsel %vm2069, %v2102, %v2103
      %v2105 = vrot.slane %v2024, 5
      %v2106 = vrot.slane %v2105, 4
      %v2107 = vrot.slane %v1038, 5
      %v2108 = vsel %vm2069, %v2106, %v2107
      %v2109 = vrot.slane %v2107, 4
      %v2110 = vrot.slane %v1065, 5
      %v2111 = vsel %vm2069, %v2109, %v2110
      %v2112 = vrot.slane %v2025, 5
      %v2113 = vrot.slane %v2112, 4
      %v2114 = vrot.slane %v1040, 5
      %v2115 = vsel %vm2069, %v2113, %v2114
      %v2116 = vrot.slane %v2114, 4
      %v2117 = vrot.slane %v1066, 5
      %v2118 = vsel %vm2069, %v2116, %v2117
      %v2119 = vrot.slane %v2026, 5
      %v2120 = vrot.slane %v2119, 4
      %v2121 = vrot.slane %v1042, 5
      %v2122 = vsel %vm2069, %v2120, %v2121
      %v2123 = vrot.slane %v2121, 4
      %v2124 = vrot.slane %v1067, 5
      %v2125 = vsel %vm2069, %v2123, %v2124
      %v2126 = vrot.slane %v2027, 5
      %v2127 = vrot.slane %v2126, 4
      %v2128 = vrot.slane %v1044, 5
      %v2129 = vsel %vm2069, %v2127, %v2128
      %v2130 = vrot.slane %v2128, 4
      %v2131 = vrot.slane %v1068, 5
      %v2132 = vsel %vm2069, %v2130, %v2131
      %v2133 = vrot.slane %v2028, 5
      %v2134 = vrot.slane %v2133, 4
      %v2135 = vrot.slane %v1046, 5
      %v2136 = vsel %vm2069, %v2134, %v2135
      %v2137 = vrot.slane %v2135, 4
      %v2138 = vrot.slane %v1069, 5
      %v2139 = vsel %vm2069, %v2137, %v2138
      %v2140 = vrot.slane %v2029, 5
      %v2141 = vrot.slane %v2140, 4
      %v2142 = vrot.slane %v1048, 5
      %v2143 = vsel %vm2069, %v2141, %v2142
      %v2144 = vrot.slane %v2142, 4
      %v2145 = vrot.slane %v1070, 5
      %v2146 = vsel %vm2069, %v2144, %v2145
      %v2147 = vrot.slane %v2030, 5
      %v2148 = vrot.slane %v2147, 4
      %v2149 = vrot.slane %v1050, 5
      %v2150 = vsel %vm2069, %v2148, %v2149
      %v2151 = vrot.slane %v2149, 4
      %v2152 = vrot.slane %v1071, 5
      %v2153 = vsel %vm2069, %v2151, %v2152
      %v2154 = vrot.slane %v2031, 5
      %v2155 = vrot.slane %v2154, 4
      %v2156 = vrot.slane %v1052, 5
      %v2157 = vsel %vm2069, %v2155, %v2156
      %v2158 = vrot.slane %v2156, 4
      %v2159 = vrot.slane %v1072, 5
      %v2160 = vsel %vm2069, %v2158, %v2159
      %v2161 = vrot.slane %v2032, 5
      %v2162 = vrot.slane %v2161, 4
      %v2163 = vrot.slane %v1054, 5
      %v2164 = vsel %vm2069, %v2162, %v2163
      %v2165 = vrot.slane %v2163, 4
      %v2166 = vrot.slane %v1073, 5
      %v2167 = vsel %vm2069, %v2165, %v2166
      %v2168 = vrot.slane %v2033, 5
      %v2169 = vrot.slane %v2168, 4
      %v2170 = vrot.slane %v1056, 5
      %v2171 = vsel %vm2069, %v2169, %v2170
      %v2172 = vrot.slane %v2170, 4
      %v2173 = vrot.slane %v1074, 5
      %v2174 = vsel %vm2069, %v2172, %v2173
      %v2175 = vrot.slane %v2034, 5
      %v2176 = vrot.slane %v2175, 4
      %v2177 = vrot.slane %v1058, 5
      %v2178 = vsel %vm2069, %v2176, %v2177
      %v2179 = vrot.slane %v2177, 4
      %v2180 = vrot.slane %v1075, 5
      %v2181 = vsel %vm2069, %v2179, %v2180
      %s2182 = scalar_lea.vmem %s1, 4
      %v2183 = vld [vmem:[%s2182] sm:$0x3]
      %v2184 = vunpack.c.l.b16 %v2073
      %v2185 = vunpack.c.l.b16 %v2076
      %v2186 = vunpack.c.l.b16 %v2080
      %v2187 = vunpack.c.l.b16 %v2083
      %v2188 = vunpack.c.l.b16 %v2087
      %v2189 = vunpack.c.l.b16 %v2090
      %v2190 = vunpack.c.l.b16 %v2094
      %v2191 = vunpack.c.l.b16 %v2097
      %v2192 = vunpack.c.l.b16 %v2101
      %v2193 = vunpack.c.l.b16 %v2104
      %v2194 = vunpack.c.l.b16 %v2108
      %v2195 = vunpack.c.l.b16 %v2111
      %v2196 = vunpack.c.l.b16 %v2115
      %v2197 = vunpack.c.l.b16 %v2118
      %v2198 = vunpack.c.l.b16 %v2122
      %v2199 = vunpack.c.l.b16 %v2125
      %v2200 = vunpack.c.l.b16 %v2129
      %v2201 = vunpack.c.l.b16 %v2132
      %v2202 = vunpack.c.l.b16 %v2136
      %v2203 = vunpack.c.l.b16 %v2139
      %v2204 = vunpack.c.l.b16 %v2143
      %v2205 = vunpack.c.l.b16 %v2146
      %v2206 = vunpack.c.l.b16 %v2150
      %v2207 = vunpack.c.l.b16 %v2153
      %v2208 = vunpack.c.l.b16 %v2157
      %v2209 = vunpack.c.l.b16 %v2160
      %v2210 = vunpack.c.l.b16 %v2164
      %v2211 = vunpack.c.l.b16 %v2167
      %v2212 = vunpack.c.l.b16 %v2171
      %v2213 = vunpack.c.l.b16 %v2174
      %v2214 = vunpack.c.l.b16 %v2178
      %v2215 = vunpack.c.l.b16 %v2181
      %v2216 = vpack.c.b16 %v2185, %v2184
      %v2217 = vpack.c.b16 %v2187, %v2186
      %v2218 = vpack.c.b16 %v2189, %v2188
      %v2219 = vpack.c.b16 %v2191, %v2190
      %v2220 = vpack.c.b16 %v2193, %v2192
      %v2221 = vpack.c.b16 %v2195, %v2194
      %v2222 = vpack.c.b16 %v2197, %v2196
      %v2223 = vpack.c.b16 %v2199, %v2198
      %v2224 = vpack.c.b16 %v2201, %v2200
      %v2225 = vpack.c.b16 %v2203, %v2202
      %v2226 = vpack.c.b16 %v2205, %v2204
      %v2227 = vpack.c.b16 %v2207, %v2206
      %v2228 = vpack.c.b16 %v2209, %v2208
      %v2229 = vpack.c.b16 %v2211, %v2210
      %v2230 = vpack.c.b16 %v2213, %v2212
      %v2231 = vpack.c.b16 %v2215, %v2214
      %v2233 = vsel %vm1513, %v2216, 0
      %v2236 = vsel %vm1513, %v2217, 0
      %v2239 = vsel %vm1513, %v2218, 0
      %v2242 = vsel %vm1513, %v2219, 0
      %v2245 = vsel %vm1513, %v2220, 0
      %v2248 = vsel %vm1513, %v2221, 0
      %v2251 = vsel %vm1513, %v2222, 0
      %v2254 = vsel %vm1513, %v2223, 0
      %v2257 = vsel %vm1513, %v2224, 0
      %v2260 = vsel %vm1513, %v2225, 0
      %v2263 = vsel %vm1513, %v2226, 0
      %v2266 = vsel %vm1513, %v2227, 0
      %v2269 = vsel %vm1513, %v2228, 0
      %v2272 = vsel %vm1513, %v2229, 0
      %v2275 = vsel %vm1513, %v2230, 0
      %v2278 = vsel %vm1513, %v2231, 0
      %v2281 = vsel %vm1562, %v2183, 0
      %2283 = vmatprep.subr.bf16.mxu0 0
      %2284 = vmatpush1.bf16.msra.mxu0 0
      %2285 = vmatprep.subr.bf16.mxu0 0
      %2286 = vmatpush1.bf16.msra.mxu0 0
      %2287 = vmatprep.subr.bf16.mxu0 0
      %2288 = vmatpush1.bf16.msra.mxu0 0
      %2289 = vmatprep.subr.bf16.mxu0 0
      %2290 = vmatpush1.bf16.msra.mxu0 0
      %2291 = vmatprep.subr.bf16.mxu0 0
      %2292 = vmatpush1.bf16.msra.mxu0 0
      %2293 = vmatprep.subr.bf16.mxu0 0
      %2294 = vmatpush1.bf16.msra.mxu0 0
      %2295 = vmatprep.subr.bf16.mxu0 0
      %2296 = vmatpush1.bf16.msra.mxu0 0
      %2297 = vmatprep.subr.bf16.mxu0 0
      %2298 = vmatpush1.bf16.msra.mxu0 %v2281
      %2299 = vmatprep.subr.bf16.mxu0 0
      %2300 = vmatpush2.bf16.msra.mxu0 0
      %2301 = vmatprep.subr.bf16.mxu0 0
      %2302 = vmatpush2.bf16.msra.mxu0 0
      %2303 = vmatprep.subr.bf16.mxu0 0
      %2304 = vmatpush2.bf16.msra.mxu0 0
      %2305 = vmatprep.subr.bf16.mxu0 0
      %2306 = vmatpush2.bf16.msra.mxu0 0
      %2307 = vmatprep.subr.bf16.mxu0 0
      %2308 = vmatpush2.bf16.msra.mxu0 0
      %2309 = vmatprep.subr.bf16.mxu0 0
      %2310 = vmatpush2.bf16.msra.mxu0 0
      %2311 = vmatprep.subr.bf16.mxu0 0
      %2312 = vmatpush2.bf16.msra.mxu0 0
      %2313 = vmatprep.subr.bf16.mxu0 0
      %2314 = vmatpush2.bf16.msra.mxu0 0
      %2315 = vmatprep.mubr.bf16.mxu0 0
      %2316 = vmatmul.mubr.bf16.gmra.mxu0 %v2233
      %v2317 = vpop.f32.mrf.mxu0
      %v2318 = vadd.f32 0.0, %v2317
      %v2319 = vpop.f32.mrf.mxu0
      %v2320 = vpop.f32.mrf.mxu0
      %v2321 = vadd.f32 0.0, %v2320
      %v2322 = vpop.f32.mrf.mxu0
      %2323 = vmatprep.mubr.bf16.mxu0 0
      %2324 = vmatmul.mubr.bf16.gmra.mxu0 %v2236
      %v2325 = vpop.f32.mrf.mxu0
      %v2326 = vadd.f32 0.0, %v2325
      %v2327 = vpop.f32.mrf.mxu0
      %v2328 = vpop.f32.mrf.mxu0
      %v2329 = vadd.f32 0.0, %v2328
      %v2330 = vpop.f32.mrf.mxu0
      %2331 = vmatprep.mubr.bf16.mxu0 0
      %2332 = vmatmul.mubr.bf16.gmra.mxu0 %v2239
      %v2333 = vpop.f32.mrf.mxu0
      %v2334 = vadd.f32 0.0, %v2333
      %v2335 = vpop.f32.mrf.mxu0
      %v2336 = vpop.f32.mrf.mxu0
      %v2337 = vadd.f32 0.0, %v2336
      %v2338 = vpop.f32.mrf.mxu0
      %2339 = vmatprep.mubr.bf16.mxu0 0
      %2340 = vmatmul.mubr.bf16.gmra.mxu0 %v2242
      %v2341 = vpop.f32.mrf.mxu0
      %v2342 = vadd.f32 0.0, %v2341
      %v2343 = vpop.f32.mrf.mxu0
      %v2344 = vpop.f32.mrf.mxu0
      %v2345 = vadd.f32 0.0, %v2344
      %v2346 = vpop.f32.mrf.mxu0
      %2347 = vmatprep.mubr.bf16.mxu0 0
      %2348 = vmatmul.mubr.bf16.gmra.mxu0 %v2245
      %v2349 = vpop.f32.mrf.mxu0
      %v2350 = vadd.f32 0.0, %v2349
      %v2351 = vpop.f32.mrf.mxu0
      %v2352 = vpop.f32.mrf.mxu0
      %v2353 = vadd.f32 0.0, %v2352
      %v2354 = vpop.f32.mrf.mxu0
      %2355 = vmatprep.mubr.bf16.mxu0 0
      %2356 = vmatmul.mubr.bf16.gmra.mxu0 %v2248
      %v2357 = vpop.f32.mrf.mxu0
      %v2358 = vadd.f32 0.0, %v2357
      %v2359 = vpop.f32.mrf.mxu0
      %v2360 = vpop.f32.mrf.mxu0
      %v2361 = vadd.f32 0.0, %v2360
      %v2362 = vpop.f32.mrf.mxu0
      %2363 = vmatprep.mubr.bf16.mxu0 0
      %2364 = vmatmul.mubr.bf16.gmra.mxu0 %v2251
      %v2365 = vpop.f32.mrf.mxu0
      %v2366 = vadd.f32 0.0, %v2365
      %v2367 = vpop.f32.mrf.mxu0
      %v2368 = vpop.f32.mrf.mxu0
      %v2369 = vadd.f32 0.0, %v2368
      %v2370 = vpop.f32.mrf.mxu0
      %2371 = vmatprep.mubr.bf16.mxu0 0
      %2372 = vmatmul.mubr.bf16.gmra.mxu0 %v2254
      %v2373 = vpop.f32.mrf.mxu0
      %v2374 = vadd.f32 0.0, %v2373
      %v2375 = vpop.f32.mrf.mxu0
      %v2376 = vpop.f32.mrf.mxu0
      %v2377 = vadd.f32 0.0, %v2376
      %v2378 = vpop.f32.mrf.mxu0
      %2379 = vmatprep.mubr.bf16.mxu0 0
      %2380 = vmatmul.mubr.bf16.gmra.mxu0 %v2257
      %v2381 = vpop.f32.mrf.mxu0
      %v2382 = vadd.f32 0.0, %v2381
      %v2383 = vpop.f32.mrf.mxu0
      %v2384 = vpop.f32.mrf.mxu0
      %v2385 = vadd.f32 0.0, %v2384
      %v2386 = vpop.f32.mrf.mxu0
      %2387 = vmatprep.mubr.bf16.mxu0 0
      %2388 = vmatmul.mubr.bf16.gmra.mxu0 %v2260
      %v2389 = vpop.f32.mrf.mxu0
      %v2390 = vadd.f32 0.0, %v2389
      %v2391 = vpop.f32.mrf.mxu0
      %v2392 = vpop.f32.mrf.mxu0
      %v2393 = vadd.f32 0.0, %v2392
      %v2394 = vpop.f32.mrf.mxu0
      %2395 = vmatprep.mubr.bf16.mxu0 0
      %2396 = vmatmul.mubr.bf16.gmra.mxu0 %v2263
      %v2397 = vpop.f32.mrf.mxu0
      %v2398 = vadd.f32 0.0, %v2397
      %v2399 = vpop.f32.mrf.mxu0
      %v2400 = vpop.f32.mrf.mxu0
      %v2401 = vadd.f32 0.0, %v2400
      %v2402 = vpop.f32.mrf.mxu0
      %2403 = vmatprep.mubr.bf16.mxu0 0
      %2404 = vmatmul.mubr.bf16.gmra.mxu0 %v2266
      %v2405 = vpop.f32.mrf.mxu0
      %v2406 = vadd.f32 0.0, %v2405
      %v2407 = vpop.f32.mrf.mxu0
      %v2408 = vpop.f32.mrf.mxu0
      %v2409 = vadd.f32 0.0, %v2408
      %v2410 = vpop.f32.mrf.mxu0
      %2411 = vmatprep.mubr.bf16.mxu0 0
      %2412 = vmatmul.mubr.bf16.gmra.mxu0 %v2269
      %v2413 = vpop.f32.mrf.mxu0
      %v2414 = vadd.f32 0.0, %v2413
      %v2415 = vpop.f32.mrf.mxu0
      %v2416 = vpop.f32.mrf.mxu0
      %v2417 = vadd.f32 0.0, %v2416
      %v2418 = vpop.f32.mrf.mxu0
      %2419 = vmatprep.mubr.bf16.mxu0 0
      %2420 = vmatmul.mubr.bf16.gmra.mxu0 %v2272
      %v2421 = vpop.f32.mrf.mxu0
      %v2422 = vadd.f32 0.0, %v2421
      %v2423 = vpop.f32.mrf.mxu0
      %v2424 = vpop.f32.mrf.mxu0
      %v2425 = vadd.f32 0.0, %v2424
      %v2426 = vpop.f32.mrf.mxu0
      %2427 = vmatprep.mubr.bf16.mxu0 0
      %2428 = vmatmul.mubr.bf16.gmra.mxu0 %v2275
      %v2429 = vpop.f32.mrf.mxu0
      %v2430 = vadd.f32 0.0, %v2429
      %v2431 = vpop.f32.mrf.mxu0
      %v2432 = vpop.f32.mrf.mxu0
      %v2433 = vadd.f32 0.0, %v2432
      %v2434 = vpop.f32.mrf.mxu0
      %2435 = vmatprep.mubr.bf16.mxu0 0
      %2436 = vmatmul.mubr.bf16.gmra.mxu0 %v2278
      %v2437 = vpop.f32.mrf.mxu0
      %v2438 = vadd.f32 0.0, %v2437
      %v2439 = vpop.f32.mrf.mxu0
      %v2440 = vpop.f32.mrf.mxu0
      %v2441 = vadd.f32 0.0, %v2440
      %v2442 = vpop.f32.mrf.mxu0
      %2443 = vdwg.mxu0
      %v2444 = vadd.f32 %v1893, %v2318
      %v2445 = vadd.f32 %v1896, %v2321
      %v2446 = vadd.f32 %v1901, %v2326
      %v2447 = vadd.f32 %v1904, %v2329
      %v2448 = vadd.f32 %v1909, %v2334
      %v2449 = vadd.f32 %v1912, %v2337
      %v2450 = vadd.f32 %v1917, %v2342
      %v2451 = vadd.f32 %v1920, %v2345
      %v2452 = vadd.f32 %v1925, %v2350
      %v2453 = vadd.f32 %v1928, %v2353
      %v2454 = vadd.f32 %v1933, %v2358
      %v2455 = vadd.f32 %v1936, %v2361
      %v2456 = vadd.f32 %v1941, %v2366
      %v2457 = vadd.f32 %v1944, %v2369
      %v2458 = vadd.f32 %v1949, %v2374
      %v2459 = vadd.f32 %v1952, %v2377
      %v2460 = vadd.f32 %v1957, %v2382
      %v2461 = vadd.f32 %v1960, %v2385
      %v2462 = vadd.f32 %v1965, %v2390
      %v2463 = vadd.f32 %v1968, %v2393
      %v2464 = vadd.f32 %v1973, %v2398
      %v2465 = vadd.f32 %v1976, %v2401
      %v2466 = vadd.f32 %v1981, %v2406
      %v2467 = vadd.f32 %v1984, %v2409
      %v2468 = vadd.f32 %v1989, %v2414
      %v2469 = vadd.f32 %v1992, %v2417
      %v2470 = vadd.f32 %v1997, %v2422
      %v2471 = vadd.f32 %v2000, %v2425
      %v2472 = vadd.f32 %v2005, %v2430
      %v2473 = vadd.f32 %v2008, %v2433
      %v2474 = vadd.f32 %v2013, %v2438
      %v2475 = vadd.f32 %v2016, %v2441
      %v2476 = vld [vmem:[%s912] sm:$0xf]
      %v2477 = vld [vmem:[%s912 + $0x4] sm:$0xf]
      %v2478 = vld [vmem:[%s912 + $0xc] sm:$0xf]
      %v2479 = vld [vmem:[%s912 + $0x10] sm:$0xf]
      %v2480 = vld [vmem:[%s912 + $0x18] sm:$0xf]
      %v2481 = vld [vmem:[%s912 + $0x1c] sm:$0xf]
      %v2482 = vld [vmem:[%s912 + $0x24] sm:$0xf]
      %v2483 = vld [vmem:[%s912 + $0x28] sm:$0xf]
      %v2484 = vld [vmem:[%s912 + $0x30] sm:$0xf]
      %v2485 = vld [vmem:[%s912 + $0x34] sm:$0xf]
      %v2486 = vld [vmem:[%s912 + $0x3c] sm:$0xf]
      %v2487 = vld [vmem:[%s912 + $0x40] sm:$0xf]
      %v2488 = vld [vmem:[%s912 + $0x48] sm:$0xf]
      %v2489 = vld [vmem:[%s912 + $0x4c] sm:$0xf]
      %v2490 = vld [vmem:[%s912 + $0x54] sm:$0xf]
      %v2491 = vld [vmem:[%s912 + $0x58] sm:$0xf]
      %v2492 = vld [vmem:[%s912 + $0x60] sm:$0xf]
      %v2493 = vld [vmem:[%s912 + $0x64] sm:$0xf]
      %v2494 = vld [vmem:[%s912 + $0x6c] sm:$0xf]
      %v2495 = vld [vmem:[%s912 + $0x70] sm:$0xf]
      %v2496 = vld [vmem:[%s912 + $0x78] sm:$0xf]
      %v2497 = vld [vmem:[%s912 + $0x7c] sm:$0xf]
      %v2498 = vld [vmem:[%s912 + $0x84] sm:$0xf]
      %v2499 = vld [vmem:[%s912 + $0x88] sm:$0xf]
      %v2500 = vld [vmem:[%s912 + $0x90] sm:$0xf]
      %v2501 = vld [vmem:[%s912 + $0x94] sm:$0xf]
      %v2502 = vld [vmem:[%s912 + $0x9c] sm:$0xf]
      %v2503 = vld [vmem:[%s912 + $0xa0] sm:$0xf]
      %v2504 = vld [vmem:[%s912 + $0xa8] sm:$0xf]
      %v2505 = vld [vmem:[%s912 + $0xac] sm:$0xf]
      %v2506 = vld [vmem:[%s912 + $0xb4] sm:$0xf]
      %v2507 = vld [vmem:[%s912 + $0xb8] sm:$0xf]
      %s2508 = scalar_lea.vmem %s1, 6
      %v2509 = vld [vmem:[%s2508] sm:$0x3]
      %v2542 = vunpack.c.l.b16 %v2476
      %v2543 = vunpack.c.l.b16 %v2477
      %v2544 = vunpack.c.l.b16 %v2478
      %v2545 = vunpack.c.l.b16 %v2479
      %v2546 = vunpack.c.l.b16 %v2480
      %v2547 = vunpack.c.l.b16 %v2481
      %v2548 = vunpack.c.l.b16 %v2482
      %v2549 = vunpack.c.l.b16 %v2483
      %v2550 = vunpack.c.l.b16 %v2484
      %v2551 = vunpack.c.l.b16 %v2485
      %v2552 = vunpack.c.l.b16 %v2486
      %v2553 = vunpack.c.l.b16 %v2487
      %v2554 = vunpack.c.l.b16 %v2488
      %v2555 = vunpack.c.l.b16 %v2489
      %v2556 = vunpack.c.l.b16 %v2490
      %v2557 = vunpack.c.l.b16 %v2491
      %v2558 = vunpack.c.l.b16 %v2492
      %v2559 = vunpack.c.l.b16 %v2493
      %v2560 = vunpack.c.l.b16 %v2494
      %v2561 = vunpack.c.l.b16 %v2495
      %v2562 = vunpack.c.l.b16 %v2496
      %v2563 = vunpack.c.l.b16 %v2497
      %v2564 = vunpack.c.l.b16 %v2498
      %v2565 = vunpack.c.l.b16 %v2499
      %v2566 = vunpack.c.l.b16 %v2500
      %v2567 = vunpack.c.l.b16 %v2501
      %v2568 = vunpack.c.l.b16 %v2502
      %v2569 = vunpack.c.l.b16 %v2503
      %v2570 = vunpack.c.l.b16 %v2504
      %v2571 = vunpack.c.l.b16 %v2505
      %v2572 = vunpack.c.l.b16 %v2506
      %v2573 = vunpack.c.l.b16 %v2507
      %v2574 = vpack.c.b16 %v2543, %v2542
      %v2575 = vpack.c.b16 %v2545, %v2544
      %v2576 = vpack.c.b16 %v2547, %v2546
      %v2577 = vpack.c.b16 %v2549, %v2548
      %v2578 = vpack.c.b16 %v2551, %v2550
      %v2579 = vpack.c.b16 %v2553, %v2552
      %v2580 = vpack.c.b16 %v2555, %v2554
      %v2581 = vpack.c.b16 %v2557, %v2556
      %v2582 = vpack.c.b16 %v2559, %v2558
      %v2583 = vpack.c.b16 %v2561, %v2560
      %v2584 = vpack.c.b16 %v2563, %v2562
      %v2585 = vpack.c.b16 %v2565, %v2564
      %v2586 = vpack.c.b16 %v2567, %v2566
      %v2587 = vpack.c.b16 %v2569, %v2568
      %v2588 = vpack.c.b16 %v2571, %v2570
      %v2589 = vpack.c.b16 %v2573, %v2572
      %v2591 = vsel %vm1513, %v2574, 0
      %v2594 = vsel %vm1513, %v2575, 0
      %v2597 = vsel %vm1513, %v2576, 0
      %v2600 = vsel %vm1513, %v2577, 0
      %v2603 = vsel %vm1513, %v2578, 0
      %v2606 = vsel %vm1513, %v2579, 0
      %v2609 = vsel %vm1513, %v2580, 0
      %v2612 = vsel %vm1513, %v2581, 0
      %v2615 = vsel %vm1513, %v2582, 0
      %v2618 = vsel %vm1513, %v2583, 0
      %v2621 = vsel %vm1513, %v2584, 0
      %v2624 = vsel %vm1513, %v2585, 0
      %v2627 = vsel %vm1513, %v2586, 0
      %v2630 = vsel %vm1513, %v2587, 0
      %v2633 = vsel %vm1513, %v2588, 0
      %v2636 = vsel %vm1513, %v2589, 0
      %v2639 = vsel %vm1562, %v2509, 0
      %2641 = vmatprep.subr.bf16.mxu0 0
      %2642 = vmatpush1.bf16.msra.mxu0 0
      %2643 = vmatprep.subr.bf16.mxu0 0
      %2644 = vmatpush1.bf16.msra.mxu0 0
      %2645 = vmatprep.subr.bf16.mxu0 0
      %2646 = vmatpush1.bf16.msra.mxu0 0
      %2647 = vmatprep.subr.bf16.mxu0 0
      %2648 = vmatpush1.bf16.msra.mxu0 0
      %2649 = vmatprep.subr.bf16.mxu0 0
      %2650 = vmatpush1.bf16.msra.mxu0 0
      %2651 = vmatprep.subr.bf16.mxu0 0
      %2652 = vmatpush1.bf16.msra.mxu0 0
      %2653 = vmatprep.subr.bf16.mxu0 0
      %2654 = vmatpush1.bf16.msra.mxu0 0
      %2655 = vmatprep.subr.bf16.mxu0 0
      %2656 = vmatpush1.bf16.msra.mxu0 %v2639
      %2657 = vmatprep.subr.bf16.mxu0 0
      %2658 = vmatpush2.bf16.msra.mxu0 0
      %2659 = vmatprep.subr.bf16.mxu0 0
      %2660 = vmatpush2.bf16.msra.mxu0 0
      %2661 = vmatprep.subr.bf16.mxu0 0
      %2662 = vmatpush2.bf16.msra.mxu0 0
      %2663 = vmatprep.subr.bf16.mxu0 0
      %2664 = vmatpush2.bf16.msra.mxu0 0
      %2665 = vmatprep.subr.bf16.mxu0 0
      %2666 = vmatpush2.bf16.msra.mxu0 0
      %2667 = vmatprep.subr.bf16.mxu0 0
      %2668 = vmatpush2.bf16.msra.mxu0 0
      %2669 = vmatprep.subr.bf16.mxu0 0
      %2670 = vmatpush2.bf16.msra.mxu0 0
      %2671 = vmatprep.subr.bf16.mxu0 0
      %2672 = vmatpush2.bf16.msra.mxu0 0
      %2673 = vmatprep.mubr.bf16.mxu0 0
      %2674 = vmatmul.mubr.bf16.gmra.mxu0 %v2591
      %v2675 = vpop.f32.mrf.mxu0
      %v2676 = vadd.f32 0.0, %v2675
      %v2677 = vpop.f32.mrf.mxu0
      %v2678 = vpop.f32.mrf.mxu0
      %v2679 = vadd.f32 0.0, %v2678
      %v2680 = vpop.f32.mrf.mxu0
      %2681 = vmatprep.mubr.bf16.mxu0 0
      %2682 = vmatmul.mubr.bf16.gmra.mxu0 %v2594
      %v2683 = vpop.f32.mrf.mxu0
      %v2684 = vadd.f32 0.0, %v2683
      %v2685 = vpop.f32.mrf.mxu0
      %v2686 = vpop.f32.mrf.mxu0
      %v2687 = vadd.f32 0.0, %v2686
      %v2688 = vpop.f32.mrf.mxu0
      %2689 = vmatprep.mubr.bf16.mxu0 0
      %2690 = vmatmul.mubr.bf16.gmra.mxu0 %v2597
      %v2691 = vpop.f32.mrf.mxu0
      %v2692 = vadd.f32 0.0, %v2691
      %v2693 = vpop.f32.mrf.mxu0
      %v2694 = vpop.f32.mrf.mxu0
      %v2695 = vadd.f32 0.0, %v2694
      %v2696 = vpop.f32.mrf.mxu0
      %2697 = vmatprep.mubr.bf16.mxu0 0
      %2698 = vmatmul.mubr.bf16.gmra.mxu0 %v2600
      %v2699 = vpop.f32.mrf.mxu0
      %v2700 = vadd.f32 0.0, %v2699
      %v2701 = vpop.f32.mrf.mxu0
      %v2702 = vpop.f32.mrf.mxu0
      %v2703 = vadd.f32 0.0, %v2702
      %v2704 = vpop.f32.mrf.mxu0
      %2705 = vmatprep.mubr.bf16.mxu0 0
      %2706 = vmatmul.mubr.bf16.gmra.mxu0 %v2603
      %v2707 = vpop.f32.mrf.mxu0
      %v2708 = vadd.f32 0.0, %v2707
      %v2709 = vpop.f32.mrf.mxu0
      %v2710 = vpop.f32.mrf.mxu0
      %v2711 = vadd.f32 0.0, %v2710
      %v2712 = vpop.f32.mrf.mxu0
      %2713 = vmatprep.mubr.bf16.mxu0 0
      %2714 = vmatmul.mubr.bf16.gmra.mxu0 %v2606
      %v2715 = vpop.f32.mrf.mxu0
      %v2716 = vadd.f32 0.0, %v2715
      %v2717 = vpop.f32.mrf.mxu0
      %v2718 = vpop.f32.mrf.mxu0
      %v2719 = vadd.f32 0.0, %v2718
      %v2720 = vpop.f32.mrf.mxu0
      %2721 = vmatprep.mubr.bf16.mxu0 0
      %2722 = vmatmul.mubr.bf16.gmra.mxu0 %v2609
      %v2723 = vpop.f32.mrf.mxu0
      %v2724 = vadd.f32 0.0, %v2723
      %v2725 = vpop.f32.mrf.mxu0
      %v2726 = vpop.f32.mrf.mxu0
      %v2727 = vadd.f32 0.0, %v2726
      %v2728 = vpop.f32.mrf.mxu0
      %2729 = vmatprep.mubr.bf16.mxu0 0
      %2730 = vmatmul.mubr.bf16.gmra.mxu0 %v2612
      %v2731 = vpop.f32.mrf.mxu0
      %v2732 = vadd.f32 0.0, %v2731
      %v2733 = vpop.f32.mrf.mxu0
      %v2734 = vpop.f32.mrf.mxu0
      %v2735 = vadd.f32 0.0, %v2734
      %v2736 = vpop.f32.mrf.mxu0
      %2737 = vmatprep.mubr.bf16.mxu0 0
      %2738 = vmatmul.mubr.bf16.gmra.mxu0 %v2615
      %v2739 = vpop.f32.mrf.mxu0
      %v2740 = vadd.f32 0.0, %v2739
      %v2741 = vpop.f32.mrf.mxu0
      %v2742 = vpop.f32.mrf.mxu0
      %v2743 = vadd.f32 0.0, %v2742
      %v2744 = vpop.f32.mrf.mxu0
      %2745 = vmatprep.mubr.bf16.mxu0 0
      %2746 = vmatmul.mubr.bf16.gmra.mxu0 %v2618
      %v2747 = vpop.f32.mrf.mxu0
      %v2748 = vadd.f32 0.0, %v2747
      %v2749 = vpop.f32.mrf.mxu0
      %v2750 = vpop.f32.mrf.mxu0
      %v2751 = vadd.f32 0.0, %v2750
      %v2752 = vpop.f32.mrf.mxu0
      %2753 = vmatprep.mubr.bf16.mxu0 0
      %2754 = vmatmul.mubr.bf16.gmra.mxu0 %v2621
      %v2755 = vpop.f32.mrf.mxu0
      %v2756 = vadd.f32 0.0, %v2755
      %v2757 = vpop.f32.mrf.mxu0
      %v2758 = vpop.f32.mrf.mxu0
      %v2759 = vadd.f32 0.0, %v2758
      %v2760 = vpop.f32.mrf.mxu0
      %2761 = vmatprep.mubr.bf16.mxu0 0
      %2762 = vmatmul.mubr.bf16.gmra.mxu0 %v2624
      %v2763 = vpop.f32.mrf.mxu0
      %v2764 = vadd.f32 0.0, %v2763
      %v2765 = vpop.f32.mrf.mxu0
      %v2766 = vpop.f32.mrf.mxu0
      %v2767 = vadd.f32 0.0, %v2766
      %v2768 = vpop.f32.mrf.mxu0
      %2769 = vmatprep.mubr.bf16.mxu0 0
      %2770 = vmatmul.mubr.bf16.gmra.mxu0 %v2627
      %v2771 = vpop.f32.mrf.mxu0
      %v2772 = vadd.f32 0.0, %v2771
      %v2773 = vpop.f32.mrf.mxu0
      %v2774 = vpop.f32.mrf.mxu0
      %v2775 = vadd.f32 0.0, %v2774
      %v2776 = vpop.f32.mrf.mxu0
      %2777 = vmatprep.mubr.bf16.mxu0 0
      %2778 = vmatmul.mubr.bf16.gmra.mxu0 %v2630
      %v2779 = vpop.f32.mrf.mxu0
      %v2780 = vadd.f32 0.0, %v2779
      %v2781 = vpop.f32.mrf.mxu0
      %v2782 = vpop.f32.mrf.mxu0
      %v2783 = vadd.f32 0.0, %v2782
      %v2784 = vpop.f32.mrf.mxu0
      %2785 = vmatprep.mubr.bf16.mxu0 0
      %2786 = vmatmul.mubr.bf16.gmra.mxu0 %v2633
      %v2787 = vpop.f32.mrf.mxu0
      %v2788 = vadd.f32 0.0, %v2787
      %v2789 = vpop.f32.mrf.mxu0
      %v2790 = vpop.f32.mrf.mxu0
      %v2791 = vadd.f32 0.0, %v2790
      %v2792 = vpop.f32.mrf.mxu0
      %2793 = vmatprep.mubr.bf16.mxu0 0
      %2794 = vmatmul.mubr.bf16.gmra.mxu0 %v2636
      %v2795 = vpop.f32.mrf.mxu0
      %v2796 = vadd.f32 0.0, %v2795
      %v2797 = vpop.f32.mrf.mxu0
      %v2798 = vpop.f32.mrf.mxu0
      %v2799 = vadd.f32 0.0, %v2798
      %v2800 = vpop.f32.mrf.mxu0
      %2801 = vdwg.mxu0
      %v2802 = vadd.f32 %v2444, %v2676
      %v2803 = vadd.f32 %v2445, %v2679
      %v2804 = vadd.f32 %v2446, %v2684
      %v2805 = vadd.f32 %v2447, %v2687
      %v2806 = vadd.f32 %v2448, %v2692
      %v2807 = vadd.f32 %v2449, %v2695
      %v2808 = vadd.f32 %v2450, %v2700
      %v2809 = vadd.f32 %v2451, %v2703
      %v2810 = vadd.f32 %v2452, %v2708
      %v2811 = vadd.f32 %v2453, %v2711
      %v2812 = vadd.f32 %v2454, %v2716
      %v2813 = vadd.f32 %v2455, %v2719
      %v2814 = vadd.f32 %v2456, %v2724
      %v2815 = vadd.f32 %v2457, %v2727
      %v2816 = vadd.f32 %v2458, %v2732
      %v2817 = vadd.f32 %v2459, %v2735
      %v2818 = vadd.f32 %v2460, %v2740
      %v2819 = vadd.f32 %v2461, %v2743
      %v2820 = vadd.f32 %v2462, %v2748
      %v2821 = vadd.f32 %v2463, %v2751
      %v2822 = vadd.f32 %v2464, %v2756
      %v2823 = vadd.f32 %v2465, %v2759
      %v2824 = vadd.f32 %v2466, %v2764
      %v2825 = vadd.f32 %v2467, %v2767
      %v2826 = vadd.f32 %v2468, %v2772
      %v2827 = vadd.f32 %v2469, %v2775
      %v2828 = vadd.f32 %v2470, %v2780
      %v2829 = vadd.f32 %v2471, %v2783
      %v2830 = vadd.f32 %v2472, %v2788
      %v2831 = vadd.f32 %v2473, %v2791
      %v2832 = vadd.f32 %v2474, %v2796
      %v2833 = vadd.f32 %v2475, %v2799
      %v2834 = vld [vmem:[%s912] sm:$0xf]
      %v2835 = vld [vmem:[%s912 + $0x4] sm:$0xf]
      %v2836 = vld [vmem:[%s912 + $0x8] sm:$0x1]
      %v2837 = vld [vmem:[%s912 + $0xc] sm:$0xf]
      %v2838 = vld [vmem:[%s912 + $0x10] sm:$0xf]
      %v2839 = vld [vmem:[%s912 + $0x14] sm:$0x1]
      %v2840 = vld [vmem:[%s912 + $0x18] sm:$0xf]
      %v2841 = vld [vmem:[%s912 + $0x1c] sm:$0xf]
      %v2842 = vld [vmem:[%s912 + $0x20] sm:$0x1]
      %v2843 = vld [vmem:[%s912 + $0x24] sm:$0xf]
      %v2844 = vld [vmem:[%s912 + $0x28] sm:$0xf]
      %v2845 = vld [vmem:[%s912 + $0x2c] sm:$0x1]
      %v2846 = vld [vmem:[%s912 + $0x30] sm:$0xf]
      %v2847 = vld [vmem:[%s912 + $0x34] sm:$0xf]
      %v2848 = vld [vmem:[%s912 + $0x38] sm:$0x1]
      %v2849 = vld [vmem:[%s912 + $0x3c] sm:$0xf]
      %v2850 = vld [vmem:[%s912 + $0x40] sm:$0xf]
      %v2851 = vld [vmem:[%s912 + $0x44] sm:$0x1]
      %v2852 = vld [vmem:[%s912 + $0x48] sm:$0xf]
      %v2853 = vld [vmem:[%s912 + $0x4c] sm:$0xf]
      %v2854 = vld [vmem:[%s912 + $0x50] sm:$0x1]
      %v2855 = vld [vmem:[%s912 + $0x54] sm:$0xf]
      %v2856 = vld [vmem:[%s912 + $0x58] sm:$0xf]
      %v2857 = vld [vmem:[%s912 + $0x5c] sm:$0x1]
      %v2858 = vld [vmem:[%s912 + $0x60] sm:$0xf]
      %v2859 = vld [vmem:[%s912 + $0x64] sm:$0xf]
      %v2860 = vld [vmem:[%s912 + $0x68] sm:$0x1]
      %v2861 = vld [vmem:[%s912 + $0x6c] sm:$0xf]
      %v2862 = vld [vmem:[%s912 + $0x70] sm:$0xf]
      %v2863 = vld [vmem:[%s912 + $0x74] sm:$0x1]
      %v2864 = vld [vmem:[%s912 + $0x78] sm:$0xf]
      %v2865 = vld [vmem:[%s912 + $0x7c] sm:$0xf]
      %v2866 = vld [vmem:[%s912 + $0x80] sm:$0x1]
      %v2867 = vld [vmem:[%s912 + $0x84] sm:$0xf]
      %v2868 = vld [vmem:[%s912 + $0x88] sm:$0xf]
      %v2869 = vld [vmem:[%s912 + $0x8c] sm:$0x1]
      %v2870 = vld [vmem:[%s912 + $0x90] sm:$0xf]
      %v2871 = vld [vmem:[%s912 + $0x94] sm:$0xf]
      %v2872 = vld [vmem:[%s912 + $0x98] sm:$0x1]
      %v2873 = vld [vmem:[%s912 + $0x9c] sm:$0xf]
      %v2874 = vld [vmem:[%s912 + $0xa0] sm:$0xf]
      %v2875 = vld [vmem:[%s912 + $0xa4] sm:$0x1]
      %v2876 = vld [vmem:[%s912 + $0xa8] sm:$0xf]
      %v2877 = vld [vmem:[%s912 + $0xac] sm:$0xf]
      %v2878 = vld [vmem:[%s912 + $0xb0] sm:$0x1]
      %v2879 = vld [vmem:[%s912 + $0xb4] sm:$0xf]
      %v2880 = vld [vmem:[%s912 + $0xb8] sm:$0xf]
      %v2881 = vld [vmem:[%s912 + $0xbc] sm:$0x1]
      %v2883 = vshrl.u32 %v2834, 16
      %v2885 = vrot.slane %v2883, 4
      %v2886 = vshll.u32 %v2834, 16
      %v2888 = vrot.slane %v2886, 5
      %v2889 = vor.u32 %v2885, %v2888
      %v2890 = vrot.slane %v2889, 4
      %v2892 = vshll.u32 %v2835, 16
      %v2894 = vrot.slane %v2892, 5
      %v2895 = vsel %vm1078, %v2890, %v2894
      %v2896 = vshrl.u32 %v2835, 16
      %v2898 = vrot.slane %v2896, 4
      %v2899 = vor.u32 %v2898, %v2894
      %v2900 = vrot.slane %v2899, 4
      %v2902 = vshll.u32 %v2836, 16
      %v2904 = vrot.slane %v2902, 5
      %v2905 = vsel %vm1078, %v2900, %v2904
      %v2907 = vshrl.u32 %v2837, 16
      %v2909 = vrot.slane %v2907, 4
      %v2910 = vshll.u32 %v2837, 16
      %v2912 = vrot.slane %v2910, 5
      %v2913 = vor.u32 %v2909, %v2912
      %v2914 = vrot.slane %v2913, 4
      %v2916 = vshll.u32 %v2838, 16
      %v2918 = vrot.slane %v2916, 5
      %v2919 = vsel %vm1078, %v2914, %v2918
      %v2920 = vshrl.u32 %v2838, 16
      %v2922 = vrot.slane %v2920, 4
      %v2923 = vor.u32 %v2922, %v2918
      %v2924 = vrot.slane %v2923, 4
      %v2926 = vshll.u32 %v2839, 16
      %v2928 = vrot.slane %v2926, 5
      %v2929 = vsel %vm1078, %v2924, %v2928
      %v2931 = vshrl.u32 %v2840, 16
      %v2933 = vrot.slane %v2931, 4
      %v2934 = vshll.u32 %v2840, 16
      %v2936 = vrot.slane %v2934, 5
      %v2937 = vor.u32 %v2933, %v2936
      %v2938 = vrot.slane %v2937, 4
      %v2940 = vshll.u32 %v2841, 16
      %v2942 = vrot.slane %v2940, 5
      %v2943 = vsel %vm1078, %v2938, %v2942
      %v2944 = vshrl.u32 %v2841, 16
      %v2946 = vrot.slane %v2944, 4
      %v2947 = vor.u32 %v2946, %v2942
      %v2948 = vrot.slane %v2947, 4
      %v2950 = vshll.u32 %v2842, 16
      %v2952 = vrot.slane %v2950, 5
      %v2953 = vsel %vm1078, %v2948, %v2952
      %v2955 = vshrl.u32 %v2843, 16
      %v2957 = vrot.slane %v2955, 4
      %v2958 = vshll.u32 %v2843, 16
      %v2960 = vrot.slane %v2958, 5
      %v2961 = vor.u32 %v2957, %v2960
      %v2962 = vrot.slane %v2961, 4
      %v2964 = vshll.u32 %v2844, 16
      %v2966 = vrot.slane %v2964, 5
      %v2967 = vsel %vm1078, %v2962, %v2966
      %v2968 = vshrl.u32 %v2844, 16
      %v2970 = vrot.slane %v2968, 4
      %v2971 = vor.u32 %v2970, %v2966
      %v2972 = vrot.slane %v2971, 4
      %v2974 = vshll.u32 %v2845, 16
      %v2976 = vrot.slane %v2974, 5
      %v2977 = vsel %vm1078, %v2972, %v2976
      %v2979 = vshrl.u32 %v2846, 16
      %v2981 = vrot.slane %v2979, 4
      %v2982 = vshll.u32 %v2846, 16
      %v2984 = vrot.slane %v2982, 5
      %v2985 = vor.u32 %v2981, %v2984
      %v2986 = vrot.slane %v2985, 4
      %v2988 = vshll.u32 %v2847, 16
      %v2990 = vrot.slane %v2988, 5
      %v2991 = vsel %vm1078, %v2986, %v2990
      %v2992 = vshrl.u32 %v2847, 16
      %v2994 = vrot.slane %v2992, 4
      %v2995 = vor.u32 %v2994, %v2990
      %v2996 = vrot.slane %v2995, 4
      %v2998 = vshll.u32 %v2848, 16
      %v3000 = vrot.slane %v2998, 5
      %v3001 = vsel %vm1078, %v2996, %v3000
      %v3003 = vshrl.u32 %v2849, 16
      %v3005 = vrot.slane %v3003, 4
      %v3006 = vshll.u32 %v2849, 16
      %v3008 = vrot.slane %v3006, 5
      %v3009 = vor.u32 %v3005, %v3008
      %v3010 = vrot.slane %v3009, 4
      %v3012 = vshll.u32 %v2850, 16
      %v3014 = vrot.slane %v3012, 5
      %v3015 = vsel %vm1078, %v3010, %v3014
      %v3016 = vshrl.u32 %v2850, 16
      %v3018 = vrot.slane %v3016, 4
      %v3019 = vor.u32 %v3018, %v3014
      %v3020 = vrot.slane %v3019, 4
      %v3022 = vshll.u32 %v2851, 16
      %v3024 = vrot.slane %v3022, 5
      %v3025 = vsel %vm1078, %v3020, %v3024
      %v3027 = vshrl.u32 %v2852, 16
      %v3029 = vrot.slane %v3027, 4
      %v3030 = vshll.u32 %v2852, 16
      %v3032 = vrot.slane %v3030, 5
      %v3033 = vor.u32 %v3029, %v3032
      %v3034 = vrot.slane %v3033, 4
      %v3036 = vshll.u32 %v2853, 16
      %v3038 = vrot.slane %v3036, 5
      %v3039 = vsel %vm1078, %v3034, %v3038
      %v3040 = vshrl.u32 %v2853, 16
      %v3042 = vrot.slane %v3040, 4
      %v3043 = vor.u32 %v3042, %v3038
      %v3044 = vrot.slane %v3043, 4
      %v3046 = vshll.u32 %v2854, 16
      %v3048 = vrot.slane %v3046, 5
      %v3049 = vsel %vm1078, %v3044, %v3048
      %v3051 = vshrl.u32 %v2855, 16
      %v3053 = vrot.slane %v3051, 4
      %v3054 = vshll.u32 %v2855, 16
      %v3056 = vrot.slane %v3054, 5
      %v3057 = vor.u32 %v3053, %v3056
      %v3058 = vrot.slane %v3057, 4
      %v3060 = vshll.u32 %v2856, 16
      %v3062 = vrot.slane %v3060, 5
      %v3063 = vsel %vm1078, %v3058, %v3062
      %v3064 = vshrl.u32 %v2856, 16
      %v3066 = vrot.slane %v3064, 4
      %v3067 = vor.u32 %v3066, %v3062
      %v3068 = vrot.slane %v3067, 4
      %v3070 = vshll.u32 %v2857, 16
      %v3072 = vrot.slane %v3070, 5
      %v3073 = vsel %vm1078, %v3068, %v3072
      %v3075 = vshrl.u32 %v2858, 16
      %v3077 = vrot.slane %v3075, 4
      %v3078 = vshll.u32 %v2858, 16
      %v3080 = vrot.slane %v3078, 5
      %v3081 = vor.u32 %v3077, %v3080
      %v3082 = vrot.slane %v3081, 4
      %v3084 = vshll.u32 %v2859, 16
      %v3086 = vrot.slane %v3084, 5
      %v3087 = vsel %vm1078, %v3082, %v3086
      %v3088 = vshrl.u32 %v2859, 16
      %v3090 = vrot.slane %v3088, 4
      %v3091 = vor.u32 %v3090, %v3086
      %v3092 = vrot.slane %v3091, 4
      %v3094 = vshll.u32 %v2860, 16
      %v3096 = vrot.slane %v3094, 5
      %v3097 = vsel %vm1078, %v3092, %v3096
      %v3099 = vshrl.u32 %v2861, 16
      %v3101 = vrot.slane %v3099, 4
      %v3102 = vshll.u32 %v2861, 16
      %v3104 = vrot.slane %v3102, 5
      %v3105 = vor.u32 %v3101, %v3104
      %v3106 = vrot.slane %v3105, 4
      %v3108 = vshll.u32 %v2862, 16
      %v3110 = vrot.slane %v3108, 5
      %v3111 = vsel %vm1078, %v3106, %v3110
      %v3112 = vshrl.u32 %v2862, 16
      %v3114 = vrot.slane %v3112, 4
      %v3115 = vor.u32 %v3114, %v3110
      %v3116 = vrot.slane %v3115, 4
      %v3118 = vshll.u32 %v2863, 16
      %v3120 = vrot.slane %v3118, 5
      %v3121 = vsel %vm1078, %v3116, %v3120
      %v3123 = vshrl.u32 %v2864, 16
      %v3125 = vrot.slane %v3123, 4
      %v3126 = vshll.u32 %v2864, 16
      %v3128 = vrot.slane %v3126, 5
      %v3129 = vor.u32 %v3125, %v3128
      %v3130 = vrot.slane %v3129, 4
      %v3132 = vshll.u32 %v2865, 16
      %v3134 = vrot.slane %v3132, 5
      %v3135 = vsel %vm1078, %v3130, %v3134
      %v3136 = vshrl.u32 %v2865, 16
      %v3138 = vrot.slane %v3136, 4
      %v3139 = vor.u32 %v3138, %v3134
      %v3140 = vrot.slane %v3139, 4
      %v3142 = vshll.u32 %v2866, 16
      %v3144 = vrot.slane %v3142, 5
      %v3145 = vsel %vm1078, %v3140, %v3144
      %v3147 = vshrl.u32 %v2867, 16
      %v3149 = vrot.slane %v3147, 4
      %v3150 = vshll.u32 %v2867, 16
      %v3152 = vrot.slane %v3150, 5
      %v3153 = vor.u32 %v3149, %v3152
      %v3154 = vrot.slane %v3153, 4
      %v3156 = vshll.u32 %v2868, 16
      %v3158 = vrot.slane %v3156, 5
      %v3159 = vsel %vm1078, %v3154, %v3158
      %v3160 = vshrl.u32 %v2868, 16
      %v3162 = vrot.slane %v3160, 4
      %v3163 = vor.u32 %v3162, %v3158
      %v3164 = vrot.slane %v3163, 4
      %v3166 = vshll.u32 %v2869, 16
      %v3168 = vrot.slane %v3166, 5
      %v3169 = vsel %vm1078, %v3164, %v3168
      %v3171 = vshrl.u32 %v2870, 16
      %v3173 = vrot.slane %v3171, 4
      %v3174 = vshll.u32 %v2870, 16
      %v3176 = vrot.slane %v3174, 5
      %v3177 = vor.u32 %v3173, %v3176
      %v3178 = vrot.slane %v3177, 4
      %v3180 = vshll.u32 %v2871, 16
      %v3182 = vrot.slane %v3180, 5
      %v3183 = vsel %vm1078, %v3178, %v3182
      %v3184 = vshrl.u32 %v2871, 16
      %v3186 = vrot.slane %v3184, 4
      %v3187 = vor.u32 %v3186, %v3182
      %v3188 = vrot.slane %v3187, 4
      %v3190 = vshll.u32 %v2872, 16
      %v3192 = vrot.slane %v3190, 5
      %v3193 = vsel %vm1078, %v3188, %v3192
      %v3195 = vshrl.u32 %v2873, 16
      %v3197 = vrot.slane %v3195, 4
      %v3198 = vshll.u32 %v2873, 16
      %v3200 = vrot.slane %v3198, 5
      %v3201 = vor.u32 %v3197, %v3200
      %v3202 = vrot.slane %v3201, 4
      %v3204 = vshll.u32 %v2874, 16
      %v3206 = vrot.slane %v3204, 5
      %v3207 = vsel %vm1078, %v3202, %v3206
      %v3208 = vshrl.u32 %v2874, 16
      %v3210 = vrot.slane %v3208, 4
      %v3211 = vor.u32 %v3210, %v3206
      %v3212 = vrot.slane %v3211, 4
      %v3214 = vshll.u32 %v2875, 16
      %v3216 = vrot.slane %v3214, 5
      %v3217 = vsel %vm1078, %v3212, %v3216
      %v3219 = vshrl.u32 %v2876, 16
      %v3221 = vrot.slane %v3219, 4
      %v3222 = vshll.u32 %v2876, 16
      %v3224 = vrot.slane %v3222, 5
      %v3225 = vor.u32 %v3221, %v3224
      %v3226 = vrot.slane %v3225, 4
      %v3228 = vshll.u32 %v2877, 16
      %v3230 = vrot.slane %v3228, 5
      %v3231 = vsel %vm1078, %v3226, %v3230
      %v3232 = vshrl.u32 %v2877, 16
      %v3234 = vrot.slane %v3232, 4
      %v3235 = vor.u32 %v3234, %v3230
      %v3236 = vrot.slane %v3235, 4
      %v3238 = vshll.u32 %v2878, 16
      %v3240 = vrot.slane %v3238, 5
      %v3241 = vsel %vm1078, %v3236, %v3240
      %v3243 = vshrl.u32 %v2879, 16
      %v3245 = vrot.slane %v3243, 4
      %v3246 = vshll.u32 %v2879, 16
      %v3248 = vrot.slane %v3246, 5
      %v3249 = vor.u32 %v3245, %v3248
      %v3250 = vrot.slane %v3249, 4
      %v3252 = vshll.u32 %v2880, 16
      %v3254 = vrot.slane %v3252, 5
      %v3255 = vsel %vm1078, %v3250, %v3254
      %v3256 = vshrl.u32 %v2880, 16
      %v3258 = vrot.slane %v3256, 4
      %v3259 = vor.u32 %v3258, %v3254
      %v3260 = vrot.slane %v3259, 4
      %v3262 = vshll.u32 %v2881, 16
      %v3264 = vrot.slane %v3262, 5
      %v3265 = vsel %vm1078, %v3260, %v3264
      %s3266 = scalar_lea.vmem %s1, 8
      %v3267 = vld [vmem:[%s3266] sm:$0x3]
      %v3268 = vunpack.c.l.b16 %v2895
      %v3269 = vunpack.c.l.b16 %v2905
      %v3270 = vunpack.c.l.b16 %v2919
      %v3271 = vunpack.c.l.b16 %v2929
      %v3272 = vunpack.c.l.b16 %v2943
      %v3273 = vunpack.c.l.b16 %v2953
      %v3274 = vunpack.c.l.b16 %v2967
      %v3275 = vunpack.c.l.b16 %v2977
      %v3276 = vunpack.c.l.b16 %v2991
      %v3277 = vunpack.c.l.b16 %v3001
      %v3278 = vunpack.c.l.b16 %v3015
      %v3279 = vunpack.c.l.b16 %v3025
      %v3280 = vunpack.c.l.b16 %v3039
      %v3281 = vunpack.c.l.b16 %v3049
      %v3282 = vunpack.c.l.b16 %v3063
      %v3283 = vunpack.c.l.b16 %v3073
      %v3284 = vunpack.c.l.b16 %v3087
      %v3285 = vunpack.c.l.b16 %v3097
      %v3286 = vunpack.c.l.b16 %v3111
      %v3287 = vunpack.c.l.b16 %v3121
      %v3288 = vunpack.c.l.b16 %v3135
      %v3289 = vunpack.c.l.b16 %v3145
      %v3290 = vunpack.c.l.b16 %v3159
      %v3291 = vunpack.c.l.b16 %v3169
      %v3292 = vunpack.c.l.b16 %v3183
      %v3293 = vunpack.c.l.b16 %v3193
      %v3294 = vunpack.c.l.b16 %v3207
      %v3295 = vunpack.c.l.b16 %v3217
      %v3296 = vunpack.c.l.b16 %v3231
      %v3297 = vunpack.c.l.b16 %v3241
      %v3298 = vunpack.c.l.b16 %v3255
      %v3299 = vunpack.c.l.b16 %v3265
      %v3300 = vpack.c.b16 %v3269, %v3268
      %v3301 = vpack.c.b16 %v3271, %v3270
      %v3302 = vpack.c.b16 %v3273, %v3272
      %v3303 = vpack.c.b16 %v3275, %v3274
      %v3304 = vpack.c.b16 %v3277, %v3276
      %v3305 = vpack.c.b16 %v3279, %v3278
      %v3306 = vpack.c.b16 %v3281, %v3280
      %v3307 = vpack.c.b16 %v3283, %v3282
      %v3308 = vpack.c.b16 %v3285, %v3284
      %v3309 = vpack.c.b16 %v3287, %v3286
      %v3310 = vpack.c.b16 %v3289, %v3288
      %v3311 = vpack.c.b16 %v3291, %v3290
      %v3312 = vpack.c.b16 %v3293, %v3292
      %v3313 = vpack.c.b16 %v3295, %v3294
      %v3314 = vpack.c.b16 %v3297, %v3296
      %v3315 = vpack.c.b16 %v3299, %v3298
      %v3317 = vsel %vm1513, %v3300, 0
      %v3320 = vsel %vm1513, %v3301, 0
      %v3323 = vsel %vm1513, %v3302, 0
      %v3326 = vsel %vm1513, %v3303, 0
      %v3329 = vsel %vm1513, %v3304, 0
      %v3332 = vsel %vm1513, %v3305, 0
      %v3335 = vsel %vm1513, %v3306, 0
      %v3338 = vsel %vm1513, %v3307, 0
      %v3341 = vsel %vm1513, %v3308, 0
      %v3344 = vsel %vm1513, %v3309, 0
      %v3347 = vsel %vm1513, %v3310, 0
      %v3350 = vsel %vm1513, %v3311, 0
      %v3353 = vsel %vm1513, %v3312, 0
      %v3356 = vsel %vm1513, %v3313, 0
      %v3359 = vsel %vm1513, %v3314, 0
      %v3362 = vsel %vm1513, %v3315, 0
      %v3365 = vsel %vm1562, %v3267, 0
      %3367 = vmatprep.subr.bf16.mxu0 0
      %3368 = vmatpush1.bf16.msra.mxu0 0
      %3369 = vmatprep.subr.bf16.mxu0 0
      %3370 = vmatpush1.bf16.msra.mxu0 0
      %3371 = vmatprep.subr.bf16.mxu0 0
      %3372 = vmatpush1.bf16.msra.mxu0 0
      %3373 = vmatprep.subr.bf16.mxu0 0
      %3374 = vmatpush1.bf16.msra.mxu0 0
      %3375 = vmatprep.subr.bf16.mxu0 0
      %3376 = vmatpush1.bf16.msra.mxu0 0
      %3377 = vmatprep.subr.bf16.mxu0 0
      %3378 = vmatpush1.bf16.msra.mxu0 0
      %3379 = vmatprep.subr.bf16.mxu0 0
      %3380 = vmatpush1.bf16.msra.mxu0 0
      %3381 = vmatprep.subr.bf16.mxu0 0
      %3382 = vmatpush1.bf16.msra.mxu0 %v3365
      %3383 = vmatprep.subr.bf16.mxu0 0
      %3384 = vmatpush2.bf16.msra.mxu0 0
      %3385 = vmatprep.subr.bf16.mxu0 0
      %3386 = vmatpush2.bf16.msra.mxu0 0
      %3387 = vmatprep.subr.bf16.mxu0 0
      %3388 = vmatpush2.bf16.msra.mxu0 0
      %3389 = vmatprep.subr.bf16.mxu0 0
      %3390 = vmatpush2.bf16.msra.mxu0 0
      %3391 = vmatprep.subr.bf16.mxu0 0
      %3392 = vmatpush2.bf16.msra.mxu0 0
      %3393 = vmatprep.subr.bf16.mxu0 0
      %3394 = vmatpush2.bf16.msra.mxu0 0
      %3395 = vmatprep.subr.bf16.mxu0 0
      %3396 = vmatpush2.bf16.msra.mxu0 0
      %3397 = vmatprep.subr.bf16.mxu0 0
      %3398 = vmatpush2.bf16.msra.mxu0 0
      %3399 = vmatprep.mubr.bf16.mxu0 0
      %3400 = vmatmul.mubr.bf16.gmra.mxu0 %v3317
      %v3401 = vpop.f32.mrf.mxu0
      %v3402 = vadd.f32 0.0, %v3401
      %v3403 = vpop.f32.mrf.mxu0
      %v3404 = vpop.f32.mrf.mxu0
      %v3405 = vadd.f32 0.0, %v3404
      %v3406 = vpop.f32.mrf.mxu0
      %3407 = vmatprep.mubr.bf16.mxu0 0
      %3408 = vmatmul.mubr.bf16.gmra.mxu0 %v3320
      %v3409 = vpop.f32.mrf.mxu0
      %v3410 = vadd.f32 0.0, %v3409
      %v3411 = vpop.f32.mrf.mxu0
      %v3412 = vpop.f32.mrf.mxu0
      %v3413 = vadd.f32 0.0, %v3412
      %v3414 = vpop.f32.mrf.mxu0
      %3415 = vmatprep.mubr.bf16.mxu0 0
      %3416 = vmatmul.mubr.bf16.gmra.mxu0 %v3323
      %v3417 = vpop.f32.mrf.mxu0
      %v3418 = vadd.f32 0.0, %v3417
      %v3419 = vpop.f32.mrf.mxu0
      %v3420 = vpop.f32.mrf.mxu0
      %v3421 = vadd.f32 0.0, %v3420
      %v3422 = vpop.f32.mrf.mxu0
      %3423 = vmatprep.mubr.bf16.mxu0 0
      %3424 = vmatmul.mubr.bf16.gmra.mxu0 %v3326
      %v3425 = vpop.f32.mrf.mxu0
      %v3426 = vadd.f32 0.0, %v3425
      %v3427 = vpop.f32.mrf.mxu0
      %v3428 = vpop.f32.mrf.mxu0
      %v3429 = vadd.f32 0.0, %v3428
      %v3430 = vpop.f32.mrf.mxu0
      %3431 = vmatprep.mubr.bf16.mxu0 0
      %3432 = vmatmul.mubr.bf16.gmra.mxu0 %v3329
      %v3433 = vpop.f32.mrf.mxu0
      %v3434 = vadd.f32 0.0, %v3433
      %v3435 = vpop.f32.mrf.mxu0
      %v3436 = vpop.f32.mrf.mxu0
      %v3437 = vadd.f32 0.0, %v3436
      %v3438 = vpop.f32.mrf.mxu0
      %3439 = vmatprep.mubr.bf16.mxu0 0
      %3440 = vmatmul.mubr.bf16.gmra.mxu0 %v3332
      %v3441 = vpop.f32.mrf.mxu0
      %v3442 = vadd.f32 0.0, %v3441
      %v3443 = vpop.f32.mrf.mxu0
      %v3444 = vpop.f32.mrf.mxu0
      %v3445 = vadd.f32 0.0, %v3444
      %v3446 = vpop.f32.mrf.mxu0
      %3447 = vmatprep.mubr.bf16.mxu0 0
      %3448 = vmatmul.mubr.bf16.gmra.mxu0 %v3335
      %v3449 = vpop.f32.mrf.mxu0
      %v3450 = vadd.f32 0.0, %v3449
      %v3451 = vpop.f32.mrf.mxu0
      %v3452 = vpop.f32.mrf.mxu0
      %v3453 = vadd.f32 0.0, %v3452
      %v3454 = vpop.f32.mrf.mxu0
      %3455 = vmatprep.mubr.bf16.mxu0 0
      %3456 = vmatmul.mubr.bf16.gmra.mxu0 %v3338
      %v3457 = vpop.f32.mrf.mxu0
      %v3458 = vadd.f32 0.0, %v3457
      %v3459 = vpop.f32.mrf.mxu0
      %v3460 = vpop.f32.mrf.mxu0
      %v3461 = vadd.f32 0.0, %v3460
      %v3462 = vpop.f32.mrf.mxu0
      %3463 = vmatprep.mubr.bf16.mxu0 0
      %3464 = vmatmul.mubr.bf16.gmra.mxu0 %v3341
      %v3465 = vpop.f32.mrf.mxu0
      %v3466 = vadd.f32 0.0, %v3465
      %v3467 = vpop.f32.mrf.mxu0
      %v3468 = vpop.f32.mrf.mxu0
      %v3469 = vadd.f32 0.0, %v3468
      %v3470 = vpop.f32.mrf.mxu0
      %3471 = vmatprep.mubr.bf16.mxu0 0
      %3472 = vmatmul.mubr.bf16.gmra.mxu0 %v3344
      %v3473 = vpop.f32.mrf.mxu0
      %v3474 = vadd.f32 0.0, %v3473
      %v3475 = vpop.f32.mrf.mxu0
      %v3476 = vpop.f32.mrf.mxu0
      %v3477 = vadd.f32 0.0, %v3476
      %v3478 = vpop.f32.mrf.mxu0
      %3479 = vmatprep.mubr.bf16.mxu0 0
      %3480 = vmatmul.mubr.bf16.gmra.mxu0 %v3347
      %v3481 = vpop.f32.mrf.mxu0
      %v3482 = vadd.f32 0.0, %v3481
      %v3483 = vpop.f32.mrf.mxu0
      %v3484 = vpop.f32.mrf.mxu0
      %v3485 = vadd.f32 0.0, %v3484
      %v3486 = vpop.f32.mrf.mxu0
      %3487 = vmatprep.mubr.bf16.mxu0 0
      %3488 = vmatmul.mubr.bf16.gmra.mxu0 %v3350
      %v3489 = vpop.f32.mrf.mxu0
      %v3490 = vadd.f32 0.0, %v3489
      %v3491 = vpop.f32.mrf.mxu0
      %v3492 = vpop.f32.mrf.mxu0
      %v3493 = vadd.f32 0.0, %v3492
      %v3494 = vpop.f32.mrf.mxu0
      %3495 = vmatprep.mubr.bf16.mxu0 0
      %3496 = vmatmul.mubr.bf16.gmra.mxu0 %v3353
      %v3497 = vpop.f32.mrf.mxu0
      %v3498 = vadd.f32 0.0, %v3497
      %v3499 = vpop.f32.mrf.mxu0
      %v3500 = vpop.f32.mrf.mxu0
      %v3501 = vadd.f32 0.0, %v3500
      %v3502 = vpop.f32.mrf.mxu0
      %3503 = vmatprep.mubr.bf16.mxu0 0
      %3504 = vmatmul.mubr.bf16.gmra.mxu0 %v3356
      %v3505 = vpop.f32.mrf.mxu0
      %v3506 = vadd.f32 0.0, %v3505
      %v3507 = vpop.f32.mrf.mxu0
      %v3508 = vpop.f32.mrf.mxu0
      %v3509 = vadd.f32 0.0, %v3508
      %v3510 = vpop.f32.mrf.mxu0
      %3511 = vmatprep.mubr.bf16.mxu0 0
      %3512 = vmatmul.mubr.bf16.gmra.mxu0 %v3359
      %v3513 = vpop.f32.mrf.mxu0
      %v3514 = vadd.f32 0.0, %v3513
      %v3515 = vpop.f32.mrf.mxu0
      %v3516 = vpop.f32.mrf.mxu0
      %v3517 = vadd.f32 0.0, %v3516
      %v3518 = vpop.f32.mrf.mxu0
      %3519 = vmatprep.mubr.bf16.mxu0 0
      %3520 = vmatmul.mubr.bf16.gmra.mxu0 %v3362
      %v3521 = vpop.f32.mrf.mxu0
      %v3522 = vadd.f32 0.0, %v3521
      %v3523 = vpop.f32.mrf.mxu0
      %v3524 = vpop.f32.mrf.mxu0
      %v3525 = vadd.f32 0.0, %v3524
      %v3526 = vpop.f32.mrf.mxu0
      %3527 = vdwg.mxu0
      %v3528 = vadd.f32 %v2802, %v3402
      %v3529 = vadd.f32 %v2803, %v3405
      %v3530 = vadd.f32 %v2804, %v3410
      %v3531 = vadd.f32 %v2805, %v3413
      %v3532 = vadd.f32 %v2806, %v3418
      %v3533 = vadd.f32 %v2807, %v3421
      %v3534 = vadd.f32 %v2808, %v3426
      %v3535 = vadd.f32 %v2809, %v3429
      %v3536 = vadd.f32 %v2810, %v3434
      %v3537 = vadd.f32 %v2811, %v3437
      %v3538 = vadd.f32 %v2812, %v3442
      %v3539 = vadd.f32 %v2813, %v3445
      %v3540 = vadd.f32 %v2814, %v3450
      %v3541 = vadd.f32 %v2815, %v3453
      %v3542 = vadd.f32 %v2816, %v3458
      %v3543 = vadd.f32 %v2817, %v3461
      %v3544 = vadd.f32 %v2818, %v3466
      %v3545 = vadd.f32 %v2819, %v3469
      %v3546 = vadd.f32 %v2820, %v3474
      %v3547 = vadd.f32 %v2821, %v3477
      %v3548 = vadd.f32 %v2822, %v3482
      %v3549 = vadd.f32 %v2823, %v3485
      %v3550 = vadd.f32 %v2824, %v3490
      %v3551 = vadd.f32 %v2825, %v3493
      %v3552 = vadd.f32 %v2826, %v3498
      %v3553 = vadd.f32 %v2827, %v3501
      %v3554 = vadd.f32 %v2828, %v3506
      %v3555 = vadd.f32 %v2829, %v3509
      %v3556 = vadd.f32 %v2830, %v3514
      %v3557 = vadd.f32 %v2831, %v3517
      %v3558 = vadd.f32 %v2832, %v3522
      %v3559 = vadd.f32 %v2833, %v3525
      %v3560 = vld [vmem:[%s912] sm:$0xe]
      %v3561 = vld [vmem:[%s912 + $0xc] sm:$0xe]
      %v3562 = vld [vmem:[%s912 + $0x18] sm:$0xe]
      %v3563 = vld [vmem:[%s912 + $0x24] sm:$0xe]
      %v3564 = vld [vmem:[%s912 + $0x30] sm:$0xe]
      %v3565 = vld [vmem:[%s912 + $0x3c] sm:$0xe]
      %v3566 = vld [vmem:[%s912 + $0x48] sm:$0xe]
      %v3567 = vld [vmem:[%s912 + $0x54] sm:$0xe]
      %v3568 = vld [vmem:[%s912 + $0x60] sm:$0xe]
      %v3569 = vld [vmem:[%s912 + $0x6c] sm:$0xe]
      %v3570 = vld [vmem:[%s912 + $0x78] sm:$0xe]
      %v3571 = vld [vmem:[%s912 + $0x84] sm:$0xe]
      %v3572 = vld [vmem:[%s912 + $0x90] sm:$0xe]
      %v3573 = vld [vmem:[%s912 + $0x9c] sm:$0xe]
      %v3574 = vld [vmem:[%s912 + $0xa8] sm:$0xe]
      %v3575 = vld [vmem:[%s912 + $0xb4] sm:$0xe]
      %v3624 = vrot.slane %v3560, 5
      %v3625 = vrot.slane %v3624, 4
      %v3626 = vrot.slane %v2835, 5
      %v3627 = vsel %vm2069, %v3625, %v3626
      %v3628 = vrot.slane %v3626, 4
      %v3629 = vrot.slane %v2836, 5
      %v3630 = vsel %vm2069, %v3628, %v3629
      %v3631 = vrot.slane %v3561, 5
      %v3632 = vrot.slane %v3631, 4
      %v3633 = vrot.slane %v2838, 5
      %v3634 = vsel %vm2069, %v3632, %v3633
      %v3635 = vrot.slane %v3633, 4
      %v3636 = vrot.slane %v2839, 5
      %v3637 = vsel %vm2069, %v3635, %v3636
      %v3638 = vrot.slane %v3562, 5
      %v3639 = vrot.slane %v3638, 4
      %v3640 = vrot.slane %v2841, 5
      %v3641 = vsel %vm2069, %v3639, %v3640
      %v3642 = vrot.slane %v3640, 4
      %v3643 = vrot.slane %v2842, 5
      %v3644 = vsel %vm2069, %v3642, %v3643
      %v3645 = vrot.slane %v3563, 5
      %v3646 = vrot.slane %v3645, 4
      %v3647 = vrot.slane %v2844, 5
      %v3648 = vsel %vm2069, %v3646, %v3647
      %v3649 = vrot.slane %v3647, 4
      %v3650 = vrot.slane %v2845, 5
      %v3651 = vsel %vm2069, %v3649, %v3650
      %v3652 = vrot.slane %v3564, 5
      %v3653 = vrot.slane %v3652, 4
      %v3654 = vrot.slane %v2847, 5
      %v3655 = vsel %vm2069, %v3653, %v3654
      %v3656 = vrot.slane %v3654, 4
      %v3657 = vrot.slane %v2848, 5
      %v3658 = vsel %vm2069, %v3656, %v3657
      %v3659 = vrot.slane %v3565, 5
      %v3660 = vrot.slane %v3659, 4
      %v3661 = vrot.slane %v2850, 5
      %v3662 = vsel %vm2069, %v3660, %v3661
      %v3663 = vrot.slane %v3661, 4
      %v3664 = vrot.slane %v2851, 5
      %v3665 = vsel %vm2069, %v3663, %v3664
      %v3666 = vrot.slane %v3566, 5
      %v3667 = vrot.slane %v3666, 4
      %v3668 = vrot.slane %v2853, 5
      %v3669 = vsel %vm2069, %v3667, %v3668
      %v3670 = vrot.slane %v3668, 4
      %v3671 = vrot.slane %v2854, 5
      %v3672 = vsel %vm2069, %v3670, %v3671
      %v3673 = vrot.slane %v3567, 5
      %v3674 = vrot.slane %v3673, 4
      %v3675 = vrot.slane %v2856, 5
      %v3676 = vsel %vm2069, %v3674, %v3675
      %v3677 = vrot.slane %v3675, 4
      %v3678 = vrot.slane %v2857, 5
      %v3679 = vsel %vm2069, %v3677, %v3678
      %v3680 = vrot.slane %v3568, 5
      %v3681 = vrot.slane %v3680, 4
      %v3682 = vrot.slane %v2859, 5
      %v3683 = vsel %vm2069, %v3681, %v3682
      %v3684 = vrot.slane %v3682, 4
      %v3685 = vrot.slane %v2860, 5
      %v3686 = vsel %vm2069, %v3684, %v3685
      %v3687 = vrot.slane %v3569, 5
      %v3688 = vrot.slane %v3687, 4
      %v3689 = vrot.slane %v2862, 5
      %v3690 = vsel %vm2069, %v3688, %v3689
      %v3691 = vrot.slane %v3689, 4
      %v3692 = vrot.slane %v2863, 5
      %v3693 = vsel %vm2069, %v3691, %v3692
      %v3694 = vrot.slane %v3570, 5
      %v3695 = vrot.slane %v3694, 4
      %v3696 = vrot.slane %v2865, 5
      %v3697 = vsel %vm2069, %v3695, %v3696
      %v3698 = vrot.slane %v3696, 4
      %v3699 = vrot.slane %v2866, 5
      %v3700 = vsel %vm2069, %v3698, %v3699
      %v3701 = vrot.slane %v3571, 5
      %v3702 = vrot.slane %v3701, 4
      %v3703 = vrot.slane %v2868, 5
      %v3704 = vsel %vm2069, %v3702, %v3703
      %v3705 = vrot.slane %v3703, 4
      %v3706 = vrot.slane %v2869, 5
      %v3707 = vsel %vm2069, %v3705, %v3706
      %v3708 = vrot.slane %v3572, 5
      %v3709 = vrot.slane %v3708, 4
      %v3710 = vrot.slane %v2871, 5
      %v3711 = vsel %vm2069, %v3709, %v3710
      %v3712 = vrot.slane %v3710, 4
      %v3713 = vrot.slane %v2872, 5
      %v3714 = vsel %vm2069, %v3712, %v3713
      %v3715 = vrot.slane %v3573, 5
      %v3716 = vrot.slane %v3715, 4
      %v3717 = vrot.slane %v2874, 5
      %v3718 = vsel %vm2069, %v3716, %v3717
      %v3719 = vrot.slane %v3717, 4
      %v3720 = vrot.slane %v2875, 5
      %v3721 = vsel %vm2069, %v3719, %v3720
      %v3722 = vrot.slane %v3574, 5
      %v3723 = vrot.slane %v3722, 4
      %v3724 = vrot.slane %v2877, 5
      %v3725 = vsel %vm2069, %v3723, %v3724
      %v3726 = vrot.slane %v3724, 4
      %v3727 = vrot.slane %v2878, 5
      %v3728 = vsel %vm2069, %v3726, %v3727
      %v3729 = vrot.slane %v3575, 5
      %v3730 = vrot.slane %v3729, 4
      %v3731 = vrot.slane %v2880, 5
      %v3732 = vsel %vm2069, %v3730, %v3731
      %v3733 = vrot.slane %v3731, 4
      %v3734 = vrot.slane %v2881, 5
      %v3735 = vsel %vm2069, %v3733, %v3734
      %s3736 = scalar_lea.vmem %s1, 10
      %v3737 = vld [vmem:[%s3736] sm:$0x3]
      %v3738 = vunpack.c.l.b16 %v3627
      %v3739 = vunpack.c.l.b16 %v3630
      %v3740 = vunpack.c.l.b16 %v3634
      %v3741 = vunpack.c.l.b16 %v3637
      %v3742 = vunpack.c.l.b16 %v3641
      %v3743 = vunpack.c.l.b16 %v3644
      %v3744 = vunpack.c.l.b16 %v3648
      %v3745 = vunpack.c.l.b16 %v3651
      %v3746 = vunpack.c.l.b16 %v3655
      %v3747 = vunpack.c.l.b16 %v3658
      %v3748 = vunpack.c.l.b16 %v3662
      %v3749 = vunpack.c.l.b16 %v3665
      %v3750 = vunpack.c.l.b16 %v3669
      %v3751 = vunpack.c.l.b16 %v3672
      %v3752 = vunpack.c.l.b16 %v3676
      %v3753 = vunpack.c.l.b16 %v3679
      %v3754 = vunpack.c.l.b16 %v3683
      %v3755 = vunpack.c.l.b16 %v3686
      %v3756 = vunpack.c.l.b16 %v3690
      %v3757 = vunpack.c.l.b16 %v3693
      %v3758 = vunpack.c.l.b16 %v3697
      %v3759 = vunpack.c.l.b16 %v3700
      %v3760 = vunpack.c.l.b16 %v3704
      %v3761 = vunpack.c.l.b16 %v3707
      %v3762 = vunpack.c.l.b16 %v3711
      %v3763 = vunpack.c.l.b16 %v3714
      %v3764 = vunpack.c.l.b16 %v3718
      %v3765 = vunpack.c.l.b16 %v3721
      %v3766 = vunpack.c.l.b16 %v3725
      %v3767 = vunpack.c.l.b16 %v3728
      %v3768 = vunpack.c.l.b16 %v3732
      %v3769 = vunpack.c.l.b16 %v3735
      %v3770 = vpack.c.b16 %v3739, %v3738
      %v3771 = vpack.c.b16 %v3741, %v3740
      %v3772 = vpack.c.b16 %v3743, %v3742
      %v3773 = vpack.c.b16 %v3745, %v3744
      %v3774 = vpack.c.b16 %v3747, %v3746
      %v3775 = vpack.c.b16 %v3749, %v3748
      %v3776 = vpack.c.b16 %v3751, %v3750
      %v3777 = vpack.c.b16 %v3753, %v3752
      %v3778 = vpack.c.b16 %v3755, %v3754
      %v3779 = vpack.c.b16 %v3757, %v3756
      %v3780 = vpack.c.b16 %v3759, %v3758
      %v3781 = vpack.c.b16 %v3761, %v3760
      %v3782 = vpack.c.b16 %v3763, %v3762
      %v3783 = vpack.c.b16 %v3765, %v3764
      %v3784 = vpack.c.b16 %v3767, %v3766
      %v3785 = vpack.c.b16 %v3769, %v3768
      %v3787 = vsel %vm1513, %v3770, 0
      %v3790 = vsel %vm1513, %v3771, 0
      %v3793 = vsel %vm1513, %v3772, 0
      %v3796 = vsel %vm1513, %v3773, 0
      %v3799 = vsel %vm1513, %v3774, 0
      %v3802 = vsel %vm1513, %v3775, 0
      %v3805 = vsel %vm1513, %v3776, 0
      %v3808 = vsel %vm1513, %v3777, 0
      %v3811 = vsel %vm1513, %v3778, 0
      %v3814 = vsel %vm1513, %v3779, 0
      %v3817 = vsel %vm1513, %v3780, 0
      %v3820 = vsel %vm1513, %v3781, 0
      %v3823 = vsel %vm1513, %v3782, 0
      %v3826 = vsel %vm1513, %v3783, 0
      %v3829 = vsel %vm1513, %v3784, 0
      %v3832 = vsel %vm1513, %v3785, 0
      %v3835 = vsel %vm1562, %v3737, 0
      %3837 = vmatprep.subr.bf16.mxu0 0
      %3838 = vmatpush1.bf16.msra.mxu0 0
      %3839 = vmatprep.subr.bf16.mxu0 0
      %3840 = vmatpush1.bf16.msra.mxu0 0
      %3841 = vmatprep.subr.bf16.mxu0 0
      %3842 = vmatpush1.bf16.msra.mxu0 0
      %3843 = vmatprep.subr.bf16.mxu0 0
      %3844 = vmatpush1.bf16.msra.mxu0 0
      %3845 = vmatprep.subr.bf16.mxu0 0
      %3846 = vmatpush1.bf16.msra.mxu0 0
      %3847 = vmatprep.subr.bf16.mxu0 0
      %3848 = vmatpush1.bf16.msra.mxu0 0
      %3849 = vmatprep.subr.bf16.mxu0 0
      %3850 = vmatpush1.bf16.msra.mxu0 0
      %3851 = vmatprep.subr.bf16.mxu0 0
      %3852 = vmatpush1.bf16.msra.mxu0 %v3835
      %3853 = vmatprep.subr.bf16.mxu0 0
      %3854 = vmatpush2.bf16.msra.mxu0 0
      %3855 = vmatprep.subr.bf16.mxu0 0
      %3856 = vmatpush2.bf16.msra.mxu0 0
      %3857 = vmatprep.subr.bf16.mxu0 0
      %3858 = vmatpush2.bf16.msra.mxu0 0
      %3859 = vmatprep.subr.bf16.mxu0 0
      %3860 = vmatpush2.bf16.msra.mxu0 0
      %3861 = vmatprep.subr.bf16.mxu0 0
      %3862 = vmatpush2.bf16.msra.mxu0 0
      %3863 = vmatprep.subr.bf16.mxu0 0
      %3864 = vmatpush2.bf16.msra.mxu0 0
      %3865 = vmatprep.subr.bf16.mxu0 0
      %3866 = vmatpush2.bf16.msra.mxu0 0
      %3867 = vmatprep.subr.bf16.mxu0 0
      %3868 = vmatpush2.bf16.msra.mxu0 0
      %3869 = vmatprep.mubr.bf16.mxu0 0
      %3870 = vmatmul.mubr.bf16.gmra.mxu0 %v3787
      %v3871 = vpop.f32.mrf.mxu0
      %v3872 = vadd.f32 0.0, %v3871
      %v3873 = vpop.f32.mrf.mxu0
      %v3874 = vpop.f32.mrf.mxu0
      %v3875 = vadd.f32 0.0, %v3874
      %v3876 = vpop.f32.mrf.mxu0
      %3877 = vmatprep.mubr.bf16.mxu0 0
      %3878 = vmatmul.mubr.bf16.gmra.mxu0 %v3790
      %v3879 = vpop.f32.mrf.mxu0
      %v3880 = vadd.f32 0.0, %v3879
      %v3881 = vpop.f32.mrf.mxu0
      %v3882 = vpop.f32.mrf.mxu0
      %v3883 = vadd.f32 0.0, %v3882
      %v3884 = vpop.f32.mrf.mxu0
      %3885 = vmatprep.mubr.bf16.mxu0 0
      %3886 = vmatmul.mubr.bf16.gmra.mxu0 %v3793
      %v3887 = vpop.f32.mrf.mxu0
      %v3888 = vadd.f32 0.0, %v3887
      %v3889 = vpop.f32.mrf.mxu0
      %v3890 = vpop.f32.mrf.mxu0
      %v3891 = vadd.f32 0.0, %v3890
      %v3892 = vpop.f32.mrf.mxu0
      %3893 = vmatprep.mubr.bf16.mxu0 0
      %3894 = vmatmul.mubr.bf16.gmra.mxu0 %v3796
      %v3895 = vpop.f32.mrf.mxu0
      %v3896 = vadd.f32 0.0, %v3895
      %v3897 = vpop.f32.mrf.mxu0
      %v3898 = vpop.f32.mrf.mxu0
      %v3899 = vadd.f32 0.0, %v3898
      %v3900 = vpop.f32.mrf.mxu0
      %3901 = vmatprep.mubr.bf16.mxu0 0
      %3902 = vmatmul.mubr.bf16.gmra.mxu0 %v3799
      %v3903 = vpop.f32.mrf.mxu0
      %v3904 = vadd.f32 0.0, %v3903
      %v3905 = vpop.f32.mrf.mxu0
      %v3906 = vpop.f32.mrf.mxu0
      %v3907 = vadd.f32 0.0, %v3906
      %v3908 = vpop.f32.mrf.mxu0
      %3909 = vmatprep.mubr.bf16.mxu0 0
      %3910 = vmatmul.mubr.bf16.gmra.mxu0 %v3802
      %v3911 = vpop.f32.mrf.mxu0
      %v3912 = vadd.f32 0.0, %v3911
      %v3913 = vpop.f32.mrf.mxu0
      %v3914 = vpop.f32.mrf.mxu0
      %v3915 = vadd.f32 0.0, %v3914
      %v3916 = vpop.f32.mrf.mxu0
      %3917 = vmatprep.mubr.bf16.mxu0 0
      %3918 = vmatmul.mubr.bf16.gmra.mxu0 %v3805
      %v3919 = vpop.f32.mrf.mxu0
      %v3920 = vadd.f32 0.0, %v3919
      %v3921 = vpop.f32.mrf.mxu0
      %v3922 = vpop.f32.mrf.mxu0
      %v3923 = vadd.f32 0.0, %v3922
      %v3924 = vpop.f32.mrf.mxu0
      %3925 = vmatprep.mubr.bf16.mxu0 0
      %3926 = vmatmul.mubr.bf16.gmra.mxu0 %v3808
      %v3927 = vpop.f32.mrf.mxu0
      %v3928 = vadd.f32 0.0, %v3927
      %v3929 = vpop.f32.mrf.mxu0
      %v3930 = vpop.f32.mrf.mxu0
      %v3931 = vadd.f32 0.0, %v3930
      %v3932 = vpop.f32.mrf.mxu0
      %3933 = vmatprep.mubr.bf16.mxu0 0
      %3934 = vmatmul.mubr.bf16.gmra.mxu0 %v3811
      %v3935 = vpop.f32.mrf.mxu0
      %v3936 = vadd.f32 0.0, %v3935
      %v3937 = vpop.f32.mrf.mxu0
      %v3938 = vpop.f32.mrf.mxu0
      %v3939 = vadd.f32 0.0, %v3938
      %v3940 = vpop.f32.mrf.mxu0
      %3941 = vmatprep.mubr.bf16.mxu0 0
      %3942 = vmatmul.mubr.bf16.gmra.mxu0 %v3814
      %v3943 = vpop.f32.mrf.mxu0
      %v3944 = vadd.f32 0.0, %v3943
      %v3945 = vpop.f32.mrf.mxu0
      %v3946 = vpop.f32.mrf.mxu0
      %v3947 = vadd.f32 0.0, %v3946
      %v3948 = vpop.f32.mrf.mxu0
      %3949 = vmatprep.mubr.bf16.mxu0 0
      %3950 = vmatmul.mubr.bf16.gmra.mxu0 %v3817
      %v3951 = vpop.f32.mrf.mxu0
      %v3952 = vadd.f32 0.0, %v3951
      %v3953 = vpop.f32.mrf.mxu0
      %v3954 = vpop.f32.mrf.mxu0
      %v3955 = vadd.f32 0.0, %v3954
      %v3956 = vpop.f32.mrf.mxu0
      %3957 = vmatprep.mubr.bf16.mxu0 0
      %3958 = vmatmul.mubr.bf16.gmra.mxu0 %v3820
      %v3959 = vpop.f32.mrf.mxu0
      %v3960 = vadd.f32 0.0, %v3959
      %v3961 = vpop.f32.mrf.mxu0
      %v3962 = vpop.f32.mrf.mxu0
      %v3963 = vadd.f32 0.0, %v3962
      %v3964 = vpop.f32.mrf.mxu0
      %3965 = vmatprep.mubr.bf16.mxu0 0
      %3966 = vmatmul.mubr.bf16.gmra.mxu0 %v3823
      %v3967 = vpop.f32.mrf.mxu0
      %v3968 = vadd.f32 0.0, %v3967
      %v3969 = vpop.f32.mrf.mxu0
      %v3970 = vpop.f32.mrf.mxu0
      %v3971 = vadd.f32 0.0, %v3970
      %v3972 = vpop.f32.mrf.mxu0
      %3973 = vmatprep.mubr.bf16.mxu0 0
      %3974 = vmatmul.mubr.bf16.gmra.mxu0 %v3826
      %v3975 = vpop.f32.mrf.mxu0
      %v3976 = vadd.f32 0.0, %v3975
      %v3977 = vpop.f32.mrf.mxu0
      %v3978 = vpop.f32.mrf.mxu0
      %v3979 = vadd.f32 0.0, %v3978
      %v3980 = vpop.f32.mrf.mxu0
      %3981 = vmatprep.mubr.bf16.mxu0 0
      %3982 = vmatmul.mubr.bf16.gmra.mxu0 %v3829
      %v3983 = vpop.f32.mrf.mxu0
      %v3984 = vadd.f32 0.0, %v3983
      %v3985 = vpop.f32.mrf.mxu0
      %v3986 = vpop.f32.mrf.mxu0
      %v3987 = vadd.f32 0.0, %v3986
      %v3988 = vpop.f32.mrf.mxu0
      %3989 = vmatprep.mubr.bf16.mxu0 0
      %3990 = vmatmul.mubr.bf16.gmra.mxu0 %v3832
      %v3991 = vpop.f32.mrf.mxu0
      %v3992 = vadd.f32 0.0, %v3991
      %v3993 = vpop.f32.mrf.mxu0
      %v3994 = vpop.f32.mrf.mxu0
      %v3995 = vadd.f32 0.0, %v3994
      %v3996 = vpop.f32.mrf.mxu0
      %3997 = vdwg.mxu0
      %v3998 = vadd.f32 %v3528, %v3872
      %v3999 = vadd.f32 %v3529, %v3875
      %v4000 = vadd.f32 %v3530, %v3880
      %v4001 = vadd.f32 %v3531, %v3883
      %v4002 = vadd.f32 %v3532, %v3888
      %v4003 = vadd.f32 %v3533, %v3891
      %v4004 = vadd.f32 %v3534, %v3896
      %v4005 = vadd.f32 %v3535, %v3899
      %v4006 = vadd.f32 %v3536, %v3904
      %v4007 = vadd.f32 %v3537, %v3907
      %v4008 = vadd.f32 %v3538, %v3912
      %v4009 = vadd.f32 %v3539, %v3915
      %v4010 = vadd.f32 %v3540, %v3920
      %v4011 = vadd.f32 %v3541, %v3923
      %v4012 = vadd.f32 %v3542, %v3928
      %v4013 = vadd.f32 %v3543, %v3931
      %v4014 = vadd.f32 %v3544, %v3936
      %v4015 = vadd.f32 %v3545, %v3939
      %v4016 = vadd.f32 %v3546, %v3944
      %v4017 = vadd.f32 %v3547, %v3947
      %v4018 = vadd.f32 %v3548, %v3952
      %v4019 = vadd.f32 %v3549, %v3955
      %v4020 = vadd.f32 %v3550, %v3960
      %v4021 = vadd.f32 %v3551, %v3963
      %v4022 = vadd.f32 %v3552, %v3968
      %v4023 = vadd.f32 %v3553, %v3971
      %v4024 = vadd.f32 %v3554, %v3976
      %v4025 = vadd.f32 %v3555, %v3979
      %v4026 = vadd.f32 %v3556, %v3984
      %v4027 = vadd.f32 %v3557, %v3987
      %v4028 = vadd.f32 %v3558, %v3992
      %v4029 = vadd.f32 %v3559, %v3995
      %s4030 = scalar_lea.vmem [#allocation2], 24
      %v4031 = vld [vmem:[%s4030] sm:$0xf]
      %v4032 = vld [vmem:[%s4030 + $0x4] sm:$0xf]
      %v4033 = vld [vmem:[%s4030 + $0xc] sm:$0xf]
      %v4034 = vld [vmem:[%s4030 + $0x10] sm:$0xf]
      %v4035 = vld [vmem:[%s4030 + $0x18] sm:$0xf]
      %v4036 = vld [vmem:[%s4030 + $0x1c] sm:$0xf]
      %v4037 = vld [vmem:[%s4030 + $0x24] sm:$0xf]
      %v4038 = vld [vmem:[%s4030 + $0x28] sm:$0xf]
      %v4039 = vld [vmem:[%s4030 + $0x30] sm:$0xf]
      %v4040 = vld [vmem:[%s4030 + $0x34] sm:$0xf]
      %v4041 = vld [vmem:[%s4030 + $0x3c] sm:$0xf]
      %v4042 = vld [vmem:[%s4030 + $0x40] sm:$0xf]
      %v4043 = vld [vmem:[%s4030 + $0x48] sm:$0xf]
      %v4044 = vld [vmem:[%s4030 + $0x4c] sm:$0xf]
      %v4045 = vld [vmem:[%s4030 + $0x54] sm:$0xf]
      %v4046 = vld [vmem:[%s4030 + $0x58] sm:$0xf]
      %v4047 = vld [vmem:[%s4030 + $0x60] sm:$0xf]
      %v4048 = vld [vmem:[%s4030 + $0x64] sm:$0xf]
      %v4049 = vld [vmem:[%s4030 + $0x6c] sm:$0xf]
      %v4050 = vld [vmem:[%s4030 + $0x70] sm:$0xf]
      %v4051 = vld [vmem:[%s4030 + $0x78] sm:$0xf]
      %v4052 = vld [vmem:[%s4030 + $0x7c] sm:$0xf]
      %v4053 = vld [vmem:[%s4030 + $0x84] sm:$0xf]
      %v4054 = vld [vmem:[%s4030 + $0x88] sm:$0xf]
      %v4055 = vld [vmem:[%s4030 + $0x90] sm:$0xf]
      %v4056 = vld [vmem:[%s4030 + $0x94] sm:$0xf]
      %v4057 = vld [vmem:[%s4030 + $0x9c] sm:$0xf]
      %v4058 = vld [vmem:[%s4030 + $0xa0] sm:$0xf]
      %v4059 = vld [vmem:[%s4030 + $0xa8] sm:$0xf]
      %v4060 = vld [vmem:[%s4030 + $0xac] sm:$0xf]
      %v4061 = vld [vmem:[%s4030 + $0xb4] sm:$0xf]
      %v4062 = vld [vmem:[%s4030 + $0xb8] sm:$0xf]
      %s4063 = scalar_lea.vmem %s1, 12
      %v4064 = vld [vmem:[%s4063] sm:$0x3]
      %v4097 = vunpack.c.l.b16 %v4031
      %v4098 = vunpack.c.l.b16 %v4032
      %v4099 = vunpack.c.l.b16 %v4033
      %v4100 = vunpack.c.l.b16 %v4034
      %v4101 = vunpack.c.l.b16 %v4035
      %v4102 = vunpack.c.l.b16 %v4036
      %v4103 = vunpack.c.l.b16 %v4037
      %v4104 = vunpack.c.l.b16 %v4038
      %v4105 = vunpack.c.l.b16 %v4039
      %v4106 = vunpack.c.l.b16 %v4040
      %v4107 = vunpack.c.l.b16 %v4041
      %v4108 = vunpack.c.l.b16 %v4042
      %v4109 = vunpack.c.l.b16 %v4043
      %v4110 = vunpack.c.l.b16 %v4044
      %v4111 = vunpack.c.l.b16 %v4045
      %v4112 = vunpack.c.l.b16 %v4046
      %v4113 = vunpack.c.l.b16 %v4047
      %v4114 = vunpack.c.l.b16 %v4048
      %v4115 = vunpack.c.l.b16 %v4049
      %v4116 = vunpack.c.l.b16 %v4050
      %v4117 = vunpack.c.l.b16 %v4051
      %v4118 = vunpack.c.l.b16 %v4052
      %v4119 = vunpack.c.l.b16 %v4053
      %v4120 = vunpack.c.l.b16 %v4054
      %v4121 = vunpack.c.l.b16 %v4055
      %v4122 = vunpack.c.l.b16 %v4056
      %v4123 = vunpack.c.l.b16 %v4057
      %v4124 = vunpack.c.l.b16 %v4058
      %v4125 = vunpack.c.l.b16 %v4059
      %v4126 = vunpack.c.l.b16 %v4060
      %v4127 = vunpack.c.l.b16 %v4061
      %v4128 = vunpack.c.l.b16 %v4062
      %v4129 = vpack.c.b16 %v4098, %v4097
      %v4130 = vpack.c.b16 %v4100, %v4099
      %v4131 = vpack.c.b16 %v4102, %v4101
      %v4132 = vpack.c.b16 %v4104, %v4103
      %v4133 = vpack.c.b16 %v4106, %v4105
      %v4134 = vpack.c.b16 %v4108, %v4107
      %v4135 = vpack.c.b16 %v4110, %v4109
      %v4136 = vpack.c.b16 %v4112, %v4111
      %v4137 = vpack.c.b16 %v4114, %v4113
      %v4138 = vpack.c.b16 %v4116, %v4115
      %v4139 = vpack.c.b16 %v4118, %v4117
      %v4140 = vpack.c.b16 %v4120, %v4119
      %v4141 = vpack.c.b16 %v4122, %v4121
      %v4142 = vpack.c.b16 %v4124, %v4123
      %v4143 = vpack.c.b16 %v4126, %v4125
      %v4144 = vpack.c.b16 %v4128, %v4127
      %v4146 = vsel %vm1513, %v4129, 0
      %v4149 = vsel %vm1513, %v4130, 0
      %v4152 = vsel %vm1513, %v4131, 0
      %v4155 = vsel %vm1513, %v4132, 0
      %v4158 = vsel %vm1513, %v4133, 0
      %v4161 = vsel %vm1513, %v4134, 0
      %v4164 = vsel %vm1513, %v4135, 0
      %v4167 = vsel %vm1513, %v4136, 0
      %v4170 = vsel %vm1513, %v4137, 0
      %v4173 = vsel %vm1513, %v4138, 0
      %v4176 = vsel %vm1513, %v4139, 0
      %v4179 = vsel %vm1513, %v4140, 0
      %v4182 = vsel %vm1513, %v4141, 0
      %v4185 = vsel %vm1513, %v4142, 0
      %v4188 = vsel %vm1513, %v4143, 0
      %v4191 = vsel %vm1513, %v4144, 0
      %v4194 = vsel %vm1562, %v4064, 0
      %4196 = vmatprep.subr.bf16.mxu0 0
      %4197 = vmatpush1.bf16.msra.mxu0 0
      %4198 = vmatprep.subr.bf16.mxu0 0
      %4199 = vmatpush1.bf16.msra.mxu0 0
      %4200 = vmatprep.subr.bf16.mxu0 0
      %4201 = vmatpush1.bf16.msra.mxu0 0
      %4202 = vmatprep.subr.bf16.mxu0 0
      %4203 = vmatpush1.bf16.msra.mxu0 0
      %4204 = vmatprep.subr.bf16.mxu0 0
      %4205 = vmatpush1.bf16.msra.mxu0 0
      %4206 = vmatprep.subr.bf16.mxu0 0
      %4207 = vmatpush1.bf16.msra.mxu0 0
      %4208 = vmatprep.subr.bf16.mxu0 0
      %4209 = vmatpush1.bf16.msra.mxu0 0
      %4210 = vmatprep.subr.bf16.mxu0 0
      %4211 = vmatpush1.bf16.msra.mxu0 %v4194
      %4212 = vmatprep.subr.bf16.mxu0 0
      %4213 = vmatpush2.bf16.msra.mxu0 0
      %4214 = vmatprep.subr.bf16.mxu0 0
      %4215 = vmatpush2.bf16.msra.mxu0 0
      %4216 = vmatprep.subr.bf16.mxu0 0
      %4217 = vmatpush2.bf16.msra.mxu0 0
      %4218 = vmatprep.subr.bf16.mxu0 0
      %4219 = vmatpush2.bf16.msra.mxu0 0
      %4220 = vmatprep.subr.bf16.mxu0 0
      %4221 = vmatpush2.bf16.msra.mxu0 0
      %4222 = vmatprep.subr.bf16.mxu0 0
      %4223 = vmatpush2.bf16.msra.mxu0 0
      %4224 = vmatprep.subr.bf16.mxu0 0
      %4225 = vmatpush2.bf16.msra.mxu0 0
      %4226 = vmatprep.subr.bf16.mxu0 0
      %4227 = vmatpush2.bf16.msra.mxu0 0
      %4228 = vmatprep.mubr.bf16.mxu0 0
      %4229 = vmatmul.mubr.bf16.gmra.mxu0 %v4146
      %v4230 = vpop.f32.mrf.mxu0
      %v4231 = vadd.f32 0.0, %v4230
      %v4232 = vpop.f32.mrf.mxu0
      %v4233 = vpop.f32.mrf.mxu0
      %v4234 = vadd.f32 0.0, %v4233
      %v4235 = vpop.f32.mrf.mxu0
      %4236 = vmatprep.mubr.bf16.mxu0 0
      %4237 = vmatmul.mubr.bf16.gmra.mxu0 %v4149
      %v4238 = vpop.f32.mrf.mxu0
      %v4239 = vadd.f32 0.0, %v4238
      %v4240 = vpop.f32.mrf.mxu0
      %v4241 = vpop.f32.mrf.mxu0
      %v4242 = vadd.f32 0.0, %v4241
      %v4243 = vpop.f32.mrf.mxu0
      %4244 = vmatprep.mubr.bf16.mxu0 0
      %4245 = vmatmul.mubr.bf16.gmra.mxu0 %v4152
      %v4246 = vpop.f32.mrf.mxu0
      %v4247 = vadd.f32 0.0, %v4246
      %v4248 = vpop.f32.mrf.mxu0
      %v4249 = vpop.f32.mrf.mxu0
      %v4250 = vadd.f32 0.0, %v4249
      %v4251 = vpop.f32.mrf.mxu0
      %4252 = vmatprep.mubr.bf16.mxu0 0
      %4253 = vmatmul.mubr.bf16.gmra.mxu0 %v4155
      %v4254 = vpop.f32.mrf.mxu0
      %v4255 = vadd.f32 0.0, %v4254
      %v4256 = vpop.f32.mrf.mxu0
      %v4257 = vpop.f32.mrf.mxu0
      %v4258 = vadd.f32 0.0, %v4257
      %v4259 = vpop.f32.mrf.mxu0
      %4260 = vmatprep.mubr.bf16.mxu0 0
      %4261 = vmatmul.mubr.bf16.gmra.mxu0 %v4158
      %v4262 = vpop.f32.mrf.mxu0
      %v4263 = vadd.f32 0.0, %v4262
      %v4264 = vpop.f32.mrf.mxu0
      %v4265 = vpop.f32.mrf.mxu0
      %v4266 = vadd.f32 0.0, %v4265
      %v4267 = vpop.f32.mrf.mxu0
      %4268 = vmatprep.mubr.bf16.mxu0 0
      %4269 = vmatmul.mubr.bf16.gmra.mxu0 %v4161
      %v4270 = vpop.f32.mrf.mxu0
      %v4271 = vadd.f32 0.0, %v4270
      %v4272 = vpop.f32.mrf.mxu0
      %v4273 = vpop.f32.mrf.mxu0
      %v4274 = vadd.f32 0.0, %v4273
      %v4275 = vpop.f32.mrf.mxu0
      %4276 = vmatprep.mubr.bf16.mxu0 0
      %4277 = vmatmul.mubr.bf16.gmra.mxu0 %v4164
      %v4278 = vpop.f32.mrf.mxu0
      %v4279 = vadd.f32 0.0, %v4278
      %v4280 = vpop.f32.mrf.mxu0
      %v4281 = vpop.f32.mrf.mxu0
      %v4282 = vadd.f32 0.0, %v4281
      %v4283 = vpop.f32.mrf.mxu0
      %4284 = vmatprep.mubr.bf16.mxu0 0
      %4285 = vmatmul.mubr.bf16.gmra.mxu0 %v4167
      %v4286 = vpop.f32.mrf.mxu0
      %v4287 = vadd.f32 0.0, %v4286
      %v4288 = vpop.f32.mrf.mxu0
      %v4289 = vpop.f32.mrf.mxu0
      %v4290 = vadd.f32 0.0, %v4289
      %v4291 = vpop.f32.mrf.mxu0
      %4292 = vmatprep.mubr.bf16.mxu0 0
      %4293 = vmatmul.mubr.bf16.gmra.mxu0 %v4170
      %v4294 = vpop.f32.mrf.mxu0
      %v4295 = vadd.f32 0.0, %v4294
      %v4296 = vpop.f32.mrf.mxu0
      %v4297 = vpop.f32.mrf.mxu0
      %v4298 = vadd.f32 0.0, %v4297
      %v4299 = vpop.f32.mrf.mxu0
      %4300 = vmatprep.mubr.bf16.mxu0 0
      %4301 = vmatmul.mubr.bf16.gmra.mxu0 %v4173
      %v4302 = vpop.f32.mrf.mxu0
      %v4303 = vadd.f32 0.0, %v4302
      %v4304 = vpop.f32.mrf.mxu0
      %v4305 = vpop.f32.mrf.mxu0
      %v4306 = vadd.f32 0.0, %v4305
      %v4307 = vpop.f32.mrf.mxu0
      %4308 = vmatprep.mubr.bf16.mxu0 0
      %4309 = vmatmul.mubr.bf16.gmra.mxu0 %v4176
      %v4310 = vpop.f32.mrf.mxu0
      %v4311 = vadd.f32 0.0, %v4310
      %v4312 = vpop.f32.mrf.mxu0
      %v4313 = vpop.f32.mrf.mxu0
      %v4314 = vadd.f32 0.0, %v4313
      %v4315 = vpop.f32.mrf.mxu0
      %4316 = vmatprep.mubr.bf16.mxu0 0
      %4317 = vmatmul.mubr.bf16.gmra.mxu0 %v4179
      %v4318 = vpop.f32.mrf.mxu0
      %v4319 = vadd.f32 0.0, %v4318
      %v4320 = vpop.f32.mrf.mxu0
      %v4321 = vpop.f32.mrf.mxu0
      %v4322 = vadd.f32 0.0, %v4321
      %v4323 = vpop.f32.mrf.mxu0
      %4324 = vmatprep.mubr.bf16.mxu0 0
      %4325 = vmatmul.mubr.bf16.gmra.mxu0 %v4182
      %v4326 = vpop.f32.mrf.mxu0
      %v4327 = vadd.f32 0.0, %v4326
      %v4328 = vpop.f32.mrf.mxu0
      %v4329 = vpop.f32.mrf.mxu0
      %v4330 = vadd.f32 0.0, %v4329
      %v4331 = vpop.f32.mrf.mxu0
      %4332 = vmatprep.mubr.bf16.mxu0 0
      %4333 = vmatmul.mubr.bf16.gmra.mxu0 %v4185
      %v4334 = vpop.f32.mrf.mxu0
      %v4335 = vadd.f32 0.0, %v4334
      %v4336 = vpop.f32.mrf.mxu0
      %v4337 = vpop.f32.mrf.mxu0
      %v4338 = vadd.f32 0.0, %v4337
      %v4339 = vpop.f32.mrf.mxu0
      %4340 = vmatprep.mubr.bf16.mxu0 0
      %4341 = vmatmul.mubr.bf16.gmra.mxu0 %v4188
      %v4342 = vpop.f32.mrf.mxu0
      %v4343 = vadd.f32 0.0, %v4342
      %v4344 = vpop.f32.mrf.mxu0
      %v4345 = vpop.f32.mrf.mxu0
      %v4346 = vadd.f32 0.0, %v4345
      %v4347 = vpop.f32.mrf.mxu0
      %4348 = vmatprep.mubr.bf16.mxu0 0
      %4349 = vmatmul.mubr.bf16.gmra.mxu0 %v4191
      %v4350 = vpop.f32.mrf.mxu0
      %v4351 = vadd.f32 0.0, %v4350
      %v4352 = vpop.f32.mrf.mxu0
      %v4353 = vpop.f32.mrf.mxu0
      %v4354 = vadd.f32 0.0, %v4353
      %v4355 = vpop.f32.mrf.mxu0
      %4356 = vdwg.mxu0
      %v4357 = vadd.f32 %v3998, %v4231
      %v4358 = vadd.f32 %v3999, %v4234
      %v4359 = vadd.f32 %v4000, %v4239
      %v4360 = vadd.f32 %v4001, %v4242
      %v4361 = vadd.f32 %v4002, %v4247
      %v4362 = vadd.f32 %v4003, %v4250
      %v4363 = vadd.f32 %v4004, %v4255
      %v4364 = vadd.f32 %v4005, %v4258
      %v4365 = vadd.f32 %v4006, %v4263
      %v4366 = vadd.f32 %v4007, %v4266
      %v4367 = vadd.f32 %v4008, %v4271
      %v4368 = vadd.f32 %v4009, %v4274
      %v4369 = vadd.f32 %v4010, %v4279
      %v4370 = vadd.f32 %v4011, %v4282
      %v4371 = vadd.f32 %v4012, %v4287
      %v4372 = vadd.f32 %v4013, %v4290
      %v4373 = vadd.f32 %v4014, %v4295
      %v4374 = vadd.f32 %v4015, %v4298
      %v4375 = vadd.f32 %v4016, %v4303
      %v4376 = vadd.f32 %v4017, %v4306
      %v4377 = vadd.f32 %v4018, %v4311
      %v4378 = vadd.f32 %v4019, %v4314
      %v4379 = vadd.f32 %v4020, %v4319
      %v4380 = vadd.f32 %v4021, %v4322
      %v4381 = vadd.f32 %v4022, %v4327
      %v4382 = vadd.f32 %v4023, %v4330
      %v4383 = vadd.f32 %v4024, %v4335
      %v4384 = vadd.f32 %v4025, %v4338
      %v4385 = vadd.f32 %v4026, %v4343
      %v4386 = vadd.f32 %v4027, %v4346
      %v4387 = vadd.f32 %v4028, %v4351
      %v4388 = vadd.f32 %v4029, %v4354
      %v4389 = vld [vmem:[%s4030] sm:$0xf]
      %v4390 = vld [vmem:[%s4030 + $0x4] sm:$0xf]
      %v4391 = vld [vmem:[%s4030 + $0x8] sm:$0x1]
      %v4392 = vld [vmem:[%s4030 + $0xc] sm:$0xf]
      %v4393 = vld [vmem:[%s4030 + $0x10] sm:$0xf]
      %v4394 = vld [vmem:[%s4030 + $0x14] sm:$0x1]
      %v4395 = vld [vmem:[%s4030 + $0x18] sm:$0xf]
      %v4396 = vld [vmem:[%s4030 + $0x1c] sm:$0xf]
      %v4397 = vld [vmem:[%s4030 + $0x20] sm:$0x1]
      %v4398 = vld [vmem:[%s4030 + $0x24] sm:$0xf]
      %v4399 = vld [vmem:[%s4030 + $0x28] sm:$0xf]
      %v4400 = vld [vmem:[%s4030 + $0x2c] sm:$0x1]
      %v4401 = vld [vmem:[%s4030 + $0x30] sm:$0xf]
      %v4402 = vld [vmem:[%s4030 + $0x34] sm:$0xf]
      %v4403 = vld [vmem:[%s4030 + $0x38] sm:$0x1]
      %v4404 = vld [vmem:[%s4030 + $0x3c] sm:$0xf]
      %v4405 = vld [vmem:[%s4030 + $0x40] sm:$0xf]
      %v4406 = vld [vmem:[%s4030 + $0x44] sm:$0x1]
      %v4407 = vld [vmem:[%s4030 + $0x48] sm:$0xf]
      %v4408 = vld [vmem:[%s4030 + $0x4c] sm:$0xf]
      %v4409 = vld [vmem:[%s4030 + $0x50] sm:$0x1]
      %v4410 = vld [vmem:[%s4030 + $0x54] sm:$0xf]
      %v4411 = vld [vmem:[%s4030 + $0x58] sm:$0xf]
      %v4412 = vld [vmem:[%s4030 + $0x5c] sm:$0x1]
      %v4413 = vld [vmem:[%s4030 + $0x60] sm:$0xf]
      %v4414 = vld [vmem:[%s4030 + $0x64] sm:$0xf]
      %v4415 = vld [vmem:[%s4030 + $0x68] sm:$0x1]
      %v4416 = vld [vmem:[%s4030 + $0x6c] sm:$0xf]
      %v4417 = vld [vmem:[%s4030 + $0x70] sm:$0xf]
      %v4418 = vld [vmem:[%s4030 + $0x74] sm:$0x1]
      %v4419 = vld [vmem:[%s4030 + $0x78] sm:$0xf]
      %v4420 = vld [vmem:[%s4030 + $0x7c] sm:$0xf]
      %v4421 = vld [vmem:[%s4030 + $0x80] sm:$0x1]
      %v4422 = vld [vmem:[%s4030 + $0x84] sm:$0xf]
      %v4423 = vld [vmem:[%s4030 + $0x88] sm:$0xf]
      %v4424 = vld [vmem:[%s4030 + $0x8c] sm:$0x1]
      %v4425 = vld [vmem:[%s4030 + $0x90] sm:$0xf]
      %v4426 = vld [vmem:[%s4030 + $0x94] sm:$0xf]
      %v4427 = vld [vmem:[%s4030 + $0x98] sm:$0x1]
      %v4428 = vld [vmem:[%s4030 + $0x9c] sm:$0xf]
      %v4429 = vld [vmem:[%s4030 + $0xa0] sm:$0xf]
      %v4430 = vld [vmem:[%s4030 + $0xa4] sm:$0x1]
      %v4431 = vld [vmem:[%s4030 + $0xa8] sm:$0xf]
      %v4432 = vld [vmem:[%s4030 + $0xac] sm:$0xf]
      %v4433 = vld [vmem:[%s4030 + $0xb0] sm:$0x1]
      %v4434 = vld [vmem:[%s4030 + $0xb4] sm:$0xf]
      %v4435 = vld [vmem:[%s4030 + $0xb8] sm:$0xf]
      %v4436 = vld [vmem:[%s4030 + $0xbc] sm:$0x1]
      %v4438 = vshrl.u32 %v4389, 16
      %v4440 = vrot.slane %v4438, 4
      %v4441 = vshll.u32 %v4389, 16
      %v4443 = vrot.slane %v4441, 5
      %v4444 = vor.u32 %v4440, %v4443
      %v4445 = vrot.slane %v4444, 4
      %v4447 = vshll.u32 %v4390, 16
      %v4449 = vrot.slane %v4447, 5
      %v4450 = vsel %vm1078, %v4445, %v4449
      %v4451 = vshrl.u32 %v4390, 16
      %v4453 = vrot.slane %v4451, 4
      %v4454 = vor.u32 %v4453, %v4449
      %v4455 = vrot.slane %v4454, 4
      %v4457 = vshll.u32 %v4391, 16
      %v4459 = vrot.slane %v4457, 5
      %v4460 = vsel %vm1078, %v4455, %v4459
      %v4462 = vshrl.u32 %v4392, 16
      %v4464 = vrot.slane %v4462, 4
      %v4465 = vshll.u32 %v4392, 16
      %v4467 = vrot.slane %v4465, 5
      %v4468 = vor.u32 %v4464, %v4467
      %v4469 = vrot.slane %v4468, 4
      %v4471 = vshll.u32 %v4393, 16
      %v4473 = vrot.slane %v4471, 5
      %v4474 = vsel %vm1078, %v4469, %v4473
      %v4475 = vshrl.u32 %v4393, 16
      %v4477 = vrot.slane %v4475, 4
      %v4478 = vor.u32 %v4477, %v4473
      %v4479 = vrot.slane %v4478, 4
      %v4481 = vshll.u32 %v4394, 16
      %v4483 = vrot.slane %v4481, 5
      %v4484 = vsel %vm1078, %v4479, %v4483
      %v4486 = vshrl.u32 %v4395, 16
      %v4488 = vrot.slane %v4486, 4
      %v4489 = vshll.u32 %v4395, 16
      %v4491 = vrot.slane %v4489, 5
      %v4492 = vor.u32 %v4488, %v4491
      %v4493 = vrot.slane %v4492, 4
      %v4495 = vshll.u32 %v4396, 16
      %v4497 = vrot.slane %v4495, 5
      %v4498 = vsel %vm1078, %v4493, %v4497
      %v4499 = vshrl.u32 %v4396, 16
      %v4501 = vrot.slane %v4499, 4
      %v4502 = vor.u32 %v4501, %v4497
      %v4503 = vrot.slane %v4502, 4
      %v4505 = vshll.u32 %v4397, 16
      %v4507 = vrot.slane %v4505, 5
      %v4508 = vsel %vm1078, %v4503, %v4507
      %v4510 = vshrl.u32 %v4398, 16
      %v4512 = vrot.slane %v4510, 4
      %v4513 = vshll.u32 %v4398, 16
      %v4515 = vrot.slane %v4513, 5
      %v4516 = vor.u32 %v4512, %v4515
      %v4517 = vrot.slane %v4516, 4
      %v4519 = vshll.u32 %v4399, 16
      %v4521 = vrot.slane %v4519, 5
      %v4522 = vsel %vm1078, %v4517, %v4521
      %v4523 = vshrl.u32 %v4399, 16
      %v4525 = vrot.slane %v4523, 4
      %v4526 = vor.u32 %v4525, %v4521
      %v4527 = vrot.slane %v4526, 4
      %v4529 = vshll.u32 %v4400, 16
      %v4531 = vrot.slane %v4529, 5
      %v4532 = vsel %vm1078, %v4527, %v4531
      %v4534 = vshrl.u32 %v4401, 16
      %v4536 = vrot.slane %v4534, 4
      %v4537 = vshll.u32 %v4401, 16
      %v4539 = vrot.slane %v4537, 5
      %v4540 = vor.u32 %v4536, %v4539
      %v4541 = vrot.slane %v4540, 4
      %v4543 = vshll.u32 %v4402, 16
      %v4545 = vrot.slane %v4543, 5
      %v4546 = vsel %vm1078, %v4541, %v4545
      %v4547 = vshrl.u32 %v4402, 16
      %v4549 = vrot.slane %v4547, 4
      %v4550 = vor.u32 %v4549, %v4545
      %v4551 = vrot.slane %v4550, 4
      %v4553 = vshll.u32 %v4403, 16
      %v4555 = vrot.slane %v4553, 5
      %v4556 = vsel %vm1078, %v4551, %v4555
      %v4558 = vshrl.u32 %v4404, 16
      %v4560 = vrot.slane %v4558, 4
      %v4561 = vshll.u32 %v4404, 16
      %v4563 = vrot.slane %v4561, 5
      %v4564 = vor.u32 %v4560, %v4563
      %v4565 = vrot.slane %v4564, 4
      %v4567 = vshll.u32 %v4405, 16
      %v4569 = vrot.slane %v4567, 5
      %v4570 = vsel %vm1078, %v4565, %v4569
      %v4571 = vshrl.u32 %v4405, 16
      %v4573 = vrot.slane %v4571, 4
      %v4574 = vor.u32 %v4573, %v4569
      %v4575 = vrot.slane %v4574, 4
      %v4577 = vshll.u32 %v4406, 16
      %v4579 = vrot.slane %v4577, 5
      %v4580 = vsel %vm1078, %v4575, %v4579
      %v4582 = vshrl.u32 %v4407, 16
      %v4584 = vrot.slane %v4582, 4
      %v4585 = vshll.u32 %v4407, 16
      %v4587 = vrot.slane %v4585, 5
      %v4588 = vor.u32 %v4584, %v4587
      %v4589 = vrot.slane %v4588, 4
      %v4591 = vshll.u32 %v4408, 16
      %v4593 = vrot.slane %v4591, 5
      %v4594 = vsel %vm1078, %v4589, %v4593
      %v4595 = vshrl.u32 %v4408, 16
      %v4597 = vrot.slane %v4595, 4
      %v4598 = vor.u32 %v4597, %v4593
      %v4599 = vrot.slane %v4598, 4
      %v4601 = vshll.u32 %v4409, 16
      %v4603 = vrot.slane %v4601, 5
      %v4604 = vsel %vm1078, %v4599, %v4603
      %v4606 = vshrl.u32 %v4410, 16
      %v4608 = vrot.slane %v4606, 4
      %v4609 = vshll.u32 %v4410, 16
      %v4611 = vrot.slane %v4609, 5
      %v4612 = vor.u32 %v4608, %v4611
      %v4613 = vrot.slane %v4612, 4
      %v4615 = vshll.u32 %v4411, 16
      %v4617 = vrot.slane %v4615, 5
      %v4618 = vsel %vm1078, %v4613, %v4617
      %v4619 = vshrl.u32 %v4411, 16
      %v4621 = vrot.slane %v4619, 4
      %v4622 = vor.u32 %v4621, %v4617
      %v4623 = vrot.slane %v4622, 4
      %v4625 = vshll.u32 %v4412, 16
      %v4627 = vrot.slane %v4625, 5
      %v4628 = vsel %vm1078, %v4623, %v4627
      %v4630 = vshrl.u32 %v4413, 16
      %v4632 = vrot.slane %v4630, 4
      %v4633 = vshll.u32 %v4413, 16
      %v4635 = vrot.slane %v4633, 5
      %v4636 = vor.u32 %v4632, %v4635
      %v4637 = vrot.slane %v4636, 4
      %v4639 = vshll.u32 %v4414, 16
      %v4641 = vrot.slane %v4639, 5
      %v4642 = vsel %vm1078, %v4637, %v4641
      %v4643 = vshrl.u32 %v4414, 16
      %v4645 = vrot.slane %v4643, 4
      %v4646 = vor.u32 %v4645, %v4641
      %v4647 = vrot.slane %v4646, 4
      %v4649 = vshll.u32 %v4415, 16
      %v4651 = vrot.slane %v4649, 5
      %v4652 = vsel %vm1078, %v4647, %v4651
      %v4654 = vshrl.u32 %v4416, 16
      %v4656 = vrot.slane %v4654, 4
      %v4657 = vshll.u32 %v4416, 16
      %v4659 = vrot.slane %v4657, 5
      %v4660 = vor.u32 %v4656, %v4659
      %v4661 = vrot.slane %v4660, 4
      %v4663 = vshll.u32 %v4417, 16
      %v4665 = vrot.slane %v4663, 5
      %v4666 = vsel %vm1078, %v4661, %v4665
      %v4667 = vshrl.u32 %v4417, 16
      %v4669 = vrot.slane %v4667, 4
      %v4670 = vor.u32 %v4669, %v4665
      %v4671 = vrot.slane %v4670, 4
      %v4673 = vshll.u32 %v4418, 16
      %v4675 = vrot.slane %v4673, 5
      %v4676 = vsel %vm1078, %v4671, %v4675
      %v4678 = vshrl.u32 %v4419, 16
      %v4680 = vrot.slane %v4678, 4
      %v4681 = vshll.u32 %v4419, 16
      %v4683 = vrot.slane %v4681, 5
      %v4684 = vor.u32 %v4680, %v4683
      %v4685 = vrot.slane %v4684, 4
      %v4687 = vshll.u32 %v4420, 16
      %v4689 = vrot.slane %v4687, 5
      %v4690 = vsel %vm1078, %v4685, %v4689
      %v4691 = vshrl.u32 %v4420, 16
      %v4693 = vrot.slane %v4691, 4
      %v4694 = vor.u32 %v4693, %v4689
      %v4695 = vrot.slane %v4694, 4
      %v4697 = vshll.u32 %v4421, 16
      %v4699 = vrot.slane %v4697, 5
      %v4700 = vsel %vm1078, %v4695, %v4699
      %v4702 = vshrl.u32 %v4422, 16
      %v4704 = vrot.slane %v4702, 4
      %v4705 = vshll.u32 %v4422, 16
      %v4707 = vrot.slane %v4705, 5
      %v4708 = vor.u32 %v4704, %v4707
      %v4709 = vrot.slane %v4708, 4
      %v4711 = vshll.u32 %v4423, 16
      %v4713 = vrot.slane %v4711, 5
      %v4714 = vsel %vm1078, %v4709, %v4713
      %v4715 = vshrl.u32 %v4423, 16
      %v4717 = vrot.slane %v4715, 4
      %v4718 = vor.u32 %v4717, %v4713
      %v4719 = vrot.slane %v4718, 4
      %v4721 = vshll.u32 %v4424, 16
      %v4723 = vrot.slane %v4721, 5
      %v4724 = vsel %vm1078, %v4719, %v4723
      %v4726 = vshrl.u32 %v4425, 16
      %v4728 = vrot.slane %v4726, 4
      %v4729 = vshll.u32 %v4425, 16
      %v4731 = vrot.slane %v4729, 5
      %v4732 = vor.u32 %v4728, %v4731
      %v4733 = vrot.slane %v4732, 4
      %v4735 = vshll.u32 %v4426, 16
      %v4737 = vrot.slane %v4735, 5
      %v4738 = vsel %vm1078, %v4733, %v4737
      %v4739 = vshrl.u32 %v4426, 16
      %v4741 = vrot.slane %v4739, 4
      %v4742 = vor.u32 %v4741, %v4737
      %v4743 = vrot.slane %v4742, 4
      %v4745 = vshll.u32 %v4427, 16
      %v4747 = vrot.slane %v4745, 5
      %v4748 = vsel %vm1078, %v4743, %v4747
      %v4750 = vshrl.u32 %v4428, 16
      %v4752 = vrot.slane %v4750, 4
      %v4753 = vshll.u32 %v4428, 16
      %v4755 = vrot.slane %v4753, 5
      %v4756 = vor.u32 %v4752, %v4755
      %v4757 = vrot.slane %v4756, 4
      %v4759 = vshll.u32 %v4429, 16
      %v4761 = vrot.slane %v4759, 5
      %v4762 = vsel %vm1078, %v4757, %v4761
      %v4763 = vshrl.u32 %v4429, 16
      %v4765 = vrot.slane %v4763, 4
      %v4766 = vor.u32 %v4765, %v4761
      %v4767 = vrot.slane %v4766, 4
      %v4769 = vshll.u32 %v4430, 16
      %v4771 = vrot.slane %v4769, 5
      %v4772 = vsel %vm1078, %v4767, %v4771
      %v4774 = vshrl.u32 %v4431, 16
      %v4776 = vrot.slane %v4774, 4
      %v4777 = vshll.u32 %v4431, 16
      %v4779 = vrot.slane %v4777, 5
      %v4780 = vor.u32 %v4776, %v4779
      %v4781 = vrot.slane %v4780, 4
      %v4783 = vshll.u32 %v4432, 16
      %v4785 = vrot.slane %v4783, 5
      %v4786 = vsel %vm1078, %v4781, %v4785
      %v4787 = vshrl.u32 %v4432, 16
      %v4789 = vrot.slane %v4787, 4
      %v4790 = vor.u32 %v4789, %v4785
      %v4791 = vrot.slane %v4790, 4
      %v4793 = vshll.u32 %v4433, 16
      %v4795 = vrot.slane %v4793, 5
      %v4796 = vsel %vm1078, %v4791, %v4795
      %v4798 = vshrl.u32 %v4434, 16
      %v4800 = vrot.slane %v4798, 4
      %v4801 = vshll.u32 %v4434, 16
      %v4803 = vrot.slane %v4801, 5
      %v4804 = vor.u32 %v4800, %v4803
      %v4805 = vrot.slane %v4804, 4
      %v4807 = vshll.u32 %v4435, 16
      %v4809 = vrot.slane %v4807, 5
      %v4810 = vsel %vm1078, %v4805, %v4809
      %v4811 = vshrl.u32 %v4435, 16
      %v4813 = vrot.slane %v4811, 4
      %v4814 = vor.u32 %v4813, %v4809
      %v4815 = vrot.slane %v4814, 4
      %v4817 = vshll.u32 %v4436, 16
      %v4819 = vrot.slane %v4817, 5
      %v4820 = vsel %vm1078, %v4815, %v4819
      %s4821 = scalar_lea.vmem %s1, 14
      %v4822 = vld [vmem:[%s4821] sm:$0x3]
      %v4823 = vunpack.c.l.b16 %v4450
      %v4824 = vunpack.c.l.b16 %v4460
      %v4825 = vunpack.c.l.b16 %v4474
      %v4826 = vunpack.c.l.b16 %v4484
      %v4827 = vunpack.c.l.b16 %v4498
      %v4828 = vunpack.c.l.b16 %v4508
      %v4829 = vunpack.c.l.b16 %v4522
      %v4830 = vunpack.c.l.b16 %v4532
      %v4831 = vunpack.c.l.b16 %v4546
      %v4832 = vunpack.c.l.b16 %v4556
      %v4833 = vunpack.c.l.b16 %v4570
      %v4834 = vunpack.c.l.b16 %v4580
      %v4835 = vunpack.c.l.b16 %v4594
      %v4836 = vunpack.c.l.b16 %v4604
      %v4837 = vunpack.c.l.b16 %v4618
      %v4838 = vunpack.c.l.b16 %v4628
      %v4839 = vunpack.c.l.b16 %v4642
      %v4840 = vunpack.c.l.b16 %v4652
      %v4841 = vunpack.c.l.b16 %v4666
      %v4842 = vunpack.c.l.b16 %v4676
      %v4843 = vunpack.c.l.b16 %v4690
      %v4844 = vunpack.c.l.b16 %v4700
      %v4845 = vunpack.c.l.b16 %v4714
      %v4846 = vunpack.c.l.b16 %v4724
      %v4847 = vunpack.c.l.b16 %v4738
      %v4848 = vunpack.c.l.b16 %v4748
      %v4849 = vunpack.c.l.b16 %v4762
      %v4850 = vunpack.c.l.b16 %v4772
      %v4851 = vunpack.c.l.b16 %v4786
      %v4852 = vunpack.c.l.b16 %v4796
      %v4853 = vunpack.c.l.b16 %v4810
      %v4854 = vunpack.c.l.b16 %v4820
      %v4855 = vpack.c.b16 %v4824, %v4823
      %v4856 = vpack.c.b16 %v4826, %v4825
      %v4857 = vpack.c.b16 %v4828, %v4827
      %v4858 = vpack.c.b16 %v4830, %v4829
      %v4859 = vpack.c.b16 %v4832, %v4831
      %v4860 = vpack.c.b16 %v4834, %v4833
      %v4861 = vpack.c.b16 %v4836, %v4835
      %v4862 = vpack.c.b16 %v4838, %v4837
      %v4863 = vpack.c.b16 %v4840, %v4839
      %v4864 = vpack.c.b16 %v4842, %v4841
      %v4865 = vpack.c.b16 %v4844, %v4843
      %v4866 = vpack.c.b16 %v4846, %v4845
      %v4867 = vpack.c.b16 %v4848, %v4847
      %v4868 = vpack.c.b16 %v4850, %v4849
      %v4869 = vpack.c.b16 %v4852, %v4851
      %v4870 = vpack.c.b16 %v4854, %v4853
      %v4872 = vsel %vm1513, %v4855, 0
      %v4875 = vsel %vm1513, %v4856, 0
      %v4878 = vsel %vm1513, %v4857, 0
      %v4881 = vsel %vm1513, %v4858, 0
      %v4884 = vsel %vm1513, %v4859, 0
      %v4887 = vsel %vm1513, %v4860, 0
      %v4890 = vsel %vm1513, %v4861, 0
      %v4893 = vsel %vm1513, %v4862, 0
      %v4896 = vsel %vm1513, %v4863, 0
      %v4899 = vsel %vm1513, %v4864, 0
      %v4902 = vsel %vm1513, %v4865, 0
      %v4905 = vsel %vm1513, %v4866, 0
      %v4908 = vsel %vm1513, %v4867, 0
      %v4911 = vsel %vm1513, %v4868, 0
      %v4914 = vsel %vm1513, %v4869, 0
      %v4917 = vsel %vm1513, %v4870, 0
      %v4920 = vsel %vm1562, %v4822, 0
      %4922 = vmatprep.subr.bf16.mxu0 0
      %4923 = vmatpush1.bf16.msra.mxu0 0
      %4924 = vmatprep.subr.bf16.mxu0 0
      %4925 = vmatpush1.bf16.msra.mxu0 0
      %4926 = vmatprep.subr.bf16.mxu0 0
      %4927 = vmatpush1.bf16.msra.mxu0 0
      %4928 = vmatprep.subr.bf16.mxu0 0
      %4929 = vmatpush1.bf16.msra.mxu0 0
      %4930 = vmatprep.subr.bf16.mxu0 0
      %4931 = vmatpush1.bf16.msra.mxu0 0
      %4932 = vmatprep.subr.bf16.mxu0 0
      %4933 = vmatpush1.bf16.msra.mxu0 0
      %4934 = vmatprep.subr.bf16.mxu0 0
      %4935 = vmatpush1.bf16.msra.mxu0 0
      %4936 = vmatprep.subr.bf16.mxu0 0
      %4937 = vmatpush1.bf16.msra.mxu0 %v4920
      %4938 = vmatprep.subr.bf16.mxu0 0
      %4939 = vmatpush2.bf16.msra.mxu0 0
      %4940 = vmatprep.subr.bf16.mxu0 0
      %4941 = vmatpush2.bf16.msra.mxu0 0
      %4942 = vmatprep.subr.bf16.mxu0 0
      %4943 = vmatpush2.bf16.msra.mxu0 0
      %4944 = vmatprep.subr.bf16.mxu0 0
      %4945 = vmatpush2.bf16.msra.mxu0 0
      %4946 = vmatprep.subr.bf16.mxu0 0
      %4947 = vmatpush2.bf16.msra.mxu0 0
      %4948 = vmatprep.subr.bf16.mxu0 0
      %4949 = vmatpush2.bf16.msra.mxu0 0
      %4950 = vmatprep.subr.bf16.mxu0 0
      %4951 = vmatpush2.bf16.msra.mxu0 0
      %4952 = vmatprep.subr.bf16.mxu0 0
      %4953 = vmatpush2.bf16.msra.mxu0 0
      %4954 = vmatprep.mubr.bf16.mxu0 0
      %4955 = vmatmul.mubr.bf16.gmra.mxu0 %v4872
      %v4956 = vpop.f32.mrf.mxu0
      %v4957 = vadd.f32 0.0, %v4956
      %v4958 = vpop.f32.mrf.mxu0
      %v4959 = vpop.f32.mrf.mxu0
      %v4960 = vadd.f32 0.0, %v4959
      %v4961 = vpop.f32.mrf.mxu0
      %4962 = vmatprep.mubr.bf16.mxu0 0
      %4963 = vmatmul.mubr.bf16.gmra.mxu0 %v4875
      %v4964 = vpop.f32.mrf.mxu0
      %v4965 = vadd.f32 0.0, %v4964
      %v4966 = vpop.f32.mrf.mxu0
      %v4967 = vpop.f32.mrf.mxu0
      %v4968 = vadd.f32 0.0, %v4967
      %v4969 = vpop.f32.mrf.mxu0
      %4970 = vmatprep.mubr.bf16.mxu0 0
      %4971 = vmatmul.mubr.bf16.gmra.mxu0 %v4878
      %v4972 = vpop.f32.mrf.mxu0
      %v4973 = vadd.f32 0.0, %v4972
      %v4974 = vpop.f32.mrf.mxu0
      %v4975 = vpop.f32.mrf.mxu0
      %v4976 = vadd.f32 0.0, %v4975
      %v4977 = vpop.f32.mrf.mxu0
      %4978 = vmatprep.mubr.bf16.mxu0 0
      %4979 = vmatmul.mubr.bf16.gmra.mxu0 %v4881
      %v4980 = vpop.f32.mrf.mxu0
      %v4981 = vadd.f32 0.0, %v4980
      %v4982 = vpop.f32.mrf.mxu0
      %v4983 = vpop.f32.mrf.mxu0
      %v4984 = vadd.f32 0.0, %v4983
      %v4985 = vpop.f32.mrf.mxu0
      %4986 = vmatprep.mubr.bf16.mxu0 0
      %4987 = vmatmul.mubr.bf16.gmra.mxu0 %v4884
      %v4988 = vpop.f32.mrf.mxu0
      %v4989 = vadd.f32 0.0, %v4988
      %v4990 = vpop.f32.mrf.mxu0
      %v4991 = vpop.f32.mrf.mxu0
      %v4992 = vadd.f32 0.0, %v4991
      %v4993 = vpop.f32.mrf.mxu0
      %4994 = vmatprep.mubr.bf16.mxu0 0
      %4995 = vmatmul.mubr.bf16.gmra.mxu0 %v4887
      %v4996 = vpop.f32.mrf.mxu0
      %v4997 = vadd.f32 0.0, %v4996
      %v4998 = vpop.f32.mrf.mxu0
      %v4999 = vpop.f32.mrf.mxu0
      %v5000 = vadd.f32 0.0, %v4999
      %v5001 = vpop.f32.mrf.mxu0
      %5002 = vmatprep.mubr.bf16.mxu0 0
      %5003 = vmatmul.mubr.bf16.gmra.mxu0 %v4890
      %v5004 = vpop.f32.mrf.mxu0
      %v5005 = vadd.f32 0.0, %v5004
      %v5006 = vpop.f32.mrf.mxu0
      %v5007 = vpop.f32.mrf.mxu0
      %v5008 = vadd.f32 0.0, %v5007
      %v5009 = vpop.f32.mrf.mxu0
      %5010 = vmatprep.mubr.bf16.mxu0 0
      %5011 = vmatmul.mubr.bf16.gmra.mxu0 %v4893
      %v5012 = vpop.f32.mrf.mxu0
      %v5013 = vadd.f32 0.0, %v5012
      %v5014 = vpop.f32.mrf.mxu0
      %v5015 = vpop.f32.mrf.mxu0
      %v5016 = vadd.f32 0.0, %v5015
      %v5017 = vpop.f32.mrf.mxu0
      %5018 = vmatprep.mubr.bf16.mxu0 0
      %5019 = vmatmul.mubr.bf16.gmra.mxu0 %v4896
      %v5020 = vpop.f32.mrf.mxu0
      %v5021 = vadd.f32 0.0, %v5020
      %v5022 = vpop.f32.mrf.mxu0
      %v5023 = vpop.f32.mrf.mxu0
      %v5024 = vadd.f32 0.0, %v5023
      %v5025 = vpop.f32.mrf.mxu0
      %5026 = vmatprep.mubr.bf16.mxu0 0
      %5027 = vmatmul.mubr.bf16.gmra.mxu0 %v4899
      %v5028 = vpop.f32.mrf.mxu0
      %v5029 = vadd.f32 0.0, %v5028
      %v5030 = vpop.f32.mrf.mxu0
      %v5031 = vpop.f32.mrf.mxu0
      %v5032 = vadd.f32 0.0, %v5031
      %v5033 = vpop.f32.mrf.mxu0
      %5034 = vmatprep.mubr.bf16.mxu0 0
      %5035 = vmatmul.mubr.bf16.gmra.mxu0 %v4902
      %v5036 = vpop.f32.mrf.mxu0
      %v5037 = vadd.f32 0.0, %v5036
      %v5038 = vpop.f32.mrf.mxu0
      %v5039 = vpop.f32.mrf.mxu0
      %v5040 = vadd.f32 0.0, %v5039
      %v5041 = vpop.f32.mrf.mxu0
      %5042 = vmatprep.mubr.bf16.mxu0 0
      %5043 = vmatmul.mubr.bf16.gmra.mxu0 %v4905
      %v5044 = vpop.f32.mrf.mxu0
      %v5045 = vadd.f32 0.0, %v5044
      %v5046 = vpop.f32.mrf.mxu0
      %v5047 = vpop.f32.mrf.mxu0
      %v5048 = vadd.f32 0.0, %v5047
      %v5049 = vpop.f32.mrf.mxu0
      %5050 = vmatprep.mubr.bf16.mxu0 0
      %5051 = vmatmul.mubr.bf16.gmra.mxu0 %v4908
      %v5052 = vpop.f32.mrf.mxu0
      %v5053 = vadd.f32 0.0, %v5052
      %v5054 = vpop.f32.mrf.mxu0
      %v5055 = vpop.f32.mrf.mxu0
      %v5056 = vadd.f32 0.0, %v5055
      %v5057 = vpop.f32.mrf.mxu0
      %5058 = vmatprep.mubr.bf16.mxu0 0
      %5059 = vmatmul.mubr.bf16.gmra.mxu0 %v4911
      %v5060 = vpop.f32.mrf.mxu0
      %v5061 = vadd.f32 0.0, %v5060
      %v5062 = vpop.f32.mrf.mxu0
      %v5063 = vpop.f32.mrf.mxu0
      %v5064 = vadd.f32 0.0, %v5063
      %v5065 = vpop.f32.mrf.mxu0
      %5066 = vmatprep.mubr.bf16.mxu0 0
      %5067 = vmatmul.mubr.bf16.gmra.mxu0 %v4914
      %v5068 = vpop.f32.mrf.mxu0
      %v5069 = vadd.f32 0.0, %v5068
      %v5070 = vpop.f32.mrf.mxu0
      %v5071 = vpop.f32.mrf.mxu0
      %v5072 = vadd.f32 0.0, %v5071
      %v5073 = vpop.f32.mrf.mxu0
      %5074 = vmatprep.mubr.bf16.mxu0 0
      %5075 = vmatmul.mubr.bf16.gmra.mxu0 %v4917
      %v5076 = vpop.f32.mrf.mxu0
      %v5077 = vadd.f32 0.0, %v5076
      %v5078 = vpop.f32.mrf.mxu0
      %v5079 = vpop.f32.mrf.mxu0
      %v5080 = vadd.f32 0.0, %v5079
      %v5081 = vpop.f32.mrf.mxu0
      %5082 = vdwg.mxu0
      %v5083 = vadd.f32 %v4357, %v4957
      %v5084 = vadd.f32 %v4358, %v4960
      %v5085 = vadd.f32 %v4359, %v4965
      %v5086 = vadd.f32 %v4360, %v4968
      %v5087 = vadd.f32 %v4361, %v4973
      %v5088 = vadd.f32 %v4362, %v4976
      %v5089 = vadd.f32 %v4363, %v4981
      %v5090 = vadd.f32 %v4364, %v4984
      %v5091 = vadd.f32 %v4365, %v4989
      %v5092 = vadd.f32 %v4366, %v4992
      %v5093 = vadd.f32 %v4367, %v4997
      %v5094 = vadd.f32 %v4368, %v5000
      %v5095 = vadd.f32 %v4369, %v5005
      %v5096 = vadd.f32 %v4370, %v5008
      %v5097 = vadd.f32 %v4371, %v5013
      %v5098 = vadd.f32 %v4372, %v5016
      %v5099 = vadd.f32 %v4373, %v5021
      %v5100 = vadd.f32 %v4374, %v5024
      %v5101 = vadd.f32 %v4375, %v5029
      %v5102 = vadd.f32 %v4376, %v5032
      %v5103 = vadd.f32 %v4377, %v5037
      %v5104 = vadd.f32 %v4378, %v5040
      %v5105 = vadd.f32 %v4379, %v5045
      %v5106 = vadd.f32 %v4380, %v5048
      %v5107 = vadd.f32 %v4381, %v5053
      %v5108 = vadd.f32 %v4382, %v5056
      %v5109 = vadd.f32 %v4383, %v5061
      %v5110 = vadd.f32 %v4384, %v5064
      %v5111 = vadd.f32 %v4385, %v5069
      %v5112 = vadd.f32 %v4386, %v5072
      %v5113 = vadd.f32 %v4387, %v5077
      %v5114 = vadd.f32 %v4388, %v5080
      %v5115 = vld [vmem:[%s4030] sm:$0xe]
      %v5116 = vld [vmem:[%s4030 + $0xc] sm:$0xe]
      %v5117 = vld [vmem:[%s4030 + $0x18] sm:$0xe]
      %v5118 = vld [vmem:[%s4030 + $0x24] sm:$0xe]
      %v5119 = vld [vmem:[%s4030 + $0x30] sm:$0xe]
      %v5120 = vld [vmem:[%s4030 + $0x3c] sm:$0xe]
      %v5121 = vld [vmem:[%s4030 + $0x48] sm:$0xe]
      %v5122 = vld [vmem:[%s4030 + $0x54] sm:$0xe]
      %v5123 = vld [vmem:[%s4030 + $0x60] sm:$0xe]
      %v5124 = vld [vmem:[%s4030 + $0x6c] sm:$0xe]
      %v5125 = vld [vmem:[%s4030 + $0x78] sm:$0xe]
      %v5126 = vld [vmem:[%s4030 + $0x84] sm:$0xe]
      %v5127 = vld [vmem:[%s4030 + $0x90] sm:$0xe]
      %v5128 = vld [vmem:[%s4030 + $0x9c] sm:$0xe]
      %v5129 = vld [vmem:[%s4030 + $0xa8] sm:$0xe]
      %v5130 = vld [vmem:[%s4030 + $0xb4] sm:$0xe]
      %v5179 = vrot.slane %v5115, 5
      %v5180 = vrot.slane %v5179, 4
      %v5181 = vrot.slane %v4390, 5
      %v5182 = vsel %vm2069, %v5180, %v5181
      %v5183 = vrot.slane %v5181, 4
      %v5184 = vrot.slane %v4391, 5
      %v5185 = vsel %vm2069, %v5183, %v5184
      %v5186 = vrot.slane %v5116, 5
      %v5187 = vrot.slane %v5186, 4
      %v5188 = vrot.slane %v4393, 5
      %v5189 = vsel %vm2069, %v5187, %v5188
      %v5190 = vrot.slane %v5188, 4
      %v5191 = vrot.slane %v4394, 5
      %v5192 = vsel %vm2069, %v5190, %v5191
      %v5193 = vrot.slane %v5117, 5
      %v5194 = vrot.slane %v5193, 4
      %v5195 = vrot.slane %v4396, 5
      %v5196 = vsel %vm2069, %v5194, %v5195
      %v5197 = vrot.slane %v5195, 4
      %v5198 = vrot.slane %v4397, 5
      %v5199 = vsel %vm2069, %v5197, %v5198
      %v5200 = vrot.slane %v5118, 5
      %v5201 = vrot.slane %v5200, 4
      %v5202 = vrot.slane %v4399, 5
      %v5203 = vsel %vm2069, %v5201, %v5202
      %v5204 = vrot.slane %v5202, 4
      %v5205 = vrot.slane %v4400, 5
      %v5206 = vsel %vm2069, %v5204, %v5205
      %v5207 = vrot.slane %v5119, 5
      %v5208 = vrot.slane %v5207, 4
      %v5209 = vrot.slane %v4402, 5
      %v5210 = vsel %vm2069, %v5208, %v5209
      %v5211 = vrot.slane %v5209, 4
      %v5212 = vrot.slane %v4403, 5
      %v5213 = vsel %vm2069, %v5211, %v5212
      %v5214 = vrot.slane %v5120, 5
      %v5215 = vrot.slane %v5214, 4
      %v5216 = vrot.slane %v4405, 5
      %v5217 = vsel %vm2069, %v5215, %v5216
      %v5218 = vrot.slane %v5216, 4
      %v5219 = vrot.slane %v4406, 5
      %v5220 = vsel %vm2069, %v5218, %v5219
      %v5221 = vrot.slane %v5121, 5
      %v5222 = vrot.slane %v5221, 4
      %v5223 = vrot.slane %v4408, 5
      %v5224 = vsel %vm2069, %v5222, %v5223
      %v5225 = vrot.slane %v5223, 4
      %v5226 = vrot.slane %v4409, 5
      %v5227 = vsel %vm2069, %v5225, %v5226
      %v5228 = vrot.slane %v5122, 5
      %v5229 = vrot.slane %v5228, 4
      %v5230 = vrot.slane %v4411, 5
      %v5231 = vsel %vm2069, %v5229, %v5230
      %v5232 = vrot.slane %v5230, 4
      %v5233 = vrot.slane %v4412, 5
      %v5234 = vsel %vm2069, %v5232, %v5233
      %v5235 = vrot.slane %v5123, 5
      %v5236 = vrot.slane %v5235, 4
      %v5237 = vrot.slane %v4414, 5
      %v5238 = vsel %vm2069, %v5236, %v5237
      %v5239 = vrot.slane %v5237, 4
      %v5240 = vrot.slane %v4415, 5
      %v5241 = vsel %vm2069, %v5239, %v5240
      %v5242 = vrot.slane %v5124, 5
      %v5243 = vrot.slane %v5242, 4
      %v5244 = vrot.slane %v4417, 5
      %v5245 = vsel %vm2069, %v5243, %v5244
      %v5246 = vrot.slane %v5244, 4
      %v5247 = vrot.slane %v4418, 5
      %v5248 = vsel %vm2069, %v5246, %v5247
      %v5249 = vrot.slane %v5125, 5
      %v5250 = vrot.slane %v5249, 4
      %v5251 = vrot.slane %v4420, 5
      %v5252 = vsel %vm2069, %v5250, %v5251
      %v5253 = vrot.slane %v5251, 4
      %v5254 = vrot.slane %v4421, 5
      %v5255 = vsel %vm2069, %v5253, %v5254
      %v5256 = vrot.slane %v5126, 5
      %v5257 = vrot.slane %v5256, 4
      %v5258 = vrot.slane %v4423, 5
      %v5259 = vsel %vm2069, %v5257, %v5258
      %v5260 = vrot.slane %v5258, 4
      %v5261 = vrot.slane %v4424, 5
      %v5262 = vsel %vm2069, %v5260, %v5261
      %v5263 = vrot.slane %v5127, 5
      %v5264 = vrot.slane %v5263, 4
      %v5265 = vrot.slane %v4426, 5
      %v5266 = vsel %vm2069, %v5264, %v5265
      %v5267 = vrot.slane %v5265, 4
      %v5268 = vrot.slane %v4427, 5
      %v5269 = vsel %vm2069, %v5267, %v5268
      %v5270 = vrot.slane %v5128, 5
      %v5271 = vrot.slane %v5270, 4
      %v5272 = vrot.slane %v4429, 5
      %v5273 = vsel %vm2069, %v5271, %v5272
      %v5274 = vrot.slane %v5272, 4
      %v5275 = vrot.slane %v4430, 5
      %v5276 = vsel %vm2069, %v5274, %v5275
      %v5277 = vrot.slane %v5129, 5
      %v5278 = vrot.slane %v5277, 4
      %v5279 = vrot.slane %v4432, 5
      %v5280 = vsel %vm2069, %v5278, %v5279
      %v5281 = vrot.slane %v5279, 4
      %v5282 = vrot.slane %v4433, 5
      %v5283 = vsel %vm2069, %v5281, %v5282
      %v5284 = vrot.slane %v5130, 5
      %v5285 = vrot.slane %v5284, 4
      %v5286 = vrot.slane %v4435, 5
      %v5287 = vsel %vm2069, %v5285, %v5286
      %v5288 = vrot.slane %v5286, 4
      %v5289 = vrot.slane %v4436, 5
      %v5290 = vsel %vm2069, %v5288, %v5289
      %s5291 = scalar_lea.vmem %s1, 16
      %v5292 = vld [vmem:[%s5291] sm:$0x3]
      %v5293 = vunpack.c.l.b16 %v5182
      %v5294 = vunpack.c.l.b16 %v5185
      %v5295 = vunpack.c.l.b16 %v5189
      %v5296 = vunpack.c.l.b16 %v5192
      %v5297 = vunpack.c.l.b16 %v5196
      %v5298 = vunpack.c.l.b16 %v5199
      %v5299 = vunpack.c.l.b16 %v5203
      %v5300 = vunpack.c.l.b16 %v5206
      %v5301 = vunpack.c.l.b16 %v5210
      %v5302 = vunpack.c.l.b16 %v5213
      %v5303 = vunpack.c.l.b16 %v5217
      %v5304 = vunpack.c.l.b16 %v5220
      %v5305 = vunpack.c.l.b16 %v5224
      %v5306 = vunpack.c.l.b16 %v5227
      %v5307 = vunpack.c.l.b16 %v5231
      %v5308 = vunpack.c.l.b16 %v5234
      %v5309 = vunpack.c.l.b16 %v5238
      %v5310 = vunpack.c.l.b16 %v5241
      %v5311 = vunpack.c.l.b16 %v5245
      %v5312 = vunpack.c.l.b16 %v5248
      %v5313 = vunpack.c.l.b16 %v5252
      %v5314 = vunpack.c.l.b16 %v5255
      %v5315 = vunpack.c.l.b16 %v5259
      %v5316 = vunpack.c.l.b16 %v5262
      %v5317 = vunpack.c.l.b16 %v5266
      %v5318 = vunpack.c.l.b16 %v5269
      %v5319 = vunpack.c.l.b16 %v5273
      %v5320 = vunpack.c.l.b16 %v5276
      %v5321 = vunpack.c.l.b16 %v5280
      %v5322 = vunpack.c.l.b16 %v5283
      %v5323 = vunpack.c.l.b16 %v5287
      %v5324 = vunpack.c.l.b16 %v5290
      %v5325 = vpack.c.b16 %v5294, %v5293
      %v5326 = vpack.c.b16 %v5296, %v5295
      %v5327 = vpack.c.b16 %v5298, %v5297
      %v5328 = vpack.c.b16 %v5300, %v5299
      %v5329 = vpack.c.b16 %v5302, %v5301
      %v5330 = vpack.c.b16 %v5304, %v5303
      %v5331 = vpack.c.b16 %v5306, %v5305
      %v5332 = vpack.c.b16 %v5308, %v5307
      %v5333 = vpack.c.b16 %v5310, %v5309
      %v5334 = vpack.c.b16 %v5312, %v5311
      %v5335 = vpack.c.b16 %v5314, %v5313
      %v5336 = vpack.c.b16 %v5316, %v5315
      %v5337 = vpack.c.b16 %v5318, %v5317
      %v5338 = vpack.c.b16 %v5320, %v5319
      %v5339 = vpack.c.b16 %v5322, %v5321
      %v5340 = vpack.c.b16 %v5324, %v5323
      %v5342 = vsel %vm1513, %v5325, 0
      %v5345 = vsel %vm1513, %v5326, 0
      %v5348 = vsel %vm1513, %v5327, 0
      %v5351 = vsel %vm1513, %v5328, 0
      %v5354 = vsel %vm1513, %v5329, 0
      %v5357 = vsel %vm1513, %v5330, 0
      %v5360 = vsel %vm1513, %v5331, 0
      %v5363 = vsel %vm1513, %v5332, 0
      %v5366 = vsel %vm1513, %v5333, 0
      %v5369 = vsel %vm1513, %v5334, 0
      %v5372 = vsel %vm1513, %v5335, 0
      %v5375 = vsel %vm1513, %v5336, 0
      %v5378 = vsel %vm1513, %v5337, 0
      %v5381 = vsel %vm1513, %v5338, 0
      %v5384 = vsel %vm1513, %v5339, 0
      %v5387 = vsel %vm1513, %v5340, 0
      %v5390 = vsel %vm1562, %v5292, 0
      %5392 = vmatprep.subr.bf16.mxu0 0
      %5393 = vmatpush1.bf16.msra.mxu0 0
      %5394 = vmatprep.subr.bf16.mxu0 0
      %5395 = vmatpush1.bf16.msra.mxu0 0
      %5396 = vmatprep.subr.bf16.mxu0 0
      %5397 = vmatpush1.bf16.msra.mxu0 0
      %5398 = vmatprep.subr.bf16.mxu0 0
      %5399 = vmatpush1.bf16.msra.mxu0 0
      %5400 = vmatprep.subr.bf16.mxu0 0
      %5401 = vmatpush1.bf16.msra.mxu0 0
      %5402 = vmatprep.subr.bf16.mxu0 0
      %5403 = vmatpush1.bf16.msra.mxu0 0
      %5404 = vmatprep.subr.bf16.mxu0 0
      %5405 = vmatpush1.bf16.msra.mxu0 0
      %5406 = vmatprep.subr.bf16.mxu0 0
      %5407 = vmatpush1.bf16.msra.mxu0 %v5390
      %5408 = vmatprep.subr.bf16.mxu0 0
      %5409 = vmatpush2.bf16.msra.mxu0 0
      %5410 = vmatprep.subr.bf16.mxu0 0
      %5411 = vmatpush2.bf16.msra.mxu0 0
      %5412 = vmatprep.subr.bf16.mxu0 0
      %5413 = vmatpush2.bf16.msra.mxu0 0
      %5414 = vmatprep.subr.bf16.mxu0 0
      %5415 = vmatpush2.bf16.msra.mxu0 0
      %5416 = vmatprep.subr.bf16.mxu0 0
      %5417 = vmatpush2.bf16.msra.mxu0 0
      %5418 = vmatprep.subr.bf16.mxu0 0
      %5419 = vmatpush2.bf16.msra.mxu0 0
      %5420 = vmatprep.subr.bf16.mxu0 0
      %5421 = vmatpush2.bf16.msra.mxu0 0
      %5422 = vmatprep.subr.bf16.mxu0 0
      %5423 = vmatpush2.bf16.msra.mxu0 0
      %5424 = vmatprep.mubr.bf16.mxu0 0
      %5425 = vmatmul.mubr.bf16.gmra.mxu0 %v5342
      %v5426 = vpop.f32.mrf.mxu0
      %v5427 = vadd.f32 0.0, %v5426
      %v5428 = vpop.f32.mrf.mxu0
      %v5429 = vpop.f32.mrf.mxu0
      %v5430 = vadd.f32 0.0, %v5429
      %v5431 = vpop.f32.mrf.mxu0
      %5432 = vmatprep.mubr.bf16.mxu0 0
      %5433 = vmatmul.mubr.bf16.gmra.mxu0 %v5345
      %v5434 = vpop.f32.mrf.mxu0
      %v5435 = vadd.f32 0.0, %v5434
      %v5436 = vpop.f32.mrf.mxu0
      %v5437 = vpop.f32.mrf.mxu0
      %v5438 = vadd.f32 0.0, %v5437
      %v5439 = vpop.f32.mrf.mxu0
      %5440 = vmatprep.mubr.bf16.mxu0 0
      %5441 = vmatmul.mubr.bf16.gmra.mxu0 %v5348
      %v5442 = vpop.f32.mrf.mxu0
      %v5443 = vadd.f32 0.0, %v5442
      %v5444 = vpop.f32.mrf.mxu0
      %v5445 = vpop.f32.mrf.mxu0
      %v5446 = vadd.f32 0.0, %v5445
      %v5447 = vpop.f32.mrf.mxu0
      %5448 = vmatprep.mubr.bf16.mxu0 0
      %5449 = vmatmul.mubr.bf16.gmra.mxu0 %v5351
      %v5450 = vpop.f32.mrf.mxu0
      %v5451 = vadd.f32 0.0, %v5450
      %v5452 = vpop.f32.mrf.mxu0
      %v5453 = vpop.f32.mrf.mxu0
      %v5454 = vadd.f32 0.0, %v5453
      %v5455 = vpop.f32.mrf.mxu0
      %5456 = vmatprep.mubr.bf16.mxu0 0
      %5457 = vmatmul.mubr.bf16.gmra.mxu0 %v5354
      %v5458 = vpop.f32.mrf.mxu0
      %v5459 = vadd.f32 0.0, %v5458
      %v5460 = vpop.f32.mrf.mxu0
      %v5461 = vpop.f32.mrf.mxu0
      %v5462 = vadd.f32 0.0, %v5461
      %v5463 = vpop.f32.mrf.mxu0
      %5464 = vmatprep.mubr.bf16.mxu0 0
      %5465 = vmatmul.mubr.bf16.gmra.mxu0 %v5357
      %v5466 = vpop.f32.mrf.mxu0
      %v5467 = vadd.f32 0.0, %v5466
      %v5468 = vpop.f32.mrf.mxu0
      %v5469 = vpop.f32.mrf.mxu0
      %v5470 = vadd.f32 0.0, %v5469
      %v5471 = vpop.f32.mrf.mxu0
      %5472 = vmatprep.mubr.bf16.mxu0 0
      %5473 = vmatmul.mubr.bf16.gmra.mxu0 %v5360
      %v5474 = vpop.f32.mrf.mxu0
      %v5475 = vadd.f32 0.0, %v5474
      %v5476 = vpop.f32.mrf.mxu0
      %v5477 = vpop.f32.mrf.mxu0
      %v5478 = vadd.f32 0.0, %v5477
      %v5479 = vpop.f32.mrf.mxu0
      %5480 = vmatprep.mubr.bf16.mxu0 0
      %5481 = vmatmul.mubr.bf16.gmra.mxu0 %v5363
      %v5482 = vpop.f32.mrf.mxu0
      %v5483 = vadd.f32 0.0, %v5482
      %v5484 = vpop.f32.mrf.mxu0
      %v5485 = vpop.f32.mrf.mxu0
      %v5486 = vadd.f32 0.0, %v5485
      %v5487 = vpop.f32.mrf.mxu0
      %5488 = vmatprep.mubr.bf16.mxu0 0
      %5489 = vmatmul.mubr.bf16.gmra.mxu0 %v5366
      %v5490 = vpop.f32.mrf.mxu0
      %v5491 = vadd.f32 0.0, %v5490
      %v5492 = vpop.f32.mrf.mxu0
      %v5493 = vpop.f32.mrf.mxu0
      %v5494 = vadd.f32 0.0, %v5493
      %v5495 = vpop.f32.mrf.mxu0
      %5496 = vmatprep.mubr.bf16.mxu0 0
      %5497 = vmatmul.mubr.bf16.gmra.mxu0 %v5369
      %v5498 = vpop.f32.mrf.mxu0
      %v5499 = vadd.f32 0.0, %v5498
      %v5500 = vpop.f32.mrf.mxu0
      %v5501 = vpop.f32.mrf.mxu0
      %v5502 = vadd.f32 0.0, %v5501
      %v5503 = vpop.f32.mrf.mxu0
      %5504 = vmatprep.mubr.bf16.mxu0 0
      %5505 = vmatmul.mubr.bf16.gmra.mxu0 %v5372
      %v5506 = vpop.f32.mrf.mxu0
      %v5507 = vadd.f32 0.0, %v5506
      %v5508 = vpop.f32.mrf.mxu0
      %v5509 = vpop.f32.mrf.mxu0
      %v5510 = vadd.f32 0.0, %v5509
      %v5511 = vpop.f32.mrf.mxu0
      %5512 = vmatprep.mubr.bf16.mxu0 0
      %5513 = vmatmul.mubr.bf16.gmra.mxu0 %v5375
      %v5514 = vpop.f32.mrf.mxu0
      %v5515 = vadd.f32 0.0, %v5514
      %v5516 = vpop.f32.mrf.mxu0
      %v5517 = vpop.f32.mrf.mxu0
      %v5518 = vadd.f32 0.0, %v5517
      %v5519 = vpop.f32.mrf.mxu0
      %5520 = vmatprep.mubr.bf16.mxu0 0
      %5521 = vmatmul.mubr.bf16.gmra.mxu0 %v5378
      %v5522 = vpop.f32.mrf.mxu0
      %v5523 = vadd.f32 0.0, %v5522
      %v5524 = vpop.f32.mrf.mxu0
      %v5525 = vpop.f32.mrf.mxu0
      %v5526 = vadd.f32 0.0, %v5525
      %v5527 = vpop.f32.mrf.mxu0
      %5528 = vmatprep.mubr.bf16.mxu0 0
      %5529 = vmatmul.mubr.bf16.gmra.mxu0 %v5381
      %v5530 = vpop.f32.mrf.mxu0
      %v5531 = vadd.f32 0.0, %v5530
      %v5532 = vpop.f32.mrf.mxu0
      %v5533 = vpop.f32.mrf.mxu0
      %v5534 = vadd.f32 0.0, %v5533
      %v5535 = vpop.f32.mrf.mxu0
      %5536 = vmatprep.mubr.bf16.mxu0 0
      %5537 = vmatmul.mubr.bf16.gmra.mxu0 %v5384
      %v5538 = vpop.f32.mrf.mxu0
      %v5539 = vadd.f32 0.0, %v5538
      %v5540 = vpop.f32.mrf.mxu0
      %v5541 = vpop.f32.mrf.mxu0
      %v5542 = vadd.f32 0.0, %v5541
      %v5543 = vpop.f32.mrf.mxu0
      %5544 = vmatprep.mubr.bf16.mxu0 0
      %5545 = vmatmul.mubr.bf16.gmra.mxu0 %v5387
      %v5546 = vpop.f32.mrf.mxu0
      %v5547 = vadd.f32 0.0, %v5546
      %v5548 = vpop.f32.mrf.mxu0
      %v5549 = vpop.f32.mrf.mxu0
      %v5550 = vadd.f32 0.0, %v5549
      %v5551 = vpop.f32.mrf.mxu0
      %5552 = vdwg.mxu0
      %v5553 = vadd.f32 %v5083, %v5427
      %v5554 = vadd.f32 %v5084, %v5430
      %v5555 = vadd.f32 %v5085, %v5435
      %v5556 = vadd.f32 %v5086, %v5438
      %v5557 = vadd.f32 %v5087, %v5443
      %v5558 = vadd.f32 %v5088, %v5446
      %v5559 = vadd.f32 %v5089, %v5451
      %v5560 = vadd.f32 %v5090, %v5454
      %v5561 = vadd.f32 %v5091, %v5459
      %v5562 = vadd.f32 %v5092, %v5462
      %v5563 = vadd.f32 %v5093, %v5467
      %v5564 = vadd.f32 %v5094, %v5470
      %v5565 = vadd.f32 %v5095, %v5475
      %v5566 = vadd.f32 %v5096, %v5478
      %v5567 = vadd.f32 %v5097, %v5483
      %v5568 = vadd.f32 %v5098, %v5486
      %v5569 = vadd.f32 %v5099, %v5491
      %v5570 = vadd.f32 %v5100, %v5494
      %v5571 = vadd.f32 %v5101, %v5499
      %v5572 = vadd.f32 %v5102, %v5502
      %v5573 = vadd.f32 %v5103, %v5507
      %v5574 = vadd.f32 %v5104, %v5510
      %v5575 = vadd.f32 %v5105, %v5515
      %v5576 = vadd.f32 %v5106, %v5518
      %v5577 = vadd.f32 %v5107, %v5523
      %v5578 = vadd.f32 %v5108, %v5526
      %v5579 = vadd.f32 %v5109, %v5531
      %v5580 = vadd.f32 %v5110, %v5534
      %v5581 = vadd.f32 %v5111, %v5539
      %v5582 = vadd.f32 %v5112, %v5542
      %v5583 = vadd.f32 %v5113, %v5547
      %v5584 = vadd.f32 %v5114, %v5550
      %v5585 = vld [vmem:[%s2] sm:$0x1]
      %v5587 = vlaneseq
      %v5588 = vshrl.u32 %v5587, 7
      %v5589 = vsub.s32 0, %v5588
      %v5590 = vrot.slane %v5585, %v5589
      %v5592 = vadd.f32 %v5553, %v5590
      %v5593 = vadd.f32 %v5554, %v5590
      %v5594 = vadd.f32 %v5555, %v5590
      %v5595 = vadd.f32 %v5556, %v5590
      %v5596 = vadd.f32 %v5557, %v5590
      %v5597 = vadd.f32 %v5558, %v5590
      %v5598 = vadd.f32 %v5559, %v5590
      %v5599 = vadd.f32 %v5560, %v5590
      %v5600 = vadd.f32 %v5561, %v5590
      %v5601 = vadd.f32 %v5562, %v5590
      %v5602 = vadd.f32 %v5563, %v5590
      %v5603 = vadd.f32 %v5564, %v5590
      %v5604 = vadd.f32 %v5565, %v5590
      %v5605 = vadd.f32 %v5566, %v5590
      %v5606 = vadd.f32 %v5567, %v5590
      %v5607 = vadd.f32 %v5568, %v5590
      %v5608 = vadd.f32 %v5569, %v5590
      %v5609 = vadd.f32 %v5570, %v5590
      %v5610 = vadd.f32 %v5571, %v5590
      %v5611 = vadd.f32 %v5572, %v5590
      %v5612 = vadd.f32 %v5573, %v5590
      %v5613 = vadd.f32 %v5574, %v5590
      %v5614 = vadd.f32 %v5575, %v5590
      %v5615 = vadd.f32 %v5576, %v5590
      %v5616 = vadd.f32 %v5577, %v5590
      %v5617 = vadd.f32 %v5578, %v5590
      %v5618 = vadd.f32 %v5579, %v5590
      %v5619 = vadd.f32 %v5580, %v5590
      %v5620 = vadd.f32 %v5581, %v5590
      %v5621 = vadd.f32 %v5582, %v5590
      %v5622 = vadd.f32 %v5583, %v5590
      %v5623 = vadd.f32 %v5584, %v5590
      %v5624 = vmax.f32 %v5592, 0.0
      %v5625 = vmax.f32 %v5593, 0.0
      %v5626 = vmax.f32 %v5594, 0.0
      %v5627 = vmax.f32 %v5595, 0.0
      %v5628 = vmax.f32 %v5596, 0.0
      %v5629 = vmax.f32 %v5597, 0.0
      %v5630 = vmax.f32 %v5598, 0.0
      %v5631 = vmax.f32 %v5599, 0.0
      %v5632 = vmax.f32 %v5600, 0.0
      %v5633 = vmax.f32 %v5601, 0.0
      %v5634 = vmax.f32 %v5602, 0.0
      %v5635 = vmax.f32 %v5603, 0.0
      %v5636 = vmax.f32 %v5604, 0.0
      %v5637 = vmax.f32 %v5605, 0.0
      %v5638 = vmax.f32 %v5606, 0.0
      %v5639 = vmax.f32 %v5607, 0.0
      %v5640 = vmax.f32 %v5608, 0.0
      %v5641 = vmax.f32 %v5609, 0.0
      %v5642 = vmax.f32 %v5610, 0.0
      %v5643 = vmax.f32 %v5611, 0.0
      %v5644 = vmax.f32 %v5612, 0.0
      %v5645 = vmax.f32 %v5613, 0.0
      %v5646 = vmax.f32 %v5614, 0.0
      %v5647 = vmax.f32 %v5615, 0.0
      %v5648 = vmax.f32 %v5616, 0.0
      %v5649 = vmax.f32 %v5617, 0.0
      %v5650 = vmax.f32 %v5618, 0.0
      %v5651 = vmax.f32 %v5619, 0.0
      %v5652 = vmax.f32 %v5620, 0.0
      %v5653 = vmax.f32 %v5621, 0.0
      %v5654 = vmax.f32 %v5622, 0.0
      %v5655 = vmax.f32 %v5623, 0.0
      %v5656 = vpack.c.bf16 %v5625, %v5624
      %v5657 = vpack.c.bf16 %v5627, %v5626
      %v5658 = vpack.c.bf16 %v5629, %v5628
      %v5659 = vpack.c.bf16 %v5631, %v5630
      %v5660 = vpack.c.bf16 %v5633, %v5632
      %v5661 = vpack.c.bf16 %v5635, %v5634
      %v5662 = vpack.c.bf16 %v5637, %v5636
      %v5663 = vpack.c.bf16 %v5639, %v5638
      %v5664 = vpack.c.bf16 %v5641, %v5640
      %v5665 = vpack.c.bf16 %v5643, %v5642
      %v5666 = vpack.c.bf16 %v5645, %v5644
      %v5667 = vpack.c.bf16 %v5647, %v5646
      %v5668 = vpack.c.bf16 %v5649, %v5648
      %v5669 = vpack.c.bf16 %v5651, %v5650
      %v5670 = vpack.c.bf16 %v5653, %v5652
      %v5671 = vpack.c.bf16 %v5655, %v5654
      %v5688 = vunpack.c.l.b16 %v5656
      %v5689 = vunpack.c.h.b16 %v5656
      %v5690 = vunpack.c.l.b16 %v5657
      %v5691 = vunpack.c.h.b16 %v5657
      %v5692 = vunpack.c.l.b16 %v5658
      %v5693 = vunpack.c.h.b16 %v5658
      %v5694 = vunpack.c.l.b16 %v5659
      %v5695 = vunpack.c.h.b16 %v5659
      %v5696 = vunpack.c.l.b16 %v5660
      %v5697 = vunpack.c.h.b16 %v5660
      %v5698 = vunpack.c.l.b16 %v5661
      %v5699 = vunpack.c.h.b16 %v5661
      %v5700 = vunpack.c.l.b16 %v5662
      %v5701 = vunpack.c.h.b16 %v5662
      %v5702 = vunpack.c.l.b16 %v5663
      %v5703 = vunpack.c.h.b16 %v5663
      %v5704 = vunpack.c.l.b16 %v5664
      %v5705 = vunpack.c.h.b16 %v5664
      %v5706 = vunpack.c.l.b16 %v5665
      %v5707 = vunpack.c.h.b16 %v5665
      %v5708 = vunpack.c.l.b16 %v5666
      %v5709 = vunpack.c.h.b16 %v5666
      %v5710 = vunpack.c.l.b16 %v5667
      %v5711 = vunpack.c.h.b16 %v5667
      %v5712 = vunpack.c.l.b16 %v5668
      %v5713 = vunpack.c.h.b16 %v5668
      %v5714 = vunpack.c.l.b16 %v5669
      %v5715 = vunpack.c.h.b16 %v5669
      %v5716 = vunpack.c.l.b16 %v5670
      %v5717 = vunpack.c.h.b16 %v5670
      %v5718 = vunpack.c.l.b16 %v5671
      %v5719 = vunpack.c.h.b16 %v5671
      %v5720 = vpack.c.b16 %v5688, %v5688
      %v5721 = vpack.c.b16 %v5689, %v5689
      %v5722 = vpack.c.b16 %v5690, %v5690
      %v5723 = vpack.c.b16 %v5691, %v5691
      %v5724 = vpack.c.b16 %v5692, %v5692
      %v5725 = vpack.c.b16 %v5693, %v5693
      %v5726 = vpack.c.b16 %v5694, %v5694
      %v5727 = vpack.c.b16 %v5695, %v5695
      %v5728 = vpack.c.b16 %v5696, %v5696
      %v5729 = vpack.c.b16 %v5697, %v5697
      %v5730 = vpack.c.b16 %v5698, %v5698
      %v5731 = vpack.c.b16 %v5699, %v5699
      %v5732 = vpack.c.b16 %v5700, %v5700
      %v5733 = vpack.c.b16 %v5701, %v5701
      %v5734 = vpack.c.b16 %v5702, %v5702
      %v5735 = vpack.c.b16 %v5703, %v5703
      %v5736 = vpack.c.b16 %v5704, %v5704
      %v5737 = vpack.c.b16 %v5705, %v5705
      %v5738 = vpack.c.b16 %v5706, %v5706
      %v5739 = vpack.c.b16 %v5707, %v5707
      %v5740 = vpack.c.b16 %v5708, %v5708
      %v5741 = vpack.c.b16 %v5709, %v5709
      %v5742 = vpack.c.b16 %v5710, %v5710
      %v5743 = vpack.c.b16 %v5711, %v5711
      %v5744 = vpack.c.b16 %v5712, %v5712
      %v5745 = vpack.c.b16 %v5713, %v5713
      %v5746 = vpack.c.b16 %v5714, %v5714
      %v5747 = vpack.c.b16 %v5715, %v5715
      %v5748 = vpack.c.b16 %v5716, %v5716
      %v5749 = vpack.c.b16 %v5717, %v5717
      %v5750 = vpack.c.b16 %v5718, %v5718
      %v5751 = vpack.c.b16 %v5719, %v5719
      %v5753 = vshrl.u32 %v5720, 16
      %v5755 = vrot.slane %v5753, 7
      %v5756 = vshll.u32 %v5720, 16
      %v5758 = vor.u32 %v5755, %v5756
      %v5759 = vrot.slane %v5755, 4
      %v5761 = vshrl.u32 %v5721, 16
      %v5763 = vrot.slane %v5761, 7
      %v5764 = vshll.u32 %v5721, 16
      %v5766 = vor.u32 %v5763, %v5764
      %v5767 = vsel %vm591, %v5759, %v5766
      %v5768 = vrot.slane %v5763, 4
      %v5770 = vshrl.u32 %v5722, 16
      %v5772 = vrot.slane %v5770, 7
      %v5773 = vshll.u32 %v5722, 16
      %v5775 = vor.u32 %v5772, %v5773
      %v5776 = vrot.slane %v5772, 4
      %v5778 = vshrl.u32 %v5723, 16
      %v5780 = vrot.slane %v5778, 7
      %v5781 = vshll.u32 %v5723, 16
      %v5783 = vor.u32 %v5780, %v5781
      %v5784 = vsel %vm591, %v5776, %v5783
      %v5785 = vrot.slane %v5780, 4
      %v5787 = vshrl.u32 %v5724, 16
      %v5789 = vrot.slane %v5787, 7
      %v5790 = vshll.u32 %v5724, 16
      %v5792 = vor.u32 %v5789, %v5790
      %v5793 = vrot.slane %v5789, 4
      %v5795 = vshrl.u32 %v5725, 16
      %v5797 = vrot.slane %v5795, 7
      %v5798 = vshll.u32 %v5725, 16
      %v5800 = vor.u32 %v5797, %v5798
      %v5801 = vsel %vm591, %v5793, %v5800
      %v5802 = vrot.slane %v5797, 4
      %v5804 = vshrl.u32 %v5726, 16
      %v5806 = vrot.slane %v5804, 7
      %v5807 = vshll.u32 %v5726, 16
      %v5809 = vor.u32 %v5806, %v5807
      %v5810 = vrot.slane %v5806, 4
      %v5812 = vshrl.u32 %v5727, 16
      %v5814 = vrot.slane %v5812, 7
      %v5815 = vshll.u32 %v5727, 16
      %v5817 = vor.u32 %v5814, %v5815
      %v5818 = vsel %vm591, %v5810, %v5817
      %v5819 = vrot.slane %v5814, 4
      %v5821 = vshrl.u32 %v5728, 16
      %v5823 = vrot.slane %v5821, 7
      %v5824 = vshll.u32 %v5728, 16
      %v5826 = vor.u32 %v5823, %v5824
      %v5827 = vrot.slane %v5823, 4
      %v5829 = vshrl.u32 %v5729, 16
      %v5831 = vrot.slane %v5829, 7
      %v5832 = vshll.u32 %v5729, 16
      %v5834 = vor.u32 %v5831, %v5832
      %v5835 = vsel %vm591, %v5827, %v5834
      %v5836 = vrot.slane %v5831, 4
      %v5838 = vshrl.u32 %v5730, 16
      %v5840 = vrot.slane %v5838, 7
      %v5841 = vshll.u32 %v5730, 16
      %v5843 = vor.u32 %v5840, %v5841
      %v5844 = vrot.slane %v5840, 4
      %v5846 = vshrl.u32 %v5731, 16
      %v5848 = vrot.slane %v5846, 7
      %v5849 = vshll.u32 %v5731, 16
      %v5851 = vor.u32 %v5848, %v5849
      %v5852 = vsel %vm591, %v5844, %v5851
      %v5853 = vrot.slane %v5848, 4
      %v5855 = vshrl.u32 %v5732, 16
      %v5857 = vrot.slane %v5855, 7
      %v5858 = vshll.u32 %v5732, 16
      %v5860 = vor.u32 %v5857, %v5858
      %v5861 = vrot.slane %v5857, 4
      %v5863 = vshrl.u32 %v5733, 16
      %v5865 = vrot.slane %v5863, 7
      %v5866 = vshll.u32 %v5733, 16
      %v5868 = vor.u32 %v5865, %v5866
      %v5869 = vsel %vm591, %v5861, %v5868
      %v5870 = vrot.slane %v5865, 4
      %v5872 = vshrl.u32 %v5734, 16
      %v5874 = vrot.slane %v5872, 7
      %v5875 = vshll.u32 %v5734, 16
      %v5877 = vor.u32 %v5874, %v5875
      %v5878 = vrot.slane %v5874, 4
      %v5880 = vshrl.u32 %v5735, 16
      %v5882 = vrot.slane %v5880, 7
      %v5883 = vshll.u32 %v5735, 16
      %v5885 = vor.u32 %v5882, %v5883
      %v5886 = vsel %vm591, %v5878, %v5885
      %v5887 = vrot.slane %v5882, 4
      %v5889 = vshrl.u32 %v5736, 16
      %v5891 = vrot.slane %v5889, 7
      %v5892 = vshll.u32 %v5736, 16
      %v5894 = vor.u32 %v5891, %v5892
      %v5895 = vrot.slane %v5891, 4
      %v5897 = vshrl.u32 %v5737, 16
      %v5899 = vrot.slane %v5897, 7
      %v5900 = vshll.u32 %v5737, 16
      %v5902 = vor.u32 %v5899, %v5900
      %v5903 = vsel %vm591, %v5895, %v5902
      %v5904 = vrot.slane %v5899, 4
      %v5906 = vshrl.u32 %v5738, 16
      %v5908 = vrot.slane %v5906, 7
      %v5909 = vshll.u32 %v5738, 16
      %v5911 = vor.u32 %v5908, %v5909
      %v5912 = vrot.slane %v5908, 4
      %v5914 = vshrl.u32 %v5739, 16
      %v5916 = vrot.slane %v5914, 7
      %v5917 = vshll.u32 %v5739, 16
      %v5919 = vor.u32 %v5916, %v5917
      %v5920 = vsel %vm591, %v5912, %v5919
      %v5921 = vrot.slane %v5916, 4
      %v5923 = vshrl.u32 %v5740, 16
      %v5925 = vrot.slane %v5923, 7
      %v5926 = vshll.u32 %v5740, 16
      %v5928 = vor.u32 %v5925, %v5926
      %v5929 = vrot.slane %v5925, 4
      %v5931 = vshrl.u32 %v5741, 16
      %v5933 = vrot.slane %v5931, 7
      %v5934 = vshll.u32 %v5741, 16
      %v5936 = vor.u32 %v5933, %v5934
      %v5937 = vsel %vm591, %v5929, %v5936
      %v5938 = vrot.slane %v5933, 4
      %v5940 = vshrl.u32 %v5742, 16
      %v5942 = vrot.slane %v5940, 7
      %v5943 = vshll.u32 %v5742, 16
      %v5945 = vor.u32 %v5942, %v5943
      %v5946 = vrot.slane %v5942, 4
      %v5948 = vshrl.u32 %v5743, 16
      %v5950 = vrot.slane %v5948, 7
      %v5951 = vshll.u32 %v5743, 16
      %v5953 = vor.u32 %v5950, %v5951
      %v5954 = vsel %vm591, %v5946, %v5953
      %v5955 = vrot.slane %v5950, 4
      %v5957 = vshrl.u32 %v5744, 16
      %v5959 = vrot.slane %v5957, 7
      %v5960 = vshll.u32 %v5744, 16
      %v5962 = vor.u32 %v5959, %v5960
      %v5963 = vrot.slane %v5959, 4
      %v5965 = vshrl.u32 %v5745, 16
      %v5967 = vrot.slane %v5965, 7
      %v5968 = vshll.u32 %v5745, 16
      %v5970 = vor.u32 %v5967, %v5968
      %v5971 = vsel %vm591, %v5963, %v5970
      %v5972 = vrot.slane %v5967, 4
      %v5974 = vshrl.u32 %v5746, 16
      %v5976 = vrot.slane %v5974, 7
      %v5977 = vshll.u32 %v5746, 16
      %v5979 = vor.u32 %v5976, %v5977
      %v5980 = vrot.slane %v5976, 4
      %v5982 = vshrl.u32 %v5747, 16
      %v5984 = vrot.slane %v5982, 7
      %v5985 = vshll.u32 %v5747, 16
      %v5987 = vor.u32 %v5984, %v5985
      %v5988 = vsel %vm591, %v5980, %v5987
      %v5989 = vrot.slane %v5984, 4
      %v5991 = vshrl.u32 %v5748, 16
      %v5993 = vrot.slane %v5991, 7
      %v5994 = vshll.u32 %v5748, 16
      %v5996 = vor.u32 %v5993, %v5994
      %v5997 = vrot.slane %v5993, 4
      %v5999 = vshrl.u32 %v5749, 16
      %v6001 = vrot.slane %v5999, 7
      %v6002 = vshll.u32 %v5749, 16
      %v6004 = vor.u32 %v6001, %v6002
      %v6005 = vsel %vm591, %v5997, %v6004
      %v6006 = vrot.slane %v6001, 4
      %v6008 = vshrl.u32 %v5750, 16
      %v6010 = vrot.slane %v6008, 7
      %v6011 = vshll.u32 %v5750, 16
      %v6013 = vor.u32 %v6010, %v6011
      %v6014 = vrot.slane %v6010, 4
      %v6016 = vshrl.u32 %v5751, 16
      %v6018 = vrot.slane %v6016, 7
      %v6019 = vshll.u32 %v5751, 16
      %v6021 = vor.u32 %v6018, %v6019
      %v6022 = vsel %vm591, %v6014, %v6021
      %v6023 = vrot.slane %v6018, 4
      %s6072 = scalar_lea.vmem [#allocation3], 12
      %v6073 = vld [vmem:[%s6072] sm:$0xf]
      %v6074 = vsel %vm914, %v5758, %v6073
      %6075 = vst [vmem:[%s6072] sm:$0xf] %v6074
      %6076 = vst.msk [vmem:[%s6072 + $0x4] sm:$0xf] %vm226, %v5767
      %v6077 = vld [vmem:[%s6072 + $0x8] sm:$0x1]
      %v6078 = vsel %vm236, %v5768, %v6077
      %6079 = vst [vmem:[%s6072 + $0x8] sm:$0x1] %v6078
      %v6080 = vld [vmem:[%s6072 + $0xc] sm:$0xf]
      %v6081 = vsel %vm914, %v5775, %v6080
      %6082 = vst [vmem:[%s6072 + $0xc] sm:$0xf] %v6081
      %6083 = vst.msk [vmem:[%s6072 + $0x10] sm:$0xf] %vm226, %v5784
      %v6084 = vld [vmem:[%s6072 + $0x14] sm:$0x1]
      %v6085 = vsel %vm236, %v5785, %v6084
      %6086 = vst [vmem:[%s6072 + $0x14] sm:$0x1] %v6085
      %v6087 = vld [vmem:[%s6072 + $0x18] sm:$0xf]
      %v6088 = vsel %vm914, %v5792, %v6087
      %6089 = vst [vmem:[%s6072 + $0x18] sm:$0xf] %v6088
      %6090 = vst.msk [vmem:[%s6072 + $0x1c] sm:$0xf] %vm226, %v5801
      %v6091 = vld [vmem:[%s6072 + $0x20] sm:$0x1]
      %v6092 = vsel %vm236, %v5802, %v6091
      %6093 = vst [vmem:[%s6072 + $0x20] sm:$0x1] %v6092
      %v6094 = vld [vmem:[%s6072 + $0x24] sm:$0xf]
      %v6095 = vsel %vm914, %v5809, %v6094
      %6096 = vst [vmem:[%s6072 + $0x24] sm:$0xf] %v6095
      %6097 = vst.msk [vmem:[%s6072 + $0x28] sm:$0xf] %vm226, %v5818
      %v6098 = vld [vmem:[%s6072 + $0x2c] sm:$0x1]
      %v6099 = vsel %vm236, %v5819, %v6098
      %6100 = vst [vmem:[%s6072 + $0x2c] sm:$0x1] %v6099
      %v6101 = vld [vmem:[%s6072 + $0x30] sm:$0xf]
      %v6102 = vsel %vm914, %v5826, %v6101
      %6103 = vst [vmem:[%s6072 + $0x30] sm:$0xf] %v6102
      %6104 = vst.msk [vmem:[%s6072 + $0x34] sm:$0xf] %vm226, %v5835
      %v6105 = vld [vmem:[%s6072 + $0x38] sm:$0x1]
      %v6106 = vsel %vm236, %v5836, %v6105
      %6107 = vst [vmem:[%s6072 + $0x38] sm:$0x1] %v6106
      %v6108 = vld [vmem:[%s6072 + $0x3c] sm:$0xf]
      %v6109 = vsel %vm914, %v5843, %v6108
      %6110 = vst [vmem:[%s6072 + $0x3c] sm:$0xf] %v6109
      %6111 = vst.msk [vmem:[%s6072 + $0x40] sm:$0xf] %vm226, %v5852
      %v6112 = vld [vmem:[%s6072 + $0x44] sm:$0x1]
      %v6113 = vsel %vm236, %v5853, %v6112
      %6114 = vst [vmem:[%s6072 + $0x44] sm:$0x1] %v6113
      %v6115 = vld [vmem:[%s6072 + $0x48] sm:$0xf]
      %v6116 = vsel %vm914, %v5860, %v6115
      %6117 = vst [vmem:[%s6072 + $0x48] sm:$0xf] %v6116
      %6118 = vst.msk [vmem:[%s6072 + $0x4c] sm:$0xf] %vm226, %v5869
      %v6119 = vld [vmem:[%s6072 + $0x50] sm:$0x1]
      %v6120 = vsel %vm236, %v5870, %v6119
      %6121 = vst [vmem:[%s6072 + $0x50] sm:$0x1] %v6120
      %v6122 = vld [vmem:[%s6072 + $0x54] sm:$0xf]
      %v6123 = vsel %vm914, %v5877, %v6122
      %6124 = vst [vmem:[%s6072 + $0x54] sm:$0xf] %v6123
      %6125 = vst.msk [vmem:[%s6072 + $0x58] sm:$0xf] %vm226, %v5886
      %v6126 = vld [vmem:[%s6072 + $0x5c] sm:$0x1]
      %v6127 = vsel %vm236, %v5887, %v6126
      %6128 = vst [vmem:[%s6072 + $0x5c] sm:$0x1] %v6127
      %v6129 = vld [vmem:[%s6072 + $0x60] sm:$0xf]
      %v6130 = vsel %vm914, %v5894, %v6129
      %6131 = vst [vmem:[%s6072 + $0x60] sm:$0xf] %v6130
      %6132 = vst.msk [vmem:[%s6072 + $0x64] sm:$0xf] %vm226, %v5903
      %v6133 = vld [vmem:[%s6072 + $0x68] sm:$0x1]
      %v6134 = vsel %vm236, %v5904, %v6133
      %6135 = vst [vmem:[%s6072 + $0x68] sm:$0x1] %v6134
      %v6136 = vld [vmem:[%s6072 + $0x6c] sm:$0xf]
      %v6137 = vsel %vm914, %v5911, %v6136
      %6138 = vst [vmem:[%s6072 + $0x6c] sm:$0xf] %v6137
      %6139 = vst.msk [vmem:[%s6072 + $0x70] sm:$0xf] %vm226, %v5920
      %v6140 = vld [vmem:[%s6072 + $0x74] sm:$0x1]
      %v6141 = vsel %vm236, %v5921, %v6140
      %6142 = vst [vmem:[%s6072 + $0x74] sm:$0x1] %v6141
      %v6143 = vld [vmem:[%s6072 + $0x78] sm:$0xf]
      %v6144 = vsel %vm914, %v5928, %v6143
      %6145 = vst [vmem:[%s6072 + $0x78] sm:$0xf] %v6144
      %6146 = vst.msk [vmem:[%s6072 + $0x7c] sm:$0xf] %vm226, %v5937
      %v6147 = vld [vmem:[%s6072 + $0x80] sm:$0x1]
      %v6148 = vsel %vm236, %v5938, %v6147
      %6149 = vst [vmem:[%s6072 + $0x80] sm:$0x1] %v6148
      %v6150 = vld [vmem:[%s6072 + $0x84] sm:$0xf]
      %v6151 = vsel %vm914, %v5945, %v6150
      %6152 = vst [vmem:[%s6072 + $0x84] sm:$0xf] %v6151
      %6153 = vst.msk [vmem:[%s6072 + $0x88] sm:$0xf] %vm226, %v5954
      %v6154 = vld [vmem:[%s6072 + $0x8c] sm:$0x1]
      %v6155 = vsel %vm236, %v5955, %v6154
      %6156 = vst [vmem:[%s6072 + $0x8c] sm:$0x1] %v6155
      %v6157 = vld [vmem:[%s6072 + $0x90] sm:$0xf]
      %v6158 = vsel %vm914, %v5962, %v6157
      %6159 = vst [vmem:[%s6072 + $0x90] sm:$0xf] %v6158
      %6160 = vst.msk [vmem:[%s6072 + $0x94] sm:$0xf] %vm226, %v5971
      %v6161 = vld [vmem:[%s6072 + $0x98] sm:$0x1]
      %v6162 = vsel %vm236, %v5972, %v6161
      %6163 = vst [vmem:[%s6072 + $0x98] sm:$0x1] %v6162
      %v6164 = vld [vmem:[%s6072 + $0x9c] sm:$0xf]
      %v6165 = vsel %vm914, %v5979, %v6164
      %6166 = vst [vmem:[%s6072 + $0x9c] sm:$0xf] %v6165
      %6167 = vst.msk [vmem:[%s6072 + $0xa0] sm:$0xf] %vm226, %v5988
      %v6168 = vld [vmem:[%s6072 + $0xa4] sm:$0x1]
      %v6169 = vsel %vm236, %v5989, %v6168
      %6170 = vst [vmem:[%s6072 + $0xa4] sm:$0x1] %v6169
      %v6171 = vld [vmem:[%s6072 + $0xa8] sm:$0xf]
      %v6172 = vsel %vm914, %v5996, %v6171
      %6173 = vst [vmem:[%s6072 + $0xa8] sm:$0xf] %v6172
      %6174 = vst.msk [vmem:[%s6072 + $0xac] sm:$0xf] %vm226, %v6005
      %v6175 = vld [vmem:[%s6072 + $0xb0] sm:$0x1]
      %v6176 = vsel %vm236, %v6006, %v6175
      %6177 = vst [vmem:[%s6072 + $0xb0] sm:$0x1] %v6176
      %v6178 = vld [vmem:[%s6072 + $0xb4] sm:$0xf]
      %v6179 = vsel %vm914, %v6013, %v6178
      %6180 = vst [vmem:[%s6072 + $0xb4] sm:$0xf] %v6179
      %6181 = vst.msk [vmem:[%s6072 + $0xb8] sm:$0xf] %vm226, %v6022
      %v6182 = vld [vmem:[%s6072 + $0xbc] sm:$0x1]
      %v6183 = vsel %vm236, %v6023, %v6182
      %6184 = vst [vmem:[%s6072 + $0xbc] sm:$0x1] %v6183
      %v6185 = vld [vmem:[#allocation3] sm:$0xf]
      %v6186 = vld [vmem:[#allocation3 + $0x4] sm:$0xf]
      %v6187 = vld [vmem:[#allocation3 + $0xc] sm:$0xf]
      %v6188 = vld [vmem:[#allocation3 + $0x10] sm:$0xf]
      %v6189 = vld [vmem:[#allocation3 + $0x18] sm:$0xf]
      %v6190 = vld [vmem:[#allocation3 + $0x1c] sm:$0xf]
      %v6191 = vld [vmem:[#allocation3 + $0x24] sm:$0xf]
      %v6192 = vld [vmem:[#allocation3 + $0x28] sm:$0xf]
      %v6193 = vld [vmem:[#allocation3 + $0x30] sm:$0xf]
      %v6194 = vld [vmem:[#allocation3 + $0x34] sm:$0xf]
      %v6195 = vld [vmem:[#allocation3 + $0x3c] sm:$0xf]
      %v6196 = vld [vmem:[#allocation3 + $0x40] sm:$0xf]
      %v6197 = vld [vmem:[#allocation3 + $0x48] sm:$0xf]
      %v6198 = vld [vmem:[#allocation3 + $0x4c] sm:$0xf]
      %v6199 = vld [vmem:[#allocation3 + $0x54] sm:$0xf]
      %v6200 = vld [vmem:[#allocation3 + $0x58] sm:$0xf]
      %v6201 = vld [vmem:[#allocation3 + $0x60] sm:$0xf]
      %v6202 = vld [vmem:[#allocation3 + $0x64] sm:$0xf]
      %v6203 = vld [vmem:[#allocation3 + $0x6c] sm:$0xf]
      %v6204 = vld [vmem:[#allocation3 + $0x70] sm:$0xf]
      %v6205 = vld [vmem:[#allocation3 + $0x78] sm:$0xf]
      %v6206 = vld [vmem:[#allocation3 + $0x7c] sm:$0xf]
      %v6207 = vld [vmem:[#allocation3 + $0x84] sm:$0xf]
      %v6208 = vld [vmem:[#allocation3 + $0x88] sm:$0xf]
      %v6209 = vld [vmem:[#allocation3 + $0x90] sm:$0xf]
      %v6210 = vld [vmem:[#allocation3 + $0x94] sm:$0xf]
      %v6211 = vld [vmem:[#allocation3 + $0x9c] sm:$0xf]
      %v6212 = vld [vmem:[#allocation3 + $0xa0] sm:$0xf]
      %v6213 = vld [vmem:[#allocation3 + $0xa8] sm:$0xf]
      %v6214 = vld [vmem:[#allocation3 + $0xac] sm:$0xf]
      %v6215 = vld [vmem:[#allocation3 + $0xb4] sm:$0xf]
      %v6216 = vld [vmem:[#allocation3 + $0xb8] sm:$0xf]
      %v6217 = vld [vmem:[%s3] sm:$0x3]
      %v6218 = vld [vmem:[#allocation3 + $0x8] sm:$0x1]
      %v6219 = vld [vmem:[#allocation3 + $0x14] sm:$0x1]
      %v6220 = vld [vmem:[#allocation3 + $0x20] sm:$0x1]
      %v6221 = vld [vmem:[#allocation3 + $0x2c] sm:$0x1]
      %v6222 = vld [vmem:[#allocation3 + $0x38] sm:$0x1]
      %v6223 = vld [vmem:[#allocation3 + $0x44] sm:$0x1]
      %v6224 = vld [vmem:[#allocation3 + $0x50] sm:$0x1]
      %v6225 = vld [vmem:[#allocation3 + $0x5c] sm:$0x1]
      %v6226 = vld [vmem:[#allocation3 + $0x68] sm:$0x1]
      %v6227 = vld [vmem:[#allocation3 + $0x74] sm:$0x1]
      %v6228 = vld [vmem:[#allocation3 + $0x80] sm:$0x1]
      %v6229 = vld [vmem:[#allocation3 + $0x8c] sm:$0x1]
      %v6230 = vld [vmem:[#allocation3 + $0x98] sm:$0x1]
      %v6231 = vld [vmem:[#allocation3 + $0xa4] sm:$0x1]
      %v6232 = vld [vmem:[#allocation3 + $0xb0] sm:$0x1]
      %v6233 = vld [vmem:[#allocation3 + $0xbc] sm:$0x1]
      %v6235 = vshrl.u32 %v6185, 16
      %v6237 = vrot.slane %v6235, 4
      %v6238 = vshll.u32 %v6185, 16
      %v6240 = vrot.slane %v6238, 5
      %v6241 = vor.u32 %v6237, %v6240
      %v6242 = vrot.slane %v6241, 4
      %v6244 = vshll.u32 %v6186, 16
      %v6246 = vrot.slane %v6244, 5
      %v6247 = vsel %vm1078, %v6242, %v6246
      %v6248 = vshrl.u32 %v6186, 16
      %v6250 = vrot.slane %v6248, 4
      %v6251 = vor.u32 %v6250, %v6246
      %v6252 = vrot.slane %v6251, 4
      %v6254 = vshll.u32 %v6218, 16
      %v6256 = vrot.slane %v6254, 5
      %v6257 = vsel %vm1078, %v6252, %v6256
      %v6259 = vshrl.u32 %v6187, 16
      %v6261 = vrot.slane %v6259, 4
      %v6262 = vshll.u32 %v6187, 16
      %v6264 = vrot.slane %v6262, 5
      %v6265 = vor.u32 %v6261, %v6264
      %v6266 = vrot.slane %v6265, 4
      %v6268 = vshll.u32 %v6188, 16
      %v6270 = vrot.slane %v6268, 5
      %v6271 = vsel %vm1078, %v6266, %v6270
      %v6272 = vshrl.u32 %v6188, 16
      %v6274 = vrot.slane %v6272, 4
      %v6275 = vor.u32 %v6274, %v6270
      %v6276 = vrot.slane %v6275, 4
      %v6278 = vshll.u32 %v6219, 16
      %v6280 = vrot.slane %v6278, 5
      %v6281 = vsel %vm1078, %v6276, %v6280
      %v6283 = vshrl.u32 %v6189, 16
      %v6285 = vrot.slane %v6283, 4
      %v6286 = vshll.u32 %v6189, 16
      %v6288 = vrot.slane %v6286, 5
      %v6289 = vor.u32 %v6285, %v6288
      %v6290 = vrot.slane %v6289, 4
      %v6292 = vshll.u32 %v6190, 16
      %v6294 = vrot.slane %v6292, 5
      %v6295 = vsel %vm1078, %v6290, %v6294
      %v6296 = vshrl.u32 %v6190, 16
      %v6298 = vrot.slane %v6296, 4
      %v6299 = vor.u32 %v6298, %v6294
      %v6300 = vrot.slane %v6299, 4
      %v6302 = vshll.u32 %v6220, 16
      %v6304 = vrot.slane %v6302, 5
      %v6305 = vsel %vm1078, %v6300, %v6304
      %v6307 = vshrl.u32 %v6191, 16
      %v6309 = vrot.slane %v6307, 4
      %v6310 = vshll.u32 %v6191, 16
      %v6312 = vrot.slane %v6310, 5
      %v6313 = vor.u32 %v6309, %v6312
      %v6314 = vrot.slane %v6313, 4
      %v6316 = vshll.u32 %v6192, 16
      %v6318 = vrot.slane %v6316, 5
      %v6319 = vsel %vm1078, %v6314, %v6318
      %v6320 = vshrl.u32 %v6192, 16
      %v6322 = vrot.slane %v6320, 4
      %v6323 = vor.u32 %v6322, %v6318
      %v6324 = vrot.slane %v6323, 4
      %v6326 = vshll.u32 %v6221, 16
      %v6328 = vrot.slane %v6326, 5
      %v6329 = vsel %vm1078, %v6324, %v6328
      %v6331 = vshrl.u32 %v6193, 16
      %v6333 = vrot.slane %v6331, 4
      %v6334 = vshll.u32 %v6193, 16
      %v6336 = vrot.slane %v6334, 5
      %v6337 = vor.u32 %v6333, %v6336
      %v6338 = vrot.slane %v6337, 4
      %v6340 = vshll.u32 %v6194, 16
      %v6342 = vrot.slane %v6340, 5
      %v6343 = vsel %vm1078, %v6338, %v6342
      %v6344 = vshrl.u32 %v6194, 16
      %v6346 = vrot.slane %v6344, 4
      %v6347 = vor.u32 %v6346, %v6342
      %v6348 = vrot.slane %v6347, 4
      %v6350 = vshll.u32 %v6222, 16
      %v6352 = vrot.slane %v6350, 5
      %v6353 = vsel %vm1078, %v6348, %v6352
      %v6355 = vshrl.u32 %v6195, 16
      %v6357 = vrot.slane %v6355, 4
      %v6358 = vshll.u32 %v6195, 16
      %v6360 = vrot.slane %v6358, 5
      %v6361 = vor.u32 %v6357, %v6360
      %v6362 = vrot.slane %v6361, 4
      %v6364 = vshll.u32 %v6196, 16
      %v6366 = vrot.slane %v6364, 5
      %v6367 = vsel %vm1078, %v6362, %v6366
      %v6368 = vshrl.u32 %v6196, 16
      %v6370 = vrot.slane %v6368, 4
      %v6371 = vor.u32 %v6370, %v6366
      %v6372 = vrot.slane %v6371, 4
      %v6374 = vshll.u32 %v6223, 16
      %v6376 = vrot.slane %v6374, 5
      %v6377 = vsel %vm1078, %v6372, %v6376
      %v6379 = vshrl.u32 %v6197, 16
      %v6381 = vrot.slane %v6379, 4
      %v6382 = vshll.u32 %v6197, 16
      %v6384 = vrot.slane %v6382, 5
      %v6385 = vor.u32 %v6381, %v6384
      %v6386 = vrot.slane %v6385, 4
      %v6388 = vshll.u32 %v6198, 16
      %v6390 = vrot.slane %v6388, 5
      %v6391 = vsel %vm1078, %v6386, %v6390
      %v6392 = vshrl.u32 %v6198, 16
      %v6394 = vrot.slane %v6392, 4
      %v6395 = vor.u32 %v6394, %v6390
      %v6396 = vrot.slane %v6395, 4
      %v6398 = vshll.u32 %v6224, 16
      %v6400 = vrot.slane %v6398, 5
      %v6401 = vsel %vm1078, %v6396, %v6400
      %v6403 = vshrl.u32 %v6199, 16
      %v6405 = vrot.slane %v6403, 4
      %v6406 = vshll.u32 %v6199, 16
      %v6408 = vrot.slane %v6406, 5
      %v6409 = vor.u32 %v6405, %v6408
      %v6410 = vrot.slane %v6409, 4
      %v6412 = vshll.u32 %v6200, 16
      %v6414 = vrot.slane %v6412, 5
      %v6415 = vsel %vm1078, %v6410, %v6414
      %v6416 = vshrl.u32 %v6200, 16
      %v6418 = vrot.slane %v6416, 4
      %v6419 = vor.u32 %v6418, %v6414
      %v6420 = vrot.slane %v6419, 4
      %v6422 = vshll.u32 %v6225, 16
      %v6424 = vrot.slane %v6422, 5
      %v6425 = vsel %vm1078, %v6420, %v6424
      %v6427 = vshrl.u32 %v6201, 16
      %v6429 = vrot.slane %v6427, 4
      %v6430 = vshll.u32 %v6201, 16
      %v6432 = vrot.slane %v6430, 5
      %v6433 = vor.u32 %v6429, %v6432
      %v6434 = vrot.slane %v6433, 4
      %v6436 = vshll.u32 %v6202, 16
      %v6438 = vrot.slane %v6436, 5
      %v6439 = vsel %vm1078, %v6434, %v6438
      %v6440 = vshrl.u32 %v6202, 16
      %v6442 = vrot.slane %v6440, 4
      %v6443 = vor.u32 %v6442, %v6438
      %v6444 = vrot.slane %v6443, 4
      %v6446 = vshll.u32 %v6226, 16
      %v6448 = vrot.slane %v6446, 5
      %v6449 = vsel %vm1078, %v6444, %v6448
      %v6451 = vshrl.u32 %v6203, 16
      %v6453 = vrot.slane %v6451, 4
      %v6454 = vshll.u32 %v6203, 16
      %v6456 = vrot.slane %v6454, 5
      %v6457 = vor.u32 %v6453, %v6456
      %v6458 = vrot.slane %v6457, 4
      %v6460 = vshll.u32 %v6204, 16
      %v6462 = vrot.slane %v6460, 5
      %v6463 = vsel %vm1078, %v6458, %v6462
      %v6464 = vshrl.u32 %v6204, 16
      %v6466 = vrot.slane %v6464, 4
      %v6467 = vor.u32 %v6466, %v6462
      %v6468 = vrot.slane %v6467, 4
      %v6470 = vshll.u32 %v6227, 16
      %v6472 = vrot.slane %v6470, 5
      %v6473 = vsel %vm1078, %v6468, %v6472
      %v6475 = vshrl.u32 %v6205, 16
      %v6477 = vrot.slane %v6475, 4
      %v6478 = vshll.u32 %v6205, 16
      %v6480 = vrot.slane %v6478, 5
      %v6481 = vor.u32 %v6477, %v6480
      %v6482 = vrot.slane %v6481, 4
      %v6484 = vshll.u32 %v6206, 16
      %v6486 = vrot.slane %v6484, 5
      %v6487 = vsel %vm1078, %v6482, %v6486
      %v6488 = vshrl.u32 %v6206, 16
      %v6490 = vrot.slane %v6488, 4
      %v6491 = vor.u32 %v6490, %v6486
      %v6492 = vrot.slane %v6491, 4
      %v6494 = vshll.u32 %v6228, 16
      %v6496 = vrot.slane %v6494, 5
      %v6497 = vsel %vm1078, %v6492, %v6496
      %v6499 = vshrl.u32 %v6207, 16
      %v6501 = vrot.slane %v6499, 4
      %v6502 = vshll.u32 %v6207, 16
      %v6504 = vrot.slane %v6502, 5
      %v6505 = vor.u32 %v6501, %v6504
      %v6506 = vrot.slane %v6505, 4
      %v6508 = vshll.u32 %v6208, 16
      %v6510 = vrot.slane %v6508, 5
      %v6511 = vsel %vm1078, %v6506, %v6510
      %v6512 = vshrl.u32 %v6208, 16
      %v6514 = vrot.slane %v6512, 4
      %v6515 = vor.u32 %v6514, %v6510
      %v6516 = vrot.slane %v6515, 4
      %v6518 = vshll.u32 %v6229, 16
      %v6520 = vrot.slane %v6518, 5
      %v6521 = vsel %vm1078, %v6516, %v6520
      %v6523 = vshrl.u32 %v6209, 16
      %v6525 = vrot.slane %v6523, 4
      %v6526 = vshll.u32 %v6209, 16
      %v6528 = vrot.slane %v6526, 5
      %v6529 = vor.u32 %v6525, %v6528
      %v6530 = vrot.slane %v6529, 4
      %v6532 = vshll.u32 %v6210, 16
      %v6534 = vrot.slane %v6532, 5
      %v6535 = vsel %vm1078, %v6530, %v6534
      %v6536 = vshrl.u32 %v6210, 16
      %v6538 = vrot.slane %v6536, 4
      %v6539 = vor.u32 %v6538, %v6534
      %v6540 = vrot.slane %v6539, 4
      %v6542 = vshll.u32 %v6230, 16
      %v6544 = vrot.slane %v6542, 5
      %v6545 = vsel %vm1078, %v6540, %v6544
      %v6547 = vshrl.u32 %v6211, 16
      %v6549 = vrot.slane %v6547, 4
      %v6550 = vshll.u32 %v6211, 16
      %v6552 = vrot.slane %v6550, 5
      %v6553 = vor.u32 %v6549, %v6552
      %v6554 = vrot.slane %v6553, 4
      %v6556 = vshll.u32 %v6212, 16
      %v6558 = vrot.slane %v6556, 5
      %v6559 = vsel %vm1078, %v6554, %v6558
      %v6560 = vshrl.u32 %v6212, 16
      %v6562 = vrot.slane %v6560, 4
      %v6563 = vor.u32 %v6562, %v6558
      %v6564 = vrot.slane %v6563, 4
      %v6566 = vshll.u32 %v6231, 16
      %v6568 = vrot.slane %v6566, 5
      %v6569 = vsel %vm1078, %v6564, %v6568
      %v6571 = vshrl.u32 %v6213, 16
      %v6573 = vrot.slane %v6571, 4
      %v6574 = vshll.u32 %v6213, 16
      %v6576 = vrot.slane %v6574, 5
      %v6577 = vor.u32 %v6573, %v6576
      %v6578 = vrot.slane %v6577, 4
      %v6580 = vshll.u32 %v6214, 16
      %v6582 = vrot.slane %v6580, 5
      %v6583 = vsel %vm1078, %v6578, %v6582
      %v6584 = vshrl.u32 %v6214, 16
      %v6586 = vrot.slane %v6584, 4
      %v6587 = vor.u32 %v6586, %v6582
      %v6588 = vrot.slane %v6587, 4
      %v6590 = vshll.u32 %v6232, 16
      %v6592 = vrot.slane %v6590, 5
      %v6593 = vsel %vm1078, %v6588, %v6592
      %v6595 = vshrl.u32 %v6215, 16
      %v6597 = vrot.slane %v6595, 4
      %v6598 = vshll.u32 %v6215, 16
      %v6600 = vrot.slane %v6598, 5
      %v6601 = vor.u32 %v6597, %v6600
      %v6602 = vrot.slane %v6601, 4
      %v6604 = vshll.u32 %v6216, 16
      %v6606 = vrot.slane %v6604, 5
      %v6607 = vsel %vm1078, %v6602, %v6606
      %v6608 = vshrl.u32 %v6216, 16
      %v6610 = vrot.slane %v6608, 4
      %v6611 = vor.u32 %v6610, %v6606
      %v6612 = vrot.slane %v6611, 4
      %v6614 = vshll.u32 %v6233, 16
      %v6616 = vrot.slane %v6614, 5
      %v6617 = vsel %vm1078, %v6612, %v6616
      %s6618 = scalar_lea.vmem %s3, 2
      %v6619 = vld [vmem:[%s6618] sm:$0x3]
      %v6620 = vunpack.c.l.b16 %v6247
      %v6621 = vunpack.c.l.b16 %v6257
      %v6622 = vunpack.c.l.b16 %v6271
      %v6623 = vunpack.c.l.b16 %v6281
      %v6624 = vunpack.c.l.b16 %v6295
      %v6625 = vunpack.c.l.b16 %v6305
      %v6626 = vunpack.c.l.b16 %v6319
      %v6627 = vunpack.c.l.b16 %v6329
      %v6628 = vunpack.c.l.b16 %v6343
      %v6629 = vunpack.c.l.b16 %v6353
      %v6630 = vunpack.c.l.b16 %v6367
      %v6631 = vunpack.c.l.b16 %v6377
      %v6632 = vunpack.c.l.b16 %v6391
      %v6633 = vunpack.c.l.b16 %v6401
      %v6634 = vunpack.c.l.b16 %v6415
      %v6635 = vunpack.c.l.b16 %v6425
      %v6636 = vunpack.c.l.b16 %v6439
      %v6637 = vunpack.c.l.b16 %v6449
      %v6638 = vunpack.c.l.b16 %v6463
      %v6639 = vunpack.c.l.b16 %v6473
      %v6640 = vunpack.c.l.b16 %v6487
      %v6641 = vunpack.c.l.b16 %v6497
      %v6642 = vunpack.c.l.b16 %v6511
      %v6643 = vunpack.c.l.b16 %v6521
      %v6644 = vunpack.c.l.b16 %v6535
      %v6645 = vunpack.c.l.b16 %v6545
      %v6646 = vunpack.c.l.b16 %v6559
      %v6647 = vunpack.c.l.b16 %v6569
      %v6648 = vunpack.c.l.b16 %v6583
      %v6649 = vunpack.c.l.b16 %v6593
      %v6650 = vunpack.c.l.b16 %v6607
      %v6651 = vunpack.c.l.b16 %v6617
      %v6652 = vpack.c.b16 %v6621, %v6620
      %v6653 = vpack.c.b16 %v6623, %v6622
      %v6654 = vpack.c.b16 %v6625, %v6624
      %v6655 = vpack.c.b16 %v6627, %v6626
      %v6656 = vpack.c.b16 %v6629, %v6628
      %v6657 = vpack.c.b16 %v6631, %v6630
      %v6658 = vpack.c.b16 %v6633, %v6632
      %v6659 = vpack.c.b16 %v6635, %v6634
      %v6660 = vpack.c.b16 %v6637, %v6636
      %v6661 = vpack.c.b16 %v6639, %v6638
      %v6662 = vpack.c.b16 %v6641, %v6640
      %v6663 = vpack.c.b16 %v6643, %v6642
      %v6664 = vpack.c.b16 %v6645, %v6644
      %v6665 = vpack.c.b16 %v6647, %v6646
      %v6666 = vpack.c.b16 %v6649, %v6648
      %v6667 = vpack.c.b16 %v6651, %v6650
      %v6669 = vsel %vm1513, %v6652, 0
      %v6672 = vsel %vm1513, %v6653, 0
      %v6675 = vsel %vm1513, %v6654, 0
      %v6678 = vsel %vm1513, %v6655, 0
      %v6681 = vsel %vm1513, %v6656, 0
      %v6684 = vsel %vm1513, %v6657, 0
      %v6687 = vsel %vm1513, %v6658, 0
      %v6690 = vsel %vm1513, %v6659, 0
      %v6693 = vsel %vm1513, %v6660, 0
      %v6696 = vsel %vm1513, %v6661, 0
      %v6699 = vsel %vm1513, %v6662, 0
      %v6702 = vsel %vm1513, %v6663, 0
      %v6705 = vsel %vm1513, %v6664, 0
      %v6708 = vsel %vm1513, %v6665, 0
      %v6711 = vsel %vm1513, %v6666, 0
      %v6714 = vsel %vm1513, %v6667, 0
      %v6717 = vsel %vm1562, %v6619, 0
      %6719 = vmatprep.subr.bf16.mxu0 0
      %6720 = vmatpush1.bf16.msra.mxu0 0
      %6721 = vmatprep.subr.bf16.mxu0 0
      %6722 = vmatpush1.bf16.msra.mxu0 0
      %6723 = vmatprep.subr.bf16.mxu0 0
      %6724 = vmatpush1.bf16.msra.mxu0 0
      %6725 = vmatprep.subr.bf16.mxu0 0
      %6726 = vmatpush1.bf16.msra.mxu0 0
      %6727 = vmatprep.subr.bf16.mxu0 0
      %6728 = vmatpush1.bf16.msra.mxu0 0
      %6729 = vmatprep.subr.bf16.mxu0 0
      %6730 = vmatpush1.bf16.msra.mxu0 0
      %6731 = vmatprep.subr.bf16.mxu0 0
      %6732 = vmatpush1.bf16.msra.mxu0 0
      %6733 = vmatprep.subr.bf16.mxu0 0
      %6734 = vmatpush1.bf16.msra.mxu0 %v6717
      %6735 = vmatprep.subr.bf16.mxu0 0
      %6736 = vmatpush2.bf16.msra.mxu0 0
      %6737 = vmatprep.subr.bf16.mxu0 0
      %6738 = vmatpush2.bf16.msra.mxu0 0
      %6739 = vmatprep.subr.bf16.mxu0 0
      %6740 = vmatpush2.bf16.msra.mxu0 0
      %6741 = vmatprep.subr.bf16.mxu0 0
      %6742 = vmatpush2.bf16.msra.mxu0 0
      %6743 = vmatprep.subr.bf16.mxu0 0
      %6744 = vmatpush2.bf16.msra.mxu0 0
      %6745 = vmatprep.subr.bf16.mxu0 0
      %6746 = vmatpush2.bf16.msra.mxu0 0
      %6747 = vmatprep.subr.bf16.mxu0 0
      %6748 = vmatpush2.bf16.msra.mxu0 0
      %6749 = vmatprep.subr.bf16.mxu0 0
      %6750 = vmatpush2.bf16.msra.mxu0 0
      %6751 = vmatprep.mubr.bf16.mxu0 0
      %6752 = vmatmul.mubr.bf16.gmra.mxu0 %v6669
      %v6753 = vpop.f32.mrf.mxu0
      %v6754 = vadd.f32 0.0, %v6753
      %v6755 = vpop.f32.mrf.mxu0
      %v6756 = vpop.f32.mrf.mxu0
      %v6757 = vadd.f32 0.0, %v6756
      %v6758 = vpop.f32.mrf.mxu0
      %6759 = vmatprep.mubr.bf16.mxu0 0
      %6760 = vmatmul.mubr.bf16.gmra.mxu0 %v6672
      %v6761 = vpop.f32.mrf.mxu0
      %v6762 = vadd.f32 0.0, %v6761
      %v6763 = vpop.f32.mrf.mxu0
      %v6764 = vpop.f32.mrf.mxu0
      %v6765 = vadd.f32 0.0, %v6764
      %v6766 = vpop.f32.mrf.mxu0
      %6767 = vmatprep.mubr.bf16.mxu0 0
      %6768 = vmatmul.mubr.bf16.gmra.mxu0 %v6675
      %v6769 = vpop.f32.mrf.mxu0
      %v6770 = vadd.f32 0.0, %v6769
      %v6771 = vpop.f32.mrf.mxu0
      %v6772 = vpop.f32.mrf.mxu0
      %v6773 = vadd.f32 0.0, %v6772
      %v6774 = vpop.f32.mrf.mxu0
      %6775 = vmatprep.mubr.bf16.mxu0 0
      %6776 = vmatmul.mubr.bf16.gmra.mxu0 %v6678
      %v6777 = vpop.f32.mrf.mxu0
      %v6778 = vadd.f32 0.0, %v6777
      %v6779 = vpop.f32.mrf.mxu0
      %v6780 = vpop.f32.mrf.mxu0
      %v6781 = vadd.f32 0.0, %v6780
      %v6782 = vpop.f32.mrf.mxu0
      %6783 = vmatprep.mubr.bf16.mxu0 0
      %6784 = vmatmul.mubr.bf16.gmra.mxu0 %v6681
      %v6785 = vpop.f32.mrf.mxu0
      %v6786 = vadd.f32 0.0, %v6785
      %v6787 = vpop.f32.mrf.mxu0
      %v6788 = vpop.f32.mrf.mxu0
      %v6789 = vadd.f32 0.0, %v6788
      %v6790 = vpop.f32.mrf.mxu0
      %6791 = vmatprep.mubr.bf16.mxu0 0
      %6792 = vmatmul.mubr.bf16.gmra.mxu0 %v6684
      %v6793 = vpop.f32.mrf.mxu0
      %v6794 = vadd.f32 0.0, %v6793
      %v6795 = vpop.f32.mrf.mxu0
      %v6796 = vpop.f32.mrf.mxu0
      %v6797 = vadd.f32 0.0, %v6796
      %v6798 = vpop.f32.mrf.mxu0
      %6799 = vmatprep.mubr.bf16.mxu0 0
      %6800 = vmatmul.mubr.bf16.gmra.mxu0 %v6687
      %v6801 = vpop.f32.mrf.mxu0
      %v6802 = vadd.f32 0.0, %v6801
      %v6803 = vpop.f32.mrf.mxu0
      %v6804 = vpop.f32.mrf.mxu0
      %v6805 = vadd.f32 0.0, %v6804
      %v6806 = vpop.f32.mrf.mxu0
      %6807 = vmatprep.mubr.bf16.mxu0 0
      %6808 = vmatmul.mubr.bf16.gmra.mxu0 %v6690
      %v6809 = vpop.f32.mrf.mxu0
      %v6810 = vadd.f32 0.0, %v6809
      %v6811 = vpop.f32.mrf.mxu0
      %v6812 = vpop.f32.mrf.mxu0
      %v6813 = vadd.f32 0.0, %v6812
      %v6814 = vpop.f32.mrf.mxu0
      %6815 = vmatprep.mubr.bf16.mxu0 0
      %6816 = vmatmul.mubr.bf16.gmra.mxu0 %v6693
      %v6817 = vpop.f32.mrf.mxu0
      %v6818 = vadd.f32 0.0, %v6817
      %v6819 = vpop.f32.mrf.mxu0
      %v6820 = vpop.f32.mrf.mxu0
      %v6821 = vadd.f32 0.0, %v6820
      %v6822 = vpop.f32.mrf.mxu0
      %6823 = vmatprep.mubr.bf16.mxu0 0
      %6824 = vmatmul.mubr.bf16.gmra.mxu0 %v6696
      %v6825 = vpop.f32.mrf.mxu0
      %v6826 = vadd.f32 0.0, %v6825
      %v6827 = vpop.f32.mrf.mxu0
      %v6828 = vpop.f32.mrf.mxu0
      %v6829 = vadd.f32 0.0, %v6828
      %v6830 = vpop.f32.mrf.mxu0
      %6831 = vmatprep.mubr.bf16.mxu0 0
      %6832 = vmatmul.mubr.bf16.gmra.mxu0 %v6699
      %v6833 = vpop.f32.mrf.mxu0
      %v6834 = vadd.f32 0.0, %v6833
      %v6835 = vpop.f32.mrf.mxu0
      %v6836 = vpop.f32.mrf.mxu0
      %v6837 = vadd.f32 0.0, %v6836
      %v6838 = vpop.f32.mrf.mxu0
      %6839 = vmatprep.mubr.bf16.mxu0 0
      %6840 = vmatmul.mubr.bf16.gmra.mxu0 %v6702
      %v6841 = vpop.f32.mrf.mxu0
      %v6842 = vadd.f32 0.0, %v6841
      %v6843 = vpop.f32.mrf.mxu0
      %v6844 = vpop.f32.mrf.mxu0
      %v6845 = vadd.f32 0.0, %v6844
      %v6846 = vpop.f32.mrf.mxu0
      %6847 = vmatprep.mubr.bf16.mxu0 0
      %6848 = vmatmul.mubr.bf16.gmra.mxu0 %v6705
      %v6849 = vpop.f32.mrf.mxu0
      %v6850 = vadd.f32 0.0, %v6849
      %v6851 = vpop.f32.mrf.mxu0
      %v6852 = vpop.f32.mrf.mxu0
      %v6853 = vadd.f32 0.0, %v6852
      %v6854 = vpop.f32.mrf.mxu0
      %6855 = vmatprep.mubr.bf16.mxu0 0
      %6856 = vmatmul.mubr.bf16.gmra.mxu0 %v6708
      %v6857 = vpop.f32.mrf.mxu0
      %v6858 = vadd.f32 0.0, %v6857
      %v6859 = vpop.f32.mrf.mxu0
      %v6860 = vpop.f32.mrf.mxu0
      %v6861 = vadd.f32 0.0, %v6860
      %v6862 = vpop.f32.mrf.mxu0
      %6863 = vmatprep.mubr.bf16.mxu0 0
      %6864 = vmatmul.mubr.bf16.gmra.mxu0 %v6711
      %v6865 = vpop.f32.mrf.mxu0
      %v6866 = vadd.f32 0.0, %v6865
      %v6867 = vpop.f32.mrf.mxu0
      %v6868 = vpop.f32.mrf.mxu0
      %v6869 = vadd.f32 0.0, %v6868
      %v6870 = vpop.f32.mrf.mxu0
      %6871 = vmatprep.mubr.bf16.mxu0 0
      %6872 = vmatmul.mubr.bf16.gmra.mxu0 %v6714
      %v6873 = vpop.f32.mrf.mxu0
      %v6874 = vadd.f32 0.0, %v6873
      %v6875 = vpop.f32.mrf.mxu0
      %v6876 = vpop.f32.mrf.mxu0
      %v6877 = vadd.f32 0.0, %v6876
      %v6878 = vpop.f32.mrf.mxu0
      %6879 = vdwg.mxu0
      %v6912 = vunpack.c.l.b16 %v6185
      %v6913 = vunpack.c.l.b16 %v6186
      %v6914 = vunpack.c.l.b16 %v6187
      %v6915 = vunpack.c.l.b16 %v6188
      %v6916 = vunpack.c.l.b16 %v6189
      %v6917 = vunpack.c.l.b16 %v6190
      %v6918 = vunpack.c.l.b16 %v6191
      %v6919 = vunpack.c.l.b16 %v6192
      %v6920 = vunpack.c.l.b16 %v6193
      %v6921 = vunpack.c.l.b16 %v6194
      %v6922 = vunpack.c.l.b16 %v6195
      %v6923 = vunpack.c.l.b16 %v6196
      %v6924 = vunpack.c.l.b16 %v6197
      %v6925 = vunpack.c.l.b16 %v6198
      %v6926 = vunpack.c.l.b16 %v6199
      %v6927 = vunpack.c.l.b16 %v6200
      %v6928 = vunpack.c.l.b16 %v6201
      %v6929 = vunpack.c.l.b16 %v6202
      %v6930 = vunpack.c.l.b16 %v6203
      %v6931 = vunpack.c.l.b16 %v6204
      %v6932 = vunpack.c.l.b16 %v6205
      %v6933 = vunpack.c.l.b16 %v6206
      %v6934 = vunpack.c.l.b16 %v6207
      %v6935 = vunpack.c.l.b16 %v6208
      %v6936 = vunpack.c.l.b16 %v6209
      %v6937 = vunpack.c.l.b16 %v6210
      %v6938 = vunpack.c.l.b16 %v6211
      %v6939 = vunpack.c.l.b16 %v6212
      %v6940 = vunpack.c.l.b16 %v6213
      %v6941 = vunpack.c.l.b16 %v6214
      %v6942 = vunpack.c.l.b16 %v6215
      %v6943 = vunpack.c.l.b16 %v6216
      %v6944 = vpack.c.b16 %v6913, %v6912
      %v6945 = vpack.c.b16 %v6915, %v6914
      %v6946 = vpack.c.b16 %v6917, %v6916
      %v6947 = vpack.c.b16 %v6919, %v6918
      %v6948 = vpack.c.b16 %v6921, %v6920
      %v6949 = vpack.c.b16 %v6923, %v6922
      %v6950 = vpack.c.b16 %v6925, %v6924
      %v6951 = vpack.c.b16 %v6927, %v6926
      %v6952 = vpack.c.b16 %v6929, %v6928
      %v6953 = vpack.c.b16 %v6931, %v6930
      %v6954 = vpack.c.b16 %v6933, %v6932
      %v6955 = vpack.c.b16 %v6935, %v6934
      %v6956 = vpack.c.b16 %v6937, %v6936
      %v6957 = vpack.c.b16 %v6939, %v6938
      %v6958 = vpack.c.b16 %v6941, %v6940
      %v6959 = vpack.c.b16 %v6943, %v6942
      %v6961 = vsel %vm1513, %v6944, 0
      %v6964 = vsel %vm1513, %v6945, 0
      %v6967 = vsel %vm1513, %v6946, 0
      %v6970 = vsel %vm1513, %v6947, 0
      %v6973 = vsel %vm1513, %v6948, 0
      %v6976 = vsel %vm1513, %v6949, 0
      %v6979 = vsel %vm1513, %v6950, 0
      %v6982 = vsel %vm1513, %v6951, 0
      %v6985 = vsel %vm1513, %v6952, 0
      %v6988 = vsel %vm1513, %v6953, 0
      %v6991 = vsel %vm1513, %v6954, 0
      %v6994 = vsel %vm1513, %v6955, 0
      %v6997 = vsel %vm1513, %v6956, 0
      %v7000 = vsel %vm1513, %v6957, 0
      %v7003 = vsel %vm1513, %v6958, 0
      %v7006 = vsel %vm1513, %v6959, 0
      %v7009 = vsel %vm1562, %v6217, 0
      %7011 = vmatprep.subr.bf16.mxu0 0
      %7012 = vmatpush1.bf16.msra.mxu0 0
      %7013 = vmatprep.subr.bf16.mxu0 0
      %7014 = vmatpush1.bf16.msra.mxu0 0
      %7015 = vmatprep.subr.bf16.mxu0 0
      %7016 = vmatpush1.bf16.msra.mxu0 0
      %7017 = vmatprep.subr.bf16.mxu0 0
      %7018 = vmatpush1.bf16.msra.mxu0 0
      %7019 = vmatprep.subr.bf16.mxu0 0
      %7020 = vmatpush1.bf16.msra.mxu0 0
      %7021 = vmatprep.subr.bf16.mxu0 0
      %7022 = vmatpush1.bf16.msra.mxu0 0
      %7023 = vmatprep.subr.bf16.mxu0 0
      %7024 = vmatpush1.bf16.msra.mxu0 0
      %7025 = vmatprep.subr.bf16.mxu0 0
      %7026 = vmatpush1.bf16.msra.mxu0 %v7009
      %7027 = vmatprep.subr.bf16.mxu0 0
      %7028 = vmatpush2.bf16.msra.mxu0 0
      %7029 = vmatprep.subr.bf16.mxu0 0
      %7030 = vmatpush2.bf16.msra.mxu0 0
      %7031 = vmatprep.subr.bf16.mxu0 0
      %7032 = vmatpush2.bf16.msra.mxu0 0
      %7033 = vmatprep.subr.bf16.mxu0 0
      %7034 = vmatpush2.bf16.msra.mxu0 0
      %7035 = vmatprep.subr.bf16.mxu0 0
      %7036 = vmatpush2.bf16.msra.mxu0 0
      %7037 = vmatprep.subr.bf16.mxu0 0
      %7038 = vmatpush2.bf16.msra.mxu0 0
      %7039 = vmatprep.subr.bf16.mxu0 0
      %7040 = vmatpush2.bf16.msra.mxu0 0
      %7041 = vmatprep.subr.bf16.mxu0 0
      %7042 = vmatpush2.bf16.msra.mxu0 0
      %7043 = vmatprep.mubr.bf16.mxu0 0
      %7044 = vmatmul.mubr.bf16.gmra.mxu0 %v6961
      %v7045 = vpop.f32.mrf.mxu0
      %v7046 = vadd.f32 %v6754, %v7045
      %v7047 = vpop.f32.mrf.mxu0
      %v7048 = vpop.f32.mrf.mxu0
      %v7049 = vadd.f32 %v6757, %v7048
      %v7050 = vpop.f32.mrf.mxu0
      %7051 = vmatprep.mubr.bf16.mxu0 0
      %7052 = vmatmul.mubr.bf16.gmra.mxu0 %v6964
      %v7053 = vpop.f32.mrf.mxu0
      %v7054 = vadd.f32 %v6762, %v7053
      %v7055 = vpop.f32.mrf.mxu0
      %v7056 = vpop.f32.mrf.mxu0
      %v7057 = vadd.f32 %v6765, %v7056
      %v7058 = vpop.f32.mrf.mxu0
      %7059 = vmatprep.mubr.bf16.mxu0 0
      %7060 = vmatmul.mubr.bf16.gmra.mxu0 %v6967
      %v7061 = vpop.f32.mrf.mxu0
      %v7062 = vadd.f32 %v6770, %v7061
      %v7063 = vpop.f32.mrf.mxu0
      %v7064 = vpop.f32.mrf.mxu0
      %v7065 = vadd.f32 %v6773, %v7064
      %v7066 = vpop.f32.mrf.mxu0
      %7067 = vmatprep.mubr.bf16.mxu0 0
      %7068 = vmatmul.mubr.bf16.gmra.mxu0 %v6970
      %v7069 = vpop.f32.mrf.mxu0
      %v7070 = vadd.f32 %v6778, %v7069
      %v7071 = vpop.f32.mrf.mxu0
      %v7072 = vpop.f32.mrf.mxu0
      %v7073 = vadd.f32 %v6781, %v7072
      %v7074 = vpop.f32.mrf.mxu0
      %7075 = vmatprep.mubr.bf16.mxu0 0
      %7076 = vmatmul.mubr.bf16.gmra.mxu0 %v6973
      %v7077 = vpop.f32.mrf.mxu0
      %v7078 = vadd.f32 %v6786, %v7077
      %v7079 = vpop.f32.mrf.mxu0
      %v7080 = vpop.f32.mrf.mxu0
      %v7081 = vadd.f32 %v6789, %v7080
      %v7082 = vpop.f32.mrf.mxu0
      %7083 = vmatprep.mubr.bf16.mxu0 0
      %7084 = vmatmul.mubr.bf16.gmra.mxu0 %v6976
      %v7085 = vpop.f32.mrf.mxu0
      %v7086 = vadd.f32 %v6794, %v7085
      %v7087 = vpop.f32.mrf.mxu0
      %v7088 = vpop.f32.mrf.mxu0
      %v7089 = vadd.f32 %v6797, %v7088
      %v7090 = vpop.f32.mrf.mxu0
      %7091 = vmatprep.mubr.bf16.mxu0 0
      %7092 = vmatmul.mubr.bf16.gmra.mxu0 %v6979
      %v7093 = vpop.f32.mrf.mxu0
      %v7094 = vadd.f32 %v6802, %v7093
      %v7095 = vpop.f32.mrf.mxu0
      %v7096 = vpop.f32.mrf.mxu0
      %v7097 = vadd.f32 %v6805, %v7096
      %v7098 = vpop.f32.mrf.mxu0
      %7099 = vmatprep.mubr.bf16.mxu0 0
      %7100 = vmatmul.mubr.bf16.gmra.mxu0 %v6982
      %v7101 = vpop.f32.mrf.mxu0
      %v7102 = vadd.f32 %v6810, %v7101
      %v7103 = vpop.f32.mrf.mxu0
      %v7104 = vpop.f32.mrf.mxu0
      %v7105 = vadd.f32 %v6813, %v7104
      %v7106 = vpop.f32.mrf.mxu0
      %7107 = vmatprep.mubr.bf16.mxu0 0
      %7108 = vmatmul.mubr.bf16.gmra.mxu0 %v6985
      %v7109 = vpop.f32.mrf.mxu0
      %v7110 = vadd.f32 %v6818, %v7109
      %v7111 = vpop.f32.mrf.mxu0
      %v7112 = vpop.f32.mrf.mxu0
      %v7113 = vadd.f32 %v6821, %v7112
      %v7114 = vpop.f32.mrf.mxu0
      %7115 = vmatprep.mubr.bf16.mxu0 0
      %7116 = vmatmul.mubr.bf16.gmra.mxu0 %v6988
      %v7117 = vpop.f32.mrf.mxu0
      %v7118 = vadd.f32 %v6826, %v7117
      %v7119 = vpop.f32.mrf.mxu0
      %v7120 = vpop.f32.mrf.mxu0
      %v7121 = vadd.f32 %v6829, %v7120
      %v7122 = vpop.f32.mrf.mxu0
      %7123 = vmatprep.mubr.bf16.mxu0 0
      %7124 = vmatmul.mubr.bf16.gmra.mxu0 %v6991
      %v7125 = vpop.f32.mrf.mxu0
      %v7126 = vadd.f32 %v6834, %v7125
      %v7127 = vpop.f32.mrf.mxu0
      %v7128 = vpop.f32.mrf.mxu0
      %v7129 = vadd.f32 %v6837, %v7128
      %v7130 = vpop.f32.mrf.mxu0
      %7131 = vmatprep.mubr.bf16.mxu0 0
      %7132 = vmatmul.mubr.bf16.gmra.mxu0 %v6994
      %v7133 = vpop.f32.mrf.mxu0
      %v7134 = vadd.f32 %v6842, %v7133
      %v7135 = vpop.f32.mrf.mxu0
      %v7136 = vpop.f32.mrf.mxu0
      %v7137 = vadd.f32 %v6845, %v7136
      %v7138 = vpop.f32.mrf.mxu0
      %7139 = vmatprep.mubr.bf16.mxu0 0
      %7140 = vmatmul.mubr.bf16.gmra.mxu0 %v6997
      %v7141 = vpop.f32.mrf.mxu0
      %v7142 = vadd.f32 %v6850, %v7141
      %v7143 = vpop.f32.mrf.mxu0
      %v7144 = vpop.f32.mrf.mxu0
      %v7145 = vadd.f32 %v6853, %v7144
      %v7146 = vpop.f32.mrf.mxu0
      %7147 = vmatprep.mubr.bf16.mxu0 0
      %7148 = vmatmul.mubr.bf16.gmra.mxu0 %v7000
      %v7149 = vpop.f32.mrf.mxu0
      %v7150 = vadd.f32 %v6858, %v7149
      %v7151 = vpop.f32.mrf.mxu0
      %v7152 = vpop.f32.mrf.mxu0
      %v7153 = vadd.f32 %v6861, %v7152
      %v7154 = vpop.f32.mrf.mxu0
      %7155 = vmatprep.mubr.bf16.mxu0 0
      %7156 = vmatmul.mubr.bf16.gmra.mxu0 %v7003
      %v7157 = vpop.f32.mrf.mxu0
      %v7158 = vadd.f32 %v6866, %v7157
      %v7159 = vpop.f32.mrf.mxu0
      %v7160 = vpop.f32.mrf.mxu0
      %v7161 = vadd.f32 %v6869, %v7160
      %v7162 = vpop.f32.mrf.mxu0
      %7163 = vmatprep.mubr.bf16.mxu0 0
      %7164 = vmatmul.mubr.bf16.gmra.mxu0 %v7006
      %v7165 = vpop.f32.mrf.mxu0
      %v7166 = vadd.f32 %v6874, %v7165
      %v7167 = vpop.f32.mrf.mxu0
      %v7168 = vpop.f32.mrf.mxu0
      %v7169 = vadd.f32 %v6877, %v7168
      %v7170 = vpop.f32.mrf.mxu0
      %7171 = vdwg.mxu0
      %v7172 = vld [vmem:[#allocation3] sm:$0xe]
      %v7173 = vld [vmem:[#allocation3 + $0xc] sm:$0xe]
      %v7174 = vld [vmem:[#allocation3 + $0x18] sm:$0xe]
      %v7175 = vld [vmem:[#allocation3 + $0x24] sm:$0xe]
      %v7176 = vld [vmem:[#allocation3 + $0x30] sm:$0xe]
      %v7177 = vld [vmem:[#allocation3 + $0x3c] sm:$0xe]
      %v7178 = vld [vmem:[#allocation3 + $0x48] sm:$0xe]
      %v7179 = vld [vmem:[#allocation3 + $0x54] sm:$0xe]
      %v7180 = vld [vmem:[#allocation3 + $0x60] sm:$0xe]
      %v7181 = vld [vmem:[#allocation3 + $0x6c] sm:$0xe]
      %v7182 = vld [vmem:[#allocation3 + $0x78] sm:$0xe]
      %v7183 = vld [vmem:[#allocation3 + $0x84] sm:$0xe]
      %v7184 = vld [vmem:[#allocation3 + $0x90] sm:$0xe]
      %v7185 = vld [vmem:[#allocation3 + $0x9c] sm:$0xe]
      %v7186 = vld [vmem:[#allocation3 + $0xa8] sm:$0xe]
      %v7187 = vld [vmem:[#allocation3 + $0xb4] sm:$0xe]
      %v7220 = vrot.slane %v7172, 5
      %v7221 = vrot.slane %v7220, 4
      %v7222 = vrot.slane %v6186, 5
      %v7223 = vsel %vm2069, %v7221, %v7222
      %v7224 = vrot.slane %v7222, 4
      %v7225 = vrot.slane %v6218, 5
      %v7226 = vsel %vm2069, %v7224, %v7225
      %v7227 = vrot.slane %v7173, 5
      %v7228 = vrot.slane %v7227, 4
      %v7229 = vrot.slane %v6188, 5
      %v7230 = vsel %vm2069, %v7228, %v7229
      %v7231 = vrot.slane %v7229, 4
      %v7232 = vrot.slane %v6219, 5
      %v7233 = vsel %vm2069, %v7231, %v7232
      %v7234 = vrot.slane %v7174, 5
      %v7235 = vrot.slane %v7234, 4
      %v7236 = vrot.slane %v6190, 5
      %v7237 = vsel %vm2069, %v7235, %v7236
      %v7238 = vrot.slane %v7236, 4
      %v7239 = vrot.slane %v6220, 5
      %v7240 = vsel %vm2069, %v7238, %v7239
      %v7241 = vrot.slane %v7175, 5
      %v7242 = vrot.slane %v7241, 4
      %v7243 = vrot.slane %v6192, 5
      %v7244 = vsel %vm2069, %v7242, %v7243
      %v7245 = vrot.slane %v7243, 4
      %v7246 = vrot.slane %v6221, 5
      %v7247 = vsel %vm2069, %v7245, %v7246
      %v7248 = vrot.slane %v7176, 5
      %v7249 = vrot.slane %v7248, 4
      %v7250 = vrot.slane %v6194, 5
      %v7251 = vsel %vm2069, %v7249, %v7250
      %v7252 = vrot.slane %v7250, 4
      %v7253 = vrot.slane %v6222, 5
      %v7254 = vsel %vm2069, %v7252, %v7253
      %v7255 = vrot.slane %v7177, 5
      %v7256 = vrot.slane %v7255, 4
      %v7257 = vrot.slane %v6196, 5
      %v7258 = vsel %vm2069, %v7256, %v7257
      %v7259 = vrot.slane %v7257, 4
      %v7260 = vrot.slane %v6223, 5
      %v7261 = vsel %vm2069, %v7259, %v7260
      %v7262 = vrot.slane %v7178, 5
      %v7263 = vrot.slane %v7262, 4
      %v7264 = vrot.slane %v6198, 5
      %v7265 = vsel %vm2069, %v7263, %v7264
      %v7266 = vrot.slane %v7264, 4
      %v7267 = vrot.slane %v6224, 5
      %v7268 = vsel %vm2069, %v7266, %v7267
      %v7269 = vrot.slane %v7179, 5
      %v7270 = vrot.slane %v7269, 4
      %v7271 = vrot.slane %v6200, 5
      %v7272 = vsel %vm2069, %v7270, %v7271
      %v7273 = vrot.slane %v7271, 4
      %v7274 = vrot.slane %v6225, 5
      %v7275 = vsel %vm2069, %v7273, %v7274
      %v7276 = vrot.slane %v7180, 5
      %v7277 = vrot.slane %v7276, 4
      %v7278 = vrot.slane %v6202, 5
      %v7279 = vsel %vm2069, %v7277, %v7278
      %v7280 = vrot.slane %v7278, 4
      %v7281 = vrot.slane %v6226, 5
      %v7282 = vsel %vm2069, %v7280, %v7281
      %v7283 = vrot.slane %v7181, 5
      %v7284 = vrot.slane %v7283, 4
      %v7285 = vrot.slane %v6204, 5
      %v7286 = vsel %vm2069, %v7284, %v7285
      %v7287 = vrot.slane %v7285, 4
      %v7288 = vrot.slane %v6227, 5
      %v7289 = vsel %vm2069, %v7287, %v7288
      %v7290 = vrot.slane %v7182, 5
      %v7291 = vrot.slane %v7290, 4
      %v7292 = vrot.slane %v6206, 5
      %v7293 = vsel %vm2069, %v7291, %v7292
      %v7294 = vrot.slane %v7292, 4
      %v7295 = vrot.slane %v6228, 5
      %v7296 = vsel %vm2069, %v7294, %v7295
      %v7297 = vrot.slane %v7183, 5
      %v7298 = vrot.slane %v7297, 4
      %v7299 = vrot.slane %v6208, 5
      %v7300 = vsel %vm2069, %v7298, %v7299
      %v7301 = vrot.slane %v7299, 4
      %v7302 = vrot.slane %v6229, 5
      %v7303 = vsel %vm2069, %v7301, %v7302
      %v7304 = vrot.slane %v7184, 5
      %v7305 = vrot.slane %v7304, 4
      %v7306 = vrot.slane %v6210, 5
      %v7307 = vsel %vm2069, %v7305, %v7306
      %v7308 = vrot.slane %v7306, 4
      %v7309 = vrot.slane %v6230, 5
      %v7310 = vsel %vm2069, %v7308, %v7309
      %v7311 = vrot.slane %v7185, 5
      %v7312 = vrot.slane %v7311, 4
      %v7313 = vrot.slane %v6212, 5
      %v7314 = vsel %vm2069, %v7312, %v7313
      %v7315 = vrot.slane %v7313, 4
      %v7316 = vrot.slane %v6231, 5
      %v7317 = vsel %vm2069, %v7315, %v7316
      %v7318 = vrot.slane %v7186, 5
      %v7319 = vrot.slane %v7318, 4
      %v7320 = vrot.slane %v6214, 5
      %v7321 = vsel %vm2069, %v7319, %v7320
      %v7322 = vrot.slane %v7320, 4
      %v7323 = vrot.slane %v6232, 5
      %v7324 = vsel %vm2069, %v7322, %v7323
      %v7325 = vrot.slane %v7187, 5
      %v7326 = vrot.slane %v7325, 4
      %v7327 = vrot.slane %v6216, 5
      %v7328 = vsel %vm2069, %v7326, %v7327
      %v7329 = vrot.slane %v7327, 4
      %v7330 = vrot.slane %v6233, 5
      %v7331 = vsel %vm2069, %v7329, %v7330
      %s7332 = scalar_lea.vmem %s3, 4
      %v7333 = vld [vmem:[%s7332] sm:$0x3]
      %v7334 = vunpack.c.l.b16 %v7223
      %v7335 = vunpack.c.l.b16 %v7226
      %v7336 = vunpack.c.l.b16 %v7230
      %v7337 = vunpack.c.l.b16 %v7233
      %v7338 = vunpack.c.l.b16 %v7237
      %v7339 = vunpack.c.l.b16 %v7240
      %v7340 = vunpack.c.l.b16 %v7244
      %v7341 = vunpack.c.l.b16 %v7247
      %v7342 = vunpack.c.l.b16 %v7251
      %v7343 = vunpack.c.l.b16 %v7254
      %v7344 = vunpack.c.l.b16 %v7258
      %v7345 = vunpack.c.l.b16 %v7261
      %v7346 = vunpack.c.l.b16 %v7265
      %v7347 = vunpack.c.l.b16 %v7268
      %v7348 = vunpack.c.l.b16 %v7272
      %v7349 = vunpack.c.l.b16 %v7275
      %v7350 = vunpack.c.l.b16 %v7279
      %v7351 = vunpack.c.l.b16 %v7282
      %v7352 = vunpack.c.l.b16 %v7286
      %v7353 = vunpack.c.l.b16 %v7289
      %v7354 = vunpack.c.l.b16 %v7293
      %v7355 = vunpack.c.l.b16 %v7296
      %v7356 = vunpack.c.l.b16 %v7300
      %v7357 = vunpack.c.l.b16 %v7303
      %v7358 = vunpack.c.l.b16 %v7307
      %v7359 = vunpack.c.l.b16 %v7310
      %v7360 = vunpack.c.l.b16 %v7314
      %v7361 = vunpack.c.l.b16 %v7317
      %v7362 = vunpack.c.l.b16 %v7321
      %v7363 = vunpack.c.l.b16 %v7324
      %v7364 = vunpack.c.l.b16 %v7328
      %v7365 = vunpack.c.l.b16 %v7331
      %v7366 = vpack.c.b16 %v7335, %v7334
      %v7367 = vpack.c.b16 %v7337, %v7336
      %v7368 = vpack.c.b16 %v7339, %v7338
      %v7369 = vpack.c.b16 %v7341, %v7340
      %v7370 = vpack.c.b16 %v7343, %v7342
      %v7371 = vpack.c.b16 %v7345, %v7344
      %v7372 = vpack.c.b16 %v7347, %v7346
      %v7373 = vpack.c.b16 %v7349, %v7348
      %v7374 = vpack.c.b16 %v7351, %v7350
      %v7375 = vpack.c.b16 %v7353, %v7352
      %v7376 = vpack.c.b16 %v7355, %v7354
      %v7377 = vpack.c.b16 %v7357, %v7356
      %v7378 = vpack.c.b16 %v7359, %v7358
      %v7379 = vpack.c.b16 %v7361, %v7360
      %v7380 = vpack.c.b16 %v7363, %v7362
      %v7381 = vpack.c.b16 %v7365, %v7364
      %v7383 = vsel %vm1513, %v7366, 0
      %v7386 = vsel %vm1513, %v7367, 0
      %v7389 = vsel %vm1513, %v7368, 0
      %v7392 = vsel %vm1513, %v7369, 0
      %v7395 = vsel %vm1513, %v7370, 0
      %v7398 = vsel %vm1513, %v7371, 0
      %v7401 = vsel %vm1513, %v7372, 0
      %v7404 = vsel %vm1513, %v7373, 0
      %v7407 = vsel %vm1513, %v7374, 0
      %v7410 = vsel %vm1513, %v7375, 0
      %v7413 = vsel %vm1513, %v7376, 0
      %v7416 = vsel %vm1513, %v7377, 0
      %v7419 = vsel %vm1513, %v7378, 0
      %v7422 = vsel %vm1513, %v7379, 0
      %v7425 = vsel %vm1513, %v7380, 0
      %v7428 = vsel %vm1513, %v7381, 0
      %v7431 = vsel %vm1562, %v7333, 0
      %7433 = vmatprep.subr.bf16.mxu0 0
      %7434 = vmatpush1.bf16.msra.mxu0 0
      %7435 = vmatprep.subr.bf16.mxu0 0
      %7436 = vmatpush1.bf16.msra.mxu0 0
      %7437 = vmatprep.subr.bf16.mxu0 0
      %7438 = vmatpush1.bf16.msra.mxu0 0
      %7439 = vmatprep.subr.bf16.mxu0 0
      %7440 = vmatpush1.bf16.msra.mxu0 0
      %7441 = vmatprep.subr.bf16.mxu0 0
      %7442 = vmatpush1.bf16.msra.mxu0 0
      %7443 = vmatprep.subr.bf16.mxu0 0
      %7444 = vmatpush1.bf16.msra.mxu0 0
      %7445 = vmatprep.subr.bf16.mxu0 0
      %7446 = vmatpush1.bf16.msra.mxu0 0
      %7447 = vmatprep.subr.bf16.mxu0 0
      %7448 = vmatpush1.bf16.msra.mxu0 %v7431
      %7449 = vmatprep.subr.bf16.mxu0 0
      %7450 = vmatpush2.bf16.msra.mxu0 0
      %7451 = vmatprep.subr.bf16.mxu0 0
      %7452 = vmatpush2.bf16.msra.mxu0 0
      %7453 = vmatprep.subr.bf16.mxu0 0
      %7454 = vmatpush2.bf16.msra.mxu0 0
      %7455 = vmatprep.subr.bf16.mxu0 0
      %7456 = vmatpush2.bf16.msra.mxu0 0
      %7457 = vmatprep.subr.bf16.mxu0 0
      %7458 = vmatpush2.bf16.msra.mxu0 0
      %7459 = vmatprep.subr.bf16.mxu0 0
      %7460 = vmatpush2.bf16.msra.mxu0 0
      %7461 = vmatprep.subr.bf16.mxu0 0
      %7462 = vmatpush2.bf16.msra.mxu0 0
      %7463 = vmatprep.subr.bf16.mxu0 0
      %7464 = vmatpush2.bf16.msra.mxu0 0
      %7465 = vmatprep.mubr.bf16.mxu0 0
      %7466 = vmatmul.mubr.bf16.gmra.mxu0 %v7383
      %v7467 = vpop.f32.mrf.mxu0
      %v7468 = vadd.f32 0.0, %v7467
      %v7469 = vpop.f32.mrf.mxu0
      %v7470 = vpop.f32.mrf.mxu0
      %v7471 = vadd.f32 0.0, %v7470
      %v7472 = vpop.f32.mrf.mxu0
      %7473 = vmatprep.mubr.bf16.mxu0 0
      %7474 = vmatmul.mubr.bf16.gmra.mxu0 %v7386
      %v7475 = vpop.f32.mrf.mxu0
      %v7476 = vadd.f32 0.0, %v7475
      %v7477 = vpop.f32.mrf.mxu0
      %v7478 = vpop.f32.mrf.mxu0
      %v7479 = vadd.f32 0.0, %v7478
      %v7480 = vpop.f32.mrf.mxu0
      %7481 = vmatprep.mubr.bf16.mxu0 0
      %7482 = vmatmul.mubr.bf16.gmra.mxu0 %v7389
      %v7483 = vpop.f32.mrf.mxu0
      %v7484 = vadd.f32 0.0, %v7483
      %v7485 = vpop.f32.mrf.mxu0
      %v7486 = vpop.f32.mrf.mxu0
      %v7487 = vadd.f32 0.0, %v7486
      %v7488 = vpop.f32.mrf.mxu0
      %7489 = vmatprep.mubr.bf16.mxu0 0
      %7490 = vmatmul.mubr.bf16.gmra.mxu0 %v7392
      %v7491 = vpop.f32.mrf.mxu0
      %v7492 = vadd.f32 0.0, %v7491
      %v7493 = vpop.f32.mrf.mxu0
      %v7494 = vpop.f32.mrf.mxu0
      %v7495 = vadd.f32 0.0, %v7494
      %v7496 = vpop.f32.mrf.mxu0
      %7497 = vmatprep.mubr.bf16.mxu0 0
      %7498 = vmatmul.mubr.bf16.gmra.mxu0 %v7395
      %v7499 = vpop.f32.mrf.mxu0
      %v7500 = vadd.f32 0.0, %v7499
      %v7501 = vpop.f32.mrf.mxu0
      %v7502 = vpop.f32.mrf.mxu0
      %v7503 = vadd.f32 0.0, %v7502
      %v7504 = vpop.f32.mrf.mxu0
      %7505 = vmatprep.mubr.bf16.mxu0 0
      %7506 = vmatmul.mubr.bf16.gmra.mxu0 %v7398
      %v7507 = vpop.f32.mrf.mxu0
      %v7508 = vadd.f32 0.0, %v7507
      %v7509 = vpop.f32.mrf.mxu0
      %v7510 = vpop.f32.mrf.mxu0
      %v7511 = vadd.f32 0.0, %v7510
      %v7512 = vpop.f32.mrf.mxu0
      %7513 = vmatprep.mubr.bf16.mxu0 0
      %7514 = vmatmul.mubr.bf16.gmra.mxu0 %v7401
      %v7515 = vpop.f32.mrf.mxu0
      %v7516 = vadd.f32 0.0, %v7515
      %v7517 = vpop.f32.mrf.mxu0
      %v7518 = vpop.f32.mrf.mxu0
      %v7519 = vadd.f32 0.0, %v7518
      %v7520 = vpop.f32.mrf.mxu0
      %7521 = vmatprep.mubr.bf16.mxu0 0
      %7522 = vmatmul.mubr.bf16.gmra.mxu0 %v7404
      %v7523 = vpop.f32.mrf.mxu0
      %v7524 = vadd.f32 0.0, %v7523
      %v7525 = vpop.f32.mrf.mxu0
      %v7526 = vpop.f32.mrf.mxu0
      %v7527 = vadd.f32 0.0, %v7526
      %v7528 = vpop.f32.mrf.mxu0
      %7529 = vmatprep.mubr.bf16.mxu0 0
      %7530 = vmatmul.mubr.bf16.gmra.mxu0 %v7407
      %v7531 = vpop.f32.mrf.mxu0
      %v7532 = vadd.f32 0.0, %v7531
      %v7533 = vpop.f32.mrf.mxu0
      %v7534 = vpop.f32.mrf.mxu0
      %v7535 = vadd.f32 0.0, %v7534
      %v7536 = vpop.f32.mrf.mxu0
      %7537 = vmatprep.mubr.bf16.mxu0 0
      %7538 = vmatmul.mubr.bf16.gmra.mxu0 %v7410
      %v7539 = vpop.f32.mrf.mxu0
      %v7540 = vadd.f32 0.0, %v7539
      %v7541 = vpop.f32.mrf.mxu0
      %v7542 = vpop.f32.mrf.mxu0
      %v7543 = vadd.f32 0.0, %v7542
      %v7544 = vpop.f32.mrf.mxu0
      %7545 = vmatprep.mubr.bf16.mxu0 0
      %7546 = vmatmul.mubr.bf16.gmra.mxu0 %v7413
      %v7547 = vpop.f32.mrf.mxu0
      %v7548 = vadd.f32 0.0, %v7547
      %v7549 = vpop.f32.mrf.mxu0
      %v7550 = vpop.f32.mrf.mxu0
      %v7551 = vadd.f32 0.0, %v7550
      %v7552 = vpop.f32.mrf.mxu0
      %7553 = vmatprep.mubr.bf16.mxu0 0
      %7554 = vmatmul.mubr.bf16.gmra.mxu0 %v7416
      %v7555 = vpop.f32.mrf.mxu0
      %v7556 = vadd.f32 0.0, %v7555
      %v7557 = vpop.f32.mrf.mxu0
      %v7558 = vpop.f32.mrf.mxu0
      %v7559 = vadd.f32 0.0, %v7558
      %v7560 = vpop.f32.mrf.mxu0
      %7561 = vmatprep.mubr.bf16.mxu0 0
      %7562 = vmatmul.mubr.bf16.gmra.mxu0 %v7419
      %v7563 = vpop.f32.mrf.mxu0
      %v7564 = vadd.f32 0.0, %v7563
      %v7565 = vpop.f32.mrf.mxu0
      %v7566 = vpop.f32.mrf.mxu0
      %v7567 = vadd.f32 0.0, %v7566
      %v7568 = vpop.f32.mrf.mxu0
      %7569 = vmatprep.mubr.bf16.mxu0 0
      %7570 = vmatmul.mubr.bf16.gmra.mxu0 %v7422
      %v7571 = vpop.f32.mrf.mxu0
      %v7572 = vadd.f32 0.0, %v7571
      %v7573 = vpop.f32.mrf.mxu0
      %v7574 = vpop.f32.mrf.mxu0
      %v7575 = vadd.f32 0.0, %v7574
      %v7576 = vpop.f32.mrf.mxu0
      %7577 = vmatprep.mubr.bf16.mxu0 0
      %7578 = vmatmul.mubr.bf16.gmra.mxu0 %v7425
      %v7579 = vpop.f32.mrf.mxu0
      %v7580 = vadd.f32 0.0, %v7579
      %v7581 = vpop.f32.mrf.mxu0
      %v7582 = vpop.f32.mrf.mxu0
      %v7583 = vadd.f32 0.0, %v7582
      %v7584 = vpop.f32.mrf.mxu0
      %7585 = vmatprep.mubr.bf16.mxu0 0
      %7586 = vmatmul.mubr.bf16.gmra.mxu0 %v7428
      %v7587 = vpop.f32.mrf.mxu0
      %v7588 = vadd.f32 0.0, %v7587
      %v7589 = vpop.f32.mrf.mxu0
      %v7590 = vpop.f32.mrf.mxu0
      %v7591 = vadd.f32 0.0, %v7590
      %v7592 = vpop.f32.mrf.mxu0
      %7593 = vdwg.mxu0
      %v7594 = vadd.f32 %v7046, %v7468
      %v7595 = vadd.f32 %v7049, %v7471
      %v7596 = vadd.f32 %v7054, %v7476
      %v7597 = vadd.f32 %v7057, %v7479
      %v7598 = vadd.f32 %v7062, %v7484
      %v7599 = vadd.f32 %v7065, %v7487
      %v7600 = vadd.f32 %v7070, %v7492
      %v7601 = vadd.f32 %v7073, %v7495
      %v7602 = vadd.f32 %v7078, %v7500
      %v7603 = vadd.f32 %v7081, %v7503
      %v7604 = vadd.f32 %v7086, %v7508
      %v7605 = vadd.f32 %v7089, %v7511
      %v7606 = vadd.f32 %v7094, %v7516
      %v7607 = vadd.f32 %v7097, %v7519
      %v7608 = vadd.f32 %v7102, %v7524
      %v7609 = vadd.f32 %v7105, %v7527
      %v7610 = vadd.f32 %v7110, %v7532
      %v7611 = vadd.f32 %v7113, %v7535
      %v7612 = vadd.f32 %v7118, %v7540
      %v7613 = vadd.f32 %v7121, %v7543
      %v7614 = vadd.f32 %v7126, %v7548
      %v7615 = vadd.f32 %v7129, %v7551
      %v7616 = vadd.f32 %v7134, %v7556
      %v7617 = vadd.f32 %v7137, %v7559
      %v7618 = vadd.f32 %v7142, %v7564
      %v7619 = vadd.f32 %v7145, %v7567
      %v7620 = vadd.f32 %v7150, %v7572
      %v7621 = vadd.f32 %v7153, %v7575
      %v7622 = vadd.f32 %v7158, %v7580
      %v7623 = vadd.f32 %v7161, %v7583
      %v7624 = vadd.f32 %v7166, %v7588
      %v7625 = vadd.f32 %v7169, %v7591
      %v7626 = vld [vmem:[%s6072] sm:$0xf]
      %v7627 = vld [vmem:[%s6072 + $0x4] sm:$0xf]
      %v7628 = vld [vmem:[%s6072 + $0xc] sm:$0xf]
      %v7629 = vld [vmem:[%s6072 + $0x10] sm:$0xf]
      %v7630 = vld [vmem:[%s6072 + $0x18] sm:$0xf]
      %v7631 = vld [vmem:[%s6072 + $0x1c] sm:$0xf]
      %v7632 = vld [vmem:[%s6072 + $0x24] sm:$0xf]
      %v7633 = vld [vmem:[%s6072 + $0x28] sm:$0xf]
      %v7634 = vld [vmem:[%s6072 + $0x30] sm:$0xf]
      %v7635 = vld [vmem:[%s6072 + $0x34] sm:$0xf]
      %v7636 = vld [vmem:[%s6072 + $0x3c] sm:$0xf]
      %v7637 = vld [vmem:[%s6072 + $0x40] sm:$0xf]
      %v7638 = vld [vmem:[%s6072 + $0x48] sm:$0xf]
      %v7639 = vld [vmem:[%s6072 + $0x4c] sm:$0xf]
      %v7640 = vld [vmem:[%s6072 + $0x54] sm:$0xf]
      %v7641 = vld [vmem:[%s6072 + $0x58] sm:$0xf]
      %v7642 = vld [vmem:[%s6072 + $0x60] sm:$0xf]
      %v7643 = vld [vmem:[%s6072 + $0x64] sm:$0xf]
      %v7644 = vld [vmem:[%s6072 + $0x6c] sm:$0xf]
      %v7645 = vld [vmem:[%s6072 + $0x70] sm:$0xf]
      %v7646 = vld [vmem:[%s6072 + $0x78] sm:$0xf]
      %v7647 = vld [vmem:[%s6072 + $0x7c] sm:$0xf]
      %v7648 = vld [vmem:[%s6072 + $0x84] sm:$0xf]
      %v7649 = vld [vmem:[%s6072 + $0x88] sm:$0xf]
      %v7650 = vld [vmem:[%s6072 + $0x90] sm:$0xf]
      %v7651 = vld [vmem:[%s6072 + $0x94] sm:$0xf]
      %v7652 = vld [vmem:[%s6072 + $0x9c] sm:$0xf]
      %v7653 = vld [vmem:[%s6072 + $0xa0] sm:$0xf]
      %v7654 = vld [vmem:[%s6072 + $0xa8] sm:$0xf]
      %v7655 = vld [vmem:[%s6072 + $0xac] sm:$0xf]
      %v7656 = vld [vmem:[%s6072 + $0xb4] sm:$0xf]
      %v7657 = vld [vmem:[%s6072 + $0xb8] sm:$0xf]
      %s7658 = scalar_lea.vmem %s3, 6
      %v7659 = vld [vmem:[%s7658] sm:$0x3]
      %v7692 = vunpack.c.l.b16 %v7626
      %v7693 = vunpack.c.l.b16 %v7627
      %v7694 = vunpack.c.l.b16 %v7628
      %v7695 = vunpack.c.l.b16 %v7629
      %v7696 = vunpack.c.l.b16 %v7630
      %v7697 = vunpack.c.l.b16 %v7631
      %v7698 = vunpack.c.l.b16 %v7632
      %v7699 = vunpack.c.l.b16 %v7633
      %v7700 = vunpack.c.l.b16 %v7634
      %v7701 = vunpack.c.l.b16 %v7635
      %v7702 = vunpack.c.l.b16 %v7636
      %v7703 = vunpack.c.l.b16 %v7637
      %v7704 = vunpack.c.l.b16 %v7638
      %v7705 = vunpack.c.l.b16 %v7639
      %v7706 = vunpack.c.l.b16 %v7640
      %v7707 = vunpack.c.l.b16 %v7641
      %v7708 = vunpack.c.l.b16 %v7642
      %v7709 = vunpack.c.l.b16 %v7643
      %v7710 = vunpack.c.l.b16 %v7644
      %v7711 = vunpack.c.l.b16 %v7645
      %v7712 = vunpack.c.l.b16 %v7646
      %v7713 = vunpack.c.l.b16 %v7647
      %v7714 = vunpack.c.l.b16 %v7648
      %v7715 = vunpack.c.l.b16 %v7649
      %v7716 = vunpack.c.l.b16 %v7650
      %v7717 = vunpack.c.l.b16 %v7651
      %v7718 = vunpack.c.l.b16 %v7652
      %v7719 = vunpack.c.l.b16 %v7653
      %v7720 = vunpack.c.l.b16 %v7654
      %v7721 = vunpack.c.l.b16 %v7655
      %v7722 = vunpack.c.l.b16 %v7656
      %v7723 = vunpack.c.l.b16 %v7657
      %v7724 = vpack.c.b16 %v7693, %v7692
      %v7725 = vpack.c.b16 %v7695, %v7694
      %v7726 = vpack.c.b16 %v7697, %v7696
      %v7727 = vpack.c.b16 %v7699, %v7698
      %v7728 = vpack.c.b16 %v7701, %v7700
      %v7729 = vpack.c.b16 %v7703, %v7702
      %v7730 = vpack.c.b16 %v7705, %v7704
      %v7731 = vpack.c.b16 %v7707, %v7706
      %v7732 = vpack.c.b16 %v7709, %v7708
      %v7733 = vpack.c.b16 %v7711, %v7710
      %v7734 = vpack.c.b16 %v7713, %v7712
      %v7735 = vpack.c.b16 %v7715, %v7714
      %v7736 = vpack.c.b16 %v7717, %v7716
      %v7737 = vpack.c.b16 %v7719, %v7718
      %v7738 = vpack.c.b16 %v7721, %v7720
      %v7739 = vpack.c.b16 %v7723, %v7722
      %v7741 = vsel %vm1513, %v7724, 0
      %v7744 = vsel %vm1513, %v7725, 0
      %v7747 = vsel %vm1513, %v7726, 0
      %v7750 = vsel %vm1513, %v7727, 0
      %v7753 = vsel %vm1513, %v7728, 0
      %v7756 = vsel %vm1513, %v7729, 0
      %v7759 = vsel %vm1513, %v7730, 0
      %v7762 = vsel %vm1513, %v7731, 0
      %v7765 = vsel %vm1513, %v7732, 0
      %v7768 = vsel %vm1513, %v7733, 0
      %v7771 = vsel %vm1513, %v7734, 0
      %v7774 = vsel %vm1513, %v7735, 0
      %v7777 = vsel %vm1513, %v7736, 0
      %v7780 = vsel %vm1513, %v7737, 0
      %v7783 = vsel %vm1513, %v7738, 0
      %v7786 = vsel %vm1513, %v7739, 0
      %v7789 = vsel %vm1562, %v7659, 0
      %7791 = vmatprep.subr.bf16.mxu0 0
      %7792 = vmatpush1.bf16.msra.mxu0 0
      %7793 = vmatprep.subr.bf16.mxu0 0
      %7794 = vmatpush1.bf16.msra.mxu0 0
      %7795 = vmatprep.subr.bf16.mxu0 0
      %7796 = vmatpush1.bf16.msra.mxu0 0
      %7797 = vmatprep.subr.bf16.mxu0 0
      %7798 = vmatpush1.bf16.msra.mxu0 0
      %7799 = vmatprep.subr.bf16.mxu0 0
      %7800 = vmatpush1.bf16.msra.mxu0 0
      %7801 = vmatprep.subr.bf16.mxu0 0
      %7802 = vmatpush1.bf16.msra.mxu0 0
      %7803 = vmatprep.subr.bf16.mxu0 0
      %7804 = vmatpush1.bf16.msra.mxu0 0
      %7805 = vmatprep.subr.bf16.mxu0 0
      %7806 = vmatpush1.bf16.msra.mxu0 %v7789
      %7807 = vmatprep.subr.bf16.mxu0 0
      %7808 = vmatpush2.bf16.msra.mxu0 0
      %7809 = vmatprep.subr.bf16.mxu0 0
      %7810 = vmatpush2.bf16.msra.mxu0 0
      %7811 = vmatprep.subr.bf16.mxu0 0
      %7812 = vmatpush2.bf16.msra.mxu0 0
      %7813 = vmatprep.subr.bf16.mxu0 0
      %7814 = vmatpush2.bf16.msra.mxu0 0
      %7815 = vmatprep.subr.bf16.mxu0 0
      %7816 = vmatpush2.bf16.msra.mxu0 0
      %7817 = vmatprep.subr.bf16.mxu0 0
      %7818 = vmatpush2.bf16.msra.mxu0 0
      %7819 = vmatprep.subr.bf16.mxu0 0
      %7820 = vmatpush2.bf16.msra.mxu0 0
      %7821 = vmatprep.subr.bf16.mxu0 0
      %7822 = vmatpush2.bf16.msra.mxu0 0
      %7823 = vmatprep.mubr.bf16.mxu0 0
      %7824 = vmatmul.mubr.bf16.gmra.mxu0 %v7741
      %v7825 = vpop.f32.mrf.mxu0
      %v7826 = vadd.f32 0.0, %v7825
      %v7827 = vpop.f32.mrf.mxu0
      %v7828 = vpop.f32.mrf.mxu0
      %v7829 = vadd.f32 0.0, %v7828
      %v7830 = vpop.f32.mrf.mxu0
      %7831 = vmatprep.mubr.bf16.mxu0 0
      %7832 = vmatmul.mubr.bf16.gmra.mxu0 %v7744
      %v7833 = vpop.f32.mrf.mxu0
      %v7834 = vadd.f32 0.0, %v7833
      %v7835 = vpop.f32.mrf.mxu0
      %v7836 = vpop.f32.mrf.mxu0
      %v7837 = vadd.f32 0.0, %v7836
      %v7838 = vpop.f32.mrf.mxu0
      %7839 = vmatprep.mubr.bf16.mxu0 0
      %7840 = vmatmul.mubr.bf16.gmra.mxu0 %v7747
      %v7841 = vpop.f32.mrf.mxu0
      %v7842 = vadd.f32 0.0, %v7841
      %v7843 = vpop.f32.mrf.mxu0
      %v7844 = vpop.f32.mrf.mxu0
      %v7845 = vadd.f32 0.0, %v7844
      %v7846 = vpop.f32.mrf.mxu0
      %7847 = vmatprep.mubr.bf16.mxu0 0
      %7848 = vmatmul.mubr.bf16.gmra.mxu0 %v7750
      %v7849 = vpop.f32.mrf.mxu0
      %v7850 = vadd.f32 0.0, %v7849
      %v7851 = vpop.f32.mrf.mxu0
      %v7852 = vpop.f32.mrf.mxu0
      %v7853 = vadd.f32 0.0, %v7852
      %v7854 = vpop.f32.mrf.mxu0
      %7855 = vmatprep.mubr.bf16.mxu0 0
      %7856 = vmatmul.mubr.bf16.gmra.mxu0 %v7753
      %v7857 = vpop.f32.mrf.mxu0
      %v7858 = vadd.f32 0.0, %v7857
      %v7859 = vpop.f32.mrf.mxu0
      %v7860 = vpop.f32.mrf.mxu0
      %v7861 = vadd.f32 0.0, %v7860
      %v7862 = vpop.f32.mrf.mxu0
      %7863 = vmatprep.mubr.bf16.mxu0 0
      %7864 = vmatmul.mubr.bf16.gmra.mxu0 %v7756
      %v7865 = vpop.f32.mrf.mxu0
      %v7866 = vadd.f32 0.0, %v7865
      %v7867 = vpop.f32.mrf.mxu0
      %v7868 = vpop.f32.mrf.mxu0
      %v7869 = vadd.f32 0.0, %v7868
      %v7870 = vpop.f32.mrf.mxu0
      %7871 = vmatprep.mubr.bf16.mxu0 0
      %7872 = vmatmul.mubr.bf16.gmra.mxu0 %v7759
      %v7873 = vpop.f32.mrf.mxu0
      %v7874 = vadd.f32 0.0, %v7873
      %v7875 = vpop.f32.mrf.mxu0
      %v7876 = vpop.f32.mrf.mxu0
      %v7877 = vadd.f32 0.0, %v7876
      %v7878 = vpop.f32.mrf.mxu0
      %7879 = vmatprep.mubr.bf16.mxu0 0
      %7880 = vmatmul.mubr.bf16.gmra.mxu0 %v7762
      %v7881 = vpop.f32.mrf.mxu0
      %v7882 = vadd.f32 0.0, %v7881
      %v7883 = vpop.f32.mrf.mxu0
      %v7884 = vpop.f32.mrf.mxu0
      %v7885 = vadd.f32 0.0, %v7884
      %v7886 = vpop.f32.mrf.mxu0
      %7887 = vmatprep.mubr.bf16.mxu0 0
      %7888 = vmatmul.mubr.bf16.gmra.mxu0 %v7765
      %v7889 = vpop.f32.mrf.mxu0
      %v7890 = vadd.f32 0.0, %v7889
      %v7891 = vpop.f32.mrf.mxu0
      %v7892 = vpop.f32.mrf.mxu0
      %v7893 = vadd.f32 0.0, %v7892
      %v7894 = vpop.f32.mrf.mxu0
      %7895 = vmatprep.mubr.bf16.mxu0 0
      %7896 = vmatmul.mubr.bf16.gmra.mxu0 %v7768
      %v7897 = vpop.f32.mrf.mxu0
      %v7898 = vadd.f32 0.0, %v7897
      %v7899 = vpop.f32.mrf.mxu0
      %v7900 = vpop.f32.mrf.mxu0
      %v7901 = vadd.f32 0.0, %v7900
      %v7902 = vpop.f32.mrf.mxu0
      %7903 = vmatprep.mubr.bf16.mxu0 0
      %7904 = vmatmul.mubr.bf16.gmra.mxu0 %v7771
      %v7905 = vpop.f32.mrf.mxu0
      %v7906 = vadd.f32 0.0, %v7905
      %v7907 = vpop.f32.mrf.mxu0
      %v7908 = vpop.f32.mrf.mxu0
      %v7909 = vadd.f32 0.0, %v7908
      %v7910 = vpop.f32.mrf.mxu0
      %7911 = vmatprep.mubr.bf16.mxu0 0
      %7912 = vmatmul.mubr.bf16.gmra.mxu0 %v7774
      %v7913 = vpop.f32.mrf.mxu0
      %v7914 = vadd.f32 0.0, %v7913
      %v7915 = vpop.f32.mrf.mxu0
      %v7916 = vpop.f32.mrf.mxu0
      %v7917 = vadd.f32 0.0, %v7916
      %v7918 = vpop.f32.mrf.mxu0
      %7919 = vmatprep.mubr.bf16.mxu0 0
      %7920 = vmatmul.mubr.bf16.gmra.mxu0 %v7777
      %v7921 = vpop.f32.mrf.mxu0
      %v7922 = vadd.f32 0.0, %v7921
      %v7923 = vpop.f32.mrf.mxu0
      %v7924 = vpop.f32.mrf.mxu0
      %v7925 = vadd.f32 0.0, %v7924
      %v7926 = vpop.f32.mrf.mxu0
      %7927 = vmatprep.mubr.bf16.mxu0 0
      %7928 = vmatmul.mubr.bf16.gmra.mxu0 %v7780
      %v7929 = vpop.f32.mrf.mxu0
      %v7930 = vadd.f32 0.0, %v7929
      %v7931 = vpop.f32.mrf.mxu0
      %v7932 = vpop.f32.mrf.mxu0
      %v7933 = vadd.f32 0.0, %v7932
      %v7934 = vpop.f32.mrf.mxu0
      %7935 = vmatprep.mubr.bf16.mxu0 0
      %7936 = vmatmul.mubr.bf16.gmra.mxu0 %v7783
      %v7937 = vpop.f32.mrf.mxu0
      %v7938 = vadd.f32 0.0, %v7937
      %v7939 = vpop.f32.mrf.mxu0
      %v7940 = vpop.f32.mrf.mxu0
      %v7941 = vadd.f32 0.0, %v7940
      %v7942 = vpop.f32.mrf.mxu0
      %7943 = vmatprep.mubr.bf16.mxu0 0
      %7944 = vmatmul.mubr.bf16.gmra.mxu0 %v7786
      %v7945 = vpop.f32.mrf.mxu0
      %v7946 = vadd.f32 0.0, %v7945
      %v7947 = vpop.f32.mrf.mxu0
      %v7948 = vpop.f32.mrf.mxu0
      %v7949 = vadd.f32 0.0, %v7948
      %v7950 = vpop.f32.mrf.mxu0
      %7951 = vdwg.mxu0
      %v7952 = vadd.f32 %v7594, %v7826
      %v7953 = vadd.f32 %v7595, %v7829
      %v7954 = vadd.f32 %v7596, %v7834
      %v7955 = vadd.f32 %v7597, %v7837
      %v7956 = vadd.f32 %v7598, %v7842
      %v7957 = vadd.f32 %v7599, %v7845
      %v7958 = vadd.f32 %v7600, %v7850
      %v7959 = vadd.f32 %v7601, %v7853
      %v7960 = vadd.f32 %v7602, %v7858
      %v7961 = vadd.f32 %v7603, %v7861
      %v7962 = vadd.f32 %v7604, %v7866
      %v7963 = vadd.f32 %v7605, %v7869
      %v7964 = vadd.f32 %v7606, %v7874
      %v7965 = vadd.f32 %v7607, %v7877
      %v7966 = vadd.f32 %v7608, %v7882
      %v7967 = vadd.f32 %v7609, %v7885
      %v7968 = vadd.f32 %v7610, %v7890
      %v7969 = vadd.f32 %v7611, %v7893
      %v7970 = vadd.f32 %v7612, %v7898
      %v7971 = vadd.f32 %v7613, %v7901
      %v7972 = vadd.f32 %v7614, %v7906
      %v7973 = vadd.f32 %v7615, %v7909
      %v7974 = vadd.f32 %v7616, %v7914
      %v7975 = vadd.f32 %v7617, %v7917
      %v7976 = vadd.f32 %v7618, %v7922
      %v7977 = vadd.f32 %v7619, %v7925
      %v7978 = vadd.f32 %v7620, %v7930
      %v7979 = vadd.f32 %v7621, %v7933
      %v7980 = vadd.f32 %v7622, %v7938
      %v7981 = vadd.f32 %v7623, %v7941
      %v7982 = vadd.f32 %v7624, %v7946
      %v7983 = vadd.f32 %v7625, %v7949
      %v7984 = vld [vmem:[%s6072] sm:$0xf]
      %v7985 = vld [vmem:[%s6072 + $0x4] sm:$0xf]
      %v7986 = vld [vmem:[%s6072 + $0x8] sm:$0x1]
      %v7987 = vld [vmem:[%s6072 + $0xc] sm:$0xf]
      %v7988 = vld [vmem:[%s6072 + $0x10] sm:$0xf]
      %v7989 = vld [vmem:[%s6072 + $0x14] sm:$0x1]
      %v7990 = vld [vmem:[%s6072 + $0x18] sm:$0xf]
      %v7991 = vld [vmem:[%s6072 + $0x1c] sm:$0xf]
      %v7992 = vld [vmem:[%s6072 + $0x20] sm:$0x1]
      %v7993 = vld [vmem:[%s6072 + $0x24] sm:$0xf]
      %v7994 = vld [vmem:[%s6072 + $0x28] sm:$0xf]
      %v7995 = vld [vmem:[%s6072 + $0x2c] sm:$0x1]
      %v7996 = vld [vmem:[%s6072 + $0x30] sm:$0xf]
      %v7997 = vld [vmem:[%s6072 + $0x34] sm:$0xf]
      %v7998 = vld [vmem:[%s6072 + $0x38] sm:$0x1]
      %v7999 = vld [vmem:[%s6072 + $0x3c] sm:$0xf]
      %v8000 = vld [vmem:[%s6072 + $0x40] sm:$0xf]
      %v8001 = vld [vmem:[%s6072 + $0x44] sm:$0x1]
      %v8002 = vld [vmem:[%s6072 + $0x48] sm:$0xf]
      %v8003 = vld [vmem:[%s6072 + $0x4c] sm:$0xf]
      %v8004 = vld [vmem:[%s6072 + $0x50] sm:$0x1]
      %v8005 = vld [vmem:[%s6072 + $0x54] sm:$0xf]
      %v8006 = vld [vmem:[%s6072 + $0x58] sm:$0xf]
      %v8007 = vld [vmem:[%s6072 + $0x5c] sm:$0x1]
      %v8008 = vld [vmem:[%s6072 + $0x60] sm:$0xf]
      %v8009 = vld [vmem:[%s6072 + $0x64] sm:$0xf]
      %v8010 = vld [vmem:[%s6072 + $0x68] sm:$0x1]
      %v8011 = vld [vmem:[%s6072 + $0x6c] sm:$0xf]
      %v8012 = vld [vmem:[%s6072 + $0x70] sm:$0xf]
      %v8013 = vld [vmem:[%s6072 + $0x74] sm:$0x1]
      %v8014 = vld [vmem:[%s6072 + $0x78] sm:$0xf]
      %v8015 = vld [vmem:[%s6072 + $0x7c] sm:$0xf]
      %v8016 = vld [vmem:[%s6072 + $0x80] sm:$0x1]
      %v8017 = vld [vmem:[%s6072 + $0x84] sm:$0xf]
      %v8018 = vld [vmem:[%s6072 + $0x88] sm:$0xf]
      %v8019 = vld [vmem:[%s6072 + $0x8c] sm:$0x1]
      %v8020 = vld [vmem:[%s6072 + $0x90] sm:$0xf]
      %v8021 = vld [vmem:[%s6072 + $0x94] sm:$0xf]
      %v8022 = vld [vmem:[%s6072 + $0x98] sm:$0x1]
      %v8023 = vld [vmem:[%s6072 + $0x9c] sm:$0xf]
      %v8024 = vld [vmem:[%s6072 + $0xa0] sm:$0xf]
      %v8025 = vld [vmem:[%s6072 + $0xa4] sm:$0x1]
      %v8026 = vld [vmem:[%s6072 + $0xa8] sm:$0xf]
      %v8027 = vld [vmem:[%s6072 + $0xac] sm:$0xf]
      %v8028 = vld [vmem:[%s6072 + $0xb0] sm:$0x1]
      %v8029 = vld [vmem:[%s6072 + $0xb4] sm:$0xf]
      %v8030 = vld [vmem:[%s6072 + $0xb8] sm:$0xf]
      %v8031 = vld [vmem:[%s6072 + $0xbc] sm:$0x1]
      %v8033 = vshrl.u32 %v7984, 16
      %v8035 = vrot.slane %v8033, 4
      %v8036 = vshll.u32 %v7984, 16
      %v8038 = vrot.slane %v8036, 5
      %v8039 = vor.u32 %v8035, %v8038
      %v8040 = vrot.slane %v8039, 4
      %v8042 = vshll.u32 %v7985, 16
      %v8044 = vrot.slane %v8042, 5
      %v8045 = vsel %vm1078, %v8040, %v8044
      %v8046 = vshrl.u32 %v7985, 16
      %v8048 = vrot.slane %v8046, 4
      %v8049 = vor.u32 %v8048, %v8044
      %v8050 = vrot.slane %v8049, 4
      %v8052 = vshll.u32 %v7986, 16
      %v8054 = vrot.slane %v8052, 5
      %v8055 = vsel %vm1078, %v8050, %v8054
      %v8057 = vshrl.u32 %v7987, 16
      %v8059 = vrot.slane %v8057, 4
      %v8060 = vshll.u32 %v7987, 16
      %v8062 = vrot.slane %v8060, 5
      %v8063 = vor.u32 %v8059, %v8062
      %v8064 = vrot.slane %v8063, 4
      %v8066 = vshll.u32 %v7988, 16
      %v8068 = vrot.slane %v8066, 5
      %v8069 = vsel %vm1078, %v8064, %v8068
      %v8070 = vshrl.u32 %v7988, 16
      %v8072 = vrot.slane %v8070, 4
      %v8073 = vor.u32 %v8072, %v8068
      %v8074 = vrot.slane %v8073, 4
      %v8076 = vshll.u32 %v7989, 16
      %v8078 = vrot.slane %v8076, 5
      %v8079 = vsel %vm1078, %v8074, %v8078
      %v8081 = vshrl.u32 %v7990, 16
      %v8083 = vrot.slane %v8081, 4
      %v8084 = vshll.u32 %v7990, 16
      %v8086 = vrot.slane %v8084, 5
      %v8087 = vor.u32 %v8083, %v8086
      %v8088 = vrot.slane %v8087, 4
      %v8090 = vshll.u32 %v7991, 16
      %v8092 = vrot.slane %v8090, 5
      %v8093 = vsel %vm1078, %v8088, %v8092
      %v8094 = vshrl.u32 %v7991, 16
      %v8096 = vrot.slane %v8094, 4
      %v8097 = vor.u32 %v8096, %v8092
      %v8098 = vrot.slane %v8097, 4
      %v8100 = vshll.u32 %v7992, 16
      %v8102 = vrot.slane %v8100, 5
      %v8103 = vsel %vm1078, %v8098, %v8102
      %v8105 = vshrl.u32 %v7993, 16
      %v8107 = vrot.slane %v8105, 4
      %v8108 = vshll.u32 %v7993, 16
      %v8110 = vrot.slane %v8108, 5
      %v8111 = vor.u32 %v8107, %v8110
      %v8112 = vrot.slane %v8111, 4
      %v8114 = vshll.u32 %v7994, 16
      %v8116 = vrot.slane %v8114, 5
      %v8117 = vsel %vm1078, %v8112, %v8116
      %v8118 = vshrl.u32 %v7994, 16
      %v8120 = vrot.slane %v8118, 4
      %v8121 = vor.u32 %v8120, %v8116
      %v8122 = vrot.slane %v8121, 4
      %v8124 = vshll.u32 %v7995, 16
      %v8126 = vrot.slane %v8124, 5
      %v8127 = vsel %vm1078, %v8122, %v8126
      %v8129 = vshrl.u32 %v7996, 16
      %v8131 = vrot.slane %v8129, 4
      %v8132 = vshll.u32 %v7996, 16
      %v8134 = vrot.slane %v8132, 5
      %v8135 = vor.u32 %v8131, %v8134
      %v8136 = vrot.slane %v8135, 4
      %v8138 = vshll.u32 %v7997, 16
      %v8140 = vrot.slane %v8138, 5
      %v8141 = vsel %vm1078, %v8136, %v8140
      %v8142 = vshrl.u32 %v7997, 16
      %v8144 = vrot.slane %v8142, 4
      %v8145 = vor.u32 %v8144, %v8140
      %v8146 = vrot.slane %v8145, 4
      %v8148 = vshll.u32 %v7998, 16
      %v8150 = vrot.slane %v8148, 5
      %v8151 = vsel %vm1078, %v8146, %v8150
      %v8153 = vshrl.u32 %v7999, 16
      %v8155 = vrot.slane %v8153, 4
      %v8156 = vshll.u32 %v7999, 16
      %v8158 = vrot.slane %v8156, 5
      %v8159 = vor.u32 %v8155, %v8158
      %v8160 = vrot.slane %v8159, 4
      %v8162 = vshll.u32 %v8000, 16
      %v8164 = vrot.slane %v8162, 5
      %v8165 = vsel %vm1078, %v8160, %v8164
      %v8166 = vshrl.u32 %v8000, 16
      %v8168 = vrot.slane %v8166, 4
      %v8169 = vor.u32 %v8168, %v8164
      %v8170 = vrot.slane %v8169, 4
      %v8172 = vshll.u32 %v8001, 16
      %v8174 = vrot.slane %v8172, 5
      %v8175 = vsel %vm1078, %v8170, %v8174
      %v8177 = vshrl.u32 %v8002, 16
      %v8179 = vrot.slane %v8177, 4
      %v8180 = vshll.u32 %v8002, 16
      %v8182 = vrot.slane %v8180, 5
      %v8183 = vor.u32 %v8179, %v8182
      %v8184 = vrot.slane %v8183, 4
      %v8186 = vshll.u32 %v8003, 16
      %v8188 = vrot.slane %v8186, 5
      %v8189 = vsel %vm1078, %v8184, %v8188
      %v8190 = vshrl.u32 %v8003, 16
      %v8192 = vrot.slane %v8190, 4
      %v8193 = vor.u32 %v8192, %v8188
      %v8194 = vrot.slane %v8193, 4
      %v8196 = vshll.u32 %v8004, 16
      %v8198 = vrot.slane %v8196, 5
      %v8199 = vsel %vm1078, %v8194, %v8198
      %v8201 = vshrl.u32 %v8005, 16
      %v8203 = vrot.slane %v8201, 4
      %v8204 = vshll.u32 %v8005, 16
      %v8206 = vrot.slane %v8204, 5
      %v8207 = vor.u32 %v8203, %v8206
      %v8208 = vrot.slane %v8207, 4
      %v8210 = vshll.u32 %v8006, 16
      %v8212 = vrot.slane %v8210, 5
      %v8213 = vsel %vm1078, %v8208, %v8212
      %v8214 = vshrl.u32 %v8006, 16
      %v8216 = vrot.slane %v8214, 4
      %v8217 = vor.u32 %v8216, %v8212
      %v8218 = vrot.slane %v8217, 4
      %v8220 = vshll.u32 %v8007, 16
      %v8222 = vrot.slane %v8220, 5
      %v8223 = vsel %vm1078, %v8218, %v8222
      %v8225 = vshrl.u32 %v8008, 16
      %v8227 = vrot.slane %v8225, 4
      %v8228 = vshll.u32 %v8008, 16
      %v8230 = vrot.slane %v8228, 5
      %v8231 = vor.u32 %v8227, %v8230
      %v8232 = vrot.slane %v8231, 4
      %v8234 = vshll.u32 %v8009, 16
      %v8236 = vrot.slane %v8234, 5
      %v8237 = vsel %vm1078, %v8232, %v8236
      %v8238 = vshrl.u32 %v8009, 16
      %v8240 = vrot.slane %v8238, 4
      %v8241 = vor.u32 %v8240, %v8236
      %v8242 = vrot.slane %v8241, 4
      %v8244 = vshll.u32 %v8010, 16
      %v8246 = vrot.slane %v8244, 5
      %v8247 = vsel %vm1078, %v8242, %v8246
      %v8249 = vshrl.u32 %v8011, 16
      %v8251 = vrot.slane %v8249, 4
      %v8252 = vshll.u32 %v8011, 16
      %v8254 = vrot.slane %v8252, 5
      %v8255 = vor.u32 %v8251, %v8254
      %v8256 = vrot.slane %v8255, 4
      %v8258 = vshll.u32 %v8012, 16
      %v8260 = vrot.slane %v8258, 5
      %v8261 = vsel %vm1078, %v8256, %v8260
      %v8262 = vshrl.u32 %v8012, 16
      %v8264 = vrot.slane %v8262, 4
      %v8265 = vor.u32 %v8264, %v8260
      %v8266 = vrot.slane %v8265, 4
      %v8268 = vshll.u32 %v8013, 16
      %v8270 = vrot.slane %v8268, 5
      %v8271 = vsel %vm1078, %v8266, %v8270
      %v8273 = vshrl.u32 %v8014, 16
      %v8275 = vrot.slane %v8273, 4
      %v8276 = vshll.u32 %v8014, 16
      %v8278 = vrot.slane %v8276, 5
      %v8279 = vor.u32 %v8275, %v8278
      %v8280 = vrot.slane %v8279, 4
      %v8282 = vshll.u32 %v8015, 16
      %v8284 = vrot.slane %v8282, 5
      %v8285 = vsel %vm1078, %v8280, %v8284
      %v8286 = vshrl.u32 %v8015, 16
      %v8288 = vrot.slane %v8286, 4
      %v8289 = vor.u32 %v8288, %v8284
      %v8290 = vrot.slane %v8289, 4
      %v8292 = vshll.u32 %v8016, 16
      %v8294 = vrot.slane %v8292, 5
      %v8295 = vsel %vm1078, %v8290, %v8294
      %v8297 = vshrl.u32 %v8017, 16
      %v8299 = vrot.slane %v8297, 4
      %v8300 = vshll.u32 %v8017, 16
      %v8302 = vrot.slane %v8300, 5
      %v8303 = vor.u32 %v8299, %v8302
      %v8304 = vrot.slane %v8303, 4
      %v8306 = vshll.u32 %v8018, 16
      %v8308 = vrot.slane %v8306, 5
      %v8309 = vsel %vm1078, %v8304, %v8308
      %v8310 = vshrl.u32 %v8018, 16
      %v8312 = vrot.slane %v8310, 4
      %v8313 = vor.u32 %v8312, %v8308
      %v8314 = vrot.slane %v8313, 4
      %v8316 = vshll.u32 %v8019, 16
      %v8318 = vrot.slane %v8316, 5
      %v8319 = vsel %vm1078, %v8314, %v8318
      %v8321 = vshrl.u32 %v8020, 16
      %v8323 = vrot.slane %v8321, 4
      %v8324 = vshll.u32 %v8020, 16
      %v8326 = vrot.slane %v8324, 5
      %v8327 = vor.u32 %v8323, %v8326
      %v8328 = vrot.slane %v8327, 4
      %v8330 = vshll.u32 %v8021, 16
      %v8332 = vrot.slane %v8330, 5
      %v8333 = vsel %vm1078, %v8328, %v8332
      %v8334 = vshrl.u32 %v8021, 16
      %v8336 = vrot.slane %v8334, 4
      %v8337 = vor.u32 %v8336, %v8332
      %v8338 = vrot.slane %v8337, 4
      %v8340 = vshll.u32 %v8022, 16
      %v8342 = vrot.slane %v8340, 5
      %v8343 = vsel %vm1078, %v8338, %v8342
      %v8345 = vshrl.u32 %v8023, 16
      %v8347 = vrot.slane %v8345, 4
      %v8348 = vshll.u32 %v8023, 16
      %v8350 = vrot.slane %v8348, 5
      %v8351 = vor.u32 %v8347, %v8350
      %v8352 = vrot.slane %v8351, 4
      %v8354 = vshll.u32 %v8024, 16
      %v8356 = vrot.slane %v8354, 5
      %v8357 = vsel %vm1078, %v8352, %v8356
      %v8358 = vshrl.u32 %v8024, 16
      %v8360 = vrot.slane %v8358, 4
      %v8361 = vor.u32 %v8360, %v8356
      %v8362 = vrot.slane %v8361, 4
      %v8364 = vshll.u32 %v8025, 16
      %v8366 = vrot.slane %v8364, 5
      %v8367 = vsel %vm1078, %v8362, %v8366
      %v8369 = vshrl.u32 %v8026, 16
      %v8371 = vrot.slane %v8369, 4
      %v8372 = vshll.u32 %v8026, 16
      %v8374 = vrot.slane %v8372, 5
      %v8375 = vor.u32 %v8371, %v8374
      %v8376 = vrot.slane %v8375, 4
      %v8378 = vshll.u32 %v8027, 16
      %v8380 = vrot.slane %v8378, 5
      %v8381 = vsel %vm1078, %v8376, %v8380
      %v8382 = vshrl.u32 %v8027, 16
      %v8384 = vrot.slane %v8382, 4
      %v8385 = vor.u32 %v8384, %v8380
      %v8386 = vrot.slane %v8385, 4
      %v8388 = vshll.u32 %v8028, 16
      %v8390 = vrot.slane %v8388, 5
      %v8391 = vsel %vm1078, %v8386, %v8390
      %v8393 = vshrl.u32 %v8029, 16
      %v8395 = vrot.slane %v8393, 4
      %v8396 = vshll.u32 %v8029, 16
      %v8398 = vrot.slane %v8396, 5
      %v8399 = vor.u32 %v8395, %v8398
      %v8400 = vrot.slane %v8399, 4
      %v8402 = vshll.u32 %v8030, 16
      %v8404 = vrot.slane %v8402, 5
      %v8405 = vsel %vm1078, %v8400, %v8404
      %v8406 = vshrl.u32 %v8030, 16
      %v8408 = vrot.slane %v8406, 4
      %v8409 = vor.u32 %v8408, %v8404
      %v8410 = vrot.slane %v8409, 4
      %v8412 = vshll.u32 %v8031, 16
      %v8414 = vrot.slane %v8412, 5
      %v8415 = vsel %vm1078, %v8410, %v8414
      %s8416 = scalar_lea.vmem %s3, 8
      %v8417 = vld [vmem:[%s8416] sm:$0x3]
      %v8418 = vunpack.c.l.b16 %v8045
      %v8419 = vunpack.c.l.b16 %v8055
      %v8420 = vunpack.c.l.b16 %v8069
      %v8421 = vunpack.c.l.b16 %v8079
      %v8422 = vunpack.c.l.b16 %v8093
      %v8423 = vunpack.c.l.b16 %v8103
      %v8424 = vunpack.c.l.b16 %v8117
      %v8425 = vunpack.c.l.b16 %v8127
      %v8426 = vunpack.c.l.b16 %v8141
      %v8427 = vunpack.c.l.b16 %v8151
      %v8428 = vunpack.c.l.b16 %v8165
      %v8429 = vunpack.c.l.b16 %v8175
      %v8430 = vunpack.c.l.b16 %v8189
      %v8431 = vunpack.c.l.b16 %v8199
      %v8432 = vunpack.c.l.b16 %v8213
      %v8433 = vunpack.c.l.b16 %v8223
      %v8434 = vunpack.c.l.b16 %v8237
      %v8435 = vunpack.c.l.b16 %v8247
      %v8436 = vunpack.c.l.b16 %v8261
      %v8437 = vunpack.c.l.b16 %v8271
      %v8438 = vunpack.c.l.b16 %v8285
      %v8439 = vunpack.c.l.b16 %v8295
      %v8440 = vunpack.c.l.b16 %v8309
      %v8441 = vunpack.c.l.b16 %v8319
      %v8442 = vunpack.c.l.b16 %v8333
      %v8443 = vunpack.c.l.b16 %v8343
      %v8444 = vunpack.c.l.b16 %v8357
      %v8445 = vunpack.c.l.b16 %v8367
      %v8446 = vunpack.c.l.b16 %v8381
      %v8447 = vunpack.c.l.b16 %v8391
      %v8448 = vunpack.c.l.b16 %v8405
      %v8449 = vunpack.c.l.b16 %v8415
      %v8450 = vpack.c.b16 %v8419, %v8418
      %v8451 = vpack.c.b16 %v8421, %v8420
      %v8452 = vpack.c.b16 %v8423, %v8422
      %v8453 = vpack.c.b16 %v8425, %v8424
      %v8454 = vpack.c.b16 %v8427, %v8426
      %v8455 = vpack.c.b16 %v8429, %v8428
      %v8456 = vpack.c.b16 %v8431, %v8430
      %v8457 = vpack.c.b16 %v8433, %v8432
      %v8458 = vpack.c.b16 %v8435, %v8434
      %v8459 = vpack.c.b16 %v8437, %v8436
      %v8460 = vpack.c.b16 %v8439, %v8438
      %v8461 = vpack.c.b16 %v8441, %v8440
      %v8462 = vpack.c.b16 %v8443, %v8442
      %v8463 = vpack.c.b16 %v8445, %v8444
      %v8464 = vpack.c.b16 %v8447, %v8446
      %v8465 = vpack.c.b16 %v8449, %v8448
      %v8467 = vsel %vm1513, %v8450, 0
      %v8470 = vsel %vm1513, %v8451, 0
      %v8473 = vsel %vm1513, %v8452, 0
      %v8476 = vsel %vm1513, %v8453, 0
      %v8479 = vsel %vm1513, %v8454, 0
      %v8482 = vsel %vm1513, %v8455, 0
      %v8485 = vsel %vm1513, %v8456, 0
      %v8488 = vsel %vm1513, %v8457, 0
      %v8491 = vsel %vm1513, %v8458, 0
      %v8494 = vsel %vm1513, %v8459, 0
      %v8497 = vsel %vm1513, %v8460, 0
      %v8500 = vsel %vm1513, %v8461, 0
      %v8503 = vsel %vm1513, %v8462, 0
      %v8506 = vsel %vm1513, %v8463, 0
      %v8509 = vsel %vm1513, %v8464, 0
      %v8512 = vsel %vm1513, %v8465, 0
      %v8515 = vsel %vm1562, %v8417, 0
      %8517 = vmatprep.subr.bf16.mxu0 0
      %8518 = vmatpush1.bf16.msra.mxu0 0
      %8519 = vmatprep.subr.bf16.mxu0 0
      %8520 = vmatpush1.bf16.msra.mxu0 0
      %8521 = vmatprep.subr.bf16.mxu0 0
      %8522 = vmatpush1.bf16.msra.mxu0 0
      %8523 = vmatprep.subr.bf16.mxu0 0
      %8524 = vmatpush1.bf16.msra.mxu0 0
      %8525 = vmatprep.subr.bf16.mxu0 0
      %8526 = vmatpush1.bf16.msra.mxu0 0
      %8527 = vmatprep.subr.bf16.mxu0 0
      %8528 = vmatpush1.bf16.msra.mxu0 0
      %8529 = vmatprep.subr.bf16.mxu0 0
      %8530 = vmatpush1.bf16.msra.mxu0 0
      %8531 = vmatprep.subr.bf16.mxu0 0
      %8532 = vmatpush1.bf16.msra.mxu0 %v8515
      %8533 = vmatprep.subr.bf16.mxu0 0
      %8534 = vmatpush2.bf16.msra.mxu0 0
      %8535 = vmatprep.subr.bf16.mxu0 0
      %8536 = vmatpush2.bf16.msra.mxu0 0
      %8537 = vmatprep.subr.bf16.mxu0 0
      %8538 = vmatpush2.bf16.msra.mxu0 0
      %8539 = vmatprep.subr.bf16.mxu0 0
      %8540 = vmatpush2.bf16.msra.mxu0 0
      %8541 = vmatprep.subr.bf16.mxu0 0
      %8542 = vmatpush2.bf16.msra.mxu0 0
      %8543 = vmatprep.subr.bf16.mxu0 0
      %8544 = vmatpush2.bf16.msra.mxu0 0
      %8545 = vmatprep.subr.bf16.mxu0 0
      %8546 = vmatpush2.bf16.msra.mxu0 0
      %8547 = vmatprep.subr.bf16.mxu0 0
      %8548 = vmatpush2.bf16.msra.mxu0 0
      %8549 = vmatprep.mubr.bf16.mxu0 0
      %8550 = vmatmul.mubr.bf16.gmra.mxu0 %v8467
      %v8551 = vpop.f32.mrf.mxu0
      %v8552 = vadd.f32 0.0, %v8551
      %v8553 = vpop.f32.mrf.mxu0
      %v8554 = vpop.f32.mrf.mxu0
      %v8555 = vadd.f32 0.0, %v8554
      %v8556 = vpop.f32.mrf.mxu0
      %8557 = vmatprep.mubr.bf16.mxu0 0
      %8558 = vmatmul.mubr.bf16.gmra.mxu0 %v8470
      %v8559 = vpop.f32.mrf.mxu0
      %v8560 = vadd.f32 0.0, %v8559
      %v8561 = vpop.f32.mrf.mxu0
      %v8562 = vpop.f32.mrf.mxu0
      %v8563 = vadd.f32 0.0, %v8562
      %v8564 = vpop.f32.mrf.mxu0
      %8565 = vmatprep.mubr.bf16.mxu0 0
      %8566 = vmatmul.mubr.bf16.gmra.mxu0 %v8473
      %v8567 = vpop.f32.mrf.mxu0
      %v8568 = vadd.f32 0.0, %v8567
      %v8569 = vpop.f32.mrf.mxu0
      %v8570 = vpop.f32.mrf.mxu0
      %v8571 = vadd.f32 0.0, %v8570
      %v8572 = vpop.f32.mrf.mxu0
      %8573 = vmatprep.mubr.bf16.mxu0 0
      %8574 = vmatmul.mubr.bf16.gmra.mxu0 %v8476
      %v8575 = vpop.f32.mrf.mxu0
      %v8576 = vadd.f32 0.0, %v8575
      %v8577 = vpop.f32.mrf.mxu0
      %v8578 = vpop.f32.mrf.mxu0
      %v8579 = vadd.f32 0.0, %v8578
      %v8580 = vpop.f32.mrf.mxu0
      %8581 = vmatprep.mubr.bf16.mxu0 0
      %8582 = vmatmul.mubr.bf16.gmra.mxu0 %v8479
      %v8583 = vpop.f32.mrf.mxu0
      %v8584 = vadd.f32 0.0, %v8583
      %v8585 = vpop.f32.mrf.mxu0
      %v8586 = vpop.f32.mrf.mxu0
      %v8587 = vadd.f32 0.0, %v8586
      %v8588 = vpop.f32.mrf.mxu0
      %8589 = vmatprep.mubr.bf16.mxu0 0
      %8590 = vmatmul.mubr.bf16.gmra.mxu0 %v8482
      %v8591 = vpop.f32.mrf.mxu0
      %v8592 = vadd.f32 0.0, %v8591
      %v8593 = vpop.f32.mrf.mxu0
      %v8594 = vpop.f32.mrf.mxu0
      %v8595 = vadd.f32 0.0, %v8594
      %v8596 = vpop.f32.mrf.mxu0
      %8597 = vmatprep.mubr.bf16.mxu0 0
      %8598 = vmatmul.mubr.bf16.gmra.mxu0 %v8485
      %v8599 = vpop.f32.mrf.mxu0
      %v8600 = vadd.f32 0.0, %v8599
      %v8601 = vpop.f32.mrf.mxu0
      %v8602 = vpop.f32.mrf.mxu0
      %v8603 = vadd.f32 0.0, %v8602
      %v8604 = vpop.f32.mrf.mxu0
      %8605 = vmatprep.mubr.bf16.mxu0 0
      %8606 = vmatmul.mubr.bf16.gmra.mxu0 %v8488
      %v8607 = vpop.f32.mrf.mxu0
      %v8608 = vadd.f32 0.0, %v8607
      %v8609 = vpop.f32.mrf.mxu0
      %v8610 = vpop.f32.mrf.mxu0
      %v8611 = vadd.f32 0.0, %v8610
      %v8612 = vpop.f32.mrf.mxu0
      %8613 = vmatprep.mubr.bf16.mxu0 0
      %8614 = vmatmul.mubr.bf16.gmra.mxu0 %v8491
      %v8615 = vpop.f32.mrf.mxu0
      %v8616 = vadd.f32 0.0, %v8615
      %v8617 = vpop.f32.mrf.mxu0
      %v8618 = vpop.f32.mrf.mxu0
      %v8619 = vadd.f32 0.0, %v8618
      %v8620 = vpop.f32.mrf.mxu0
      %8621 = vmatprep.mubr.bf16.mxu0 0
      %8622 = vmatmul.mubr.bf16.gmra.mxu0 %v8494
      %v8623 = vpop.f32.mrf.mxu0
      %v8624 = vadd.f32 0.0, %v8623
      %v8625 = vpop.f32.mrf.mxu0
      %v8626 = vpop.f32.mrf.mxu0
      %v8627 = vadd.f32 0.0, %v8626
      %v8628 = vpop.f32.mrf.mxu0
      %8629 = vmatprep.mubr.bf16.mxu0 0
      %8630 = vmatmul.mubr.bf16.gmra.mxu0 %v8497
      %v8631 = vpop.f32.mrf.mxu0
      %v8632 = vadd.f32 0.0, %v8631
      %v8633 = vpop.f32.mrf.mxu0
      %v8634 = vpop.f32.mrf.mxu0
      %v8635 = vadd.f32 0.0, %v8634
      %v8636 = vpop.f32.mrf.mxu0
      %8637 = vmatprep.mubr.bf16.mxu0 0
      %8638 = vmatmul.mubr.bf16.gmra.mxu0 %v8500
      %v8639 = vpop.f32.mrf.mxu0
      %v8640 = vadd.f32 0.0, %v8639
      %v8641 = vpop.f32.mrf.mxu0
      %v8642 = vpop.f32.mrf.mxu0
      %v8643 = vadd.f32 0.0, %v8642
      %v8644 = vpop.f32.mrf.mxu0
      %8645 = vmatprep.mubr.bf16.mxu0 0
      %8646 = vmatmul.mubr.bf16.gmra.mxu0 %v8503
      %v8647 = vpop.f32.mrf.mxu0
      %v8648 = vadd.f32 0.0, %v8647
      %v8649 = vpop.f32.mrf.mxu0
      %v8650 = vpop.f32.mrf.mxu0
      %v8651 = vadd.f32 0.0, %v8650
      %v8652 = vpop.f32.mrf.mxu0
      %8653 = vmatprep.mubr.bf16.mxu0 0
      %8654 = vmatmul.mubr.bf16.gmra.mxu0 %v8506
      %v8655 = vpop.f32.mrf.mxu0
      %v8656 = vadd.f32 0.0, %v8655
      %v8657 = vpop.f32.mrf.mxu0
      %v8658 = vpop.f32.mrf.mxu0
      %v8659 = vadd.f32 0.0, %v8658
      %v8660 = vpop.f32.mrf.mxu0
      %8661 = vmatprep.mubr.bf16.mxu0 0
      %8662 = vmatmul.mubr.bf16.gmra.mxu0 %v8509
      %v8663 = vpop.f32.mrf.mxu0
      %v8664 = vadd.f32 0.0, %v8663
      %v8665 = vpop.f32.mrf.mxu0
      %v8666 = vpop.f32.mrf.mxu0
      %v8667 = vadd.f32 0.0, %v8666
      %v8668 = vpop.f32.mrf.mxu0
      %8669 = vmatprep.mubr.bf16.mxu0 0
      %8670 = vmatmul.mubr.bf16.gmra.mxu0 %v8512
      %v8671 = vpop.f32.mrf.mxu0
      %v8672 = vadd.f32 0.0, %v8671
      %v8673 = vpop.f32.mrf.mxu0
      %v8674 = vpop.f32.mrf.mxu0
      %v8675 = vadd.f32 0.0, %v8674
      %v8676 = vpop.f32.mrf.mxu0
      %8677 = vdwg.mxu0
      %v8678 = vadd.f32 %v7952, %v8552
      %v8679 = vadd.f32 %v7953, %v8555
      %v8680 = vadd.f32 %v7954, %v8560
      %v8681 = vadd.f32 %v7955, %v8563
      %v8682 = vadd.f32 %v7956, %v8568
      %v8683 = vadd.f32 %v7957, %v8571
      %v8684 = vadd.f32 %v7958, %v8576
      %v8685 = vadd.f32 %v7959, %v8579
      %v8686 = vadd.f32 %v7960, %v8584
      %v8687 = vadd.f32 %v7961, %v8587
      %v8688 = vadd.f32 %v7962, %v8592
      %v8689 = vadd.f32 %v7963, %v8595
      %v8690 = vadd.f32 %v7964, %v8600
      %v8691 = vadd.f32 %v7965, %v8603
      %v8692 = vadd.f32 %v7966, %v8608
      %v8693 = vadd.f32 %v7967, %v8611
      %v8694 = vadd.f32 %v7968, %v8616
      %v8695 = vadd.f32 %v7969, %v8619
      %v8696 = vadd.f32 %v7970, %v8624
      %v8697 = vadd.f32 %v7971, %v8627
      %v8698 = vadd.f32 %v7972, %v8632
      %v8699 = vadd.f32 %v7973, %v8635
      %v8700 = vadd.f32 %v7974, %v8640
      %v8701 = vadd.f32 %v7975, %v8643
      %v8702 = vadd.f32 %v7976, %v8648
      %v8703 = vadd.f32 %v7977, %v8651
      %v8704 = vadd.f32 %v7978, %v8656
      %v8705 = vadd.f32 %v7979, %v8659
      %v8706 = vadd.f32 %v7980, %v8664
      %v8707 = vadd.f32 %v7981, %v8667
      %v8708 = vadd.f32 %v7982, %v8672
      %v8709 = vadd.f32 %v7983, %v8675
      %v8710 = vld [vmem:[%s6072] sm:$0xe]
      %v8711 = vld [vmem:[%s6072 + $0xc] sm:$0xe]
      %v8712 = vld [vmem:[%s6072 + $0x18] sm:$0xe]
      %v8713 = vld [vmem:[%s6072 + $0x24] sm:$0xe]
      %v8714 = vld [vmem:[%s6072 + $0x30] sm:$0xe]
      %v8715 = vld [vmem:[%s6072 + $0x3c] sm:$0xe]
      %v8716 = vld [vmem:[%s6072 + $0x48] sm:$0xe]
      %v8717 = vld [vmem:[%s6072 + $0x54] sm:$0xe]
      %v8718 = vld [vmem:[%s6072 + $0x60] sm:$0xe]
      %v8719 = vld [vmem:[%s6072 + $0x6c] sm:$0xe]
      %v8720 = vld [vmem:[%s6072 + $0x78] sm:$0xe]
      %v8721 = vld [vmem:[%s6072 + $0x84] sm:$0xe]
      %v8722 = vld [vmem:[%s6072 + $0x90] sm:$0xe]
      %v8723 = vld [vmem:[%s6072 + $0x9c] sm:$0xe]
      %v8724 = vld [vmem:[%s6072 + $0xa8] sm:$0xe]
      %v8725 = vld [vmem:[%s6072 + $0xb4] sm:$0xe]
      %v8774 = vrot.slane %v8710, 5
      %v8775 = vrot.slane %v8774, 4
      %v8776 = vrot.slane %v7985, 5
      %v8777 = vsel %vm2069, %v8775, %v8776
      %v8778 = vrot.slane %v8776, 4
      %v8779 = vrot.slane %v7986, 5
      %v8780 = vsel %vm2069, %v8778, %v8779
      %v8781 = vrot.slane %v8711, 5
      %v8782 = vrot.slane %v8781, 4
      %v8783 = vrot.slane %v7988, 5
      %v8784 = vsel %vm2069, %v8782, %v8783
      %v8785 = vrot.slane %v8783, 4
      %v8786 = vrot.slane %v7989, 5
      %v8787 = vsel %vm2069, %v8785, %v8786
      %v8788 = vrot.slane %v8712, 5
      %v8789 = vrot.slane %v8788, 4
      %v8790 = vrot.slane %v7991, 5
      %v8791 = vsel %vm2069, %v8789, %v8790
      %v8792 = vrot.slane %v8790, 4
      %v8793 = vrot.slane %v7992, 5
      %v8794 = vsel %vm2069, %v8792, %v8793
      %v8795 = vrot.slane %v8713, 5
      %v8796 = vrot.slane %v8795, 4
      %v8797 = vrot.slane %v7994, 5
      %v8798 = vsel %vm2069, %v8796, %v8797
      %v8799 = vrot.slane %v8797, 4
      %v8800 = vrot.slane %v7995, 5
      %v8801 = vsel %vm2069, %v8799, %v8800
      %v8802 = vrot.slane %v8714, 5
      %v8803 = vrot.slane %v8802, 4
      %v8804 = vrot.slane %v7997, 5
      %v8805 = vsel %vm2069, %v8803, %v8804
      %v8806 = vrot.slane %v8804, 4
      %v8807 = vrot.slane %v7998, 5
      %v8808 = vsel %vm2069, %v8806, %v8807
      %v8809 = vrot.slane %v8715, 5
      %v8810 = vrot.slane %v8809, 4
      %v8811 = vrot.slane %v8000, 5
      %v8812 = vsel %vm2069, %v8810, %v8811
      %v8813 = vrot.slane %v8811, 4
      %v8814 = vrot.slane %v8001, 5
      %v8815 = vsel %vm2069, %v8813, %v8814
      %v8816 = vrot.slane %v8716, 5
      %v8817 = vrot.slane %v8816, 4
      %v8818 = vrot.slane %v8003, 5
      %v8819 = vsel %vm2069, %v8817, %v8818
      %v8820 = vrot.slane %v8818, 4
      %v8821 = vrot.slane %v8004, 5
      %v8822 = vsel %vm2069, %v8820, %v8821
      %v8823 = vrot.slane %v8717, 5
      %v8824 = vrot.slane %v8823, 4
      %v8825 = vrot.slane %v8006, 5
      %v8826 = vsel %vm2069, %v8824, %v8825
      %v8827 = vrot.slane %v8825, 4
      %v8828 = vrot.slane %v8007, 5
      %v8829 = vsel %vm2069, %v8827, %v8828
      %v8830 = vrot.slane %v8718, 5
      %v8831 = vrot.slane %v8830, 4
      %v8832 = vrot.slane %v8009, 5
      %v8833 = vsel %vm2069, %v8831, %v8832
      %v8834 = vrot.slane %v8832, 4
      %v8835 = vrot.slane %v8010, 5
      %v8836 = vsel %vm2069, %v8834, %v8835
      %v8837 = vrot.slane %v8719, 5
      %v8838 = vrot.slane %v8837, 4
      %v8839 = vrot.slane %v8012, 5
      %v8840 = vsel %vm2069, %v8838, %v8839
      %v8841 = vrot.slane %v8839, 4
      %v8842 = vrot.slane %v8013, 5
      %v8843 = vsel %vm2069, %v8841, %v8842
      %v8844 = vrot.slane %v8720, 5
      %v8845 = vrot.slane %v8844, 4
      %v8846 = vrot.slane %v8015, 5
      %v8847 = vsel %vm2069, %v8845, %v8846
      %v8848 = vrot.slane %v8846, 4
      %v8849 = vrot.slane %v8016, 5
      %v8850 = vsel %vm2069, %v8848, %v8849
      %v8851 = vrot.slane %v8721, 5
      %v8852 = vrot.slane %v8851, 4
      %v8853 = vrot.slane %v8018, 5
      %v8854 = vsel %vm2069, %v8852, %v8853
      %v8855 = vrot.slane %v8853, 4
      %v8856 = vrot.slane %v8019, 5
      %v8857 = vsel %vm2069, %v8855, %v8856
      %v8858 = vrot.slane %v8722, 5
      %v8859 = vrot.slane %v8858, 4
      %v8860 = vrot.slane %v8021, 5
      %v8861 = vsel %vm2069, %v8859, %v8860
      %v8862 = vrot.slane %v8860, 4
      %v8863 = vrot.slane %v8022, 5
      %v8864 = vsel %vm2069, %v8862, %v8863
      %v8865 = vrot.slane %v8723, 5
      %v8866 = vrot.slane %v8865, 4
      %v8867 = vrot.slane %v8024, 5
      %v8868 = vsel %vm2069, %v8866, %v8867
      %v8869 = vrot.slane %v8867, 4
      %v8870 = vrot.slane %v8025, 5
      %v8871 = vsel %vm2069, %v8869, %v8870
      %v8872 = vrot.slane %v8724, 5
      %v8873 = vrot.slane %v8872, 4
      %v8874 = vrot.slane %v8027, 5
      %v8875 = vsel %vm2069, %v8873, %v8874
      %v8876 = vrot.slane %v8874, 4
      %v8877 = vrot.slane %v8028, 5
      %v8878 = vsel %vm2069, %v8876, %v8877
      %v8879 = vrot.slane %v8725, 5
      %v8880 = vrot.slane %v8879, 4
      %v8881 = vrot.slane %v8030, 5
      %v8882 = vsel %vm2069, %v8880, %v8881
      %v8883 = vrot.slane %v8881, 4
      %v8884 = vrot.slane %v8031, 5
      %v8885 = vsel %vm2069, %v8883, %v8884
      %s8886 = scalar_lea.vmem %s3, 10
      %v8887 = vld [vmem:[%s8886] sm:$0x3]
      %v8888 = vunpack.c.l.b16 %v8777
      %v8889 = vunpack.c.l.b16 %v8780
      %v8890 = vunpack.c.l.b16 %v8784
      %v8891 = vunpack.c.l.b16 %v8787
      %v8892 = vunpack.c.l.b16 %v8791
      %v8893 = vunpack.c.l.b16 %v8794
      %v8894 = vunpack.c.l.b16 %v8798
      %v8895 = vunpack.c.l.b16 %v8801
      %v8896 = vunpack.c.l.b16 %v8805
      %v8897 = vunpack.c.l.b16 %v8808
      %v8898 = vunpack.c.l.b16 %v8812
      %v8899 = vunpack.c.l.b16 %v8815
      %v8900 = vunpack.c.l.b16 %v8819
      %v8901 = vunpack.c.l.b16 %v8822
      %v8902 = vunpack.c.l.b16 %v8826
      %v8903 = vunpack.c.l.b16 %v8829
      %v8904 = vunpack.c.l.b16 %v8833
      %v8905 = vunpack.c.l.b16 %v8836
      %v8906 = vunpack.c.l.b16 %v8840
      %v8907 = vunpack.c.l.b16 %v8843
      %v8908 = vunpack.c.l.b16 %v8847
      %v8909 = vunpack.c.l.b16 %v8850
      %v8910 = vunpack.c.l.b16 %v8854
      %v8911 = vunpack.c.l.b16 %v8857
      %v8912 = vunpack.c.l.b16 %v8861
      %v8913 = vunpack.c.l.b16 %v8864
      %v8914 = vunpack.c.l.b16 %v8868
      %v8915 = vunpack.c.l.b16 %v8871
      %v8916 = vunpack.c.l.b16 %v8875
      %v8917 = vunpack.c.l.b16 %v8878
      %v8918 = vunpack.c.l.b16 %v8882
      %v8919 = vunpack.c.l.b16 %v8885
      %v8920 = vpack.c.b16 %v8889, %v8888
      %v8921 = vpack.c.b16 %v8891, %v8890
      %v8922 = vpack.c.b16 %v8893, %v8892
      %v8923 = vpack.c.b16 %v8895, %v8894
      %v8924 = vpack.c.b16 %v8897, %v8896
      %v8925 = vpack.c.b16 %v8899, %v8898
      %v8926 = vpack.c.b16 %v8901, %v8900
      %v8927 = vpack.c.b16 %v8903, %v8902
      %v8928 = vpack.c.b16 %v8905, %v8904
      %v8929 = vpack.c.b16 %v8907, %v8906
      %v8930 = vpack.c.b16 %v8909, %v8908
      %v8931 = vpack.c.b16 %v8911, %v8910
      %v8932 = vpack.c.b16 %v8913, %v8912
      %v8933 = vpack.c.b16 %v8915, %v8914
      %v8934 = vpack.c.b16 %v8917, %v8916
      %v8935 = vpack.c.b16 %v8919, %v8918
      %v8937 = vsel %vm1513, %v8920, 0
      %v8940 = vsel %vm1513, %v8921, 0
      %v8943 = vsel %vm1513, %v8922, 0
      %v8946 = vsel %vm1513, %v8923, 0
      %v8949 = vsel %vm1513, %v8924, 0
      %v8952 = vsel %vm1513, %v8925, 0
      %v8955 = vsel %vm1513, %v8926, 0
      %v8958 = vsel %vm1513, %v8927, 0
      %v8961 = vsel %vm1513, %v8928, 0
      %v8964 = vsel %vm1513, %v8929, 0
      %v8967 = vsel %vm1513, %v8930, 0
      %v8970 = vsel %vm1513, %v8931, 0
      %v8973 = vsel %vm1513, %v8932, 0
      %v8976 = vsel %vm1513, %v8933, 0
      %v8979 = vsel %vm1513, %v8934, 0
      %v8982 = vsel %vm1513, %v8935, 0
      %v8985 = vsel %vm1562, %v8887, 0
      %8987 = vmatprep.subr.bf16.mxu0 0
      %8988 = vmatpush1.bf16.msra.mxu0 0
      %8989 = vmatprep.subr.bf16.mxu0 0
      %8990 = vmatpush1.bf16.msra.mxu0 0
      %8991 = vmatprep.subr.bf16.mxu0 0
      %8992 = vmatpush1.bf16.msra.mxu0 0
      %8993 = vmatprep.subr.bf16.mxu0 0
      %8994 = vmatpush1.bf16.msra.mxu0 0
      %8995 = vmatprep.subr.bf16.mxu0 0
      %8996 = vmatpush1.bf16.msra.mxu0 0
      %8997 = vmatprep.subr.bf16.mxu0 0
      %8998 = vmatpush1.bf16.msra.mxu0 0
      %8999 = vmatprep.subr.bf16.mxu0 0
      %9000 = vmatpush1.bf16.msra.mxu0 0
      %9001 = vmatprep.subr.bf16.mxu0 0
      %9002 = vmatpush1.bf16.msra.mxu0 %v8985
      %9003 = vmatprep.subr.bf16.mxu0 0
      %9004 = vmatpush2.bf16.msra.mxu0 0
      %9005 = vmatprep.subr.bf16.mxu0 0
      %9006 = vmatpush2.bf16.msra.mxu0 0
      %9007 = vmatprep.subr.bf16.mxu0 0
      %9008 = vmatpush2.bf16.msra.mxu0 0
      %9009 = vmatprep.subr.bf16.mxu0 0
      %9010 = vmatpush2.bf16.msra.mxu0 0
      %9011 = vmatprep.subr.bf16.mxu0 0
      %9012 = vmatpush2.bf16.msra.mxu0 0
      %9013 = vmatprep.subr.bf16.mxu0 0
      %9014 = vmatpush2.bf16.msra.mxu0 0
      %9015 = vmatprep.subr.bf16.mxu0 0
      %9016 = vmatpush2.bf16.msra.mxu0 0
      %9017 = vmatprep.subr.bf16.mxu0 0
      %9018 = vmatpush2.bf16.msra.mxu0 0
      %9019 = vmatprep.mubr.bf16.mxu0 0
      %9020 = vmatmul.mubr.bf16.gmra.mxu0 %v8937
      %v9021 = vpop.f32.mrf.mxu0
      %v9022 = vadd.f32 0.0, %v9021
      %v9023 = vpop.f32.mrf.mxu0
      %v9024 = vpop.f32.mrf.mxu0
      %v9025 = vadd.f32 0.0, %v9024
      %v9026 = vpop.f32.mrf.mxu0
      %9027 = vmatprep.mubr.bf16.mxu0 0
      %9028 = vmatmul.mubr.bf16.gmra.mxu0 %v8940
      %v9029 = vpop.f32.mrf.mxu0
      %v9030 = vadd.f32 0.0, %v9029
      %v9031 = vpop.f32.mrf.mxu0
      %v9032 = vpop.f32.mrf.mxu0
      %v9033 = vadd.f32 0.0, %v9032
      %v9034 = vpop.f32.mrf.mxu0
      %9035 = vmatprep.mubr.bf16.mxu0 0
      %9036 = vmatmul.mubr.bf16.gmra.mxu0 %v8943
      %v9037 = vpop.f32.mrf.mxu0
      %v9038 = vadd.f32 0.0, %v9037
      %v9039 = vpop.f32.mrf.mxu0
      %v9040 = vpop.f32.mrf.mxu0
      %v9041 = vadd.f32 0.0, %v9040
      %v9042 = vpop.f32.mrf.mxu0
      %9043 = vmatprep.mubr.bf16.mxu0 0
      %9044 = vmatmul.mubr.bf16.gmra.mxu0 %v8946
      %v9045 = vpop.f32.mrf.mxu0
      %v9046 = vadd.f32 0.0, %v9045
      %v9047 = vpop.f32.mrf.mxu0
      %v9048 = vpop.f32.mrf.mxu0
      %v9049 = vadd.f32 0.0, %v9048
      %v9050 = vpop.f32.mrf.mxu0
      %9051 = vmatprep.mubr.bf16.mxu0 0
      %9052 = vmatmul.mubr.bf16.gmra.mxu0 %v8949
      %v9053 = vpop.f32.mrf.mxu0
      %v9054 = vadd.f32 0.0, %v9053
      %v9055 = vpop.f32.mrf.mxu0
      %v9056 = vpop.f32.mrf.mxu0
      %v9057 = vadd.f32 0.0, %v9056
      %v9058 = vpop.f32.mrf.mxu0
      %9059 = vmatprep.mubr.bf16.mxu0 0
      %9060 = vmatmul.mubr.bf16.gmra.mxu0 %v8952
      %v9061 = vpop.f32.mrf.mxu0
      %v9062 = vadd.f32 0.0, %v9061
      %v9063 = vpop.f32.mrf.mxu0
      %v9064 = vpop.f32.mrf.mxu0
      %v9065 = vadd.f32 0.0, %v9064
      %v9066 = vpop.f32.mrf.mxu0
      %9067 = vmatprep.mubr.bf16.mxu0 0
      %9068 = vmatmul.mubr.bf16.gmra.mxu0 %v8955
      %v9069 = vpop.f32.mrf.mxu0
      %v9070 = vadd.f32 0.0, %v9069
      %v9071 = vpop.f32.mrf.mxu0
      %v9072 = vpop.f32.mrf.mxu0
      %v9073 = vadd.f32 0.0, %v9072
      %v9074 = vpop.f32.mrf.mxu0
      %9075 = vmatprep.mubr.bf16.mxu0 0
      %9076 = vmatmul.mubr.bf16.gmra.mxu0 %v8958
      %v9077 = vpop.f32.mrf.mxu0
      %v9078 = vadd.f32 0.0, %v9077
      %v9079 = vpop.f32.mrf.mxu0
      %v9080 = vpop.f32.mrf.mxu0
      %v9081 = vadd.f32 0.0, %v9080
      %v9082 = vpop.f32.mrf.mxu0
      %9083 = vmatprep.mubr.bf16.mxu0 0
      %9084 = vmatmul.mubr.bf16.gmra.mxu0 %v8961
      %v9085 = vpop.f32.mrf.mxu0
      %v9086 = vadd.f32 0.0, %v9085
      %v9087 = vpop.f32.mrf.mxu0
      %v9088 = vpop.f32.mrf.mxu0
      %v9089 = vadd.f32 0.0, %v9088
      %v9090 = vpop.f32.mrf.mxu0
      %9091 = vmatprep.mubr.bf16.mxu0 0
      %9092 = vmatmul.mubr.bf16.gmra.mxu0 %v8964
      %v9093 = vpop.f32.mrf.mxu0
      %v9094 = vadd.f32 0.0, %v9093
      %v9095 = vpop.f32.mrf.mxu0
      %v9096 = vpop.f32.mrf.mxu0
      %v9097 = vadd.f32 0.0, %v9096
      %v9098 = vpop.f32.mrf.mxu0
      %9099 = vmatprep.mubr.bf16.mxu0 0
      %9100 = vmatmul.mubr.bf16.gmra.mxu0 %v8967
      %v9101 = vpop.f32.mrf.mxu0
      %v9102 = vadd.f32 0.0, %v9101
      %v9103 = vpop.f32.mrf.mxu0
      %v9104 = vpop.f32.mrf.mxu0
      %v9105 = vadd.f32 0.0, %v9104
      %v9106 = vpop.f32.mrf.mxu0
      %9107 = vmatprep.mubr.bf16.mxu0 0
      %9108 = vmatmul.mubr.bf16.gmra.mxu0 %v8970
      %v9109 = vpop.f32.mrf.mxu0
      %v9110 = vadd.f32 0.0, %v9109
      %v9111 = vpop.f32.mrf.mxu0
      %v9112 = vpop.f32.mrf.mxu0
      %v9113 = vadd.f32 0.0, %v9112
      %v9114 = vpop.f32.mrf.mxu0
      %9115 = vmatprep.mubr.bf16.mxu0 0
      %9116 = vmatmul.mubr.bf16.gmra.mxu0 %v8973
      %v9117 = vpop.f32.mrf.mxu0
      %v9118 = vadd.f32 0.0, %v9117
      %v9119 = vpop.f32.mrf.mxu0
      %v9120 = vpop.f32.mrf.mxu0
      %v9121 = vadd.f32 0.0, %v9120
      %v9122 = vpop.f32.mrf.mxu0
      %9123 = vmatprep.mubr.bf16.mxu0 0
      %9124 = vmatmul.mubr.bf16.gmra.mxu0 %v8976
      %v9125 = vpop.f32.mrf.mxu0
      %v9126 = vadd.f32 0.0, %v9125
      %v9127 = vpop.f32.mrf.mxu0
      %v9128 = vpop.f32.mrf.mxu0
      %v9129 = vadd.f32 0.0, %v9128
      %v9130 = vpop.f32.mrf.mxu0
      %9131 = vmatprep.mubr.bf16.mxu0 0
      %9132 = vmatmul.mubr.bf16.gmra.mxu0 %v8979
      %v9133 = vpop.f32.mrf.mxu0
      %v9134 = vadd.f32 0.0, %v9133
      %v9135 = vpop.f32.mrf.mxu0
      %v9136 = vpop.f32.mrf.mxu0
      %v9137 = vadd.f32 0.0, %v9136
      %v9138 = vpop.f32.mrf.mxu0
      %9139 = vmatprep.mubr.bf16.mxu0 0
      %9140 = vmatmul.mubr.bf16.gmra.mxu0 %v8982
      %v9141 = vpop.f32.mrf.mxu0
      %v9142 = vadd.f32 0.0, %v9141
      %v9143 = vpop.f32.mrf.mxu0
      %v9144 = vpop.f32.mrf.mxu0
      %v9145 = vadd.f32 0.0, %v9144
      %v9146 = vpop.f32.mrf.mxu0
      %9147 = vdwg.mxu0
      %v9148 = vadd.f32 %v8678, %v9022
      %v9149 = vadd.f32 %v8679, %v9025
      %v9150 = vadd.f32 %v8680, %v9030
      %v9151 = vadd.f32 %v8681, %v9033
      %v9152 = vadd.f32 %v8682, %v9038
      %v9153 = vadd.f32 %v8683, %v9041
      %v9154 = vadd.f32 %v8684, %v9046
      %v9155 = vadd.f32 %v8685, %v9049
      %v9156 = vadd.f32 %v8686, %v9054
      %v9157 = vadd.f32 %v8687, %v9057
      %v9158 = vadd.f32 %v8688, %v9062
      %v9159 = vadd.f32 %v8689, %v9065
      %v9160 = vadd.f32 %v8690, %v9070
      %v9161 = vadd.f32 %v8691, %v9073
      %v9162 = vadd.f32 %v8692, %v9078
      %v9163 = vadd.f32 %v8693, %v9081
      %v9164 = vadd.f32 %v8694, %v9086
      %v9165 = vadd.f32 %v8695, %v9089
      %v9166 = vadd.f32 %v8696, %v9094
      %v9167 = vadd.f32 %v8697, %v9097
      %v9168 = vadd.f32 %v8698, %v9102
      %v9169 = vadd.f32 %v8699, %v9105
      %v9170 = vadd.f32 %v8700, %v9110
      %v9171 = vadd.f32 %v8701, %v9113
      %v9172 = vadd.f32 %v8702, %v9118
      %v9173 = vadd.f32 %v8703, %v9121
      %v9174 = vadd.f32 %v8704, %v9126
      %v9175 = vadd.f32 %v8705, %v9129
      %v9176 = vadd.f32 %v8706, %v9134
      %v9177 = vadd.f32 %v8707, %v9137
      %v9178 = vadd.f32 %v8708, %v9142
      %v9179 = vadd.f32 %v8709, %v9145
      %s9180 = scalar_lea.vmem [#allocation3], 24
      %v9181 = vld [vmem:[%s9180] sm:$0xf]
      %v9182 = vld [vmem:[%s9180 + $0x4] sm:$0xf]
      %v9183 = vld [vmem:[%s9180 + $0xc] sm:$0xf]
      %v9184 = vld [vmem:[%s9180 + $0x10] sm:$0xf]
      %v9185 = vld [vmem:[%s9180 + $0x18] sm:$0xf]
      %v9186 = vld [vmem:[%s9180 + $0x1c] sm:$0xf]
      %v9187 = vld [vmem:[%s9180 + $0x24] sm:$0xf]
      %v9188 = vld [vmem:[%s9180 + $0x28] sm:$0xf]
      %v9189 = vld [vmem:[%s9180 + $0x30] sm:$0xf]
      %v9190 = vld [vmem:[%s9180 + $0x34] sm:$0xf]
      %v9191 = vld [vmem:[%s9180 + $0x3c] sm:$0xf]
      %v9192 = vld [vmem:[%s9180 + $0x40] sm:$0xf]
      %v9193 = vld [vmem:[%s9180 + $0x48] sm:$0xf]
      %v9194 = vld [vmem:[%s9180 + $0x4c] sm:$0xf]
      %v9195 = vld [vmem:[%s9180 + $0x54] sm:$0xf]
      %v9196 = vld [vmem:[%s9180 + $0x58] sm:$0xf]
      %v9197 = vld [vmem:[%s9180 + $0x60] sm:$0xf]
      %v9198 = vld [vmem:[%s9180 + $0x64] sm:$0xf]
      %v9199 = vld [vmem:[%s9180 + $0x6c] sm:$0xf]
      %v9200 = vld [vmem:[%s9180 + $0x70] sm:$0xf]
      %v9201 = vld [vmem:[%s9180 + $0x78] sm:$0xf]
      %v9202 = vld [vmem:[%s9180 + $0x7c] sm:$0xf]
      %v9203 = vld [vmem:[%s9180 + $0x84] sm:$0xf]
      %v9204 = vld [vmem:[%s9180 + $0x88] sm:$0xf]
      %v9205 = vld [vmem:[%s9180 + $0x90] sm:$0xf]
      %v9206 = vld [vmem:[%s9180 + $0x94] sm:$0xf]
      %v9207 = vld [vmem:[%s9180 + $0x9c] sm:$0xf]
      %v9208 = vld [vmem:[%s9180 + $0xa0] sm:$0xf]
      %v9209 = vld [vmem:[%s9180 + $0xa8] sm:$0xf]
      %v9210 = vld [vmem:[%s9180 + $0xac] sm:$0xf]
      %v9211 = vld [vmem:[%s9180 + $0xb4] sm:$0xf]
      %v9212 = vld [vmem:[%s9180 + $0xb8] sm:$0xf]
      %s9213 = scalar_lea.vmem %s3, 12
      %v9214 = vld [vmem:[%s9213] sm:$0x3]
      %v9247 = vunpack.c.l.b16 %v9181
      %v9248 = vunpack.c.l.b16 %v9182
      %v9249 = vunpack.c.l.b16 %v9183
      %v9250 = vunpack.c.l.b16 %v9184
      %v9251 = vunpack.c.l.b16 %v9185
      %v9252 = vunpack.c.l.b16 %v9186
      %v9253 = vunpack.c.l.b16 %v9187
      %v9254 = vunpack.c.l.b16 %v9188
      %v9255 = vunpack.c.l.b16 %v9189
      %v9256 = vunpack.c.l.b16 %v9190
      %v9257 = vunpack.c.l.b16 %v9191
      %v9258 = vunpack.c.l.b16 %v9192
      %v9259 = vunpack.c.l.b16 %v9193
      %v9260 = vunpack.c.l.b16 %v9194
      %v9261 = vunpack.c.l.b16 %v9195
      %v9262 = vunpack.c.l.b16 %v9196
      %v9263 = vunpack.c.l.b16 %v9197
      %v9264 = vunpack.c.l.b16 %v9198
      %v9265 = vunpack.c.l.b16 %v9199
      %v9266 = vunpack.c.l.b16 %v9200
      %v9267 = vunpack.c.l.b16 %v9201
      %v9268 = vunpack.c.l.b16 %v9202
      %v9269 = vunpack.c.l.b16 %v9203
      %v9270 = vunpack.c.l.b16 %v9204
      %v9271 = vunpack.c.l.b16 %v9205
      %v9272 = vunpack.c.l.b16 %v9206
      %v9273 = vunpack.c.l.b16 %v9207
      %v9274 = vunpack.c.l.b16 %v9208
      %v9275 = vunpack.c.l.b16 %v9209
      %v9276 = vunpack.c.l.b16 %v9210
      %v9277 = vunpack.c.l.b16 %v9211
      %v9278 = vunpack.c.l.b16 %v9212
      %v9279 = vpack.c.b16 %v9248, %v9247
      %v9280 = vpack.c.b16 %v9250, %v9249
      %v9281 = vpack.c.b16 %v9252, %v9251
      %v9282 = vpack.c.b16 %v9254, %v9253
      %v9283 = vpack.c.b16 %v9256, %v9255
      %v9284 = vpack.c.b16 %v9258, %v9257
      %v9285 = vpack.c.b16 %v9260, %v9259
      %v9286 = vpack.c.b16 %v9262, %v9261
      %v9287 = vpack.c.b16 %v9264, %v9263
      %v9288 = vpack.c.b16 %v9266, %v9265
      %v9289 = vpack.c.b16 %v9268, %v9267
      %v9290 = vpack.c.b16 %v9270, %v9269
      %v9291 = vpack.c.b16 %v9272, %v9271
      %v9292 = vpack.c.b16 %v9274, %v9273
      %v9293 = vpack.c.b16 %v9276, %v9275
      %v9294 = vpack.c.b16 %v9278, %v9277
      %v9296 = vsel %vm1513, %v9279, 0
      %v9299 = vsel %vm1513, %v9280, 0
      %v9302 = vsel %vm1513, %v9281, 0
      %v9305 = vsel %vm1513, %v9282, 0
      %v9308 = vsel %vm1513, %v9283, 0
      %v9311 = vsel %vm1513, %v9284, 0
      %v9314 = vsel %vm1513, %v9285, 0
      %v9317 = vsel %vm1513, %v9286, 0
      %v9320 = vsel %vm1513, %v9287, 0
      %v9323 = vsel %vm1513, %v9288, 0
      %v9326 = vsel %vm1513, %v9289, 0
      %v9329 = vsel %vm1513, %v9290, 0
      %v9332 = vsel %vm1513, %v9291, 0
      %v9335 = vsel %vm1513, %v9292, 0
      %v9338 = vsel %vm1513, %v9293, 0
      %v9341 = vsel %vm1513, %v9294, 0
      %v9344 = vsel %vm1562, %v9214, 0
      %9346 = vmatprep.subr.bf16.mxu0 0
      %9347 = vmatpush1.bf16.msra.mxu0 0
      %9348 = vmatprep.subr.bf16.mxu0 0
      %9349 = vmatpush1.bf16.msra.mxu0 0
      %9350 = vmatprep.subr.bf16.mxu0 0
      %9351 = vmatpush1.bf16.msra.mxu0 0
      %9352 = vmatprep.subr.bf16.mxu0 0
      %9353 = vmatpush1.bf16.msra.mxu0 0
      %9354 = vmatprep.subr.bf16.mxu0 0
      %9355 = vmatpush1.bf16.msra.mxu0 0
      %9356 = vmatprep.subr.bf16.mxu0 0
      %9357 = vmatpush1.bf16.msra.mxu0 0
      %9358 = vmatprep.subr.bf16.mxu0 0
      %9359 = vmatpush1.bf16.msra.mxu0 0
      %9360 = vmatprep.subr.bf16.mxu0 0
      %9361 = vmatpush1.bf16.msra.mxu0 %v9344
      %9362 = vmatprep.subr.bf16.mxu0 0
      %9363 = vmatpush2.bf16.msra.mxu0 0
      %9364 = vmatprep.subr.bf16.mxu0 0
      %9365 = vmatpush2.bf16.msra.mxu0 0
      %9366 = vmatprep.subr.bf16.mxu0 0
      %9367 = vmatpush2.bf16.msra.mxu0 0
      %9368 = vmatprep.subr.bf16.mxu0 0
      %9369 = vmatpush2.bf16.msra.mxu0 0
      %9370 = vmatprep.subr.bf16.mxu0 0
      %9371 = vmatpush2.bf16.msra.mxu0 0
      %9372 = vmatprep.subr.bf16.mxu0 0
      %9373 = vmatpush2.bf16.msra.mxu0 0
      %9374 = vmatprep.subr.bf16.mxu0 0
      %9375 = vmatpush2.bf16.msra.mxu0 0
      %9376 = vmatprep.subr.bf16.mxu0 0
      %9377 = vmatpush2.bf16.msra.mxu0 0
      %9378 = vmatprep.mubr.bf16.mxu0 0
      %9379 = vmatmul.mubr.bf16.gmra.mxu0 %v9296
      %v9380 = vpop.f32.mrf.mxu0
      %v9381 = vadd.f32 0.0, %v9380
      %v9382 = vpop.f32.mrf.mxu0
      %v9383 = vpop.f32.mrf.mxu0
      %v9384 = vadd.f32 0.0, %v9383
      %v9385 = vpop.f32.mrf.mxu0
      %9386 = vmatprep.mubr.bf16.mxu0 0
      %9387 = vmatmul.mubr.bf16.gmra.mxu0 %v9299
      %v9388 = vpop.f32.mrf.mxu0
      %v9389 = vadd.f32 0.0, %v9388
      %v9390 = vpop.f32.mrf.mxu0
      %v9391 = vpop.f32.mrf.mxu0
      %v9392 = vadd.f32 0.0, %v9391
      %v9393 = vpop.f32.mrf.mxu0
      %9394 = vmatprep.mubr.bf16.mxu0 0
      %9395 = vmatmul.mubr.bf16.gmra.mxu0 %v9302
      %v9396 = vpop.f32.mrf.mxu0
      %v9397 = vadd.f32 0.0, %v9396
      %v9398 = vpop.f32.mrf.mxu0
      %v9399 = vpop.f32.mrf.mxu0
      %v9400 = vadd.f32 0.0, %v9399
      %v9401 = vpop.f32.mrf.mxu0
      %9402 = vmatprep.mubr.bf16.mxu0 0
      %9403 = vmatmul.mubr.bf16.gmra.mxu0 %v9305
      %v9404 = vpop.f32.mrf.mxu0
      %v9405 = vadd.f32 0.0, %v9404
      %v9406 = vpop.f32.mrf.mxu0
      %v9407 = vpop.f32.mrf.mxu0
      %v9408 = vadd.f32 0.0, %v9407
      %v9409 = vpop.f32.mrf.mxu0
      %9410 = vmatprep.mubr.bf16.mxu0 0
      %9411 = vmatmul.mubr.bf16.gmra.mxu0 %v9308
      %v9412 = vpop.f32.mrf.mxu0
      %v9413 = vadd.f32 0.0, %v9412
      %v9414 = vpop.f32.mrf.mxu0
      %v9415 = vpop.f32.mrf.mxu0
      %v9416 = vadd.f32 0.0, %v9415
      %v9417 = vpop.f32.mrf.mxu0
      %9418 = vmatprep.mubr.bf16.mxu0 0
      %9419 = vmatmul.mubr.bf16.gmra.mxu0 %v9311
      %v9420 = vpop.f32.mrf.mxu0
      %v9421 = vadd.f32 0.0, %v9420
      %v9422 = vpop.f32.mrf.mxu0
      %v9423 = vpop.f32.mrf.mxu0
      %v9424 = vadd.f32 0.0, %v9423
      %v9425 = vpop.f32.mrf.mxu0
      %9426 = vmatprep.mubr.bf16.mxu0 0
      %9427 = vmatmul.mubr.bf16.gmra.mxu0 %v9314
      %v9428 = vpop.f32.mrf.mxu0
      %v9429 = vadd.f32 0.0, %v9428
      %v9430 = vpop.f32.mrf.mxu0
      %v9431 = vpop.f32.mrf.mxu0
      %v9432 = vadd.f32 0.0, %v9431
      %v9433 = vpop.f32.mrf.mxu0
      %9434 = vmatprep.mubr.bf16.mxu0 0
      %9435 = vmatmul.mubr.bf16.gmra.mxu0 %v9317
      %v9436 = vpop.f32.mrf.mxu0
      %v9437 = vadd.f32 0.0, %v9436
      %v9438 = vpop.f32.mrf.mxu0
      %v9439 = vpop.f32.mrf.mxu0
      %v9440 = vadd.f32 0.0, %v9439
      %v9441 = vpop.f32.mrf.mxu0
      %9442 = vmatprep.mubr.bf16.mxu0 0
      %9443 = vmatmul.mubr.bf16.gmra.mxu0 %v9320
      %v9444 = vpop.f32.mrf.mxu0
      %v9445 = vadd.f32 0.0, %v9444
      %v9446 = vpop.f32.mrf.mxu0
      %v9447 = vpop.f32.mrf.mxu0
      %v9448 = vadd.f32 0.0, %v9447
      %v9449 = vpop.f32.mrf.mxu0
      %9450 = vmatprep.mubr.bf16.mxu0 0
      %9451 = vmatmul.mubr.bf16.gmra.mxu0 %v9323
      %v9452 = vpop.f32.mrf.mxu0
      %v9453 = vadd.f32 0.0, %v9452
      %v9454 = vpop.f32.mrf.mxu0
      %v9455 = vpop.f32.mrf.mxu0
      %v9456 = vadd.f32 0.0, %v9455
      %v9457 = vpop.f32.mrf.mxu0
      %9458 = vmatprep.mubr.bf16.mxu0 0
      %9459 = vmatmul.mubr.bf16.gmra.mxu0 %v9326
      %v9460 = vpop.f32.mrf.mxu0
      %v9461 = vadd.f32 0.0, %v9460
      %v9462 = vpop.f32.mrf.mxu0
      %v9463 = vpop.f32.mrf.mxu0
      %v9464 = vadd.f32 0.0, %v9463
      %v9465 = vpop.f32.mrf.mxu0
      %9466 = vmatprep.mubr.bf16.mxu0 0
      %9467 = vmatmul.mubr.bf16.gmra.mxu0 %v9329
      %v9468 = vpop.f32.mrf.mxu0
      %v9469 = vadd.f32 0.0, %v9468
      %v9470 = vpop.f32.mrf.mxu0
      %v9471 = vpop.f32.mrf.mxu0
      %v9472 = vadd.f32 0.0, %v9471
      %v9473 = vpop.f32.mrf.mxu0
      %9474 = vmatprep.mubr.bf16.mxu0 0
      %9475 = vmatmul.mubr.bf16.gmra.mxu0 %v9332
      %v9476 = vpop.f32.mrf.mxu0
      %v9477 = vadd.f32 0.0, %v9476
      %v9478 = vpop.f32.mrf.mxu0
      %v9479 = vpop.f32.mrf.mxu0
      %v9480 = vadd.f32 0.0, %v9479
      %v9481 = vpop.f32.mrf.mxu0
      %9482 = vmatprep.mubr.bf16.mxu0 0
      %9483 = vmatmul.mubr.bf16.gmra.mxu0 %v9335
      %v9484 = vpop.f32.mrf.mxu0
      %v9485 = vadd.f32 0.0, %v9484
      %v9486 = vpop.f32.mrf.mxu0
      %v9487 = vpop.f32.mrf.mxu0
      %v9488 = vadd.f32 0.0, %v9487
      %v9489 = vpop.f32.mrf.mxu0
      %9490 = vmatprep.mubr.bf16.mxu0 0
      %9491 = vmatmul.mubr.bf16.gmra.mxu0 %v9338
      %v9492 = vpop.f32.mrf.mxu0
      %v9493 = vadd.f32 0.0, %v9492
      %v9494 = vpop.f32.mrf.mxu0
      %v9495 = vpop.f32.mrf.mxu0
      %v9496 = vadd.f32 0.0, %v9495
      %v9497 = vpop.f32.mrf.mxu0
      %9498 = vmatprep.mubr.bf16.mxu0 0
      %9499 = vmatmul.mubr.bf16.gmra.mxu0 %v9341
      %v9500 = vpop.f32.mrf.mxu0
      %v9501 = vadd.f32 0.0, %v9500
      %v9502 = vpop.f32.mrf.mxu0
      %v9503 = vpop.f32.mrf.mxu0
      %v9504 = vadd.f32 0.0, %v9503
      %v9505 = vpop.f32.mrf.mxu0
      %9506 = vdwg.mxu0
      %v9507 = vadd.f32 %v9148, %v9381
      %v9508 = vadd.f32 %v9149, %v9384
      %v9509 = vadd.f32 %v9150, %v9389
      %v9510 = vadd.f32 %v9151, %v9392
      %v9511 = vadd.f32 %v9152, %v9397
      %v9512 = vadd.f32 %v9153, %v9400
      %v9513 = vadd.f32 %v9154, %v9405
      %v9514 = vadd.f32 %v9155, %v9408
      %v9515 = vadd.f32 %v9156, %v9413
      %v9516 = vadd.f32 %v9157, %v9416
      %v9517 = vadd.f32 %v9158, %v9421
      %v9518 = vadd.f32 %v9159, %v9424
      %v9519 = vadd.f32 %v9160, %v9429
      %v9520 = vadd.f32 %v9161, %v9432
      %v9521 = vadd.f32 %v9162, %v9437
      %v9522 = vadd.f32 %v9163, %v9440
      %v9523 = vadd.f32 %v9164, %v9445
      %v9524 = vadd.f32 %v9165, %v9448
      %v9525 = vadd.f32 %v9166, %v9453
      %v9526 = vadd.f32 %v9167, %v9456
      %v9527 = vadd.f32 %v9168, %v9461
      %v9528 = vadd.f32 %v9169, %v9464
      %v9529 = vadd.f32 %v9170, %v9469
      %v9530 = vadd.f32 %v9171, %v9472
      %v9531 = vadd.f32 %v9172, %v9477
      %v9532 = vadd.f32 %v9173, %v9480
      %v9533 = vadd.f32 %v9174, %v9485
      %v9534 = vadd.f32 %v9175, %v9488
      %v9535 = vadd.f32 %v9176, %v9493
      %v9536 = vadd.f32 %v9177, %v9496
      %v9537 = vadd.f32 %v9178, %v9501
      %v9538 = vadd.f32 %v9179, %v9504
      %v9539 = vld [vmem:[%s9180] sm:$0xf]
      %v9540 = vld [vmem:[%s9180 + $0x4] sm:$0xf]
      %v9541 = vld [vmem:[%s9180 + $0x8] sm:$0x1]
      %v9542 = vld [vmem:[%s9180 + $0xc] sm:$0xf]
      %v9543 = vld [vmem:[%s9180 + $0x10] sm:$0xf]
      %v9544 = vld [vmem:[%s9180 + $0x14] sm:$0x1]
      %v9545 = vld [vmem:[%s9180 + $0x18] sm:$0xf]
      %v9546 = vld [vmem:[%s9180 + $0x1c] sm:$0xf]
      %v9547 = vld [vmem:[%s9180 + $0x20] sm:$0x1]
      %v9548 = vld [vmem:[%s9180 + $0x24] sm:$0xf]
      %v9549 = vld [vmem:[%s9180 + $0x28] sm:$0xf]
      %v9550 = vld [vmem:[%s9180 + $0x2c] sm:$0x1]
      %v9551 = vld [vmem:[%s9180 + $0x30] sm:$0xf]
      %v9552 = vld [vmem:[%s9180 + $0x34] sm:$0xf]
      %v9553 = vld [vmem:[%s9180 + $0x38] sm:$0x1]
      %v9554 = vld [vmem:[%s9180 + $0x3c] sm:$0xf]
      %v9555 = vld [vmem:[%s9180 + $0x40] sm:$0xf]
      %v9556 = vld [vmem:[%s9180 + $0x44] sm:$0x1]
      %v9557 = vld [vmem:[%s9180 + $0x48] sm:$0xf]
      %v9558 = vld [vmem:[%s9180 + $0x4c] sm:$0xf]
      %v9559 = vld [vmem:[%s9180 + $0x50] sm:$0x1]
      %v9560 = vld [vmem:[%s9180 + $0x54] sm:$0xf]
      %v9561 = vld [vmem:[%s9180 + $0x58] sm:$0xf]
      %v9562 = vld [vmem:[%s9180 + $0x5c] sm:$0x1]
      %v9563 = vld [vmem:[%s9180 + $0x60] sm:$0xf]
      %v9564 = vld [vmem:[%s9180 + $0x64] sm:$0xf]
      %v9565 = vld [vmem:[%s9180 + $0x68] sm:$0x1]
      %v9566 = vld [vmem:[%s9180 + $0x6c] sm:$0xf]
      %v9567 = vld [vmem:[%s9180 + $0x70] sm:$0xf]
      %v9568 = vld [vmem:[%s9180 + $0x74] sm:$0x1]
      %v9569 = vld [vmem:[%s9180 + $0x78] sm:$0xf]
      %v9570 = vld [vmem:[%s9180 + $0x7c] sm:$0xf]
      %v9571 = vld [vmem:[%s9180 + $0x80] sm:$0x1]
      %v9572 = vld [vmem:[%s9180 + $0x84] sm:$0xf]
      %v9573 = vld [vmem:[%s9180 + $0x88] sm:$0xf]
      %v9574 = vld [vmem:[%s9180 + $0x8c] sm:$0x1]
      %v9575 = vld [vmem:[%s9180 + $0x90] sm:$0xf]
      %v9576 = vld [vmem:[%s9180 + $0x94] sm:$0xf]
      %v9577 = vld [vmem:[%s9180 + $0x98] sm:$0x1]
      %v9578 = vld [vmem:[%s9180 + $0x9c] sm:$0xf]
      %v9579 = vld [vmem:[%s9180 + $0xa0] sm:$0xf]
      %v9580 = vld [vmem:[%s9180 + $0xa4] sm:$0x1]
      %v9581 = vld [vmem:[%s9180 + $0xa8] sm:$0xf]
      %v9582 = vld [vmem:[%s9180 + $0xac] sm:$0xf]
      %v9583 = vld [vmem:[%s9180 + $0xb0] sm:$0x1]
      %v9584 = vld [vmem:[%s9180 + $0xb4] sm:$0xf]
      %v9585 = vld [vmem:[%s9180 + $0xb8] sm:$0xf]
      %v9586 = vld [vmem:[%s9180 + $0xbc] sm:$0x1]
      %v9588 = vshrl.u32 %v9539, 16
      %v9590 = vrot.slane %v9588, 4
      %v9591 = vshll.u32 %v9539, 16
      %v9593 = vrot.slane %v9591, 5
      %v9594 = vor.u32 %v9590, %v9593
      %v9595 = vrot.slane %v9594, 4
      %v9597 = vshll.u32 %v9540, 16
      %v9599 = vrot.slane %v9597, 5
      %v9600 = vsel %vm1078, %v9595, %v9599
      %v9601 = vshrl.u32 %v9540, 16
      %v9603 = vrot.slane %v9601, 4
      %v9604 = vor.u32 %v9603, %v9599
      %v9605 = vrot.slane %v9604, 4
      %v9607 = vshll.u32 %v9541, 16
      %v9609 = vrot.slane %v9607, 5
      %v9610 = vsel %vm1078, %v9605, %v9609
      %v9612 = vshrl.u32 %v9542, 16
      %v9614 = vrot.slane %v9612, 4
      %v9615 = vshll.u32 %v9542, 16
      %v9617 = vrot.slane %v9615, 5
      %v9618 = vor.u32 %v9614, %v9617
      %v9619 = vrot.slane %v9618, 4
      %v9621 = vshll.u32 %v9543, 16
      %v9623 = vrot.slane %v9621, 5
      %v9624 = vsel %vm1078, %v9619, %v9623
      %v9625 = vshrl.u32 %v9543, 16
      %v9627 = vrot.slane %v9625, 4
      %v9628 = vor.u32 %v9627, %v9623
      %v9629 = vrot.slane %v9628, 4
      %v9631 = vshll.u32 %v9544, 16
      %v9633 = vrot.slane %v9631, 5
      %v9634 = vsel %vm1078, %v9629, %v9633
      %v9636 = vshrl.u32 %v9545, 16
      %v9638 = vrot.slane %v9636, 4
      %v9639 = vshll.u32 %v9545, 16
      %v9641 = vrot.slane %v9639, 5
      %v9642 = vor.u32 %v9638, %v9641
      %v9643 = vrot.slane %v9642, 4
      %v9645 = vshll.u32 %v9546, 16
      %v9647 = vrot.slane %v9645, 5
      %v9648 = vsel %vm1078, %v9643, %v9647
      %v9649 = vshrl.u32 %v9546, 16
      %v9651 = vrot.slane %v9649, 4
      %v9652 = vor.u32 %v9651, %v9647
      %v9653 = vrot.slane %v9652, 4
      %v9655 = vshll.u32 %v9547, 16
      %v9657 = vrot.slane %v9655, 5
      %v9658 = vsel %vm1078, %v9653, %v9657
      %v9660 = vshrl.u32 %v9548, 16
      %v9662 = vrot.slane %v9660, 4
      %v9663 = vshll.u32 %v9548, 16
      %v9665 = vrot.slane %v9663, 5
      %v9666 = vor.u32 %v9662, %v9665
      %v9667 = vrot.slane %v9666, 4
      %v9669 = vshll.u32 %v9549, 16
      %v9671 = vrot.slane %v9669, 5
      %v9672 = vsel %vm1078, %v9667, %v9671
      %v9673 = vshrl.u32 %v9549, 16
      %v9675 = vrot.slane %v9673, 4
      %v9676 = vor.u32 %v9675, %v9671
      %v9677 = vrot.slane %v9676, 4
      %v9679 = vshll.u32 %v9550, 16
      %v9681 = vrot.slane %v9679, 5
      %v9682 = vsel %vm1078, %v9677, %v9681
      %v9684 = vshrl.u32 %v9551, 16
      %v9686 = vrot.slane %v9684, 4
      %v9687 = vshll.u32 %v9551, 16
      %v9689 = vrot.slane %v9687, 5
      %v9690 = vor.u32 %v9686, %v9689
      %v9691 = vrot.slane %v9690, 4
      %v9693 = vshll.u32 %v9552, 16
      %v9695 = vrot.slane %v9693, 5
      %v9696 = vsel %vm1078, %v9691, %v9695
      %v9697 = vshrl.u32 %v9552, 16
      %v9699 = vrot.slane %v9697, 4
      %v9700 = vor.u32 %v9699, %v9695
      %v9701 = vrot.slane %v9700, 4
      %v9703 = vshll.u32 %v9553, 16
      %v9705 = vrot.slane %v9703, 5
      %v9706 = vsel %vm1078, %v9701, %v9705
      %v9708 = vshrl.u32 %v9554, 16
      %v9710 = vrot.slane %v9708, 4
      %v9711 = vshll.u32 %v9554, 16
      %v9713 = vrot.slane %v9711, 5
      %v9714 = vor.u32 %v9710, %v9713
      %v9715 = vrot.slane %v9714, 4
      %v9717 = vshll.u32 %v9555, 16
      %v9719 = vrot.slane %v9717, 5
      %v9720 = vsel %vm1078, %v9715, %v9719
      %v9721 = vshrl.u32 %v9555, 16
      %v9723 = vrot.slane %v9721, 4
      %v9724 = vor.u32 %v9723, %v9719
      %v9725 = vrot.slane %v9724, 4
      %v9727 = vshll.u32 %v9556, 16
      %v9729 = vrot.slane %v9727, 5
      %v9730 = vsel %vm1078, %v9725, %v9729
      %v9732 = vshrl.u32 %v9557, 16
      %v9734 = vrot.slane %v9732, 4
      %v9735 = vshll.u32 %v9557, 16
      %v9737 = vrot.slane %v9735, 5
      %v9738 = vor.u32 %v9734, %v9737
      %v9739 = vrot.slane %v9738, 4
      %v9741 = vshll.u32 %v9558, 16
      %v9743 = vrot.slane %v9741, 5
      %v9744 = vsel %vm1078, %v9739, %v9743
      %v9745 = vshrl.u32 %v9558, 16
      %v9747 = vrot.slane %v9745, 4
      %v9748 = vor.u32 %v9747, %v9743
      %v9749 = vrot.slane %v9748, 4
      %v9751 = vshll.u32 %v9559, 16
      %v9753 = vrot.slane %v9751, 5
      %v9754 = vsel %vm1078, %v9749, %v9753
      %v9756 = vshrl.u32 %v9560, 16
      %v9758 = vrot.slane %v9756, 4
      %v9759 = vshll.u32 %v9560, 16
      %v9761 = vrot.slane %v9759, 5
      %v9762 = vor.u32 %v9758, %v9761
      %v9763 = vrot.slane %v9762, 4
      %v9765 = vshll.u32 %v9561, 16
      %v9767 = vrot.slane %v9765, 5
      %v9768 = vsel %vm1078, %v9763, %v9767
      %v9769 = vshrl.u32 %v9561, 16
      %v9771 = vrot.slane %v9769, 4
      %v9772 = vor.u32 %v9771, %v9767
      %v9773 = vrot.slane %v9772, 4
      %v9775 = vshll.u32 %v9562, 16
      %v9777 = vrot.slane %v9775, 5
      %v9778 = vsel %vm1078, %v9773, %v9777
      %v9780 = vshrl.u32 %v9563, 16
      %v9782 = vrot.slane %v9780, 4
      %v9783 = vshll.u32 %v9563, 16
      %v9785 = vrot.slane %v9783, 5
      %v9786 = vor.u32 %v9782, %v9785
      %v9787 = vrot.slane %v9786, 4
      %v9789 = vshll.u32 %v9564, 16
      %v9791 = vrot.slane %v9789, 5
      %v9792 = vsel %vm1078, %v9787, %v9791
      %v9793 = vshrl.u32 %v9564, 16
      %v9795 = vrot.slane %v9793, 4
      %v9796 = vor.u32 %v9795, %v9791
      %v9797 = vrot.slane %v9796, 4
      %v9799 = vshll.u32 %v9565, 16
      %v9801 = vrot.slane %v9799, 5
      %v9802 = vsel %vm1078, %v9797, %v9801
      %v9804 = vshrl.u32 %v9566, 16
      %v9806 = vrot.slane %v9804, 4
      %v9807 = vshll.u32 %v9566, 16
      %v9809 = vrot.slane %v9807, 5
      %v9810 = vor.u32 %v9806, %v9809
      %v9811 = vrot.slane %v9810, 4
      %v9813 = vshll.u32 %v9567, 16
      %v9815 = vrot.slane %v9813, 5
      %v9816 = vsel %vm1078, %v9811, %v9815
      %v9817 = vshrl.u32 %v9567, 16
      %v9819 = vrot.slane %v9817, 4
      %v9820 = vor.u32 %v9819, %v9815
      %v9821 = vrot.slane %v9820, 4
      %v9823 = vshll.u32 %v9568, 16
      %v9825 = vrot.slane %v9823, 5
      %v9826 = vsel %vm1078, %v9821, %v9825
      %v9828 = vshrl.u32 %v9569, 16
      %v9830 = vrot.slane %v9828, 4
      %v9831 = vshll.u32 %v9569, 16
      %v9833 = vrot.slane %v9831, 5
      %v9834 = vor.u32 %v9830, %v9833
      %v9835 = vrot.slane %v9834, 4
      %v9837 = vshll.u32 %v9570, 16
      %v9839 = vrot.slane %v9837, 5
      %v9840 = vsel %vm1078, %v9835, %v9839
      %v9841 = vshrl.u32 %v9570, 16
      %v9843 = vrot.slane %v9841, 4
      %v9844 = vor.u32 %v9843, %v9839
      %v9845 = vrot.slane %v9844, 4
      %v9847 = vshll.u32 %v9571, 16
      %v9849 = vrot.slane %v9847, 5
      %v9850 = vsel %vm1078, %v9845, %v9849
      %v9852 = vshrl.u32 %v9572, 16
      %v9854 = vrot.slane %v9852, 4
      %v9855 = vshll.u32 %v9572, 16
      %v9857 = vrot.slane %v9855, 5
      %v9858 = vor.u32 %v9854, %v9857
      %v9859 = vrot.slane %v9858, 4
      %v9861 = vshll.u32 %v9573, 16
      %v9863 = vrot.slane %v9861, 5
      %v9864 = vsel %vm1078, %v9859, %v9863
      %v9865 = vshrl.u32 %v9573, 16
      %v9867 = vrot.slane %v9865, 4
      %v9868 = vor.u32 %v9867, %v9863
      %v9869 = vrot.slane %v9868, 4
      %v9871 = vshll.u32 %v9574, 16
      %v9873 = vrot.slane %v9871, 5
      %v9874 = vsel %vm1078, %v9869, %v9873
      %v9876 = vshrl.u32 %v9575, 16
      %v9878 = vrot.slane %v9876, 4
      %v9879 = vshll.u32 %v9575, 16
      %v9881 = vrot.slane %v9879, 5
      %v9882 = vor.u32 %v9878, %v9881
      %v9883 = vrot.slane %v9882, 4
      %v9885 = vshll.u32 %v9576, 16
      %v9887 = vrot.slane %v9885, 5
      %v9888 = vsel %vm1078, %v9883, %v9887
      %v9889 = vshrl.u32 %v9576, 16
      %v9891 = vrot.slane %v9889, 4
      %v9892 = vor.u32 %v9891, %v9887
      %v9893 = vrot.slane %v9892, 4
      %v9895 = vshll.u32 %v9577, 16
      %v9897 = vrot.slane %v9895, 5
      %v9898 = vsel %vm1078, %v9893, %v9897
      %v9900 = vshrl.u32 %v9578, 16
      %v9902 = vrot.slane %v9900, 4
      %v9903 = vshll.u32 %v9578, 16
      %v9905 = vrot.slane %v9903, 5
      %v9906 = vor.u32 %v9902, %v9905
      %v9907 = vrot.slane %v9906, 4
      %v9909 = vshll.u32 %v9579, 16
      %v9911 = vrot.slane %v9909, 5
      %v9912 = vsel %vm1078, %v9907, %v9911
      %v9913 = vshrl.u32 %v9579, 16
      %v9915 = vrot.slane %v9913, 4
      %v9916 = vor.u32 %v9915, %v9911
      %v9917 = vrot.slane %v9916, 4
      %v9919 = vshll.u32 %v9580, 16
      %v9921 = vrot.slane %v9919, 5
      %v9922 = vsel %vm1078, %v9917, %v9921
      %v9924 = vshrl.u32 %v9581, 16
      %v9926 = vrot.slane %v9924, 4
      %v9927 = vshll.u32 %v9581, 16
      %v9929 = vrot.slane %v9927, 5
      %v9930 = vor.u32 %v9926, %v9929
      %v9931 = vrot.slane %v9930, 4
      %v9933 = vshll.u32 %v9582, 16
      %v9935 = vrot.slane %v9933, 5
      %v9936 = vsel %vm1078, %v9931, %v9935
      %v9937 = vshrl.u32 %v9582, 16
      %v9939 = vrot.slane %v9937, 4
      %v9940 = vor.u32 %v9939, %v9935
      %v9941 = vrot.slane %v9940, 4
      %v9943 = vshll.u32 %v9583, 16
      %v9945 = vrot.slane %v9943, 5
      %v9946 = vsel %vm1078, %v9941, %v9945
      %v9948 = vshrl.u32 %v9584, 16
      %v9950 = vrot.slane %v9948, 4
      %v9951 = vshll.u32 %v9584, 16
      %v9953 = vrot.slane %v9951, 5
      %v9954 = vor.u32 %v9950, %v9953
      %v9955 = vrot.slane %v9954, 4
      %v9957 = vshll.u32 %v9585, 16
      %v9959 = vrot.slane %v9957, 5
      %v9960 = vsel %vm1078, %v9955, %v9959
      %v9961 = vshrl.u32 %v9585, 16
      %v9963 = vrot.slane %v9961, 4
      %v9964 = vor.u32 %v9963, %v9959
      %v9965 = vrot.slane %v9964, 4
      %v9967 = vshll.u32 %v9586, 16
      %v9969 = vrot.slane %v9967, 5
      %v9970 = vsel %vm1078, %v9965, %v9969
      %s9971 = scalar_lea.vmem %s3, 14
      %v9972 = vld [vmem:[%s9971] sm:$0x3]
      %v9973 = vunpack.c.l.b16 %v9600
      %v9974 = vunpack.c.l.b16 %v9610
      %v9975 = vunpack.c.l.b16 %v9624
      %v9976 = vunpack.c.l.b16 %v9634
      %v9977 = vunpack.c.l.b16 %v9648
      %v9978 = vunpack.c.l.b16 %v9658
      %v9979 = vunpack.c.l.b16 %v9672
      %v9980 = vunpack.c.l.b16 %v9682
      %v9981 = vunpack.c.l.b16 %v9696
      %v9982 = vunpack.c.l.b16 %v9706
      %v9983 = vunpack.c.l.b16 %v9720
      %v9984 = vunpack.c.l.b16 %v9730
      %v9985 = vunpack.c.l.b16 %v9744
      %v9986 = vunpack.c.l.b16 %v9754
      %v9987 = vunpack.c.l.b16 %v9768
      %v9988 = vunpack.c.l.b16 %v9778
      %v9989 = vunpack.c.l.b16 %v9792
      %v9990 = vunpack.c.l.b16 %v9802
      %v9991 = vunpack.c.l.b16 %v9816
      %v9992 = vunpack.c.l.b16 %v9826
      %v9993 = vunpack.c.l.b16 %v9840
      %v9994 = vunpack.c.l.b16 %v9850
      %v9995 = vunpack.c.l.b16 %v9864
      %v9996 = vunpack.c.l.b16 %v9874
      %v9997 = vunpack.c.l.b16 %v9888
      %v9998 = vunpack.c.l.b16 %v9898
      %v9999 = vunpack.c.l.b16 %v9912
      %v10000 = vunpack.c.l.b16 %v9922
      %v10001 = vunpack.c.l.b16 %v9936
      %v10002 = vunpack.c.l.b16 %v9946
      %v10003 = vunpack.c.l.b16 %v9960
      %v10004 = vunpack.c.l.b16 %v9970
      %v10005 = vpack.c.b16 %v9974, %v9973
      %v10006 = vpack.c.b16 %v9976, %v9975
      %v10007 = vpack.c.b16 %v9978, %v9977
      %v10008 = vpack.c.b16 %v9980, %v9979
      %v10009 = vpack.c.b16 %v9982, %v9981
      %v10010 = vpack.c.b16 %v9984, %v9983
      %v10011 = vpack.c.b16 %v9986, %v9985
      %v10012 = vpack.c.b16 %v9988, %v9987
      %v10013 = vpack.c.b16 %v9990, %v9989
      %v10014 = vpack.c.b16 %v9992, %v9991
      %v10015 = vpack.c.b16 %v9994, %v9993
      %v10016 = vpack.c.b16 %v9996, %v9995
      %v10017 = vpack.c.b16 %v9998, %v9997
      %v10018 = vpack.c.b16 %v10000, %v9999
      %v10019 = vpack.c.b16 %v10002, %v10001
      %v10020 = vpack.c.b16 %v10004, %v10003
      %v10022 = vsel %vm1513, %v10005, 0
      %v10025 = vsel %vm1513, %v10006, 0
      %v10028 = vsel %vm1513, %v10007, 0
      %v10031 = vsel %vm1513, %v10008, 0
      %v10034 = vsel %vm1513, %v10009, 0
      %v10037 = vsel %vm1513, %v10010, 0
      %v10040 = vsel %vm1513, %v10011, 0
      %v10043 = vsel %vm1513, %v10012, 0
      %v10046 = vsel %vm1513, %v10013, 0
      %v10049 = vsel %vm1513, %v10014, 0
      %v10052 = vsel %vm1513, %v10015, 0
      %v10055 = vsel %vm1513, %v10016, 0
      %v10058 = vsel %vm1513, %v10017, 0
      %v10061 = vsel %vm1513, %v10018, 0
      %v10064 = vsel %vm1513, %v10019, 0
      %v10067 = vsel %vm1513, %v10020, 0
      %v10070 = vsel %vm1562, %v9972, 0
      %10072 = vmatprep.subr.bf16.mxu0 0
      %10073 = vmatpush1.bf16.msra.mxu0 0
      %10074 = vmatprep.subr.bf16.mxu0 0
      %10075 = vmatpush1.bf16.msra.mxu0 0
      %10076 = vmatprep.subr.bf16.mxu0 0
      %10077 = vmatpush1.bf16.msra.mxu0 0
      %10078 = vmatprep.subr.bf16.mxu0 0
      %10079 = vmatpush1.bf16.msra.mxu0 0
      %10080 = vmatprep.subr.bf16.mxu0 0
      %10081 = vmatpush1.bf16.msra.mxu0 0
      %10082 = vmatprep.subr.bf16.mxu0 0
      %10083 = vmatpush1.bf16.msra.mxu0 0
      %10084 = vmatprep.subr.bf16.mxu0 0
      %10085 = vmatpush1.bf16.msra.mxu0 0
      %10086 = vmatprep.subr.bf16.mxu0 0
      %10087 = vmatpush1.bf16.msra.mxu0 %v10070
      %10088 = vmatprep.subr.bf16.mxu0 0
      %10089 = vmatpush2.bf16.msra.mxu0 0
      %10090 = vmatprep.subr.bf16.mxu0 0
      %10091 = vmatpush2.bf16.msra.mxu0 0
      %10092 = vmatprep.subr.bf16.mxu0 0
      %10093 = vmatpush2.bf16.msra.mxu0 0
      %10094 = vmatprep.subr.bf16.mxu0 0
      %10095 = vmatpush2.bf16.msra.mxu0 0
      %10096 = vmatprep.subr.bf16.mxu0 0
      %10097 = vmatpush2.bf16.msra.mxu0 0
      %10098 = vmatprep.subr.bf16.mxu0 0
      %10099 = vmatpush2.bf16.msra.mxu0 0
      %10100 = vmatprep.subr.bf16.mxu0 0
      %10101 = vmatpush2.bf16.msra.mxu0 0
      %10102 = vmatprep.subr.bf16.mxu0 0
      %10103 = vmatpush2.bf16.msra.mxu0 0
      %10104 = vmatprep.mubr.bf16.mxu0 0
      %10105 = vmatmul.mubr.bf16.gmra.mxu0 %v10022
      %v10106 = vpop.f32.mrf.mxu0
      %v10107 = vadd.f32 0.0, %v10106
      %v10108 = vpop.f32.mrf.mxu0
      %v10109 = vpop.f32.mrf.mxu0
      %v10110 = vadd.f32 0.0, %v10109
      %v10111 = vpop.f32.mrf.mxu0
      %10112 = vmatprep.mubr.bf16.mxu0 0
      %10113 = vmatmul.mubr.bf16.gmra.mxu0 %v10025
      %v10114 = vpop.f32.mrf.mxu0
      %v10115 = vadd.f32 0.0, %v10114
      %v10116 = vpop.f32.mrf.mxu0
      %v10117 = vpop.f32.mrf.mxu0
      %v10118 = vadd.f32 0.0, %v10117
      %v10119 = vpop.f32.mrf.mxu0
      %10120 = vmatprep.mubr.bf16.mxu0 0
      %10121 = vmatmul.mubr.bf16.gmra.mxu0 %v10028
      %v10122 = vpop.f32.mrf.mxu0
      %v10123 = vadd.f32 0.0, %v10122
      %v10124 = vpop.f32.mrf.mxu0
      %v10125 = vpop.f32.mrf.mxu0
      %v10126 = vadd.f32 0.0, %v10125
      %v10127 = vpop.f32.mrf.mxu0
      %10128 = vmatprep.mubr.bf16.mxu0 0
      %10129 = vmatmul.mubr.bf16.gmra.mxu0 %v10031
      %v10130 = vpop.f32.mrf.mxu0
      %v10131 = vadd.f32 0.0, %v10130
      %v10132 = vpop.f32.mrf.mxu0
      %v10133 = vpop.f32.mrf.mxu0
      %v10134 = vadd.f32 0.0, %v10133
      %v10135 = vpop.f32.mrf.mxu0
      %10136 = vmatprep.mubr.bf16.mxu0 0
      %10137 = vmatmul.mubr.bf16.gmra.mxu0 %v10034
      %v10138 = vpop.f32.mrf.mxu0
      %v10139 = vadd.f32 0.0, %v10138
      %v10140 = vpop.f32.mrf.mxu0
      %v10141 = vpop.f32.mrf.mxu0
      %v10142 = vadd.f32 0.0, %v10141
      %v10143 = vpop.f32.mrf.mxu0
      %10144 = vmatprep.mubr.bf16.mxu0 0
      %10145 = vmatmul.mubr.bf16.gmra.mxu0 %v10037
      %v10146 = vpop.f32.mrf.mxu0
      %v10147 = vadd.f32 0.0, %v10146
      %v10148 = vpop.f32.mrf.mxu0
      %v10149 = vpop.f32.mrf.mxu0
      %v10150 = vadd.f32 0.0, %v10149
      %v10151 = vpop.f32.mrf.mxu0
      %10152 = vmatprep.mubr.bf16.mxu0 0
      %10153 = vmatmul.mubr.bf16.gmra.mxu0 %v10040
      %v10154 = vpop.f32.mrf.mxu0
      %v10155 = vadd.f32 0.0, %v10154
      %v10156 = vpop.f32.mrf.mxu0
      %v10157 = vpop.f32.mrf.mxu0
      %v10158 = vadd.f32 0.0, %v10157
      %v10159 = vpop.f32.mrf.mxu0
      %10160 = vmatprep.mubr.bf16.mxu0 0
      %10161 = vmatmul.mubr.bf16.gmra.mxu0 %v10043
      %v10162 = vpop.f32.mrf.mxu0
      %v10163 = vadd.f32 0.0, %v10162
      %v10164 = vpop.f32.mrf.mxu0
      %v10165 = vpop.f32.mrf.mxu0
      %v10166 = vadd.f32 0.0, %v10165
      %v10167 = vpop.f32.mrf.mxu0
      %10168 = vmatprep.mubr.bf16.mxu0 0
      %10169 = vmatmul.mubr.bf16.gmra.mxu0 %v10046
      %v10170 = vpop.f32.mrf.mxu0
      %v10171 = vadd.f32 0.0, %v10170
      %v10172 = vpop.f32.mrf.mxu0
      %v10173 = vpop.f32.mrf.mxu0
      %v10174 = vadd.f32 0.0, %v10173
      %v10175 = vpop.f32.mrf.mxu0
      %10176 = vmatprep.mubr.bf16.mxu0 0
      %10177 = vmatmul.mubr.bf16.gmra.mxu0 %v10049
      %v10178 = vpop.f32.mrf.mxu0
      %v10179 = vadd.f32 0.0, %v10178
      %v10180 = vpop.f32.mrf.mxu0
      %v10181 = vpop.f32.mrf.mxu0
      %v10182 = vadd.f32 0.0, %v10181
      %v10183 = vpop.f32.mrf.mxu0
      %10184 = vmatprep.mubr.bf16.mxu0 0
      %10185 = vmatmul.mubr.bf16.gmra.mxu0 %v10052
      %v10186 = vpop.f32.mrf.mxu0
      %v10187 = vadd.f32 0.0, %v10186
      %v10188 = vpop.f32.mrf.mxu0
      %v10189 = vpop.f32.mrf.mxu0
      %v10190 = vadd.f32 0.0, %v10189
      %v10191 = vpop.f32.mrf.mxu0
      %10192 = vmatprep.mubr.bf16.mxu0 0
      %10193 = vmatmul.mubr.bf16.gmra.mxu0 %v10055
      %v10194 = vpop.f32.mrf.mxu0
      %v10195 = vadd.f32 0.0, %v10194
      %v10196 = vpop.f32.mrf.mxu0
      %v10197 = vpop.f32.mrf.mxu0
      %v10198 = vadd.f32 0.0, %v10197
      %v10199 = vpop.f32.mrf.mxu0
      %10200 = vmatprep.mubr.bf16.mxu0 0
      %10201 = vmatmul.mubr.bf16.gmra.mxu0 %v10058
      %v10202 = vpop.f32.mrf.mxu0
      %v10203 = vadd.f32 0.0, %v10202
      %v10204 = vpop.f32.mrf.mxu0
      %v10205 = vpop.f32.mrf.mxu0
      %v10206 = vadd.f32 0.0, %v10205
      %v10207 = vpop.f32.mrf.mxu0
      %10208 = vmatprep.mubr.bf16.mxu0 0
      %10209 = vmatmul.mubr.bf16.gmra.mxu0 %v10061
      %v10210 = vpop.f32.mrf.mxu0
      %v10211 = vadd.f32 0.0, %v10210
      %v10212 = vpop.f32.mrf.mxu0
      %v10213 = vpop.f32.mrf.mxu0
      %v10214 = vadd.f32 0.0, %v10213
      %v10215 = vpop.f32.mrf.mxu0
      %10216 = vmatprep.mubr.bf16.mxu0 0
      %10217 = vmatmul.mubr.bf16.gmra.mxu0 %v10064
      %v10218 = vpop.f32.mrf.mxu0
      %v10219 = vadd.f32 0.0, %v10218
      %v10220 = vpop.f32.mrf.mxu0
      %v10221 = vpop.f32.mrf.mxu0
      %v10222 = vadd.f32 0.0, %v10221
      %v10223 = vpop.f32.mrf.mxu0
      %10224 = vmatprep.mubr.bf16.mxu0 0
      %10225 = vmatmul.mubr.bf16.gmra.mxu0 %v10067
      %v10226 = vpop.f32.mrf.mxu0
      %v10227 = vadd.f32 0.0, %v10226
      %v10228 = vpop.f32.mrf.mxu0
      %v10229 = vpop.f32.mrf.mxu0
      %v10230 = vadd.f32 0.0, %v10229
      %v10231 = vpop.f32.mrf.mxu0
      %10232 = vdwg.mxu0
      %v10233 = vadd.f32 %v9507, %v10107
      %v10234 = vadd.f32 %v9508, %v10110
      %v10235 = vadd.f32 %v9509, %v10115
      %v10236 = vadd.f32 %v9510, %v10118
      %v10237 = vadd.f32 %v9511, %v10123
      %v10238 = vadd.f32 %v9512, %v10126
      %v10239 = vadd.f32 %v9513, %v10131
      %v10240 = vadd.f32 %v9514, %v10134
      %v10241 = vadd.f32 %v9515, %v10139
      %v10242 = vadd.f32 %v9516, %v10142
      %v10243 = vadd.f32 %v9517, %v10147
      %v10244 = vadd.f32 %v9518, %v10150
      %v10245 = vadd.f32 %v9519, %v10155
      %v10246 = vadd.f32 %v9520, %v10158
      %v10247 = vadd.f32 %v9521, %v10163
      %v10248 = vadd.f32 %v9522, %v10166
      %v10249 = vadd.f32 %v9523, %v10171
      %v10250 = vadd.f32 %v9524, %v10174
      %v10251 = vadd.f32 %v9525, %v10179
      %v10252 = vadd.f32 %v9526, %v10182
      %v10253 = vadd.f32 %v9527, %v10187
      %v10254 = vadd.f32 %v9528, %v10190
      %v10255 = vadd.f32 %v9529, %v10195
      %v10256 = vadd.f32 %v9530, %v10198
      %v10257 = vadd.f32 %v9531, %v10203
      %v10258 = vadd.f32 %v9532, %v10206
      %v10259 = vadd.f32 %v9533, %v10211
      %v10260 = vadd.f32 %v9534, %v10214
      %v10261 = vadd.f32 %v9535, %v10219
      %v10262 = vadd.f32 %v9536, %v10222
      %v10263 = vadd.f32 %v9537, %v10227
      %v10264 = vadd.f32 %v9538, %v10230
      %v10265 = vld [vmem:[%s9180] sm:$0xe]
      %v10266 = vld [vmem:[%s9180 + $0xc] sm:$0xe]
      %v10267 = vld [vmem:[%s9180 + $0x18] sm:$0xe]
      %v10268 = vld [vmem:[%s9180 + $0x24] sm:$0xe]
      %v10269 = vld [vmem:[%s9180 + $0x30] sm:$0xe]
      %v10270 = vld [vmem:[%s9180 + $0x3c] sm:$0xe]
      %v10271 = vld [vmem:[%s9180 + $0x48] sm:$0xe]
      %v10272 = vld [vmem:[%s9180 + $0x54] sm:$0xe]
      %v10273 = vld [vmem:[%s9180 + $0x60] sm:$0xe]
      %v10274 = vld [vmem:[%s9180 + $0x6c] sm:$0xe]
      %v10275 = vld [vmem:[%s9180 + $0x78] sm:$0xe]
      %v10276 = vld [vmem:[%s9180 + $0x84] sm:$0xe]
      %v10277 = vld [vmem:[%s9180 + $0x90] sm:$0xe]
      %v10278 = vld [vmem:[%s9180 + $0x9c] sm:$0xe]
      %v10279 = vld [vmem:[%s9180 + $0xa8] sm:$0xe]
      %v10280 = vld [vmem:[%s9180 + $0xb4] sm:$0xe]
      %v10329 = vrot.slane %v10265, 5
      %v10330 = vrot.slane %v10329, 4
      %v10331 = vrot.slane %v9540, 5
      %v10332 = vsel %vm2069, %v10330, %v10331
      %v10333 = vrot.slane %v10331, 4
      %v10334 = vrot.slane %v9541, 5
      %v10335 = vsel %vm2069, %v10333, %v10334
      %v10336 = vrot.slane %v10266, 5
      %v10337 = vrot.slane %v10336, 4
      %v10338 = vrot.slane %v9543, 5
      %v10339 = vsel %vm2069, %v10337, %v10338
      %v10340 = vrot.slane %v10338, 4
      %v10341 = vrot.slane %v9544, 5
      %v10342 = vsel %vm2069, %v10340, %v10341
      %v10343 = vrot.slane %v10267, 5
      %v10344 = vrot.slane %v10343, 4
      %v10345 = vrot.slane %v9546, 5
      %v10346 = vsel %vm2069, %v10344, %v10345
      %v10347 = vrot.slane %v10345, 4
      %v10348 = vrot.slane %v9547, 5
      %v10349 = vsel %vm2069, %v10347, %v10348
      %v10350 = vrot.slane %v10268, 5
      %v10351 = vrot.slane %v10350, 4
      %v10352 = vrot.slane %v9549, 5
      %v10353 = vsel %vm2069, %v10351, %v10352
      %v10354 = vrot.slane %v10352, 4
      %v10355 = vrot.slane %v9550, 5
      %v10356 = vsel %vm2069, %v10354, %v10355
      %v10357 = vrot.slane %v10269, 5
      %v10358 = vrot.slane %v10357, 4
      %v10359 = vrot.slane %v9552, 5
      %v10360 = vsel %vm2069, %v10358, %v10359
      %v10361 = vrot.slane %v10359, 4
      %v10362 = vrot.slane %v9553, 5
      %v10363 = vsel %vm2069, %v10361, %v10362
      %v10364 = vrot.slane %v10270, 5
      %v10365 = vrot.slane %v10364, 4
      %v10366 = vrot.slane %v9555, 5
      %v10367 = vsel %vm2069, %v10365, %v10366
      %v10368 = vrot.slane %v10366, 4
      %v10369 = vrot.slane %v9556, 5
      %v10370 = vsel %vm2069, %v10368, %v10369
      %v10371 = vrot.slane %v10271, 5
      %v10372 = vrot.slane %v10371, 4
      %v10373 = vrot.slane %v9558, 5
      %v10374 = vsel %vm2069, %v10372, %v10373
      %v10375 = vrot.slane %v10373, 4
      %v10376 = vrot.slane %v9559, 5
      %v10377 = vsel %vm2069, %v10375, %v10376
      %v10378 = vrot.slane %v10272, 5
      %v10379 = vrot.slane %v10378, 4
      %v10380 = vrot.slane %v9561, 5
      %v10381 = vsel %vm2069, %v10379, %v10380
      %v10382 = vrot.slane %v10380, 4
      %v10383 = vrot.slane %v9562, 5
      %v10384 = vsel %vm2069, %v10382, %v10383
      %v10385 = vrot.slane %v10273, 5
      %v10386 = vrot.slane %v10385, 4
      %v10387 = vrot.slane %v9564, 5
      %v10388 = vsel %vm2069, %v10386, %v10387
      %v10389 = vrot.slane %v10387, 4
      %v10390 = vrot.slane %v9565, 5
      %v10391 = vsel %vm2069, %v10389, %v10390
      %v10392 = vrot.slane %v10274, 5
      %v10393 = vrot.slane %v10392, 4
      %v10394 = vrot.slane %v9567, 5
      %v10395 = vsel %vm2069, %v10393, %v10394
      %v10396 = vrot.slane %v10394, 4
      %v10397 = vrot.slane %v9568, 5
      %v10398 = vsel %vm2069, %v10396, %v10397
      %v10399 = vrot.slane %v10275, 5
      %v10400 = vrot.slane %v10399, 4
      %v10401 = vrot.slane %v9570, 5
      %v10402 = vsel %vm2069, %v10400, %v10401
      %v10403 = vrot.slane %v10401, 4
      %v10404 = vrot.slane %v9571, 5
      %v10405 = vsel %vm2069, %v10403, %v10404
      %v10406 = vrot.slane %v10276, 5
      %v10407 = vrot.slane %v10406, 4
      %v10408 = vrot.slane %v9573, 5
      %v10409 = vsel %vm2069, %v10407, %v10408
      %v10410 = vrot.slane %v10408, 4
      %v10411 = vrot.slane %v9574, 5
      %v10412 = vsel %vm2069, %v10410, %v10411
      %v10413 = vrot.slane %v10277, 5
      %v10414 = vrot.slane %v10413, 4
      %v10415 = vrot.slane %v9576, 5
      %v10416 = vsel %vm2069, %v10414, %v10415
      %v10417 = vrot.slane %v10415, 4
      %v10418 = vrot.slane %v9577, 5
      %v10419 = vsel %vm2069, %v10417, %v10418
      %v10420 = vrot.slane %v10278, 5
      %v10421 = vrot.slane %v10420, 4
      %v10422 = vrot.slane %v9579, 5
      %v10423 = vsel %vm2069, %v10421, %v10422
      %v10424 = vrot.slane %v10422, 4
      %v10425 = vrot.slane %v9580, 5
      %v10426 = vsel %vm2069, %v10424, %v10425
      %v10427 = vrot.slane %v10279, 5
      %v10428 = vrot.slane %v10427, 4
      %v10429 = vrot.slane %v9582, 5
      %v10430 = vsel %vm2069, %v10428, %v10429
      %v10431 = vrot.slane %v10429, 4
      %v10432 = vrot.slane %v9583, 5
      %v10433 = vsel %vm2069, %v10431, %v10432
      %v10434 = vrot.slane %v10280, 5
      %v10435 = vrot.slane %v10434, 4
      %v10436 = vrot.slane %v9585, 5
      %v10437 = vsel %vm2069, %v10435, %v10436
      %v10438 = vrot.slane %v10436, 4
      %v10439 = vrot.slane %v9586, 5
      %v10440 = vsel %vm2069, %v10438, %v10439
      %s10441 = scalar_lea.vmem %s3, 16
      %v10442 = vld [vmem:[%s10441] sm:$0x3]
      %v10443 = vunpack.c.l.b16 %v10332
      %v10444 = vunpack.c.l.b16 %v10335
      %v10445 = vunpack.c.l.b16 %v10339
      %v10446 = vunpack.c.l.b16 %v10342
      %v10447 = vunpack.c.l.b16 %v10346
      %v10448 = vunpack.c.l.b16 %v10349
      %v10449 = vunpack.c.l.b16 %v10353
      %v10450 = vunpack.c.l.b16 %v10356
      %v10451 = vunpack.c.l.b16 %v10360
      %v10452 = vunpack.c.l.b16 %v10363
      %v10453 = vunpack.c.l.b16 %v10367
      %v10454 = vunpack.c.l.b16 %v10370
      %v10455 = vunpack.c.l.b16 %v10374
      %v10456 = vunpack.c.l.b16 %v10377
      %v10457 = vunpack.c.l.b16 %v10381
      %v10458 = vunpack.c.l.b16 %v10384
      %v10459 = vunpack.c.l.b16 %v10388
      %v10460 = vunpack.c.l.b16 %v10391
      %v10461 = vunpack.c.l.b16 %v10395
      %v10462 = vunpack.c.l.b16 %v10398
      %v10463 = vunpack.c.l.b16 %v10402
      %v10464 = vunpack.c.l.b16 %v10405
      %v10465 = vunpack.c.l.b16 %v10409
      %v10466 = vunpack.c.l.b16 %v10412
      %v10467 = vunpack.c.l.b16 %v10416
      %v10468 = vunpack.c.l.b16 %v10419
      %v10469 = vunpack.c.l.b16 %v10423
      %v10470 = vunpack.c.l.b16 %v10426
      %v10471 = vunpack.c.l.b16 %v10430
      %v10472 = vunpack.c.l.b16 %v10433
      %v10473 = vunpack.c.l.b16 %v10437
      %v10474 = vunpack.c.l.b16 %v10440
      %v10475 = vpack.c.b16 %v10444, %v10443
      %v10476 = vpack.c.b16 %v10446, %v10445
      %v10477 = vpack.c.b16 %v10448, %v10447
      %v10478 = vpack.c.b16 %v10450, %v10449
      %v10479 = vpack.c.b16 %v10452, %v10451
      %v10480 = vpack.c.b16 %v10454, %v10453
      %v10481 = vpack.c.b16 %v10456, %v10455
      %v10482 = vpack.c.b16 %v10458, %v10457
      %v10483 = vpack.c.b16 %v10460, %v10459
      %v10484 = vpack.c.b16 %v10462, %v10461
      %v10485 = vpack.c.b16 %v10464, %v10463
      %v10486 = vpack.c.b16 %v10466, %v10465
      %v10487 = vpack.c.b16 %v10468, %v10467
      %v10488 = vpack.c.b16 %v10470, %v10469
      %v10489 = vpack.c.b16 %v10472, %v10471
      %v10490 = vpack.c.b16 %v10474, %v10473
      %v10492 = vsel %vm1513, %v10475, 0
      %v10495 = vsel %vm1513, %v10476, 0
      %v10498 = vsel %vm1513, %v10477, 0
      %v10501 = vsel %vm1513, %v10478, 0
      %v10504 = vsel %vm1513, %v10479, 0
      %v10507 = vsel %vm1513, %v10480, 0
      %v10510 = vsel %vm1513, %v10481, 0
      %v10513 = vsel %vm1513, %v10482, 0
      %v10516 = vsel %vm1513, %v10483, 0
      %v10519 = vsel %vm1513, %v10484, 0
      %v10522 = vsel %vm1513, %v10485, 0
      %v10525 = vsel %vm1513, %v10486, 0
      %v10528 = vsel %vm1513, %v10487, 0
      %v10531 = vsel %vm1513, %v10488, 0
      %v10534 = vsel %vm1513, %v10489, 0
      %v10537 = vsel %vm1513, %v10490, 0
      %v10540 = vsel %vm1562, %v10442, 0
      %10542 = vmatprep.subr.bf16.mxu0 0
      %10543 = vmatpush1.bf16.msra.mxu0 0
      %10544 = vmatprep.subr.bf16.mxu0 0
      %10545 = vmatpush1.bf16.msra.mxu0 0
      %10546 = vmatprep.subr.bf16.mxu0 0
      %10547 = vmatpush1.bf16.msra.mxu0 0
      %10548 = vmatprep.subr.bf16.mxu0 0
      %10549 = vmatpush1.bf16.msra.mxu0 0
      %10550 = vmatprep.subr.bf16.mxu0 0
      %10551 = vmatpush1.bf16.msra.mxu0 0
      %10552 = vmatprep.subr.bf16.mxu0 0
      %10553 = vmatpush1.bf16.msra.mxu0 0
      %10554 = vmatprep.subr.bf16.mxu0 0
      %10555 = vmatpush1.bf16.msra.mxu0 0
      %10556 = vmatprep.subr.bf16.mxu0 0
      %10557 = vmatpush1.bf16.msra.mxu0 %v10540
      %10558 = vmatprep.subr.bf16.mxu0 0
      %10559 = vmatpush2.bf16.msra.mxu0 0
      %10560 = vmatprep.subr.bf16.mxu0 0
      %10561 = vmatpush2.bf16.msra.mxu0 0
      %10562 = vmatprep.subr.bf16.mxu0 0
      %10563 = vmatpush2.bf16.msra.mxu0 0
      %10564 = vmatprep.subr.bf16.mxu0 0
      %10565 = vmatpush2.bf16.msra.mxu0 0
      %10566 = vmatprep.subr.bf16.mxu0 0
      %10567 = vmatpush2.bf16.msra.mxu0 0
      %10568 = vmatprep.subr.bf16.mxu0 0
      %10569 = vmatpush2.bf16.msra.mxu0 0
      %10570 = vmatprep.subr.bf16.mxu0 0
      %10571 = vmatpush2.bf16.msra.mxu0 0
      %10572 = vmatprep.subr.bf16.mxu0 0
      %10573 = vmatpush2.bf16.msra.mxu0 0
      %10574 = vmatprep.mubr.bf16.mxu0 0
      %10575 = vmatmul.mubr.bf16.gmra.mxu0 %v10492
      %v10576 = vpop.f32.mrf.mxu0
      %v10577 = vadd.f32 0.0, %v10576
      %v10578 = vpop.f32.mrf.mxu0
      %v10579 = vpop.f32.mrf.mxu0
      %v10580 = vadd.f32 0.0, %v10579
      %v10581 = vpop.f32.mrf.mxu0
      %10582 = vmatprep.mubr.bf16.mxu0 0
      %10583 = vmatmul.mubr.bf16.gmra.mxu0 %v10495
      %v10584 = vpop.f32.mrf.mxu0
      %v10585 = vadd.f32 0.0, %v10584
      %v10586 = vpop.f32.mrf.mxu0
      %v10587 = vpop.f32.mrf.mxu0
      %v10588 = vadd.f32 0.0, %v10587
      %v10589 = vpop.f32.mrf.mxu0
      %10590 = vmatprep.mubr.bf16.mxu0 0
      %10591 = vmatmul.mubr.bf16.gmra.mxu0 %v10498
      %v10592 = vpop.f32.mrf.mxu0
      %v10593 = vadd.f32 0.0, %v10592
      %v10594 = vpop.f32.mrf.mxu0
      %v10595 = vpop.f32.mrf.mxu0
      %v10596 = vadd.f32 0.0, %v10595
      %v10597 = vpop.f32.mrf.mxu0
      %10598 = vmatprep.mubr.bf16.mxu0 0
      %10599 = vmatmul.mubr.bf16.gmra.mxu0 %v10501
      %v10600 = vpop.f32.mrf.mxu0
      %v10601 = vadd.f32 0.0, %v10600
      %v10602 = vpop.f32.mrf.mxu0
      %v10603 = vpop.f32.mrf.mxu0
      %v10604 = vadd.f32 0.0, %v10603
      %v10605 = vpop.f32.mrf.mxu0
      %10606 = vmatprep.mubr.bf16.mxu0 0
      %10607 = vmatmul.mubr.bf16.gmra.mxu0 %v10504
      %v10608 = vpop.f32.mrf.mxu0
      %v10609 = vadd.f32 0.0, %v10608
      %v10610 = vpop.f32.mrf.mxu0
      %v10611 = vpop.f32.mrf.mxu0
      %v10612 = vadd.f32 0.0, %v10611
      %v10613 = vpop.f32.mrf.mxu0
      %10614 = vmatprep.mubr.bf16.mxu0 0
      %10615 = vmatmul.mubr.bf16.gmra.mxu0 %v10507
      %v10616 = vpop.f32.mrf.mxu0
      %v10617 = vadd.f32 0.0, %v10616
      %v10618 = vpop.f32.mrf.mxu0
      %v10619 = vpop.f32.mrf.mxu0
      %v10620 = vadd.f32 0.0, %v10619
      %v10621 = vpop.f32.mrf.mxu0
      %10622 = vmatprep.mubr.bf16.mxu0 0
      %10623 = vmatmul.mubr.bf16.gmra.mxu0 %v10510
      %v10624 = vpop.f32.mrf.mxu0
      %v10625 = vadd.f32 0.0, %v10624
      %v10626 = vpop.f32.mrf.mxu0
      %v10627 = vpop.f32.mrf.mxu0
      %v10628 = vadd.f32 0.0, %v10627
      %v10629 = vpop.f32.mrf.mxu0
      %10630 = vmatprep.mubr.bf16.mxu0 0
      %10631 = vmatmul.mubr.bf16.gmra.mxu0 %v10513
      %v10632 = vpop.f32.mrf.mxu0
      %v10633 = vadd.f32 0.0, %v10632
      %v10634 = vpop.f32.mrf.mxu0
      %v10635 = vpop.f32.mrf.mxu0
      %v10636 = vadd.f32 0.0, %v10635
      %v10637 = vpop.f32.mrf.mxu0
      %10638 = vmatprep.mubr.bf16.mxu0 0
      %10639 = vmatmul.mubr.bf16.gmra.mxu0 %v10516
      %v10640 = vpop.f32.mrf.mxu0
      %v10641 = vadd.f32 0.0, %v10640
      %v10642 = vpop.f32.mrf.mxu0
      %v10643 = vpop.f32.mrf.mxu0
      %v10644 = vadd.f32 0.0, %v10643
      %v10645 = vpop.f32.mrf.mxu0
      %10646 = vmatprep.mubr.bf16.mxu0 0
      %10647 = vmatmul.mubr.bf16.gmra.mxu0 %v10519
      %v10648 = vpop.f32.mrf.mxu0
      %v10649 = vadd.f32 0.0, %v10648
      %v10650 = vpop.f32.mrf.mxu0
      %v10651 = vpop.f32.mrf.mxu0
      %v10652 = vadd.f32 0.0, %v10651
      %v10653 = vpop.f32.mrf.mxu0
      %10654 = vmatprep.mubr.bf16.mxu0 0
      %10655 = vmatmul.mubr.bf16.gmra.mxu0 %v10522
      %v10656 = vpop.f32.mrf.mxu0
      %v10657 = vadd.f32 0.0, %v10656
      %v10658 = vpop.f32.mrf.mxu0
      %v10659 = vpop.f32.mrf.mxu0
      %v10660 = vadd.f32 0.0, %v10659
      %v10661 = vpop.f32.mrf.mxu0
      %10662 = vmatprep.mubr.bf16.mxu0 0
      %10663 = vmatmul.mubr.bf16.gmra.mxu0 %v10525
      %v10664 = vpop.f32.mrf.mxu0
      %v10665 = vadd.f32 0.0, %v10664
      %v10666 = vpop.f32.mrf.mxu0
      %v10667 = vpop.f32.mrf.mxu0
      %v10668 = vadd.f32 0.0, %v10667
      %v10669 = vpop.f32.mrf.mxu0
      %10670 = vmatprep.mubr.bf16.mxu0 0
      %10671 = vmatmul.mubr.bf16.gmra.mxu0 %v10528
      %v10672 = vpop.f32.mrf.mxu0
      %v10673 = vadd.f32 0.0, %v10672
      %v10674 = vpop.f32.mrf.mxu0
      %v10675 = vpop.f32.mrf.mxu0
      %v10676 = vadd.f32 0.0, %v10675
      %v10677 = vpop.f32.mrf.mxu0
      %10678 = vmatprep.mubr.bf16.mxu0 0
      %10679 = vmatmul.mubr.bf16.gmra.mxu0 %v10531
      %v10680 = vpop.f32.mrf.mxu0
      %v10681 = vadd.f32 0.0, %v10680
      %v10682 = vpop.f32.mrf.mxu0
      %v10683 = vpop.f32.mrf.mxu0
      %v10684 = vadd.f32 0.0, %v10683
      %v10685 = vpop.f32.mrf.mxu0
      %10686 = vmatprep.mubr.bf16.mxu0 0
      %10687 = vmatmul.mubr.bf16.gmra.mxu0 %v10534
      %v10688 = vpop.f32.mrf.mxu0
      %v10689 = vadd.f32 0.0, %v10688
      %v10690 = vpop.f32.mrf.mxu0
      %v10691 = vpop.f32.mrf.mxu0
      %v10692 = vadd.f32 0.0, %v10691
      %v10693 = vpop.f32.mrf.mxu0
      %10694 = vmatprep.mubr.bf16.mxu0 0
      %10695 = vmatmul.mubr.bf16.gmra.mxu0 %v10537
      %v10696 = vpop.f32.mrf.mxu0
      %v10697 = vadd.f32 0.0, %v10696
      %v10698 = vpop.f32.mrf.mxu0
      %v10699 = vpop.f32.mrf.mxu0
      %v10700 = vadd.f32 0.0, %v10699
      %v10701 = vpop.f32.mrf.mxu0
      %10702 = vdwg.mxu0
      %v10703 = vadd.f32 %v10233, %v10577
      %v10704 = vadd.f32 %v10234, %v10580
      %v10705 = vadd.f32 %v10235, %v10585
      %v10706 = vadd.f32 %v10236, %v10588
      %v10707 = vadd.f32 %v10237, %v10593
      %v10708 = vadd.f32 %v10238, %v10596
      %v10709 = vadd.f32 %v10239, %v10601
      %v10710 = vadd.f32 %v10240, %v10604
      %v10711 = vadd.f32 %v10241, %v10609
      %v10712 = vadd.f32 %v10242, %v10612
      %v10713 = vadd.f32 %v10243, %v10617
      %v10714 = vadd.f32 %v10244, %v10620
      %v10715 = vadd.f32 %v10245, %v10625
      %v10716 = vadd.f32 %v10246, %v10628
      %v10717 = vadd.f32 %v10247, %v10633
      %v10718 = vadd.f32 %v10248, %v10636
      %v10719 = vadd.f32 %v10249, %v10641
      %v10720 = vadd.f32 %v10250, %v10644
      %v10721 = vadd.f32 %v10251, %v10649
      %v10722 = vadd.f32 %v10252, %v10652
      %v10723 = vadd.f32 %v10253, %v10657
      %v10724 = vadd.f32 %v10254, %v10660
      %v10725 = vadd.f32 %v10255, %v10665
      %v10726 = vadd.f32 %v10256, %v10668
      %v10727 = vadd.f32 %v10257, %v10673
      %v10728 = vadd.f32 %v10258, %v10676
      %v10729 = vadd.f32 %v10259, %v10681
      %v10730 = vadd.f32 %v10260, %v10684
      %v10731 = vadd.f32 %v10261, %v10689
      %v10732 = vadd.f32 %v10262, %v10692
      %v10733 = vadd.f32 %v10263, %v10697
      %v10734 = vadd.f32 %v10264, %v10700
      %v10735 = vld [vmem:[%s4] sm:$0x1]
      %v10737 = vlaneseq
      %v10738 = vshrl.u32 %v10737, 7
      %v10739 = vsub.s32 0, %v10738
      %v10740 = vrot.slane %v10735, %v10739
      %v10742 = vadd.f32 %v10703, %v10740
      %v10743 = vadd.f32 %v10704, %v10740
      %v10744 = vadd.f32 %v10705, %v10740
      %v10745 = vadd.f32 %v10706, %v10740
      %v10746 = vadd.f32 %v10707, %v10740
      %v10747 = vadd.f32 %v10708, %v10740
      %v10748 = vadd.f32 %v10709, %v10740
      %v10749 = vadd.f32 %v10710, %v10740
      %v10750 = vadd.f32 %v10711, %v10740
      %v10751 = vadd.f32 %v10712, %v10740
      %v10752 = vadd.f32 %v10713, %v10740
      %v10753 = vadd.f32 %v10714, %v10740
      %v10754 = vadd.f32 %v10715, %v10740
      %v10755 = vadd.f32 %v10716, %v10740
      %v10756 = vadd.f32 %v10717, %v10740
      %v10757 = vadd.f32 %v10718, %v10740
      %v10758 = vadd.f32 %v10719, %v10740
      %v10759 = vadd.f32 %v10720, %v10740
      %v10760 = vadd.f32 %v10721, %v10740
      %v10761 = vadd.f32 %v10722, %v10740
      %v10762 = vadd.f32 %v10723, %v10740
      %v10763 = vadd.f32 %v10724, %v10740
      %v10764 = vadd.f32 %v10725, %v10740
      %v10765 = vadd.f32 %v10726, %v10740
      %v10766 = vadd.f32 %v10727, %v10740
      %v10767 = vadd.f32 %v10728, %v10740
      %v10768 = vadd.f32 %v10729, %v10740
      %v10769 = vadd.f32 %v10730, %v10740
      %v10770 = vadd.f32 %v10731, %v10740
      %v10771 = vadd.f32 %v10732, %v10740
      %v10772 = vadd.f32 %v10733, %v10740
      %v10773 = vadd.f32 %v10734, %v10740
      %v10774 = vadd.f32 %v10742, %v462
      %v10775 = vadd.f32 %v10743, %v463
      %v10776 = vadd.f32 %v10744, %v464
      %v10777 = vadd.f32 %v10745, %v465
      %v10778 = vadd.f32 %v10746, %v466
      %v10779 = vadd.f32 %v10747, %v467
      %v10780 = vadd.f32 %v10748, %v468
      %v10781 = vadd.f32 %v10749, %v469
      %v10782 = vadd.f32 %v10750, %v470
      %v10783 = vadd.f32 %v10751, %v471
      %v10784 = vadd.f32 %v10752, %v472
      %v10785 = vadd.f32 %v10753, %v473
      %v10786 = vadd.f32 %v10754, %v474
      %v10787 = vadd.f32 %v10755, %v475
      %v10788 = vadd.f32 %v10756, %v476
      %v10789 = vadd.f32 %v10757, %v477
      %v10790 = vadd.f32 %v10758, %v478
      %v10791 = vadd.f32 %v10759, %v479
      %v10792 = vadd.f32 %v10760, %v480
      %v10793 = vadd.f32 %v10761, %v481
      %v10794 = vadd.f32 %v10762, %v482
      %v10795 = vadd.f32 %v10763, %v483
      %v10796 = vadd.f32 %v10764, %v484
      %v10797 = vadd.f32 %v10765, %v485
      %v10798 = vadd.f32 %v10766, %v486
      %v10799 = vadd.f32 %v10767, %v487
      %v10800 = vadd.f32 %v10768, %v488
      %v10801 = vadd.f32 %v10769, %v489
      %v10802 = vadd.f32 %v10770, %v490
      %v10803 = vadd.f32 %v10771, %v491
      %v10804 = vadd.f32 %v10772, %v492
      %v10805 = vadd.f32 %v10773, %v493
      %v10806 = vmax.f32 %v10774, 0.0
      %v10807 = vmax.f32 %v10775, 0.0
      %v10808 = vmax.f32 %v10776, 0.0
      %v10809 = vmax.f32 %v10777, 0.0
      %v10810 = vmax.f32 %v10778, 0.0
      %v10811 = vmax.f32 %v10779, 0.0
      %v10812 = vmax.f32 %v10780, 0.0
      %v10813 = vmax.f32 %v10781, 0.0
      %v10814 = vmax.f32 %v10782, 0.0
      %v10815 = vmax.f32 %v10783, 0.0
      %v10816 = vmax.f32 %v10784, 0.0
      %v10817 = vmax.f32 %v10785, 0.0
      %v10818 = vmax.f32 %v10786, 0.0
      %v10819 = vmax.f32 %v10787, 0.0
      %v10820 = vmax.f32 %v10788, 0.0
      %v10821 = vmax.f32 %v10789, 0.0
      %v10822 = vmax.f32 %v10790, 0.0
      %v10823 = vmax.f32 %v10791, 0.0
      %v10824 = vmax.f32 %v10792, 0.0
      %v10825 = vmax.f32 %v10793, 0.0
      %v10826 = vmax.f32 %v10794, 0.0
      %v10827 = vmax.f32 %v10795, 0.0
      %v10828 = vmax.f32 %v10796, 0.0
      %v10829 = vmax.f32 %v10797, 0.0
      %v10830 = vmax.f32 %v10798, 0.0
      %v10831 = vmax.f32 %v10799, 0.0
      %v10832 = vmax.f32 %v10800, 0.0
      %v10833 = vmax.f32 %v10801, 0.0
      %v10834 = vmax.f32 %v10802, 0.0
      %v10835 = vmax.f32 %v10803, 0.0
      %v10836 = vmax.f32 %v10804, 0.0
      %v10837 = vmax.f32 %v10805, 0.0
      %10838 = vst.msk [vmem:[%s224] sm:$0xff] %vm1513, %v10806
      %10839 = vst.msk [vmem:[%s224 + $0x8] sm:$0xff] %vm1513, %v10807
      %10840 = vst.msk [vmem:[%s224 + $0x10] sm:$0xff] %vm1513, %v10808
      %10841 = vst.msk [vmem:[%s224 + $0x18] sm:$0xff] %vm1513, %v10809
      %10842 = vst.msk [vmem:[%s224 + $0x20] sm:$0xff] %vm1513, %v10810
      %10843 = vst.msk [vmem:[%s224 + $0x28] sm:$0xff] %vm1513, %v10811
      %10844 = vst.msk [vmem:[%s224 + $0x30] sm:$0xff] %vm1513, %v10812
      %10845 = vst.msk [vmem:[%s224 + $0x38] sm:$0xff] %vm1513, %v10813
      %10846 = vst.msk [vmem:[%s224 + $0x40] sm:$0xff] %vm1513, %v10814
      %10847 = vst.msk [vmem:[%s224 + $0x48] sm:$0xff] %vm1513, %v10815
      %10848 = vst.msk [vmem:[%s224 + $0x50] sm:$0xff] %vm1513, %v10816
      %10849 = vst.msk [vmem:[%s224 + $0x58] sm:$0xff] %vm1513, %v10817
      %10850 = vst.msk [vmem:[%s224 + $0x60] sm:$0xff] %vm1513, %v10818
      %10851 = vst.msk [vmem:[%s224 + $0x68] sm:$0xff] %vm1513, %v10819
      %10852 = vst.msk [vmem:[%s224 + $0x70] sm:$0xff] %vm1513, %v10820
      %10853 = vst.msk [vmem:[%s224 + $0x78] sm:$0xff] %vm1513, %v10821
      %10854 = vst.msk [vmem:[%s224 + $0x80] sm:$0xff] %vm1513, %v10822
      %10855 = vst.msk [vmem:[%s224 + $0x88] sm:$0xff] %vm1513, %v10823
      %10856 = vst.msk [vmem:[%s224 + $0x90] sm:$0xff] %vm1513, %v10824
      %10857 = vst.msk [vmem:[%s224 + $0x98] sm:$0xff] %vm1513, %v10825
      %10858 = vst.msk [vmem:[%s224 + $0xa0] sm:$0xff] %vm1513, %v10826
      %10859 = vst.msk [vmem:[%s224 + $0xa8] sm:$0xff] %vm1513, %v10827
      %10860 = vst.msk [vmem:[%s224 + $0xb0] sm:$0xff] %vm1513, %v10828
      %10861 = vst.msk [vmem:[%s224 + $0xb8] sm:$0xff] %vm1513, %v10829
      %10862 = vst.msk [vmem:[%s224 + $0xc0] sm:$0xff] %vm1513, %v10830
      %10863 = vst.msk [vmem:[%s224 + $0xc8] sm:$0xff] %vm1513, %v10831
      %10864 = vst.msk [vmem:[%s224 + $0xd0] sm:$0xff] %vm1513, %v10832
      %10865 = vst.msk [vmem:[%s224 + $0xd8] sm:$0xff] %vm1513, %v10833
      %10866 = vst.msk [vmem:[%s224 + $0xe0] sm:$0xff] %vm1513, %v10834
      %10867 = vst.msk [vmem:[%s224 + $0xe8] sm:$0xff] %vm1513, %v10835
      %10868 = vst.msk [vmem:[%s224 + $0xf0] sm:$0xff] %vm1513, %v10836
      %10869 = vst.msk [vmem:[%s224 + $0xf8] sm:$0xff] %vm1513, %v10837
      %p10870 = scmp.lt.s32.totalorder %s16, 1
      %s10871 = scalar_select %p10870, %s16, 1
      %s10872 = smul.addr %s10871, 32
      %s10873 = smul.addr %s10872, 8
      %s10874 = scalar_lea.vmem %s5, %s10873
      // Predicated region
      $region41: #{basic_block.1} parent=39 // pred_check
        %p10875 = pneg %p144
      $region42: #{basic_block.1} parent=39 // pred_check_branch
        %10877 = sbr.rel (%p10875) target = $region44
      $region43: #{basic_block.1} parent=39 // pred_region
        _
      $region44: #{basic_block.1} parent=39 // pred_fallthru
        _
    $region40: #{basic_block.1} parent=5 // pred_fallthru
      _
    %p10878 = scmp.le.s32.totalorder 2, %s11
    // Predicated region
    $region45: #{basic_block.1} parent=5 // pred_check
      %p10879 = pneg %p10878
    $region46: #{basic_block.1} parent=5 // pred_check_branch
      %10881 = sbr.rel (%p10879) target = $region48
    $region47: #{basic_block.1} parent=5 // pred_region
      %s10882 = ssub.s32 %s11, 2
      // Predicated region
      $region49: #{basic_block.1} parent=47 // pred_check
        %p10883 = pneg %p150
      $region50: #{basic_block.1} parent=47 // pred_check_branch
        %10885 = sbr.rel (%p10883) target = $region52
      $region51: #{basic_block.1} parent=47 // pred_region
        %p10886 = scmp.lt.s32.totalorder %s17, 1
        %s10887 = scalar_select %p10886, %s17, 1
        %s10888 = smul.addr %s10887, 32
        %s10889 = smul.addr %s10888, 8
        %s10890 = scalar_lea.vmem %s5, %s10889
      $region52: #{basic_block.1} parent=47 // pred_fallthru
        _
    $region48: #{basic_block.1} parent=5 // pred_fallthru
      _
  $region6: #{basic_block.1} parent=0 // loop_footer
    %s15 = sadd.s32 1, %s11
  $region7: #{basic_block.1} parent=0 // loop_footer_branch
    %10 = sbr.rel target = $region3
  $region8: #{basic_block.1} parent=0 // loop_exit
    _

</llo_original>
